<compile_context>
chip_gen: v7x
topology: tpu7x:2x2x1
jax: 0.10.0
libtpu: 0.0.40
codegen_flags: <defaults>
</compile_context>

<pallas_src>
import math

import jax
import jax.numpy as jnp
from jax.experimental import pallas as pl
from jax.experimental.pallas import tpu as pltpu

_CP = 128  # channel padding = TPU lane width


# ----------------------------------------------------------------------------
# Fused per-image VGG kernel (spatial sizes / layer count baked in as Python ints).
# ----------------------------------------------------------------------------
def _make_vgg_kernel(img_hw, n_conv, fc_hidden):
    C = _CP

    def kernel(x_ref, wconv_ref, bconv_ref, w1_ref, b1_ref, w2_ref, b2_ref,
               w3_ref, b3_ref, o_ref, pad_ref):
        # Stage the (channel-padded) input image inside the zero-padded VMEM buffer.
        pad_ref[...] = jnp.zeros_like(pad_ref)
        pad_ref[:, 1:img_hw + 1, 1:img_hw + 1, :] = x_ref[...]

        h = img_hw
        feat = None
        for layer in range(n_conv):
            # ---- conv3x3 (pad=1, stride=1) + bias + ReLU: 9 shifted sub-matmuls.
            m = h * h
            acc = jnp.zeros((m, C), jnp.float32)
            for kh in range(3):
                for kw in range(3):
                    tap = pad_ref[:, kh:kh + h, kw:kw + h, :].reshape(m, C)
                    acc = acc + jnp.dot(
                        tap.astype(jnp.bfloat16),
                        wconv_ref[layer * 9 + kh * 3 + kw],
                        preferred_element_type=jnp.float32)
            y = jnp.maximum(acc + bconv_ref[layer], 0.0)          # bias + ReLU in f32

            if layer < n_conv - 1:
                # ---- 2x2 max-pool (stride 2), fully in-register.
                ho = h // 2
                y5 = y.reshape(1, ho, 2, h, C)
                yh = jnp.maximum(y5[:, :, 0, :, :], y5[:, :, 1, :, :])   # (1, ho, h, C)
                cols = [jnp.maximum(yh[:, :, 2 * wo, :], yh[:, :, 2 * wo + 1, :])
                        for wo in range(ho)]
                pooled = jnp.stack(cols, axis=2)                          # (1, ho, ho, C)
                # Re-stage as next conv's zero-padded input (zero ring + interior).
                pad_ref[:, :ho + 2, :ho + 2, :] = jnp.zeros(
                    (1, ho + 2, ho + 2, C), jnp.float32)
                pad_ref[:, 1:ho + 1, 1:ho + 1, :] = pooled
                h = ho
            else:
                feat = y                                                  # (h*h, C)

        # ---- classifier (Dropout == identity in eval mode).
        # FC1 consumes 128-channel chunks per spatial site; the NCHW-flatten
        # permutation is already folded into w1's packing.
        f4 = feat.reshape(1, h, h, C)
        acc1 = jnp.zeros((1, fc_hidden), jnp.float32)
        for hw in range(h * h):
            hh, ww = divmod(hw, h)
            acc1 = acc1 + jnp.dot(f4[:, hh, ww, :].astype(jnp.bfloat16), w1_ref[hw],
                                  preferred_element_type=jnp.float32)
        z1 = jnp.maximum(acc1 + b1_ref[...], 0.0)
        z2 = jnp.dot(z1.astype(jnp.bfloat16), w2_ref[...],
                     preferred_element_type=jnp.float32) + b2_ref[...]
        z2 = jnp.maximum(z2, 0.0)
        logits = jnp.dot(z2.astype(jnp.bfloat16), w3_ref[...],
                         preferred_element_type=jnp.float32) + b3_ref[...]
        o_ref[...] = logits.reshape(1, 1, C)

    return kernel


# ----------------------------------------------------------------------------
# Forward wrapper: one pallas_call for the whole network.
# ----------------------------------------------------------------------------
def build_vgg_forward(img_hw, n_conv, num_classes, fc_hidden=512):
    final_hw = img_hw // (2 ** (n_conv - 1))
    assert final_hw * final_hw * _CP == 512, "feature map must flatten to 512"
    kernel = _make_vgg_kernel(img_hw, n_conv, fc_hidden)

    @jax.jit
    def forward(x_nchw, packed):
        wconv, bconv, w1p, b1, w2, b2, w3p, b3 = packed
        B, Cin = x_nchw.shape[0], x_nchw.shape[1]
        # Entry-point glue only: NCHW -> NHWC + zero-pad channels to 128 lanes.
        x = jnp.transpose(x_nchw, (0, 2, 3, 1)).astype(jnp.float32)
        x = jnp.pad(x, ((0, 0), (0, 0), (0, 0), (0, _CP - Cin)))

        out = pl.pallas_call(
            kernel,
            out_shape=jax.ShapeDtypeStruct((B, 1, _CP), jnp.float32),
            grid=(B,),
            in_specs=[
                pl.BlockSpec((1, img_hw, img_hw, _CP), lambda b: (b, 0, 0, 0)),
                pl.BlockSpec(wconv.shape, lambda b: (0, 0, 0)),
                pl.BlockSpec(bconv.shape, lambda b: (0, 0, 0)),
                pl.BlockSpec(w1p.shape, lambda b: (0, 0, 0)),
                pl.BlockSpec(b1.shape, lambda b: (0, 0)),
                pl.BlockSpec(w2.shape, lambda b: (0, 0)),
                pl.BlockSpec(b2.shape, lambda b: (0, 0)),
                pl.BlockSpec(w3p.shape, lambda b: (0, 0)),
                pl.BlockSpec(b3.shape, lambda b: (0, 0)),
            ],
            out_specs=pl.BlockSpec((1, 1, _CP), lambda b: (b, 0, 0)),
            scratch_shapes=[
                pltpu.VMEM((1, img_hw + 2, img_hw + 2, _CP), jnp.float32),
            ],
            compiler_params=pltpu.CompilerParams(
                dimension_semantics=("parallel",)),
        )(x, wconv, bconv, w1p, b1, w2, b2, w3p, b3)
        return out[:, 0, :num_classes]

    return forward


# ----------------------------------------------------------------------------
# Parameter construction (matches the module's init semantics) + kernel packing.
# ----------------------------------------------------------------------------
def init_params(key, conv_cfg, num_classes):
    params = {"convs": [], "fc": None}
    k = key
    # Conv2d init from the module: weight ~ N(0, sqrt(2 / (kh*kw*Cout))), bias = 0.
    for cin, cout in conv_cfg:
        k, sub = jax.random.split(k)
        std = math.sqrt(2.0 / (3 * 3 * cout))
        w = std * jax.random.normal(sub, (3, 3, cin, cout), dtype=jnp.float32)
        b = jnp.zeros((cout,), dtype=jnp.float32)
        params["convs"].append((w, b))

    # nn.Linear default-style init (uniform +/- 1/sqrt(fan_in)), stored as (in, out).
    def linear(k, din, dout):
        k, kw_, kb_ = jax.random.split(k, 3)
        bound = 1.0 / math.sqrt(din)
        w = jax.random.uniform(kw_, (din, dout), jnp.float32, -bound, bound)
        b = jax.random.uniform(kb_, (1, dout), jnp.float32, -bound, bound)
        return k, w, b

    k, w1, b1 = linear(k, 512, 512)
    k, w2, b2 = linear(k, 512, 512)
    k, w3, b3 = linear(k, 512, num_classes)
    params["fc"] = (w1, b1, w2, b2, w3, b3)
    return params


def pack_params(params, num_classes):
    """Pack params into lane-dense bf16 kernel operands (done once, outside jit)."""
    wconv_list, bconv_list = [], []
    for w, b in params["convs"]:
        cin, cout = int(w.shape[2]), int(w.shape[3])
        wp = jnp.zeros((9, _CP, _CP), jnp.float32).at[:, :cin, :cout].set(
            w.reshape(9, cin, cout))
        wconv_list.append(wp)
        bconv_list.append(jnp.zeros((1, _CP), jnp.float32).at[0, :cout].set(b))
    wconv = jnp.concatenate(wconv_list, axis=0).astype(jnp.bfloat16)  # (9*n_conv,128,128)
    bconv = jnp.stack(bconv_list, axis=0)                             # (n_conv,1,128) f32

    w1, b1, w2, b2, w3, b3 = params["fc"]
    # Fold torch's NCHW flatten (feature index = c*HW + h*W + w, with H=W=2) into w1's
    # row order: the kernel consumes one 128-channel chunk per spatial site hw = h*W+w.
    hw_sites = w1.shape[0] // _CP                                     # = 4
    w1p = w1.reshape(_CP, hw_sites, w1.shape[1]).transpose(1, 0, 2).astype(jnp.bfloat16)
    w3p = jnp.zeros((w3.shape[0], _CP), jnp.float32).at[:, :num_classes].set(w3)
    b3p = jnp.zeros((1, _CP), jnp.float32).at[0, :num_classes].set(b3[0])
    return (wconv, bconv, w1p, b1, w2.astype(jnp.bfloat16), b2,
            w3p.astype(jnp.bfloat16), b3p)


if __name__ == "__main__":
    key = jax.random.PRNGKey(0)
    k_in, k_par = jax.random.split(key)

    # Small VGG-style features: conv(3->16), pool, conv(16->32), pool,
    # conv(32->64), pool, conv(64->128)  => (B,128,2,2) -> flatten 512 -> classifier.
    conv_cfg = [(3, 16), (16, 32), (32, 64), (64, 128)]
    num_classes = 10
    img_hw = 16

    x = jax.random.normal(k_in, (2, 3, img_hw, img_hw), dtype=jnp.float32)  # NCHW input
    params = init_params(k_par, conv_cfg, num_classes)
    packed = pack_params(params, num_classes)

    forward = build_vgg_forward(img_hw, len(conv_cfg), num_classes)
    logits = forward(x, packed)
    jax.block_until_ready(logits)
    assert logits.shape == (2, num_classes), logits.shape
    print("KERNEL_OK")
</pallas_src>

<mosaic_0001>
module attributes {stable_mosaic.version = 11 : i64} {
  func.func @kernel(%arg0: i32, %arg1: memref<1x16x16x128xf32, #tpu.memory_space<vmem>>, %arg2: memref<36x128x128xbf16, #tpu.memory_space<vmem>>, %arg3: memref<4x1x128xf32, #tpu.memory_space<vmem>>, %arg4: memref<4x128x512xbf16, #tpu.memory_space<vmem>>, %arg5: memref<1x512xf32, #tpu.memory_space<vmem>>, %arg6: memref<512x512xbf16, #tpu.memory_space<vmem>>, %arg7: memref<1x512xf32, #tpu.memory_space<vmem>>, %arg8: memref<512x128xbf16, #tpu.memory_space<vmem>>, %arg9: memref<1x128xf32, #tpu.memory_space<vmem>>, %arg10: memref<1x1x128xf32, #tpu.memory_space<vmem>>, %arg11: memref<1x18x18x128xf32, #tpu.memory_space<vmem>>) attributes {dimension_semantics = [#tpu.dimension_semantics<parallel>], iteration_bounds = array<i64: 2>, scalar_prefetch = 0 : i64, scratch_operands = 1 : i64, tpu.core_type = #tpu.core_type<tc>, window_params = [{transform_indices = @transform_0, window_bounds = array<i64: 1, 16, 16, 128>}, {pipeline_mode = #tpu.pipeline_mode<synchronous>, transform_indices = @transform_1, window_bounds = array<i64: 36, 128, 128>}, {pipeline_mode = #tpu.pipeline_mode<synchronous>, transform_indices = @transform_2, window_bounds = array<i64: 4, 1, 128>}, {pipeline_mode = #tpu.pipeline_mode<synchronous>, transform_indices = @transform_3, window_bounds = array<i64: 4, 128, 512>}, {pipeline_mode = #tpu.pipeline_mode<synchronous>, transform_indices = @transform_4, window_bounds = array<i64: 1, 512>}, {pipeline_mode = #tpu.pipeline_mode<synchronous>, transform_indices = @transform_5, window_bounds = array<i64: 512, 512>}, {pipeline_mode = #tpu.pipeline_mode<synchronous>, transform_indices = @transform_6, window_bounds = array<i64: 1, 512>}, {pipeline_mode = #tpu.pipeline_mode<synchronous>, transform_indices = @transform_7, window_bounds = array<i64: 512, 128>}, {pipeline_mode = #tpu.pipeline_mode<synchronous>, transform_indices = @transform_8, window_bounds = array<i64: 1, 128>}, {transform_indices = @transform_9, window_bounds = array<i64: 1, 1, 128>}]} {
    %cst = arith.constant 0.000000e+00 : f32
    %0 = vector.broadcast %cst : f32 to vector<1x18x18x128xf32>
    %c0 = arith.constant 0 : index
    %c0_0 = arith.constant 0 : index
    %c0_1 = arith.constant 0 : index
    %c0_2 = arith.constant 0 : index
    %1 = vector.load %arg11[%c0, %c0_0, %c0_1, %c0_2] : memref<1x18x18x128xf32, #tpu.memory_space<vmem>>, vector<1x18x18x128xf32>
    tpu.vector_store %arg11[%c0, %c0_0, %c0_1, %c0_2], %0 {strides = array<i32>} : memref<1x18x18x128xf32, #tpu.memory_space<vmem>>, vector<1x18x18x128xf32>,
    %c0_3 = arith.constant 0 : index
    %c0_4 = arith.constant 0 : index
    %c0_5 = arith.constant 0 : index
    %c0_6 = arith.constant 0 : index
    %2 = vector.load %arg1[%c0_3, %c0_4, %c0_5, %c0_6] : memref<1x16x16x128xf32, #tpu.memory_space<vmem>>, vector<1x16x16x128xf32>
    %c0_7 = arith.constant 0 : index
    %c1 = arith.constant 1 : index
    %c1_8 = arith.constant 1 : index
    %c0_9 = arith.constant 0 : index
    %3 = vector.load %arg11[%c0_7, %c1, %c1_8, %c0_9] : memref<1x18x18x128xf32, #tpu.memory_space<vmem>>, vector<1x16x16x128xf32>
    tpu.vector_store %arg11[%c0_7, %c1, %c1_8, %c0_9], %2 {strides = array<i32>} : memref<1x18x18x128xf32, #tpu.memory_space<vmem>>, vector<1x16x16x128xf32>,
    %cst_10 = arith.constant 0.000000e+00 : f32
    %4 = vector.broadcast %cst_10 : f32 to vector<256x128xf32>
    %c0_11 = arith.constant 0 : index
    %c0_12 = arith.constant 0 : index
    %c0_13 = arith.constant 0 : index
    %c0_14 = arith.constant 0 : index
    %5 = vector.load %arg11[%c0_11, %c0_12, %c0_13, %c0_14] : memref<1x18x18x128xf32, #tpu.memory_space<vmem>>, vector<1x16x16x128xf32>
    %6 = vector.shape_cast %5 : vector<1x16x16x128xf32> to vector<256x128xf32>
    %7 = arith.truncf %6 : vector<256x128xf32> to vector<256x128xbf16>
    %c0_15 = arith.constant 0 : index
    %c0_16 = arith.constant 0 : index
    %c0_17 = arith.constant 0 : index
    %8 = vector.load %arg2[%c0_15, %c0_16, %c0_17] : memref<36x128x128xbf16, #tpu.memory_space<vmem>>, vector<1x128x128xbf16>
    %9 = vector.shape_cast %8 : vector<1x128x128xbf16> to vector<128x128xbf16>
    %cst_18 = arith.constant dense<0.000000e+00> : vector<256x128xf32>
    %10 = tpu.matmul %7, %9, %cst_18 {dimension_numbers = #tpu.dot_dimension_numbers<[1], [0], [0], [1], [0, 0, 1, 1], [], []>} : vector<256x128xbf16>, vector<128x128xbf16>, vector<256x128xf32> -> vector<256x128xf32>
    %11 = arith.addf %4, %10 : vector<256x128xf32>
    %c0_19 = arith.constant 0 : index
    %c0_20 = arith.constant 0 : index
    %c1_21 = arith.constant 1 : index
    %c0_22 = arith.constant 0 : index
    %12 = vector.load %arg11[%c0_19, %c0_20, %c1_21, %c0_22] : memref<1x18x18x128xf32, #tpu.memory_space<vmem>>, vector<1x16x16x128xf32>
    %13 = vector.shape_cast %12 : vector<1x16x16x128xf32> to vector<256x128xf32>
    %14 = arith.truncf %13 : vector<256x128xf32> to vector<256x128xbf16>
    %c1_23 = arith.constant 1 : index
    %c0_24 = arith.constant 0 : index
    %c0_25 = arith.constant 0 : index
    %15 = vector.load %arg2[%c1_23, %c0_24, %c0_25] : memref<36x128x128xbf16, #tpu.memory_space<vmem>>, vector<1x128x128xbf16>
    %16 = vector.shape_cast %15 : vector<1x128x128xbf16> to vector<128x128xbf16>
    %cst_26 = arith.constant dense<0.000000e+00> : vector<256x128xf32>
    %17 = tpu.matmul %14, %16, %cst_26 {dimension_numbers = #tpu.dot_dimension_numbers<[1], [0], [0], [1], [0, 0, 1, 1], [], []>} : vector<256x128xbf16>, vector<128x128xbf16>, vector<256x128xf32> -> vector<256x128xf32>
    %18 = arith.addf %11, %17 : vector<256x128xf32>
    %c0_27 = arith.constant 0 : index
    %c0_28 = arith.constant 0 : index
    %c2 = arith.constant 2 : index
    %c0_29 = arith.constant 0 : index
    %19 = vector.load %arg11[%c0_27, %c0_28, %c2, %c0_29] : memref<1x18x18x128xf32, #tpu.memory_space<vmem>>, vector<1x16x16x128xf32>
    %20 = vector.shape_cast %19 : vector<1x16x16x128xf32> to vector<256x128xf32>
    %21 = arith.truncf %20 : vector<256x128xf32> to vector<256x128xbf16>
    %c2_30 = arith.constant 2 : index
    %c0_31 = arith.constant 0 : index
    %c0_32 = arith.constant 0 : index
    %22 = vector.load %arg2[%c2_30, %c0_31, %c0_32] : memref<36x128x128xbf16, #tpu.memory_space<vmem>>, vector<1x128x128xbf16>
    %23 = vector.shape_cast %22 : vector<1x128x128xbf16> to vector<128x128xbf16>
    %cst_33 = arith.constant dense<0.000000e+00> : vector<256x128xf32>
    %24 = tpu.matmul %21, %23, %cst_33 {dimension_numbers = #tpu.dot_dimension_numbers<[1], [0], [0], [1], [0, 0, 1, 1], [], []>} : vector<256x128xbf16>, vector<128x128xbf16>, vector<256x128xf32> -> vector<256x128xf32>
    %25 = arith.addf %18, %24 : vector<256x128xf32>
    %c0_34 = arith.constant 0 : index
    %c1_35 = arith.constant 1 : index
    %c0_36 = arith.constant 0 : index
    %c0_37 = arith.constant 0 : index
    %26 = vector.load %arg11[%c0_34, %c1_35, %c0_36, %c0_37] : memref<1x18x18x128xf32, #tpu.memory_space<vmem>>, vector<1x16x16x128xf32>
    %27 = vector.shape_cast %26 : vector<1x16x16x128xf32> to vector<256x128xf32>
    %28 = arith.truncf %27 : vector<256x128xf32> to vector<256x128xbf16>
    %c3 = arith.constant 3 : index
    %c0_38 = arith.constant 0 : index
    %c0_39 = arith.constant 0 : index
    %29 = vector.load %arg2[%c3, %c0_38, %c0_39] : memref<36x128x128xbf16, #tpu.memory_space<vmem>>, vector<1x128x128xbf16>
    %30 = vector.shape_cast %29 : vector<1x128x128xbf16> to vector<128x128xbf16>
    %cst_40 = arith.constant dense<0.000000e+00> : vector<256x128xf32>
    %31 = tpu.matmul %28, %30, %cst_40 {dimension_numbers = #tpu.dot_dimension_numbers<[1], [0], [0], [1], [0, 0, 1, 1], [], []>} : vector<256x128xbf16>, vector<128x128xbf16>, vector<256x128xf32> -> vector<256x128xf32>
    %32 = arith.addf %25, %31 : vector<256x128xf32>
    %c0_41 = arith.constant 0 : index
    %c1_42 = arith.constant 1 : index
    %c1_43 = arith.constant 1 : index
    %c0_44 = arith.constant 0 : index
    %33 = vector.load %arg11[%c0_41, %c1_42, %c1_43, %c0_44] : memref<1x18x18x128xf32, #tpu.memory_space<vmem>>, vector<1x16x16x128xf32>
    %34 = vector.shape_cast %33 : vector<1x16x16x128xf32> to vector<256x128xf32>
    %35 = arith.truncf %34 : vector<256x128xf32> to vector<256x128xbf16>
    %c4 = arith.constant 4 : index
    %c0_45 = arith.constant 0 : index
    %c0_46 = arith.constant 0 : index
    %36 = vector.load %arg2[%c4, %c0_45, %c0_46] : memref<36x128x128xbf16, #tpu.memory_space<vmem>>, vector<1x128x128xbf16>
    %37 = vector.shape_cast %36 : vector<1x128x128xbf16> to vector<128x128xbf16>
    %cst_47 = arith.constant dense<0.000000e+00> : vector<256x128xf32>
    %38 = tpu.matmul %35, %37, %cst_47 {dimension_numbers = #tpu.dot_dimension_numbers<[1], [0], [0], [1], [0, 0, 1, 1], [], []>} : vector<256x128xbf16>, vector<128x128xbf16>, vector<256x128xf32> -> vector<256x128xf32>
    %39 = arith.addf %32, %38 : vector<256x128xf32>
    %c0_48 = arith.constant 0 : index
    %c1_49 = arith.constant 1 : index
    %c2_50 = arith.constant 2 : index
    %c0_51 = arith.constant 0 : index
    %40 = vector.load %arg11[%c0_48, %c1_49, %c2_50, %c0_51] : memref<1x18x18x128xf32, #tpu.memory_space<vmem>>, vector<1x16x16x128xf32>
    %41 = vector.shape_cast %40 : vector<1x16x16x128xf32> to vector<256x128xf32>
    %42 = arith.truncf %41 : vector<256x128xf32> to vector<256x128xbf16>
    %c5 = arith.constant 5 : index
    %c0_52 = arith.constant 0 : index
    %c0_53 = arith.constant 0 : index
    %43 = vector.load %arg2[%c5, %c0_52, %c0_53] : memref<36x128x128xbf16, #tpu.memory_space<vmem>>, vector<1x128x128xbf16>
    %44 = vector.shape_cast %43 : vector<1x128x128xbf16> to vector<128x128xbf16>
    %cst_54 = arith.constant dense<0.000000e+00> : vector<256x128xf32>
    %45 = tpu.matmul %42, %44, %cst_54 {dimension_numbers = #tpu.dot_dimension_numbers<[1], [0], [0], [1], [0, 0, 1, 1], [], []>} : vector<256x128xbf16>, vector<128x128xbf16>, vector<256x128xf32> -> vector<256x128xf32>
    %46 = arith.addf %39, %45 : vector<256x128xf32>
    %c0_55 = arith.constant 0 : index
    %c2_56 = arith.constant 2 : index
    %c0_57 = arith.constant 0 : index
    %c0_58 = arith.constant 0 : index
    %47 = vector.load %arg11[%c0_55, %c2_56, %c0_57, %c0_58] : memref<1x18x18x128xf32, #tpu.memory_space<vmem>>, vector<1x16x16x128xf32>
    %48 = vector.shape_cast %47 : vector<1x16x16x128xf32> to vector<256x128xf32>
    %49 = arith.truncf %48 : vector<256x128xf32> to vector<256x128xbf16>
    %c6 = arith.constant 6 : index
    %c0_59 = arith.constant 0 : index
    %c0_60 = arith.constant 0 : index
    %50 = vector.load %arg2[%c6, %c0_59, %c0_60] : memref<36x128x128xbf16, #tpu.memory_space<vmem>>, vector<1x128x128xbf16>
    %51 = vector.shape_cast %50 : vector<1x128x128xbf16> to vector<128x128xbf16>
    %cst_61 = arith.constant dense<0.000000e+00> : vector<256x128xf32>
    %52 = tpu.matmul %49, %51, %cst_61 {dimension_numbers = #tpu.dot_dimension_numbers<[1], [0], [0], [1], [0, 0, 1, 1], [], []>} : vector<256x128xbf16>, vector<128x128xbf16>, vector<256x128xf32> -> vector<256x128xf32>
    %53 = arith.addf %46, %52 : vector<256x128xf32>
    %c0_62 = arith.constant 0 : index
    %c2_63 = arith.constant 2 : index
    %c1_64 = arith.constant 1 : index
    %c0_65 = arith.constant 0 : index
    %54 = vector.load %arg11[%c0_62, %c2_63, %c1_64, %c0_65] : memref<1x18x18x128xf32, #tpu.memory_space<vmem>>, vector<1x16x16x128xf32>
    %55 = vector.shape_cast %54 : vector<1x16x16x128xf32> to vector<256x128xf32>
    %56 = arith.truncf %55 : vector<256x128xf32> to vector<256x128xbf16>
    %c7 = arith.constant 7 : index
    %c0_66 = arith.constant 0 : index
    %c0_67 = arith.constant 0 : index
    %57 = vector.load %arg2[%c7, %c0_66, %c0_67] : memref<36x128x128xbf16, #tpu.memory_space<vmem>>, vector<1x128x128xbf16>
    %58 = vector.shape_cast %57 : vector<1x128x128xbf16> to vector<128x128xbf16>
    %cst_68 = arith.constant dense<0.000000e+00> : vector<256x128xf32>
    %59 = tpu.matmul %56, %58, %cst_68 {dimension_numbers = #tpu.dot_dimension_numbers<[1], [0], [0], [1], [0, 0, 1, 1], [], []>} : vector<256x128xbf16>, vector<128x128xbf16>, vector<256x128xf32> -> vector<256x128xf32>
    %60 = arith.addf %53, %59 : vector<256x128xf32>
    %c0_69 = arith.constant 0 : index
    %c2_70 = arith.constant 2 : index
    %c2_71 = arith.constant 2 : index
    %c0_72 = arith.constant 0 : index
    %61 = vector.load %arg11[%c0_69, %c2_70, %c2_71, %c0_72] : memref<1x18x18x128xf32, #tpu.memory_space<vmem>>, vector<1x16x16x128xf32>
    %62 = vector.shape_cast %61 : vector<1x16x16x128xf32> to vector<256x128xf32>
    %63 = arith.truncf %62 : vector<256x128xf32> to vector<256x128xbf16>
    %c8 = arith.constant 8 : index
    %c0_73 = arith.constant 0 : index
    %c0_74 = arith.constant 0 : index
    %64 = vector.load %arg2[%c8, %c0_73, %c0_74] : memref<36x128x128xbf16, #tpu.memory_space<vmem>>, vector<1x128x128xbf16>
    %65 = vector.shape_cast %64 : vector<1x128x128xbf16> to vector<128x128xbf16>
    %cst_75 = arith.constant dense<0.000000e+00> : vector<256x128xf32>
    %66 = tpu.matmul %63, %65, %cst_75 {dimension_numbers = #tpu.dot_dimension_numbers<[1], [0], [0], [1], [0, 0, 1, 1], [], []>} : vector<256x128xbf16>, vector<128x128xbf16>, vector<256x128xf32> -> vector<256x128xf32>
    %67 = arith.addf %60, %66 : vector<256x128xf32>
    %c0_76 = arith.constant 0 : index
    %c0_77 = arith.constant 0 : index
    %c0_78 = arith.constant 0 : index
    %68 = vector.load %arg3[%c0_76, %c0_77, %c0_78] : memref<4x1x128xf32, #tpu.memory_space<vmem>>, vector<1x1x128xf32>
    %69 = vector.shape_cast %68 : vector<1x1x128xf32> to vector<1x128xf32>
    %70 = vector.broadcast %69 : vector<1x128xf32> to vector<256x128xf32>
    %71 = arith.addf %67, %70 : vector<256x128xf32>
    %cst_79 = arith.constant 0.000000e+00 : f32
    %72 = vector.broadcast %cst_79 : f32 to vector<256x128xf32>
    %73 = arith.maximumf %71, %72 : vector<256x128xf32>
    %74 = vector.shape_cast %73 : vector<256x128xf32> to vector<1x8x2x16x128xf32>
    %75 = vector.extract_strided_slice %74 {offsets = [0, 0, 0, 0, 0], sizes = [1, 8, 1, 16, 128], strides = [1, 1, 1, 1, 1]} : vector<1x8x2x16x128xf32> to vector<1x8x1x16x128xf32>
    %76 = vector.shape_cast %75 : vector<1x8x1x16x128xf32> to vector<1x8x16x128xf32>
    %77 = vector.extract_strided_slice %74 {offsets = [0, 0, 1, 0, 0], sizes = [1, 8, 1, 16, 128], strides = [1, 1, 1, 1, 1]} : vector<1x8x2x16x128xf32> to vector<1x8x1x16x128xf32>
    %78 = vector.shape_cast %77 : vector<1x8x1x16x128xf32> to vector<1x8x16x128xf32>
    %79 = arith.maximumf %76, %78 : vector<1x8x16x128xf32>
    %80 = vector.extract_strided_slice %79 {offsets = [0, 0, 0, 0], sizes = [1, 8, 1, 128], strides = [1, 1, 1, 1]} : vector<1x8x16x128xf32> to vector<1x8x1x128xf32>
    %81 = vector.shape_cast %80 : vector<1x8x1x128xf32> to vector<1x8x128xf32>
    %82 = vector.extract_strided_slice %79 {offsets = [0, 0, 1, 0], sizes = [1, 8, 1, 128], strides = [1, 1, 1, 1]} : vector<1x8x16x128xf32> to vector<1x8x1x128xf32>
    %83 = vector.shape_cast %82 : vector<1x8x1x128xf32> to vector<1x8x128xf32>
    %84 = arith.maximumf %81, %83 : vector<1x8x128xf32>
    %85 = vector.extract_strided_slice %79 {offsets = [0, 0, 2, 0], sizes = [1, 8, 1, 128], strides = [1, 1, 1, 1]} : vector<1x8x16x128xf32> to vector<1x8x1x128xf32>
    %86 = vector.shape_cast %85 : vector<1x8x1x128xf32> to vector<1x8x128xf32>
    %87 = vector.extract_strided_slice %79 {offsets = [0, 0, 3, 0], sizes = [1, 8, 1, 128], strides = [1, 1, 1, 1]} : vector<1x8x16x128xf32> to vector<1x8x1x128xf32>
    %88 = vector.shape_cast %87 : vector<1x8x1x128xf32> to vector<1x8x128xf32>
    %89 = arith.maximumf %86, %88 : vector<1x8x128xf32>
    %90 = vector.extract_strided_slice %79 {offsets = [0, 0, 4, 0], sizes = [1, 8, 1, 128], strides = [1, 1, 1, 1]} : vector<1x8x16x128xf32> to vector<1x8x1x128xf32>
    %91 = vector.shape_cast %90 : vector<1x8x1x128xf32> to vector<1x8x128xf32>
    %92 = vector.extract_strided_slice %79 {offsets = [0, 0, 5, 0], sizes = [1, 8, 1, 128], strides = [1, 1, 1, 1]} : vector<1x8x16x128xf32> to vector<1x8x1x128xf32>
    %93 = vector.shape_cast %92 : vector<1x8x1x128xf32> to vector<1x8x128xf32>
    %94 = arith.maximumf %91, %93 : vector<1x8x128xf32>
    %95 = vector.extract_strided_slice %79 {offsets = [0, 0, 6, 0], sizes = [1, 8, 1, 128], strides = [1, 1, 1, 1]} : vector<1x8x16x128xf32> to vector<1x8x1x128xf32>
    %96 = vector.shape_cast %95 : vector<1x8x1x128xf32> to vector<1x8x128xf32>
    %97 = vector.extract_strided_slice %79 {offsets = [0, 0, 7, 0], sizes = [1, 8, 1, 128], strides = [1, 1, 1, 1]} : vector<1x8x16x128xf32> to vector<1x8x1x128xf32>
    %98 = vector.shape_cast %97 : vector<1x8x1x128xf32> to vector<1x8x128xf32>
    %99 = arith.maximumf %96, %98 : vector<1x8x128xf32>
    %100 = vector.extract_strided_slice %79 {offsets = [0, 0, 8, 0], sizes = [1, 8, 1, 128], strides = [1, 1, 1, 1]} : vector<1x8x16x128xf32> to vector<1x8x1x128xf32>
    %101 = vector.shape_cast %100 : vector<1x8x1x128xf32> to vector<1x8x128xf32>
    %102 = vector.extract_strided_slice %79 {offsets = [0, 0, 9, 0], sizes = [1, 8, 1, 128], strides = [1, 1, 1, 1]} : vector<1x8x16x128xf32> to vector<1x8x1x128xf32>
    %103 = vector.shape_cast %102 : vector<1x8x1x128xf32> to vector<1x8x128xf32>
    %104 = arith.maximumf %101, %103 : vector<1x8x128xf32>
    %105 = vector.extract_strided_slice %79 {offsets = [0, 0, 10, 0], sizes = [1, 8, 1, 128], strides = [1, 1, 1, 1]} : vector<1x8x16x128xf32> to vector<1x8x1x128xf32>
    %106 = vector.shape_cast %105 : vector<1x8x1x128xf32> to vector<1x8x128xf32>
    %107 = vector.extract_strided_slice %79 {offsets = [0, 0, 11, 0], sizes = [1, 8, 1, 128], strides = [1, 1, 1, 1]} : vector<1x8x16x128xf32> to vector<1x8x1x128xf32>
    %108 = vector.shape_cast %107 : vector<1x8x1x128xf32> to vector<1x8x128xf32>
    %109 = arith.maximumf %106, %108 : vector<1x8x128xf32>
    %110 = vector.extract_strided_slice %79 {offsets = [0, 0, 12, 0], sizes = [1, 8, 1, 128], strides = [1, 1, 1, 1]} : vector<1x8x16x128xf32> to vector<1x8x1x128xf32>
    %111 = vector.shape_cast %110 : vector<1x8x1x128xf32> to vector<1x8x128xf32>
    %112 = vector.extract_strided_slice %79 {offsets = [0, 0, 13, 0], sizes = [1, 8, 1, 128], strides = [1, 1, 1, 1]} : vector<1x8x16x128xf32> to vector<1x8x1x128xf32>
    %113 = vector.shape_cast %112 : vector<1x8x1x128xf32> to vector<1x8x128xf32>
    %114 = arith.maximumf %111, %113 : vector<1x8x128xf32>
    %115 = vector.extract_strided_slice %79 {offsets = [0, 0, 14, 0], sizes = [1, 8, 1, 128], strides = [1, 1, 1, 1]} : vector<1x8x16x128xf32> to vector<1x8x1x128xf32>
    %116 = vector.shape_cast %115 : vector<1x8x1x128xf32> to vector<1x8x128xf32>
    %117 = vector.extract_strided_slice %79 {offsets = [0, 0, 15, 0], sizes = [1, 8, 1, 128], strides = [1, 1, 1, 1]} : vector<1x8x16x128xf32> to vector<1x8x1x128xf32>
    %118 = vector.shape_cast %117 : vector<1x8x1x128xf32> to vector<1x8x128xf32>
    %119 = arith.maximumf %116, %118 : vector<1x8x128xf32>
    %120 = vector.shape_cast %84 : vector<1x8x128xf32> to vector<1x8x1x128xf32>
    %121 = vector.shape_cast %89 : vector<1x8x128xf32> to vector<1x8x1x128xf32>
    %122 = vector.shape_cast %94 : vector<1x8x128xf32> to vector<1x8x1x128xf32>
    %123 = vector.shape_cast %99 : vector<1x8x128xf32> to vector<1x8x1x128xf32>
    %124 = vector.shape_cast %104 : vector<1x8x128xf32> to vector<1x8x1x128xf32>
    %125 = vector.shape_cast %109 : vector<1x8x128xf32> to vector<1x8x1x128xf32>
    %126 = vector.shape_cast %114 : vector<1x8x128xf32> to vector<1x8x1x128xf32>
    %127 = vector.shape_cast %119 : vector<1x8x128xf32> to vector<1x8x1x128xf32>
    %128 = tpu.concatenate %120, %121, %122, %123, %124, %125, %126, %127 in 2 : vector<1x8x1x128xf32>, vector<1x8x1x128xf32>, vector<1x8x1x128xf32>, vector<1x8x1x128xf32>, vector<1x8x1x128xf32>, vector<1x8x1x128xf32>, vector<1x8x1x128xf32>, vector<1x8x1x128xf32> -> vector<1x8x8x128xf32>
    %cst_80 = arith.constant 0.000000e+00 : f32
    %129 = vector.broadcast %cst_80 : f32 to vector<1x10x10x128xf32>
    %c0_81 = arith.constant 0 : index
    %c0_82 = arith.constant 0 : index
    %c0_83 = arith.constant 0 : index
    %c0_84 = arith.constant 0 : index
    %130 = vector.load %arg11[%c0_81, %c0_82, %c0_83, %c0_84] : memref<1x18x18x128xf32, #tpu.memory_space<vmem>>, vector<1x10x10x128xf32>
    tpu.vector_store %arg11[%c0_81, %c0_82, %c0_83, %c0_84], %129 {strides = array<i32>} : memref<1x18x18x128xf32, #tpu.memory_space<vmem>>, vector<1x10x10x128xf32>,
    %c0_85 = arith.constant 0 : index
    %c1_86 = arith.constant 1 : index
    %c1_87 = arith.constant 1 : index
    %c0_88 = arith.constant 0 : index
    %131 = vector.load %arg11[%c0_85, %c1_86, %c1_87, %c0_88] : memref<1x18x18x128xf32, #tpu.memory_space<vmem>>, vector<1x8x8x128xf32>
    tpu.vector_store %arg11[%c0_85, %c1_86, %c1_87, %c0_88], %128 {strides = array<i32>} : memref<1x18x18x128xf32, #tpu.memory_space<vmem>>, vector<1x8x8x128xf32>,
    %cst_89 = arith.constant 0.000000e+00 : f32
    %132 = vector.broadcast %cst_89 : f32 to vector<64x128xf32>
    %c0_90 = arith.constant 0 : index
    %c0_91 = arith.constant 0 : index
    %c0_92 = arith.constant 0 : index
    %c0_93 = arith.constant 0 : index
    %133 = vector.load %arg11[%c0_90, %c0_91, %c0_92, %c0_93] : memref<1x18x18x128xf32, #tpu.memory_space<vmem>>, vector<1x8x8x128xf32>
    %134 = vector.shape_cast %133 : vector<1x8x8x128xf32> to vector<64x128xf32>
    %135 = arith.truncf %134 : vector<64x128xf32> to vector<64x128xbf16>
    %c9 = arith.constant 9 : index
    %c0_94 = arith.constant 0 : index
    %c0_95 = arith.constant 0 : index
    %136 = vector.load %arg2[%c9, %c0_94, %c0_95] : memref<36x128x128xbf16, #tpu.memory_space<vmem>>, vector<1x128x128xbf16>
    %137 = vector.shape_cast %136 : vector<1x128x128xbf16> to vector<128x128xbf16>
    %cst_96 = arith.constant dense<0.000000e+00> : vector<64x128xf32>
    %138 = tpu.matmul %135, %137, %cst_96 {dimension_numbers = #tpu.dot_dimension_numbers<[1], [0], [0], [1], [0, 0, 1, 1], [], []>} : vector<64x128xbf16>, vector<128x128xbf16>, vector<64x128xf32> -> vector<64x128xf32>
    %139 = arith.addf %132, %138 : vector<64x128xf32>
    %c0_97 = arith.constant 0 : index
    %c0_98 = arith.constant 0 : index
    %c1_99 = arith.constant 1 : index
    %c0_100 = arith.constant 0 : index
    %140 = vector.load %arg11[%c0_97, %c0_98, %c1_99, %c0_100] : memref<1x18x18x128xf32, #tpu.memory_space<vmem>>, vector<1x8x8x128xf32>
    %141 = vector.shape_cast %140 : vector<1x8x8x128xf32> to vector<64x128xf32>
    %142 = arith.truncf %141 : vector<64x128xf32> to vector<64x128xbf16>
    %c10 = arith.constant 10 : index
    %c0_101 = arith.constant 0 : index
    %c0_102 = arith.constant 0 : index
    %143 = vector.load %arg2[%c10, %c0_101, %c0_102] : memref<36x128x128xbf16, #tpu.memory_space<vmem>>, vector<1x128x128xbf16>
    %144 = vector.shape_cast %143 : vector<1x128x128xbf16> to vector<128x128xbf16>
    %cst_103 = arith.constant dense<0.000000e+00> : vector<64x128xf32>
    %145 = tpu.matmul %142, %144, %cst_103 {dimension_numbers = #tpu.dot_dimension_numbers<[1], [0], [0], [1], [0, 0, 1, 1], [], []>} : vector<64x128xbf16>, vector<128x128xbf16>, vector<64x128xf32> -> vector<64x128xf32>
    %146 = arith.addf %139, %145 : vector<64x128xf32>
    %c0_104 = arith.constant 0 : index
    %c0_105 = arith.constant 0 : index
    %c2_106 = arith.constant 2 : index
    %c0_107 = arith.constant 0 : index
    %147 = vector.load %arg11[%c0_104, %c0_105, %c2_106, %c0_107] : memref<1x18x18x128xf32, #tpu.memory_space<vmem>>, vector<1x8x8x128xf32>
    %148 = vector.shape_cast %147 : vector<1x8x8x128xf32> to vector<64x128xf32>
    %149 = arith.truncf %148 : vector<64x128xf32> to vector<64x128xbf16>
    %c11 = arith.constant 11 : index
    %c0_108 = arith.constant 0 : index
    %c0_109 = arith.constant 0 : index
    %150 = vector.load %arg2[%c11, %c0_108, %c0_109] : memref<36x128x128xbf16, #tpu.memory_space<vmem>>, vector<1x128x128xbf16>
    %151 = vector.shape_cast %150 : vector<1x128x128xbf16> to vector<128x128xbf16>
    %cst_110 = arith.constant dense<0.000000e+00> : vector<64x128xf32>
    %152 = tpu.matmul %149, %151, %cst_110 {dimension_numbers = #tpu.dot_dimension_numbers<[1], [0], [0], [1], [0, 0, 1, 1], [], []>} : vector<64x128xbf16>, vector<128x128xbf16>, vector<64x128xf32> -> vector<64x128xf32>
    %153 = arith.addf %146, %152 : vector<64x128xf32>
    %c0_111 = arith.constant 0 : index
    %c1_112 = arith.constant 1 : index
    %c0_113 = arith.constant 0 : index
    %c0_114 = arith.constant 0 : index
    %154 = vector.load %arg11[%c0_111, %c1_112, %c0_113, %c0_114] : memref<1x18x18x128xf32, #tpu.memory_space<vmem>>, vector<1x8x8x128xf32>
    %155 = vector.shape_cast %154 : vector<1x8x8x128xf32> to vector<64x128xf32>
    %156 = arith.truncf %155 : vector<64x128xf32> to vector<64x128xbf16>
    %c12 = arith.constant 12 : index
    %c0_115 = arith.constant 0 : index
    %c0_116 = arith.constant 0 : index
    %157 = vector.load %arg2[%c12, %c0_115, %c0_116] : memref<36x128x128xbf16, #tpu.memory_space<vmem>>, vector<1x128x128xbf16>
    %158 = vector.shape_cast %157 : vector<1x128x128xbf16> to vector<128x128xbf16>
    %cst_117 = arith.constant dense<0.000000e+00> : vector<64x128xf32>
    %159 = tpu.matmul %156, %158, %cst_117 {dimension_numbers = #tpu.dot_dimension_numbers<[1], [0], [0], [1], [0, 0, 1, 1], [], []>} : vector<64x128xbf16>, vector<128x128xbf16>, vector<64x128xf32> -> vector<64x128xf32>
    %160 = arith.addf %153, %159 : vector<64x128xf32>
    %c0_118 = arith.constant 0 : index
    %c1_119 = arith.constant 1 : index
    %c1_120 = arith.constant 1 : index
    %c0_121 = arith.constant 0 : index
    %161 = vector.load %arg11[%c0_118, %c1_119, %c1_120, %c0_121] : memref<1x18x18x128xf32, #tpu.memory_space<vmem>>, vector<1x8x8x128xf32>
    %162 = vector.shape_cast %161 : vector<1x8x8x128xf32> to vector<64x128xf32>
    %163 = arith.truncf %162 : vector<64x128xf32> to vector<64x128xbf16>
    %c13 = arith.constant 13 : index
    %c0_122 = arith.constant 0 : index
    %c0_123 = arith.constant 0 : index
    %164 = vector.load %arg2[%c13, %c0_122, %c0_123] : memref<36x128x128xbf16, #tpu.memory_space<vmem>>, vector<1x128x128xbf16>
    %165 = vector.shape_cast %164 : vector<1x128x128xbf16> to vector<128x128xbf16>
    %cst_124 = arith.constant dense<0.000000e+00> : vector<64x128xf32>
    %166 = tpu.matmul %163, %165, %cst_124 {dimension_numbers = #tpu.dot_dimension_numbers<[1], [0], [0], [1], [0, 0, 1, 1], [], []>} : vector<64x128xbf16>, vector<128x128xbf16>, vector<64x128xf32> -> vector<64x128xf32>
    %167 = arith.addf %160, %166 : vector<64x128xf32>
    %c0_125 = arith.constant 0 : index
    %c1_126 = arith.constant 1 : index
    %c2_127 = arith.constant 2 : index
    %c0_128 = arith.constant 0 : index
    %168 = vector.load %arg11[%c0_125, %c1_126, %c2_127, %c0_128] : memref<1x18x18x128xf32, #tpu.memory_space<vmem>>, vector<1x8x8x128xf32>
    %169 = vector.shape_cast %168 : vector<1x8x8x128xf32> to vector<64x128xf32>
    %170 = arith.truncf %169 : vector<64x128xf32> to vector<64x128xbf16>
    %c14 = arith.constant 14 : index
    %c0_129 = arith.constant 0 : index
    %c0_130 = arith.constant 0 : index
    %171 = vector.load %arg2[%c14, %c0_129, %c0_130] : memref<36x128x128xbf16, #tpu.memory_space<vmem>>, vector<1x128x128xbf16>
    %172 = vector.shape_cast %171 : vector<1x128x128xbf16> to vector<128x128xbf16>
    %cst_131 = arith.constant dense<0.000000e+00> : vector<64x128xf32>
    %173 = tpu.matmul %170, %172, %cst_131 {dimension_numbers = #tpu.dot_dimension_numbers<[1], [0], [0], [1], [0, 0, 1, 1], [], []>} : vector<64x128xbf16>, vector<128x128xbf16>, vector<64x128xf32> -> vector<64x128xf32>
    %174 = arith.addf %167, %173 : vector<64x128xf32>
    %c0_132 = arith.constant 0 : index
    %c2_133 = arith.constant 2 : index
    %c0_134 = arith.constant 0 : index
    %c0_135 = arith.constant 0 : index
    %175 = vector.load %arg11[%c0_132, %c2_133, %c0_134, %c0_135] : memref<1x18x18x128xf32, #tpu.memory_space<vmem>>, vector<1x8x8x128xf32>
    %176 = vector.shape_cast %175 : vector<1x8x8x128xf32> to vector<64x128xf32>
    %177 = arith.truncf %176 : vector<64x128xf32> to vector<64x128xbf16>
    %c15 = arith.constant 15 : index
    %c0_136 = arith.constant 0 : index
    %c0_137 = arith.constant 0 : index
    %178 = vector.load %arg2[%c15, %c0_136, %c0_137] : memref<36x128x128xbf16, #tpu.memory_space<vmem>>, vector<1x128x128xbf16>
    %179 = vector.shape_cast %178 : vector<1x128x128xbf16> to vector<128x128xbf16>
    %cst_138 = arith.constant dense<0.000000e+00> : vector<64x128xf32>
    %180 = tpu.matmul %177, %179, %cst_138 {dimension_numbers = #tpu.dot_dimension_numbers<[1], [0], [0], [1], [0, 0, 1, 1], [], []>} : vector<64x128xbf16>, vector<128x128xbf16>, vector<64x128xf32> -> vector<64x128xf32>
    %181 = arith.addf %174, %180 : vector<64x128xf32>
    %c0_139 = arith.constant 0 : index
    %c2_140 = arith.constant 2 : index
    %c1_141 = arith.constant 1 : index
    %c0_142 = arith.constant 0 : index
    %182 = vector.load %arg11[%c0_139, %c2_140, %c1_141, %c0_142] : memref<1x18x18x128xf32, #tpu.memory_space<vmem>>, vector<1x8x8x128xf32>
    %183 = vector.shape_cast %182 : vector<1x8x8x128xf32> to vector<64x128xf32>
    %184 = arith.truncf %183 : vector<64x128xf32> to vector<64x128xbf16>
    %c16 = arith.constant 16 : index
    %c0_143 = arith.constant 0 : index
    %c0_144 = arith.constant 0 : index
    %185 = vector.load %arg2[%c16, %c0_143, %c0_144] : memref<36x128x128xbf16, #tpu.memory_space<vmem>>, vector<1x128x128xbf16>
    %186 = vector.shape_cast %185 : vector<1x128x128xbf16> to vector<128x128xbf16>
    %cst_145 = arith.constant dense<0.000000e+00> : vector<64x128xf32>
    %187 = tpu.matmul %184, %186, %cst_145 {dimension_numbers = #tpu.dot_dimension_numbers<[1], [0], [0], [1], [0, 0, 1, 1], [], []>} : vector<64x128xbf16>, vector<128x128xbf16>, vector<64x128xf32> -> vector<64x128xf32>
    %188 = arith.addf %181, %187 : vector<64x128xf32>
    %c0_146 = arith.constant 0 : index
    %c2_147 = arith.constant 2 : index
    %c2_148 = arith.constant 2 : index
    %c0_149 = arith.constant 0 : index
    %189 = vector.load %arg11[%c0_146, %c2_147, %c2_148, %c0_149] : memref<1x18x18x128xf32, #tpu.memory_space<vmem>>, vector<1x8x8x128xf32>
    %190 = vector.shape_cast %189 : vector<1x8x8x128xf32> to vector<64x128xf32>
    %191 = arith.truncf %190 : vector<64x128xf32> to vector<64x128xbf16>
    %c17 = arith.constant 17 : index
    %c0_150 = arith.constant 0 : index
    %c0_151 = arith.constant 0 : index
    %192 = vector.load %arg2[%c17, %c0_150, %c0_151] : memref<36x128x128xbf16, #tpu.memory_space<vmem>>, vector<1x128x128xbf16>
    %193 = vector.shape_cast %192 : vector<1x128x128xbf16> to vector<128x128xbf16>
    %cst_152 = arith.constant dense<0.000000e+00> : vector<64x128xf32>
    %194 = tpu.matmul %191, %193, %cst_152 {dimension_numbers = #tpu.dot_dimension_numbers<[1], [0], [0], [1], [0, 0, 1, 1], [], []>} : vector<64x128xbf16>, vector<128x128xbf16>, vector<64x128xf32> -> vector<64x128xf32>
    %195 = arith.addf %188, %194 : vector<64x128xf32>
    %c1_153 = arith.constant 1 : index
    %c0_154 = arith.constant 0 : index
    %c0_155 = arith.constant 0 : index
    %196 = vector.load %arg3[%c1_153, %c0_154, %c0_155] : memref<4x1x128xf32, #tpu.memory_space<vmem>>, vector<1x1x128xf32>
    %197 = vector.shape_cast %196 : vector<1x1x128xf32> to vector<1x128xf32>
    %198 = vector.broadcast %197 : vector<1x128xf32> to vector<64x128xf32>
    %199 = arith.addf %195, %198 : vector<64x128xf32>
    %cst_156 = arith.constant 0.000000e+00 : f32
    %200 = vector.broadcast %cst_156 : f32 to vector<64x128xf32>
    %201 = arith.maximumf %199, %200 : vector<64x128xf32>
    %202 = vector.shape_cast %201 : vector<64x128xf32> to vector<1x4x2x8x128xf32>
    %203 = vector.extract_strided_slice %202 {offsets = [0, 0, 0, 0, 0], sizes = [1, 4, 1, 8, 128], strides = [1, 1, 1, 1, 1]} : vector<1x4x2x8x128xf32> to vector<1x4x1x8x128xf32>
    %204 = vector.shape_cast %203 : vector<1x4x1x8x128xf32> to vector<1x4x8x128xf32>
    %205 = vector.extract_strided_slice %202 {offsets = [0, 0, 1, 0, 0], sizes = [1, 4, 1, 8, 128], strides = [1, 1, 1, 1, 1]} : vector<1x4x2x8x128xf32> to vector<1x4x1x8x128xf32>
    %206 = vector.shape_cast %205 : vector<1x4x1x8x128xf32> to vector<1x4x8x128xf32>
    %207 = arith.maximumf %204, %206 : vector<1x4x8x128xf32>
    %208 = vector.extract_strided_slice %207 {offsets = [0, 0, 0, 0], sizes = [1, 4, 1, 128], strides = [1, 1, 1, 1]} : vector<1x4x8x128xf32> to vector<1x4x1x128xf32>
    %209 = vector.shape_cast %208 : vector<1x4x1x128xf32> to vector<1x4x128xf32>
    %210 = vector.extract_strided_slice %207 {offsets = [0, 0, 1, 0], sizes = [1, 4, 1, 128], strides = [1, 1, 1, 1]} : vector<1x4x8x128xf32> to vector<1x4x1x128xf32>
    %211 = vector.shape_cast %210 : vector<1x4x1x128xf32> to vector<1x4x128xf32>
    %212 = arith.maximumf %209, %211 : vector<1x4x128xf32>
    %213 = vector.extract_strided_slice %207 {offsets = [0, 0, 2, 0], sizes = [1, 4, 1, 128], strides = [1, 1, 1, 1]} : vector<1x4x8x128xf32> to vector<1x4x1x128xf32>
    %214 = vector.shape_cast %213 : vector<1x4x1x128xf32> to vector<1x4x128xf32>
    %215 = vector.extract_strided_slice %207 {offsets = [0, 0, 3, 0], sizes = [1, 4, 1, 128], strides = [1, 1, 1, 1]} : vector<1x4x8x128xf32> to vector<1x4x1x128xf32>
    %216 = vector.shape_cast %215 : vector<1x4x1x128xf32> to vector<1x4x128xf32>
    %217 = arith.maximumf %214, %216 : vector<1x4x128xf32>
    %218 = vector.extract_strided_slice %207 {offsets = [0, 0, 4, 0], sizes = [1, 4, 1, 128], strides = [1, 1, 1, 1]} : vector<1x4x8x128xf32> to vector<1x4x1x128xf32>
    %219 = vector.shape_cast %218 : vector<1x4x1x128xf32> to vector<1x4x128xf32>
    %220 = vector.extract_strided_slice %207 {offsets = [0, 0, 5, 0], sizes = [1, 4, 1, 128], strides = [1, 1, 1, 1]} : vector<1x4x8x128xf32> to vector<1x4x1x128xf32>
    %221 = vector.shape_cast %220 : vector<1x4x1x128xf32> to vector<1x4x128xf32>
    %222 = arith.maximumf %219, %221 : vector<1x4x128xf32>
    %223 = vector.extract_strided_slice %207 {offsets = [0, 0, 6, 0], sizes = [1, 4, 1, 128], strides = [1, 1, 1, 1]} : vector<1x4x8x128xf32> to vector<1x4x1x128xf32>
    %224 = vector.shape_cast %223 : vector<1x4x1x128xf32> to vector<1x4x128xf32>
    %225 = vector.extract_strided_slice %207 {offsets = [0, 0, 7, 0], sizes = [1, 4, 1, 128], strides = [1, 1, 1, 1]} : vector<1x4x8x128xf32> to vector<1x4x1x128xf32>
    %226 = vector.shape_cast %225 : vector<1x4x1x128xf32> to vector<1x4x128xf32>
    %227 = arith.maximumf %224, %226 : vector<1x4x128xf32>
    %228 = vector.shape_cast %212 : vector<1x4x128xf32> to vector<1x4x1x128xf32>
    %229 = vector.shape_cast %217 : vector<1x4x128xf32> to vector<1x4x1x128xf32>
    %230 = vector.shape_cast %222 : vector<1x4x128xf32> to vector<1x4x1x128xf32>
    %231 = vector.shape_cast %227 : vector<1x4x128xf32> to vector<1x4x1x128xf32>
    %232 = tpu.concatenate %228, %229, %230, %231 in 2 : vector<1x4x1x128xf32>, vector<1x4x1x128xf32>, vector<1x4x1x128xf32>, vector<1x4x1x128xf32> -> vector<1x4x4x128xf32>
    %cst_157 = arith.constant 0.000000e+00 : f32
    %233 = vector.broadcast %cst_157 : f32 to vector<1x6x6x128xf32>
    %c0_158 = arith.constant 0 : index
    %c0_159 = arith.constant 0 : index
    %c0_160 = arith.constant 0 : index
    %c0_161 = arith.constant 0 : index
    %234 = vector.load %arg11[%c0_158, %c0_159, %c0_160, %c0_161] : memref<1x18x18x128xf32, #tpu.memory_space<vmem>>, vector<1x6x6x128xf32>
    tpu.vector_store %arg11[%c0_158, %c0_159, %c0_160, %c0_161], %233 {strides = array<i32>} : memref<1x18x18x128xf32, #tpu.memory_space<vmem>>, vector<1x6x6x128xf32>,
    %c0_162 = arith.constant 0 : index
    %c1_163 = arith.constant 1 : index
    %c1_164 = arith.constant 1 : index
    %c0_165 = arith.constant 0 : index
    %235 = vector.load %arg11[%c0_162, %c1_163, %c1_164, %c0_165] : memref<1x18x18x128xf32, #tpu.memory_space<vmem>>, vector<1x4x4x128xf32>
    tpu.vector_store %arg11[%c0_162, %c1_163, %c1_164, %c0_165], %232 {strides = array<i32>} : memref<1x18x18x128xf32, #tpu.memory_space<vmem>>, vector<1x4x4x128xf32>,
    %cst_166 = arith.constant 0.000000e+00 : f32
    %236 = vector.broadcast %cst_166 : f32 to vector<16x128xf32>
    %c0_167 = arith.constant 0 : index
    %c0_168 = arith.constant 0 : index
    %c0_169 = arith.constant 0 : index
    %c0_170 = arith.constant 0 : index
    %237 = vector.load %arg11[%c0_167, %c0_168, %c0_169, %c0_170] : memref<1x18x18x128xf32, #tpu.memory_space<vmem>>, vector<1x4x4x128xf32>
    %238 = vector.shape_cast %237 : vector<1x4x4x128xf32> to vector<16x128xf32>
    %239 = arith.truncf %238 : vector<16x128xf32> to vector<16x128xbf16>
    %c18 = arith.constant 18 : index
    %c0_171 = arith.constant 0 : index
    %c0_172 = arith.constant 0 : index
    %240 = vector.load %arg2[%c18, %c0_171, %c0_172] : memref<36x128x128xbf16, #tpu.memory_space<vmem>>, vector<1x128x128xbf16>
    %241 = vector.shape_cast %240 : vector<1x128x128xbf16> to vector<128x128xbf16>
    %cst_173 = arith.constant dense<0.000000e+00> : vector<16x128xf32>
    %242 = tpu.matmul %239, %241, %cst_173 {dimension_numbers = #tpu.dot_dimension_numbers<[1], [0], [0], [1], [0, 0, 1, 1], [], []>} : vector<16x128xbf16>, vector<128x128xbf16>, vector<16x128xf32> -> vector<16x128xf32>
    %243 = arith.addf %236, %242 : vector<16x128xf32>
    %c0_174 = arith.constant 0 : index
    %c0_175 = arith.constant 0 : index
    %c1_176 = arith.constant 1 : index
    %c0_177 = arith.constant 0 : index
    %244 = vector.load %arg11[%c0_174, %c0_175, %c1_176, %c0_177] : memref<1x18x18x128xf32, #tpu.memory_space<vmem>>, vector<1x4x4x128xf32>
    %245 = vector.shape_cast %244 : vector<1x4x4x128xf32> to vector<16x128xf32>
    %246 = arith.truncf %245 : vector<16x128xf32> to vector<16x128xbf16>
    %c19 = arith.constant 19 : index
    %c0_178 = arith.constant 0 : index
    %c0_179 = arith.constant 0 : index
    %247 = vector.load %arg2[%c19, %c0_178, %c0_179] : memref<36x128x128xbf16, #tpu.memory_space<vmem>>, vector<1x128x128xbf16>
    %248 = vector.shape_cast %247 : vector<1x128x128xbf16> to vector<128x128xbf16>
    %cst_180 = arith.constant dense<0.000000e+00> : vector<16x128xf32>
    %249 = tpu.matmul %246, %248, %cst_180 {dimension_numbers = #tpu.dot_dimension_numbers<[1], [0], [0], [1], [0, 0, 1, 1], [], []>} : vector<16x128xbf16>, vector<128x128xbf16>, vector<16x128xf32> -> vector<16x128xf32>
    %250 = arith.addf %243, %249 : vector<16x128xf32>
    %c0_181 = arith.constant 0 : index
    %c0_182 = arith.constant 0 : index
    %c2_183 = arith.constant 2 : index
    %c0_184 = arith.constant 0 : index
    %251 = vector.load %arg11[%c0_181, %c0_182, %c2_183, %c0_184] : memref<1x18x18x128xf32, #tpu.memory_space<vmem>>, vector<1x4x4x128xf32>
    %252 = vector.shape_cast %251 : vector<1x4x4x128xf32> to vector<16x128xf32>
    %253 = arith.truncf %252 : vector<16x128xf32> to vector<16x128xbf16>
    %c20 = arith.constant 20 : index
    %c0_185 = arith.constant 0 : index
    %c0_186 = arith.constant 0 : index
    %254 = vector.load %arg2[%c20, %c0_185, %c0_186] : memref<36x128x128xbf16, #tpu.memory_space<vmem>>, vector<1x128x128xbf16>
    %255 = vector.shape_cast %254 : vector<1x128x128xbf16> to vector<128x128xbf16>
    %cst_187 = arith.constant dense<0.000000e+00> : vector<16x128xf32>
    %256 = tpu.matmul %253, %255, %cst_187 {dimension_numbers = #tpu.dot_dimension_numbers<[1], [0], [0], [1], [0, 0, 1, 1], [], []>} : vector<16x128xbf16>, vector<128x128xbf16>, vector<16x128xf32> -> vector<16x128xf32>
    %257 = arith.addf %250, %256 : vector<16x128xf32>
    %c0_188 = arith.constant 0 : index
    %c1_189 = arith.constant 1 : index
    %c0_190 = arith.constant 0 : index
    %c0_191 = arith.constant 0 : index
    %258 = vector.load %arg11[%c0_188, %c1_189, %c0_190, %c0_191] : memref<1x18x18x128xf32, #tpu.memory_space<vmem>>, vector<1x4x4x128xf32>
    %259 = vector.shape_cast %258 : vector<1x4x4x128xf32> to vector<16x128xf32>
    %260 = arith.truncf %259 : vector<16x128xf32> to vector<16x128xbf16>
    %c21 = arith.constant 21 : index
    %c0_192 = arith.constant 0 : index
    %c0_193 = arith.constant 0 : index
    %261 = vector.load %arg2[%c21, %c0_192, %c0_193] : memref<36x128x128xbf16, #tpu.memory_space<vmem>>, vector<1x128x128xbf16>
    %262 = vector.shape_cast %261 : vector<1x128x128xbf16> to vector<128x128xbf16>
    %cst_194 = arith.constant dense<0.000000e+00> : vector<16x128xf32>
    %263 = tpu.matmul %260, %262, %cst_194 {dimension_numbers = #tpu.dot_dimension_numbers<[1], [0], [0], [1], [0, 0, 1, 1], [], []>} : vector<16x128xbf16>, vector<128x128xbf16>, vector<16x128xf32> -> vector<16x128xf32>
    %264 = arith.addf %257, %263 : vector<16x128xf32>
    %c0_195 = arith.constant 0 : index
    %c1_196 = arith.constant 1 : index
    %c1_197 = arith.constant 1 : index
    %c0_198 = arith.constant 0 : index
    %265 = vector.load %arg11[%c0_195, %c1_196, %c1_197, %c0_198] : memref<1x18x18x128xf32, #tpu.memory_space<vmem>>, vector<1x4x4x128xf32>
    %266 = vector.shape_cast %265 : vector<1x4x4x128xf32> to vector<16x128xf32>
    %267 = arith.truncf %266 : vector<16x128xf32> to vector<16x128xbf16>
    %c22 = arith.constant 22 : index
    %c0_199 = arith.constant 0 : index
    %c0_200 = arith.constant 0 : index
    %268 = vector.load %arg2[%c22, %c0_199, %c0_200] : memref<36x128x128xbf16, #tpu.memory_space<vmem>>, vector<1x128x128xbf16>
    %269 = vector.shape_cast %268 : vector<1x128x128xbf16> to vector<128x128xbf16>
    %cst_201 = arith.constant dense<0.000000e+00> : vector<16x128xf32>
    %270 = tpu.matmul %267, %269, %cst_201 {dimension_numbers = #tpu.dot_dimension_numbers<[1], [0], [0], [1], [0, 0, 1, 1], [], []>} : vector<16x128xbf16>, vector<128x128xbf16>, vector<16x128xf32> -> vector<16x128xf32>
    %271 = arith.addf %264, %270 : vector<16x128xf32>
    %c0_202 = arith.constant 0 : index
    %c1_203 = arith.constant 1 : index
    %c2_204 = arith.constant 2 : index
    %c0_205 = arith.constant 0 : index
    %272 = vector.load %arg11[%c0_202, %c1_203, %c2_204, %c0_205] : memref<1x18x18x128xf32, #tpu.memory_space<vmem>>, vector<1x4x4x128xf32>
    %273 = vector.shape_cast %272 : vector<1x4x4x128xf32> to vector<16x128xf32>
    %274 = arith.truncf %273 : vector<16x128xf32> to vector<16x128xbf16>
    %c23 = arith.constant 23 : index
    %c0_206 = arith.constant 0 : index
    %c0_207 = arith.constant 0 : index
    %275 = vector.load %arg2[%c23, %c0_206, %c0_207] : memref<36x128x128xbf16, #tpu.memory_space<vmem>>, vector<1x128x128xbf16>
    %276 = vector.shape_cast %275 : vector<1x128x128xbf16> to vector<128x128xbf16>
    %cst_208 = arith.constant dense<0.000000e+00> : vector<16x128xf32>
    %277 = tpu.matmul %274, %276, %cst_208 {dimension_numbers = #tpu.dot_dimension_numbers<[1], [0], [0], [1], [0, 0, 1, 1], [], []>} : vector<16x128xbf16>, vector<128x128xbf16>, vector<16x128xf32> -> vector<16x128xf32>
    %278 = arith.addf %271, %277 : vector<16x128xf32>
    %c0_209 = arith.constant 0 : index
    %c2_210 = arith.constant 2 : index
    %c0_211 = arith.constant 0 : index
    %c0_212 = arith.constant 0 : index
    %279 = vector.load %arg11[%c0_209, %c2_210, %c0_211, %c0_212] : memref<1x18x18x128xf32, #tpu.memory_space<vmem>>, vector<1x4x4x128xf32>
    %280 = vector.shape_cast %279 : vector<1x4x4x128xf32> to vector<16x128xf32>
    %281 = arith.truncf %280 : vector<16x128xf32> to vector<16x128xbf16>
    %c24 = arith.constant 24 : index
    %c0_213 = arith.constant 0 : index
    %c0_214 = arith.constant 0 : index
    %282 = vector.load %arg2[%c24, %c0_213, %c0_214] : memref<36x128x128xbf16, #tpu.memory_space<vmem>>, vector<1x128x128xbf16>
    %283 = vector.shape_cast %282 : vector<1x128x128xbf16> to vector<128x128xbf16>
    %cst_215 = arith.constant dense<0.000000e+00> : vector<16x128xf32>
    %284 = tpu.matmul %281, %283, %cst_215 {dimension_numbers = #tpu.dot_dimension_numbers<[1], [0], [0], [1], [0, 0, 1, 1], [], []>} : vector<16x128xbf16>, vector<128x128xbf16>, vector<16x128xf32> -> vector<16x128xf32>
    %285 = arith.addf %278, %284 : vector<16x128xf32>
    %c0_216 = arith.constant 0 : index
    %c2_217 = arith.constant 2 : index
    %c1_218 = arith.constant 1 : index
    %c0_219 = arith.constant 0 : index
    %286 = vector.load %arg11[%c0_216, %c2_217, %c1_218, %c0_219] : memref<1x18x18x128xf32, #tpu.memory_space<vmem>>, vector<1x4x4x128xf32>
    %287 = vector.shape_cast %286 : vector<1x4x4x128xf32> to vector<16x128xf32>
    %288 = arith.truncf %287 : vector<16x128xf32> to vector<16x128xbf16>
    %c25 = arith.constant 25 : index
    %c0_220 = arith.constant 0 : index
    %c0_221 = arith.constant 0 : index
    %289 = vector.load %arg2[%c25, %c0_220, %c0_221] : memref<36x128x128xbf16, #tpu.memory_space<vmem>>, vector<1x128x128xbf16>
    %290 = vector.shape_cast %289 : vector<1x128x128xbf16> to vector<128x128xbf16>
    %cst_222 = arith.constant dense<0.000000e+00> : vector<16x128xf32>
    %291 = tpu.matmul %288, %290, %cst_222 {dimension_numbers = #tpu.dot_dimension_numbers<[1], [0], [0], [1], [0, 0, 1, 1], [], []>} : vector<16x128xbf16>, vector<128x128xbf16>, vector<16x128xf32> -> vector<16x128xf32>
    %292 = arith.addf %285, %291 : vector<16x128xf32>
    %c0_223 = arith.constant 0 : index
    %c2_224 = arith.constant 2 : index
    %c2_225 = arith.constant 2 : index
    %c0_226 = arith.constant 0 : index
    %293 = vector.load %arg11[%c0_223, %c2_224, %c2_225, %c0_226] : memref<1x18x18x128xf32, #tpu.memory_space<vmem>>, vector<1x4x4x128xf32>
    %294 = vector.shape_cast %293 : vector<1x4x4x128xf32> to vector<16x128xf32>
    %295 = arith.truncf %294 : vector<16x128xf32> to vector<16x128xbf16>
    %c26 = arith.constant 26 : index
    %c0_227 = arith.constant 0 : index
    %c0_228 = arith.constant 0 : index
    %296 = vector.load %arg2[%c26, %c0_227, %c0_228] : memref<36x128x128xbf16, #tpu.memory_space<vmem>>, vector<1x128x128xbf16>
    %297 = vector.shape_cast %296 : vector<1x128x128xbf16> to vector<128x128xbf16>
    %cst_229 = arith.constant dense<0.000000e+00> : vector<16x128xf32>
    %298 = tpu.matmul %295, %297, %cst_229 {dimension_numbers = #tpu.dot_dimension_numbers<[1], [0], [0], [1], [0, 0, 1, 1], [], []>} : vector<16x128xbf16>, vector<128x128xbf16>, vector<16x128xf32> -> vector<16x128xf32>
    %299 = arith.addf %292, %298 : vector<16x128xf32>
    %c2_230 = arith.constant 2 : index
    %c0_231 = arith.constant 0 : index
    %c0_232 = arith.constant 0 : index
    %300 = vector.load %arg3[%c2_230, %c0_231, %c0_232] : memref<4x1x128xf32, #tpu.memory_space<vmem>>, vector<1x1x128xf32>
    %301 = vector.shape_cast %300 : vector<1x1x128xf32> to vector<1x128xf32>
    %302 = vector.broadcast %301 : vector<1x128xf32> to vector<16x128xf32>
    %303 = arith.addf %299, %302 : vector<16x128xf32>
    %cst_233 = arith.constant 0.000000e+00 : f32
    %304 = vector.broadcast %cst_233 : f32 to vector<16x128xf32>
    %305 = arith.maximumf %303, %304 : vector<16x128xf32>
    %306 = vector.shape_cast %305 : vector<16x128xf32> to vector<1x2x2x4x128xf32>
    %307 = vector.extract_strided_slice %306 {offsets = [0, 0, 0, 0, 0], sizes = [1, 2, 1, 4, 128], strides = [1, 1, 1, 1, 1]} : vector<1x2x2x4x128xf32> to vector<1x2x1x4x128xf32>
    %308 = vector.shape_cast %307 : vector<1x2x1x4x128xf32> to vector<1x2x4x128xf32>
    %309 = vector.extract_strided_slice %306 {offsets = [0, 0, 1, 0, 0], sizes = [1, 2, 1, 4, 128], strides = [1, 1, 1, 1, 1]} : vector<1x2x2x4x128xf32> to vector<1x2x1x4x128xf32>
    %310 = vector.shape_cast %309 : vector<1x2x1x4x128xf32> to vector<1x2x4x128xf32>
    %311 = arith.maximumf %308, %310 : vector<1x2x4x128xf32>
    %312 = vector.extract_strided_slice %311 {offsets = [0, 0, 0, 0], sizes = [1, 2, 1, 128], strides = [1, 1, 1, 1]} : vector<1x2x4x128xf32> to vector<1x2x1x128xf32>
    %313 = vector.shape_cast %312 : vector<1x2x1x128xf32> to vector<1x2x128xf32>
    %314 = vector.extract_strided_slice %311 {offsets = [0, 0, 1, 0], sizes = [1, 2, 1, 128], strides = [1, 1, 1, 1]} : vector<1x2x4x128xf32> to vector<1x2x1x128xf32>
    %315 = vector.shape_cast %314 : vector<1x2x1x128xf32> to vector<1x2x128xf32>
    %316 = arith.maximumf %313, %315 : vector<1x2x128xf32>
    %317 = vector.extract_strided_slice %311 {offsets = [0, 0, 2, 0], sizes = [1, 2, 1, 128], strides = [1, 1, 1, 1]} : vector<1x2x4x128xf32> to vector<1x2x1x128xf32>
    %318 = vector.shape_cast %317 : vector<1x2x1x128xf32> to vector<1x2x128xf32>
    %319 = vector.extract_strided_slice %311 {offsets = [0, 0, 3, 0], sizes = [1, 2, 1, 128], strides = [1, 1, 1, 1]} : vector<1x2x4x128xf32> to vector<1x2x1x128xf32>
    %320 = vector.shape_cast %319 : vector<1x2x1x128xf32> to vector<1x2x128xf32>
    %321 = arith.maximumf %318, %320 : vector<1x2x128xf32>
    %322 = vector.shape_cast %316 : vector<1x2x128xf32> to vector<1x2x1x128xf32>
    %323 = vector.shape_cast %321 : vector<1x2x128xf32> to vector<1x2x1x128xf32>
    %324 = tpu.concatenate %322, %323 in 2 : vector<1x2x1x128xf32>, vector<1x2x1x128xf32> -> vector<1x2x2x128xf32>
    %cst_234 = arith.constant 0.000000e+00 : f32
    %325 = vector.broadcast %cst_234 : f32 to vector<1x4x4x128xf32>
    %c0_235 = arith.constant 0 : index
    %c0_236 = arith.constant 0 : index
    %c0_237 = arith.constant 0 : index
    %c0_238 = arith.constant 0 : index
    %326 = vector.load %arg11[%c0_235, %c0_236, %c0_237, %c0_238] : memref<1x18x18x128xf32, #tpu.memory_space<vmem>>, vector<1x4x4x128xf32>
    tpu.vector_store %arg11[%c0_235, %c0_236, %c0_237, %c0_238], %325 {strides = array<i32>} : memref<1x18x18x128xf32, #tpu.memory_space<vmem>>, vector<1x4x4x128xf32>,
    %c0_239 = arith.constant 0 : index
    %c1_240 = arith.constant 1 : index
    %c1_241 = arith.constant 1 : index
    %c0_242 = arith.constant 0 : index
    %327 = vector.load %arg11[%c0_239, %c1_240, %c1_241, %c0_242] : memref<1x18x18x128xf32, #tpu.memory_space<vmem>>, vector<1x2x2x128xf32>
    tpu.vector_store %arg11[%c0_239, %c1_240, %c1_241, %c0_242], %324 {strides = array<i32>} : memref<1x18x18x128xf32, #tpu.memory_space<vmem>>, vector<1x2x2x128xf32>,
    %cst_243 = arith.constant 0.000000e+00 : f32
    %328 = vector.broadcast %cst_243 : f32 to vector<4x128xf32>
    %c0_244 = arith.constant 0 : index
    %c0_245 = arith.constant 0 : index
    %c0_246 = arith.constant 0 : index
    %c0_247 = arith.constant 0 : index
    %329 = vector.load %arg11[%c0_244, %c0_245, %c0_246, %c0_247] : memref<1x18x18x128xf32, #tpu.memory_space<vmem>>, vector<1x2x2x128xf32>
    %330 = vector.shape_cast %329 : vector<1x2x2x128xf32> to vector<4x128xf32>
    %331 = arith.truncf %330 : vector<4x128xf32> to vector<4x128xbf16>
    %c27 = arith.constant 27 : index
    %c0_248 = arith.constant 0 : index
    %c0_249 = arith.constant 0 : index
    %332 = vector.load %arg2[%c27, %c0_248, %c0_249] : memref<36x128x128xbf16, #tpu.memory_space<vmem>>, vector<1x128x128xbf16>
    %333 = vector.shape_cast %332 : vector<1x128x128xbf16> to vector<128x128xbf16>
    %cst_250 = arith.constant dense<0.000000e+00> : vector<4x128xf32>
    %334 = tpu.matmul %331, %333, %cst_250 {dimension_numbers = #tpu.dot_dimension_numbers<[1], [0], [0], [1], [0, 0, 1, 1], [], []>} : vector<4x128xbf16>, vector<128x128xbf16>, vector<4x128xf32> -> vector<4x128xf32>
    %335 = arith.addf %328, %334 : vector<4x128xf32>
    %c0_251 = arith.constant 0 : index
    %c0_252 = arith.constant 0 : index
    %c1_253 = arith.constant 1 : index
    %c0_254 = arith.constant 0 : index
    %336 = vector.load %arg11[%c0_251, %c0_252, %c1_253, %c0_254] : memref<1x18x18x128xf32, #tpu.memory_space<vmem>>, vector<1x2x2x128xf32>
    %337 = vector.shape_cast %336 : vector<1x2x2x128xf32> to vector<4x128xf32>
    %338 = arith.truncf %337 : vector<4x128xf32> to vector<4x128xbf16>
    %c28 = arith.constant 28 : index
    %c0_255 = arith.constant 0 : index
    %c0_256 = arith.constant 0 : index
    %339 = vector.load %arg2[%c28, %c0_255, %c0_256] : memref<36x128x128xbf16, #tpu.memory_space<vmem>>, vector<1x128x128xbf16>
    %340 = vector.shape_cast %339 : vector<1x128x128xbf16> to vector<128x128xbf16>
    %cst_257 = arith.constant dense<0.000000e+00> : vector<4x128xf32>
    %341 = tpu.matmul %338, %340, %cst_257 {dimension_numbers = #tpu.dot_dimension_numbers<[1], [0], [0], [1], [0, 0, 1, 1], [], []>} : vector<4x128xbf16>, vector<128x128xbf16>, vector<4x128xf32> -> vector<4x128xf32>
    %342 = arith.addf %335, %341 : vector<4x128xf32>
    %c0_258 = arith.constant 0 : index
    %c0_259 = arith.constant 0 : index
    %c2_260 = arith.constant 2 : index
    %c0_261 = arith.constant 0 : index
    %343 = vector.load %arg11[%c0_258, %c0_259, %c2_260, %c0_261] : memref<1x18x18x128xf32, #tpu.memory_space<vmem>>, vector<1x2x2x128xf32>
    %344 = vector.shape_cast %343 : vector<1x2x2x128xf32> to vector<4x128xf32>
    %345 = arith.truncf %344 : vector<4x128xf32> to vector<4x128xbf16>
    %c29 = arith.constant 29 : index
    %c0_262 = arith.constant 0 : index
    %c0_263 = arith.constant 0 : index
    %346 = vector.load %arg2[%c29, %c0_262, %c0_263] : memref<36x128x128xbf16, #tpu.memory_space<vmem>>, vector<1x128x128xbf16>
    %347 = vector.shape_cast %346 : vector<1x128x128xbf16> to vector<128x128xbf16>
    %cst_264 = arith.constant dense<0.000000e+00> : vector<4x128xf32>
    %348 = tpu.matmul %345, %347, %cst_264 {dimension_numbers = #tpu.dot_dimension_numbers<[1], [0], [0], [1], [0, 0, 1, 1], [], []>} : vector<4x128xbf16>, vector<128x128xbf16>, vector<4x128xf32> -> vector<4x128xf32>
    %349 = arith.addf %342, %348 : vector<4x128xf32>
    %c0_265 = arith.constant 0 : index
    %c1_266 = arith.constant 1 : index
    %c0_267 = arith.constant 0 : index
    %c0_268 = arith.constant 0 : index
    %350 = vector.load %arg11[%c0_265, %c1_266, %c0_267, %c0_268] : memref<1x18x18x128xf32, #tpu.memory_space<vmem>>, vector<1x2x2x128xf32>
    %351 = vector.shape_cast %350 : vector<1x2x2x128xf32> to vector<4x128xf32>
    %352 = arith.truncf %351 : vector<4x128xf32> to vector<4x128xbf16>
    %c30 = arith.constant 30 : index
    %c0_269 = arith.constant 0 : index
    %c0_270 = arith.constant 0 : index
    %353 = vector.load %arg2[%c30, %c0_269, %c0_270] : memref<36x128x128xbf16, #tpu.memory_space<vmem>>, vector<1x128x128xbf16>
    %354 = vector.shape_cast %353 : vector<1x128x128xbf16> to vector<128x128xbf16>
    %cst_271 = arith.constant dense<0.000000e+00> : vector<4x128xf32>
    %355 = tpu.matmul %352, %354, %cst_271 {dimension_numbers = #tpu.dot_dimension_numbers<[1], [0], [0], [1], [0, 0, 1, 1], [], []>} : vector<4x128xbf16>, vector<128x128xbf16>, vector<4x128xf32> -> vector<4x128xf32>
    %356 = arith.addf %349, %355 : vector<4x128xf32>
    %c0_272 = arith.constant 0 : index
    %c1_273 = arith.constant 1 : index
    %c1_274 = arith.constant 1 : index
    %c0_275 = arith.constant 0 : index
    %357 = vector.load %arg11[%c0_272, %c1_273, %c1_274, %c0_275] : memref<1x18x18x128xf32, #tpu.memory_space<vmem>>, vector<1x2x2x128xf32>
    %358 = vector.shape_cast %357 : vector<1x2x2x128xf32> to vector<4x128xf32>
    %359 = arith.truncf %358 : vector<4x128xf32> to vector<4x128xbf16>
    %c31 = arith.constant 31 : index
    %c0_276 = arith.constant 0 : index
    %c0_277 = arith.constant 0 : index
    %360 = vector.load %arg2[%c31, %c0_276, %c0_277] : memref<36x128x128xbf16, #tpu.memory_space<vmem>>, vector<1x128x128xbf16>
    %361 = vector.shape_cast %360 : vector<1x128x128xbf16> to vector<128x128xbf16>
    %cst_278 = arith.constant dense<0.000000e+00> : vector<4x128xf32>
    %362 = tpu.matmul %359, %361, %cst_278 {dimension_numbers = #tpu.dot_dimension_numbers<[1], [0], [0], [1], [0, 0, 1, 1], [], []>} : vector<4x128xbf16>, vector<128x128xbf16>, vector<4x128xf32> -> vector<4x128xf32>
    %363 = arith.addf %356, %362 : vector<4x128xf32>
    %c0_279 = arith.constant 0 : index
    %c1_280 = arith.constant 1 : index
    %c2_281 = arith.constant 2 : index
    %c0_282 = arith.constant 0 : index
    %364 = vector.load %arg11[%c0_279, %c1_280, %c2_281, %c0_282] : memref<1x18x18x128xf32, #tpu.memory_space<vmem>>, vector<1x2x2x128xf32>
    %365 = vector.shape_cast %364 : vector<1x2x2x128xf32> to vector<4x128xf32>
    %366 = arith.truncf %365 : vector<4x128xf32> to vector<4x128xbf16>
    %c32 = arith.constant 32 : index
    %c0_283 = arith.constant 0 : index
    %c0_284 = arith.constant 0 : index
    %367 = vector.load %arg2[%c32, %c0_283, %c0_284] : memref<36x128x128xbf16, #tpu.memory_space<vmem>>, vector<1x128x128xbf16>
    %368 = vector.shape_cast %367 : vector<1x128x128xbf16> to vector<128x128xbf16>
    %cst_285 = arith.constant dense<0.000000e+00> : vector<4x128xf32>
    %369 = tpu.matmul %366, %368, %cst_285 {dimension_numbers = #tpu.dot_dimension_numbers<[1], [0], [0], [1], [0, 0, 1, 1], [], []>} : vector<4x128xbf16>, vector<128x128xbf16>, vector<4x128xf32> -> vector<4x128xf32>
    %370 = arith.addf %363, %369 : vector<4x128xf32>
    %c0_286 = arith.constant 0 : index
    %c2_287 = arith.constant 2 : index
    %c0_288 = arith.constant 0 : index
    %c0_289 = arith.constant 0 : index
    %371 = vector.load %arg11[%c0_286, %c2_287, %c0_288, %c0_289] : memref<1x18x18x128xf32, #tpu.memory_space<vmem>>, vector<1x2x2x128xf32>
    %372 = vector.shape_cast %371 : vector<1x2x2x128xf32> to vector<4x128xf32>
    %373 = arith.truncf %372 : vector<4x128xf32> to vector<4x128xbf16>
    %c33 = arith.constant 33 : index
    %c0_290 = arith.constant 0 : index
    %c0_291 = arith.constant 0 : index
    %374 = vector.load %arg2[%c33, %c0_290, %c0_291] : memref<36x128x128xbf16, #tpu.memory_space<vmem>>, vector<1x128x128xbf16>
    %375 = vector.shape_cast %374 : vector<1x128x128xbf16> to vector<128x128xbf16>
    %cst_292 = arith.constant dense<0.000000e+00> : vector<4x128xf32>
    %376 = tpu.matmul %373, %375, %cst_292 {dimension_numbers = #tpu.dot_dimension_numbers<[1], [0], [0], [1], [0, 0, 1, 1], [], []>} : vector<4x128xbf16>, vector<128x128xbf16>, vector<4x128xf32> -> vector<4x128xf32>
    %377 = arith.addf %370, %376 : vector<4x128xf32>
    %c0_293 = arith.constant 0 : index
    %c2_294 = arith.constant 2 : index
    %c1_295 = arith.constant 1 : index
    %c0_296 = arith.constant 0 : index
    %378 = vector.load %arg11[%c0_293, %c2_294, %c1_295, %c0_296] : memref<1x18x18x128xf32, #tpu.memory_space<vmem>>, vector<1x2x2x128xf32>
    %379 = vector.shape_cast %378 : vector<1x2x2x128xf32> to vector<4x128xf32>
    %380 = arith.truncf %379 : vector<4x128xf32> to vector<4x128xbf16>
    %c34 = arith.constant 34 : index
    %c0_297 = arith.constant 0 : index
    %c0_298 = arith.constant 0 : index
    %381 = vector.load %arg2[%c34, %c0_297, %c0_298] : memref<36x128x128xbf16, #tpu.memory_space<vmem>>, vector<1x128x128xbf16>
    %382 = vector.shape_cast %381 : vector<1x128x128xbf16> to vector<128x128xbf16>
    %cst_299 = arith.constant dense<0.000000e+00> : vector<4x128xf32>
    %383 = tpu.matmul %380, %382, %cst_299 {dimension_numbers = #tpu.dot_dimension_numbers<[1], [0], [0], [1], [0, 0, 1, 1], [], []>} : vector<4x128xbf16>, vector<128x128xbf16>, vector<4x128xf32> -> vector<4x128xf32>
    %384 = arith.addf %377, %383 : vector<4x128xf32>
    %c0_300 = arith.constant 0 : index
    %c2_301 = arith.constant 2 : index
    %c2_302 = arith.constant 2 : index
    %c0_303 = arith.constant 0 : index
    %385 = vector.load %arg11[%c0_300, %c2_301, %c2_302, %c0_303] : memref<1x18x18x128xf32, #tpu.memory_space<vmem>>, vector<1x2x2x128xf32>
    %386 = vector.shape_cast %385 : vector<1x2x2x128xf32> to vector<4x128xf32>
    %387 = arith.truncf %386 : vector<4x128xf32> to vector<4x128xbf16>
    %c35 = arith.constant 35 : index
    %c0_304 = arith.constant 0 : index
    %c0_305 = arith.constant 0 : index
    %388 = vector.load %arg2[%c35, %c0_304, %c0_305] : memref<36x128x128xbf16, #tpu.memory_space<vmem>>, vector<1x128x128xbf16>
    %389 = vector.shape_cast %388 : vector<1x128x128xbf16> to vector<128x128xbf16>
    %cst_306 = arith.constant dense<0.000000e+00> : vector<4x128xf32>
    %390 = tpu.matmul %387, %389, %cst_306 {dimension_numbers = #tpu.dot_dimension_numbers<[1], [0], [0], [1], [0, 0, 1, 1], [], []>} : vector<4x128xbf16>, vector<128x128xbf16>, vector<4x128xf32> -> vector<4x128xf32>
    %391 = arith.addf %384, %390 : vector<4x128xf32>
    %c3_307 = arith.constant 3 : index
    %c0_308 = arith.constant 0 : index
    %c0_309 = arith.constant 0 : index
    %392 = vector.load %arg3[%c3_307, %c0_308, %c0_309] : memref<4x1x128xf32, #tpu.memory_space<vmem>>, vector<1x1x128xf32>
    %393 = vector.shape_cast %392 : vector<1x1x128xf32> to vector<1x128xf32>
    %394 = vector.broadcast %393 : vector<1x128xf32> to vector<4x128xf32>
    %395 = arith.addf %391, %394 : vector<4x128xf32>
    %cst_310 = arith.constant 0.000000e+00 : f32
    %396 = vector.broadcast %cst_310 : f32 to vector<4x128xf32>
    %397 = arith.maximumf %395, %396 : vector<4x128xf32>
    %398 = vector.shape_cast %397 : vector<4x128xf32> to vector<1x2x2x128xf32>
    %cst_311 = arith.constant 0.000000e+00 : f32
    %399 = vector.broadcast %cst_311 : f32 to vector<1x512xf32>
    %400 = vector.extract_strided_slice %398 {offsets = [0, 0, 0, 0], sizes = [1, 1, 1, 128], strides = [1, 1, 1, 1]} : vector<1x2x2x128xf32> to vector<1x1x1x128xf32>
    %401 = vector.shape_cast %400 : vector<1x1x1x128xf32> to vector<1x128xf32>
    %402 = arith.truncf %401 : vector<1x128xf32> to vector<1x128xbf16>
    %c0_312 = arith.constant 0 : index
    %c0_313 = arith.constant 0 : index
    %c0_314 = arith.constant 0 : index
    %403 = vector.load %arg4[%c0_312, %c0_313, %c0_314] : memref<4x128x512xbf16, #tpu.memory_space<vmem>>, vector<1x128x512xbf16>
    %404 = vector.shape_cast %403 : vector<1x128x512xbf16> to vector<128x512xbf16>
    %cst_315 = arith.constant dense<0.000000e+00> : vector<1x512xf32>
    %405 = tpu.matmul %402, %404, %cst_315 {dimension_numbers = #tpu.dot_dimension_numbers<[1], [0], [0], [1], [0, 0, 1, 1], [], []>} : vector<1x128xbf16>, vector<128x512xbf16>, vector<1x512xf32> -> vector<1x512xf32>
    %406 = arith.addf %399, %405 : vector<1x512xf32>
    %407 = vector.extract_strided_slice %398 {offsets = [0, 0, 1, 0], sizes = [1, 1, 1, 128], strides = [1, 1, 1, 1]} : vector<1x2x2x128xf32> to vector<1x1x1x128xf32>
    %408 = vector.shape_cast %407 : vector<1x1x1x128xf32> to vector<1x128xf32>
    %409 = arith.truncf %408 : vector<1x128xf32> to vector<1x128xbf16>
    %c1_316 = arith.constant 1 : index
    %c0_317 = arith.constant 0 : index
    %c0_318 = arith.constant 0 : index
    %410 = vector.load %arg4[%c1_316, %c0_317, %c0_318] : memref<4x128x512xbf16, #tpu.memory_space<vmem>>, vector<1x128x512xbf16>
    %411 = vector.shape_cast %410 : vector<1x128x512xbf16> to vector<128x512xbf16>
    %cst_319 = arith.constant dense<0.000000e+00> : vector<1x512xf32>
    %412 = tpu.matmul %409, %411, %cst_319 {dimension_numbers = #tpu.dot_dimension_numbers<[1], [0], [0], [1], [0, 0, 1, 1], [], []>} : vector<1x128xbf16>, vector<128x512xbf16>, vector<1x512xf32> -> vector<1x512xf32>
    %413 = arith.addf %406, %412 : vector<1x512xf32>
    %414 = vector.extract_strided_slice %398 {offsets = [0, 1, 0, 0], sizes = [1, 1, 1, 128], strides = [1, 1, 1, 1]} : vector<1x2x2x128xf32> to vector<1x1x1x128xf32>
    %415 = vector.shape_cast %414 : vector<1x1x1x128xf32> to vector<1x128xf32>
    %416 = arith.truncf %415 : vector<1x128xf32> to vector<1x128xbf16>
    %c2_320 = arith.constant 2 : index
    %c0_321 = arith.constant 0 : index
    %c0_322 = arith.constant 0 : index
    %417 = vector.load %arg4[%c2_320, %c0_321, %c0_322] : memref<4x128x512xbf16, #tpu.memory_space<vmem>>, vector<1x128x512xbf16>
    %418 = vector.shape_cast %417 : vector<1x128x512xbf16> to vector<128x512xbf16>
    %cst_323 = arith.constant dense<0.000000e+00> : vector<1x512xf32>
    %419 = tpu.matmul %416, %418, %cst_323 {dimension_numbers = #tpu.dot_dimension_numbers<[1], [0], [0], [1], [0, 0, 1, 1], [], []>} : vector<1x128xbf16>, vector<128x512xbf16>, vector<1x512xf32> -> vector<1x512xf32>
    %420 = arith.addf %413, %419 : vector<1x512xf32>
    %421 = vector.extract_strided_slice %398 {offsets = [0, 1, 1, 0], sizes = [1, 1, 1, 128], strides = [1, 1, 1, 1]} : vector<1x2x2x128xf32> to vector<1x1x1x128xf32>
    %422 = vector.shape_cast %421 : vector<1x1x1x128xf32> to vector<1x128xf32>
    %423 = arith.truncf %422 : vector<1x128xf32> to vector<1x128xbf16>
    %c3_324 = arith.constant 3 : index
    %c0_325 = arith.constant 0 : index
    %c0_326 = arith.constant 0 : index
    %424 = vector.load %arg4[%c3_324, %c0_325, %c0_326] : memref<4x128x512xbf16, #tpu.memory_space<vmem>>, vector<1x128x512xbf16>
    %425 = vector.shape_cast %424 : vector<1x128x512xbf16> to vector<128x512xbf16>
    %cst_327 = arith.constant dense<0.000000e+00> : vector<1x512xf32>
    %426 = tpu.matmul %423, %425, %cst_327 {dimension_numbers = #tpu.dot_dimension_numbers<[1], [0], [0], [1], [0, 0, 1, 1], [], []>} : vector<1x128xbf16>, vector<128x512xbf16>, vector<1x512xf32> -> vector<1x512xf32>
    %427 = arith.addf %420, %426 : vector<1x512xf32>
    %c0_328 = arith.constant 0 : index
    %c0_329 = arith.constant 0 : index
    %428 = vector.load %arg5[%c0_328, %c0_329] : memref<1x512xf32, #tpu.memory_space<vmem>>, vector<1x512xf32>
    %429 = arith.addf %427, %428 : vector<1x512xf32>
    %cst_330 = arith.constant 0.000000e+00 : f32
    %430 = vector.broadcast %cst_330 : f32 to vector<1x512xf32>
    %431 = arith.maximumf %429, %430 : vector<1x512xf32>
    %432 = arith.truncf %431 : vector<1x512xf32> to vector<1x512xbf16>
    %c0_331 = arith.constant 0 : index
    %c0_332 = arith.constant 0 : index
    %433 = vector.load %arg6[%c0_331, %c0_332] : memref<512x512xbf16, #tpu.memory_space<vmem>>, vector<512x512xbf16>
    %cst_333 = arith.constant dense<0.000000e+00> : vector<1x512xf32>
    %434 = tpu.matmul %432, %433, %cst_333 {dimension_numbers = #tpu.dot_dimension_numbers<[1], [0], [0], [1], [0, 0, 1, 1], [], []>} : vector<1x512xbf16>, vector<512x512xbf16>, vector<1x512xf32> -> vector<1x512xf32>
    %c0_334 = arith.constant 0 : index
    %c0_335 = arith.constant 0 : index
    %435 = vector.load %arg7[%c0_334, %c0_335] : memref<1x512xf32, #tpu.memory_space<vmem>>, vector<1x512xf32>
    %436 = arith.addf %434, %435 : vector<1x512xf32>
    %cst_336 = arith.constant 0.000000e+00 : f32
    %437 = vector.broadcast %cst_336 : f32 to vector<1x512xf32>
    %438 = arith.maximumf %436, %437 : vector<1x512xf32>
    %439 = arith.truncf %438 : vector<1x512xf32> to vector<1x512xbf16>
    %c0_337 = arith.constant 0 : index
    %c0_338 = arith.constant 0 : index
    %440 = vector.load %arg8[%c0_337, %c0_338] : memref<512x128xbf16, #tpu.memory_space<vmem>>, vector<512x128xbf16>
    %cst_339 = arith.constant dense<0.000000e+00> : vector<1x128xf32>
    %441 = tpu.matmul %439, %440, %cst_339 {dimension_numbers = #tpu.dot_dimension_numbers<[1], [0], [0], [1], [0, 0, 1, 1], [], []>} : vector<1x512xbf16>, vector<512x128xbf16>, vector<1x128xf32> -> vector<1x128xf32>
    %c0_340 = arith.constant 0 : index
    %c0_341 = arith.constant 0 : index
    %442 = vector.load %arg9[%c0_340, %c0_341] : memref<1x128xf32, #tpu.memory_space<vmem>>, vector<1x128xf32>
    %443 = arith.addf %441, %442 : vector<1x128xf32>
    %444 = vector.shape_cast %443 : vector<1x128xf32> to vector<1x1x128xf32>
    %c0_342 = arith.constant 0 : index
    %c0_343 = arith.constant 0 : index
    %c0_344 = arith.constant 0 : index
    %445 = vector.load %arg10[%c0_342, %c0_343, %c0_344] : memref<1x1x128xf32, #tpu.memory_space<vmem>>, vector<1x1x128xf32>
    tpu.vector_store %arg10[%c0_342, %c0_343, %c0_344], %444 {strides = array<i32>} : memref<1x1x128xf32, #tpu.memory_space<vmem>>, vector<1x1x128xf32>,
    return
  }
  func.func @transform_0(%arg0: i32) -> (i32, i32, i32, i32) {
    %c0_i32 = arith.constant 0 : i32
    %c0_i32_0 = arith.constant 0 : i32
    %c0_i32_1 = arith.constant 0 : i32
    %c0_i32_2 = arith.constant 0 : i32
    return %arg0, %c0_i32, %c0_i32_0, %c0_i32_1 : i32, i32, i32, i32
  }
  func.func @transform_1(%arg0: i32) -> (i32, i32, i32) {
    %c0_i32 = arith.constant 0 : i32
    %c0_i32_0 = arith.constant 0 : i32
    %c0_i32_1 = arith.constant 0 : i32
    %c0_i32_2 = arith.constant 0 : i32
    return %c0_i32, %c0_i32_0, %c0_i32_1 : i32, i32, i32
  }
  func.func @transform_2(%arg0: i32) -> (i32, i32, i32) {
    %c0_i32 = arith.constant 0 : i32
    %c0_i32_0 = arith.constant 0 : i32
    %c0_i32_1 = arith.constant 0 : i32
    %c0_i32_2 = arith.constant 0 : i32
    return %c0_i32, %c0_i32_0, %c0_i32_1 : i32, i32, i32
  }
  func.func @transform_3(%arg0: i32) -> (i32, i32, i32) {
    %c0_i32 = arith.constant 0 : i32
    %c0_i32_0 = arith.constant 0 : i32
    %c0_i32_1 = arith.constant 0 : i32
    %c0_i32_2 = arith.constant 0 : i32
    return %c0_i32, %c0_i32_0, %c0_i32_1 : i32, i32, i32
  }
  func.func @transform_4(%arg0: i32) -> (i32, i32) {
    %c0_i32 = arith.constant 0 : i32
    %c0_i32_0 = arith.constant 0 : i32
    %c0_i32_1 = arith.constant 0 : i32
    return %c0_i32, %c0_i32_0 : i32, i32
  }
  func.func @transform_5(%arg0: i32) -> (i32, i32) {
    %c0_i32 = arith.constant 0 : i32
    %c0_i32_0 = arith.constant 0 : i32
    %c0_i32_1 = arith.constant 0 : i32
    return %c0_i32, %c0_i32_0 : i32, i32
  }
  func.func @transform_6(%arg0: i32) -> (i32, i32) {
    %c0_i32 = arith.constant 0 : i32
    %c0_i32_0 = arith.constant 0 : i32
    %c0_i32_1 = arith.constant 0 : i32
    return %c0_i32, %c0_i32_0 : i32, i32
  }
  func.func @transform_7(%arg0: i32) -> (i32, i32) {
    %c0_i32 = arith.constant 0 : i32
    %c0_i32_0 = arith.constant 0 : i32
    %c0_i32_1 = arith.constant 0 : i32
    return %c0_i32, %c0_i32_0 : i32, i32
  }
  func.func @transform_8(%arg0: i32) -> (i32, i32) {
    %c0_i32 = arith.constant 0 : i32
    %c0_i32_0 = arith.constant 0 : i32
    %c0_i32_1 = arith.constant 0 : i32
    return %c0_i32, %c0_i32_0 : i32, i32
  }
  func.func @transform_9(%arg0: i32) -> (i32, i32, i32) {
    %c0_i32 = arith.constant 0 : i32
    %c0_i32_0 = arith.constant 0 : i32
    %c0_i32_1 = arith.constant 0 : i32
    return %arg0, %c0_i32, %c0_i32_0 : i32, i32, i32
  }
}

</mosaic_0001>

<llo_original>
// kernel: forward.1
$region0: #{forward.1}
  #allocation0 [shape = 'u32[]', space=smem, size = 0x4, offset = 0x4, fixed_abs, tag = 'smem constant byte address 0x4 - core index']
  #allocation1 [shape = 'u32[144,128]{1,0:T(1,128)}', space=vmem, size = 0x12000, scoped, tag = 'internal scratch']
  #allocation2 [shape = 'f32[1,18,18,128]{3,2,1,0:T(8,128)}', space=vmem, size = 0x36000, scoped, tag = 'scratch operand']
  %s0 = inlined_call_operand.vmem [shape: f32[2,16,16,128], index: 0, kind: input, shape index: {}]
  %s1 = inlined_call_operand.hbm [shape: bf16[36,128,128], index: 1, kind: input, shape index: {}]
  %s2 = inlined_call_operand.hbm [shape: f32[4,1,128], index: 2, kind: input, shape index: {}]
  %s3 = inlined_call_operand.vmem [shape: bf16[4,128,512], index: 3, kind: input, shape index: {}]
  %s4 = inlined_call_operand.hbm [shape: f32[1,512], index: 4, kind: input, shape index: {}]
  %s5 = inlined_call_operand.hbm [shape: bf16[512,512], index: 5, kind: input, shape index: {}]
  %s6 = inlined_call_operand.hbm [shape: f32[1,512], index: 6, kind: input, shape index: {}]
  %s7 = inlined_call_operand.hbm [shape: bf16[512,128], index: 7, kind: input, shape index: {}]
  %s8 = inlined_call_operand.hbm [shape: f32[1,128], index: 8, kind: input, shape index: {}]
  %s9 = inlined_call_operand.hbm [shape: f32[2,1,128], index: 9, kind: output, shape index: {}]
  %s10 = sld [smem:[#allocation0]]
  $region97: #{forward.1} parent=0
    _
  %s12 = ssub.s32 1, %s10
  %s13 = scalar_select 0, %s12, %s10
  $region1: #{forward.1} parent=0
    #allocation3 [shape = 'u8[1179648]{0}', space=vmem, size = 0x120000, scoped, tag = 'input window, operand 1, single buffered']
    #allocation4 [shape = 's32[2]{0}', space=sflag, size = 0x8, scoped, tag = 'scoped memory for forward.1']
    #allocation5 [shape = 's32[2]{0}', space=sflag, size = 0x8, scoped, tag = 'scoped memory for forward.1']
    #allocation6 [shape = 'u8[2048]{0}', space=vmem, size = 0x800, scoped, tag = 'input window, operand 2, single buffered']
    #allocation7 [shape = 's32[1]{0}', space=sflag, size = 0x4, scoped, tag = 'scoped memory for forward.1']
    #allocation8 [shape = 'u8[2048]{0}', space=vmem, size = 0x800, scoped, tag = 'input window, operand 4, single buffered']
    #allocation9 [shape = 'u8[524288]{0}', space=vmem, size = 0x80000, scoped, tag = 'input window, operand 5, single buffered']
    #allocation10 [shape = 's32[1]{0}', space=sflag, size = 0x4, scoped, tag = 'scoped memory for forward.1']
    #allocation11 [shape = 'u8[2048]{0}', space=vmem, size = 0x800, scoped, tag = 'input window, operand 6, single buffered']
    #allocation12 [shape = 'u8[131072]{0}', space=vmem, size = 0x20000, scoped, tag = 'input window, operand 7, single buffered']
    #allocation13 [shape = 's32[1]{0}', space=sflag, size = 0x4, scoped, tag = 'scoped memory for forward.1']
    #allocation14 [shape = 'u8[512]{0}', space=vmem, size = 0x400, scoped, tag = 'input window, operand 8, single buffered']
    #allocation15 [shape = 'u8[1024]{0}', space=vmem, size = 0x400, scoped, tag = 'output window, operand 0']
    %14 = vsyncpa [#allocation4], 0
    %15 = vsyncpa [#allocation7], 0
    %16 = vsyncpa [#allocation10], 0
    %17 = vsyncpa [#allocation13], 0
    %18 = vsyncpa [#allocation5], 0
    %s19 = scalar_lea.sflag [#allocation5], 1
    %20 = vsyncpa %s19, 0
    loop: start=0, step=1, limit=4
    $region2: #{forward.1} parent=1 // loop_pre_header
      _
    $region3: #{forward.1} parent=1 // loop_header
      %s22 = sphi 0, %s26
      %p23 = scmp.ge.s32.totalorder %s22, 4
      %s32 = sphi 0, %s34
      %s35 = sphi 0, %s32
      %s36 = sphi 0, %s35
      %s52 = sphi 0, %s36
      %s56 = sphi 0, %s56
      %s58 = sphi 0, %s56
      %s59 = sphi 0, %s58
      %s73 = sphi 0, %s59
      %s77 = sphi 0, %s77
      %s79 = sphi 0, %s77
      %s80 = sphi 0, %s79
      %s94 = sphi 0, %s80
      %s98 = sphi 0, %s98
      %s100 = sphi 0, %s98
      %s101 = sphi 0, %s100
      %s115 = sphi 0, %s101
      %s119 = sphi 0, %s119
      %s121 = sphi 0, %s119
      %s122 = sphi 0, %s121
      %s136 = sphi 0, %s122
      %s140 = sphi 0, %s140
      %s142 = sphi 0, %s140
      %s143 = sphi 0, %s142
      %s157 = sphi 0, %s143
      %s161 = sphi 0, %s161
      %s163 = sphi 0, %s161
      %s164 = sphi 0, %s163
      %s178 = sphi 0, %s164
      %s182 = sphi 0, %s182
      %s184 = sphi 0, %s182
      %s185 = sphi 0, %s184
      %s199 = sphi 0, %s185
      %s203 = sphi 0, %s203
      %s205 = sphi 0, %s203
      %s206 = sphi 0, %s205
      %s220 = sphi 0, %s206
      %s226 = sphi 0, %s228
      %s229 = sphi 0, %s226
      %s230 = sphi 0, %s229
      %s246 = sphi 0, %s230
    $region4: #{forward.1} parent=1 // loop_header_branch
      %25 = sbr.rel (%p23) target = $region8
    $region5: #{forward.1} parent=1 // loop_body
      %s27 = ssub.s32 %s22, 1
      %s28 = ssub.s32 %s22, 2
      %s29 = sadd.s32 %s22, 1
      %s30 = ssub.s32 %s22, %s29
      %p31 = scmp.eq.s32.totalorder %s30, 0
      %s33 = sadd.s32 %s32, 1
      %s34 = scalar_select %p31, %s32, %s33
      %p37 = pneg %p31
      %p38 = scmp.eq.s32.totalorder %s22, 1
      %p39 = por %p37, %p38
      %p40 = scmp.ne.s32.totalorder %s32, %s35
      %p41 = scmp.eq.s32.totalorder %s22, 0
      %p42 = por %p40, %p41
      %p43 = scmp.ne.s32.totalorder %s32, %s35
      %p44 = scmp.eq.s32.totalorder %s27, 1
      %p45 = por %p43, %p44
      %p46 = scmp.ne.s32.totalorder %s35, %s36
      %p47 = scmp.eq.s32.totalorder %s27, 0
      %p48 = por %p46, %p47
      %p49 = scmp.ne.s32.totalorder %s35, %s36
      %p50 = scmp.eq.s32.totalorder %s28, 1
      %p51 = por %p49, %p50
      %p53 = scmp.ne.s32.totalorder %s36, %s52
      %p54 = scmp.eq.s32.totalorder %s28, 0
      %p55 = por %p53, %p54
      %s57 = sadd.s32 %s56, 1
      %p60 = scmp.eq.s32.totalorder %s22, 1
      %p61 = scmp.ne.s32.totalorder %s56, %s58
      %p62 = scmp.eq.s32.totalorder %s22, 0
      %p63 = por %p61, %p62
      %p64 = scmp.ne.s32.totalorder %s56, %s58
      %p65 = scmp.eq.s32.totalorder %s27, 1
      %p66 = por %p64, %p65
      %p67 = scmp.ne.s32.totalorder %s58, %s59
      %p68 = scmp.eq.s32.totalorder %s27, 0
      %p69 = por %p67, %p68
      %p70 = scmp.ne.s32.totalorder %s58, %s59
      %p71 = scmp.eq.s32.totalorder %s28, 1
      %p72 = por %p70, %p71
      %p74 = scmp.ne.s32.totalorder %s59, %s73
      %p75 = scmp.eq.s32.totalorder %s28, 0
      %p76 = por %p74, %p75
      %s78 = sadd.s32 %s77, 1
      %p81 = scmp.eq.s32.totalorder %s22, 1
      %p82 = scmp.ne.s32.totalorder %s77, %s79
      %p83 = scmp.eq.s32.totalorder %s22, 0
      %p84 = por %p82, %p83
      %p85 = scmp.ne.s32.totalorder %s77, %s79
      %p86 = scmp.eq.s32.totalorder %s27, 1
      %p87 = por %p85, %p86
      %p88 = scmp.ne.s32.totalorder %s79, %s80
      %p89 = scmp.eq.s32.totalorder %s27, 0
      %p90 = por %p88, %p89
      %p91 = scmp.ne.s32.totalorder %s79, %s80
      %p92 = scmp.eq.s32.totalorder %s28, 1
      %p93 = por %p91, %p92
      %p95 = scmp.ne.s32.totalorder %s80, %s94
      %p96 = scmp.eq.s32.totalorder %s28, 0
      %p97 = por %p95, %p96
      %s99 = sadd.s32 %s98, 1
      %p102 = scmp.eq.s32.totalorder %s22, 1
      %p103 = scmp.ne.s32.totalorder %s98, %s100
      %p104 = scmp.eq.s32.totalorder %s22, 0
      %p105 = por %p103, %p104
      %p106 = scmp.ne.s32.totalorder %s98, %s100
      %p107 = scmp.eq.s32.totalorder %s27, 1
      %p108 = por %p106, %p107
      %p109 = scmp.ne.s32.totalorder %s100, %s101
      %p110 = scmp.eq.s32.totalorder %s27, 0
      %p111 = por %p109, %p110
      %p112 = scmp.ne.s32.totalorder %s100, %s101
      %p113 = scmp.eq.s32.totalorder %s28, 1
      %p114 = por %p112, %p113
      %p116 = scmp.ne.s32.totalorder %s101, %s115
      %p117 = scmp.eq.s32.totalorder %s28, 0
      %p118 = por %p116, %p117
      %s120 = sadd.s32 %s119, 1
      %p123 = scmp.eq.s32.totalorder %s22, 1
      %p124 = scmp.ne.s32.totalorder %s119, %s121
      %p125 = scmp.eq.s32.totalorder %s22, 0
      %p126 = por %p124, %p125
      %p127 = scmp.ne.s32.totalorder %s119, %s121
      %p128 = scmp.eq.s32.totalorder %s27, 1
      %p129 = por %p127, %p128
      %p130 = scmp.ne.s32.totalorder %s121, %s122
      %p131 = scmp.eq.s32.totalorder %s27, 0
      %p132 = por %p130, %p131
      %p133 = scmp.ne.s32.totalorder %s121, %s122
      %p134 = scmp.eq.s32.totalorder %s28, 1
      %p135 = por %p133, %p134
      %p137 = scmp.ne.s32.totalorder %s122, %s136
      %p138 = scmp.eq.s32.totalorder %s28, 0
      %p139 = por %p137, %p138
      %s141 = sadd.s32 %s140, 1
      %p144 = scmp.eq.s32.totalorder %s22, 1
      %p145 = scmp.ne.s32.totalorder %s140, %s142
      %p146 = scmp.eq.s32.totalorder %s22, 0
      %p147 = por %p145, %p146
      %p148 = scmp.ne.s32.totalorder %s140, %s142
      %p149 = scmp.eq.s32.totalorder %s27, 1
      %p150 = por %p148, %p149
      %p151 = scmp.ne.s32.totalorder %s142, %s143
      %p152 = scmp.eq.s32.totalorder %s27, 0
      %p153 = por %p151, %p152
      %p154 = scmp.ne.s32.totalorder %s142, %s143
      %p155 = scmp.eq.s32.totalorder %s28, 1
      %p156 = por %p154, %p155
      %p158 = scmp.ne.s32.totalorder %s143, %s157
      %p159 = scmp.eq.s32.totalorder %s28, 0
      %p160 = por %p158, %p159
      %s162 = sadd.s32 %s161, 1
      %p165 = scmp.eq.s32.totalorder %s22, 1
      %p166 = scmp.ne.s32.totalorder %s161, %s163
      %p167 = scmp.eq.s32.totalorder %s22, 0
      %p168 = por %p166, %p167
      %p169 = scmp.ne.s32.totalorder %s161, %s163
      %p170 = scmp.eq.s32.totalorder %s27, 1
      %p171 = por %p169, %p170
      %p172 = scmp.ne.s32.totalorder %s163, %s164
      %p173 = scmp.eq.s32.totalorder %s27, 0
      %p174 = por %p172, %p173
      %p175 = scmp.ne.s32.totalorder %s163, %s164
      %p176 = scmp.eq.s32.totalorder %s28, 1
      %p177 = por %p175, %p176
      %p179 = scmp.ne.s32.totalorder %s164, %s178
      %p180 = scmp.eq.s32.totalorder %s28, 0
      %p181 = por %p179, %p180
      %s183 = sadd.s32 %s182, 1
      %p186 = scmp.eq.s32.totalorder %s22, 1
      %p187 = scmp.ne.s32.totalorder %s182, %s184
      %p188 = scmp.eq.s32.totalorder %s22, 0
      %p189 = por %p187, %p188
      %p190 = scmp.ne.s32.totalorder %s182, %s184
      %p191 = scmp.eq.s32.totalorder %s27, 1
      %p192 = por %p190, %p191
      %p193 = scmp.ne.s32.totalorder %s184, %s185
      %p194 = scmp.eq.s32.totalorder %s27, 0
      %p195 = por %p193, %p194
      %p196 = scmp.ne.s32.totalorder %s184, %s185
      %p197 = scmp.eq.s32.totalorder %s28, 1
      %p198 = por %p196, %p197
      %p200 = scmp.ne.s32.totalorder %s185, %s199
      %p201 = scmp.eq.s32.totalorder %s28, 0
      %p202 = por %p200, %p201
      %s204 = sadd.s32 %s203, 1
      %p207 = scmp.eq.s32.totalorder %s22, 1
      %p208 = scmp.ne.s32.totalorder %s203, %s205
      %p209 = scmp.eq.s32.totalorder %s22, 0
      %p210 = por %p208, %p209
      %p211 = scmp.ne.s32.totalorder %s203, %s205
      %p212 = scmp.eq.s32.totalorder %s27, 1
      %p213 = por %p211, %p212
      %p214 = scmp.ne.s32.totalorder %s205, %s206
      %p215 = scmp.eq.s32.totalorder %s27, 0
      %p216 = por %p214, %p215
      %p217 = scmp.ne.s32.totalorder %s205, %s206
      %p218 = scmp.eq.s32.totalorder %s28, 1
      %p219 = por %p217, %p218
      %p221 = scmp.ne.s32.totalorder %s206, %s220
      %p222 = scmp.eq.s32.totalorder %s28, 0
      %p223 = por %p221, %p222
      %s224 = ssub.s32 %s22, %s29
      %p225 = scmp.eq.s32.totalorder %s224, 0
      %s227 = sadd.s32 %s226, 1
      %s228 = scalar_select %p225, %s226, %s227
      %p231 = pneg %p225
      %p232 = scmp.eq.s32.totalorder %s22, 1
      %p233 = por %p231, %p232
      %p234 = scmp.ne.s32.totalorder %s226, %s229
      %p235 = scmp.eq.s32.totalorder %s22, 0
      %p236 = por %p234, %p235
      %p237 = scmp.ne.s32.totalorder %s226, %s229
      %p238 = scmp.eq.s32.totalorder %s27, 1
      %p239 = por %p237, %p238
      %p240 = scmp.ne.s32.totalorder %s229, %s230
      %p241 = scmp.eq.s32.totalorder %s27, 0
      %p242 = por %p240, %p241
      %p243 = scmp.ne.s32.totalorder %s229, %s230
      %p244 = scmp.eq.s32.totalorder %s28, 1
      %p245 = por %p243, %p244
      %p247 = scmp.ne.s32.totalorder %s230, %s246
      %p248 = scmp.eq.s32.totalorder %s28, 0
      %p249 = por %p247, %p248
      %p250 = scmp.le.s32.totalorder 1, %s22
      %p251 = scmp.lt.s32.totalorder %s22, 3
      %p252 = pnand %p250, %p251
      %p253 = pneg %p252
      // Predicated region
      $region9: #{forward.1} parent=5 // pred_check
        _
      $region10: #{forward.1} parent=5 // pred_check_branch
        %255 = sbr.rel (%p252) target = $region12
      $region11: #{forward.1} parent=5 // pred_region
        %s256 = ssub.s32 %s22, 1
        // Predicated region
        $region13: #{forward.1} parent=11 // pred_check
          %p257 = pneg %p69
        $region14: #{forward.1} parent=11 // pred_check_branch
          %259 = sbr.rel (%p257) target = $region16
        $region15: #{forward.1} parent=11 // pred_region
          %s261 = ssub.s32 36864, 36864
          %262 = vsyncadd [#allocation4], %s261
          %s263 = sshll.u32 [#allocation3], 4
          %s264 = int_to_ptr.vmem [resolvable:$true] %s263
          %269 = dma.hbm_to_vmem [thread:$0]  %s1, 36864, %s264, [#allocation4], 64, 64, 4
        $region16: #{forward.1} parent=11 // pred_fallthru
          _
        // Predicated region
        $region17: #{forward.1} parent=11 // pred_check
          %p270 = pneg %p90
        $region18: #{forward.1} parent=11 // pred_check_branch
          %272 = sbr.rel (%p270) target = $region20
        $region19: #{forward.1} parent=11 // pred_region
          %s274 = ssub.s32 64, 64
          %275 = vsyncadd [#allocation7], %s274
          %s276 = sshll.u32 [#allocation6], 4
          %s277 = int_to_ptr.vmem [resolvable:$true] %s276
          %282 = dma.hbm_to_vmem [thread:$0]  %s2, 64, %s277, [#allocation7], 16, 16, 1
        $region20: #{forward.1} parent=11 // pred_fallthru
          _
        // Predicated region
        $region21: #{forward.1} parent=11 // pred_check
          %p283 = pneg %p111
        $region22: #{forward.1} parent=11 // pred_check_branch
          %285 = sbr.rel (%p283) target = $region24
        $region23: #{forward.1} parent=11 // pred_region
          _
        $region24: #{forward.1} parent=11 // pred_fallthru
          _
        // Predicated region
        $region25: #{forward.1} parent=11 // pred_check
          %p286 = pneg %p132
        $region26: #{forward.1} parent=11 // pred_check_branch
          %288 = sbr.rel (%p286) target = $region28
        $region27: #{forward.1} parent=11 // pred_region
          %s290 = ssub.s32 64, 64
          %291 = vsyncadd [#allocation7], %s290
          %s293 = sshll.u32 [#allocation8], 4
          %s294 = int_to_ptr.vmem [resolvable:$true] %s293
          %296 = dma.hbm_to_vmem [thread:$0]  %s4, 64, %s294, [#allocation7]
        $region28: #{forward.1} parent=11 // pred_fallthru
          _
        // Predicated region
        $region29: #{forward.1} parent=11 // pred_check
          %p297 = pneg %p153
        $region30: #{forward.1} parent=11 // pred_check_branch
          %299 = sbr.rel (%p297) target = $region32
        $region31: #{forward.1} parent=11 // pred_region
          %s301 = ssub.s32 16384, 16384
          %302 = vsyncadd [#allocation10], %s301
          %s303 = sshll.u32 [#allocation9], 4
          %s304 = int_to_ptr.vmem [resolvable:$true] %s303
          %309 = dma.hbm_to_vmem [thread:$0]  %s5, 16384, %s304, [#allocation10], 256, 256, 16
        $region32: #{forward.1} parent=11 // pred_fallthru
          _
        // Predicated region
        $region33: #{forward.1} parent=11 // pred_check
          %p310 = pneg %p174
        $region34: #{forward.1} parent=11 // pred_check_branch
          %312 = sbr.rel (%p310) target = $region36
        $region35: #{forward.1} parent=11 // pred_region
          %s314 = ssub.s32 64, 64
          %315 = vsyncadd [#allocation10], %s314
          %s317 = sshll.u32 [#allocation11], 4
          %s318 = int_to_ptr.vmem [resolvable:$true] %s317
          %320 = dma.hbm_to_vmem [thread:$0]  %s6, 64, %s318, [#allocation10]
        $region36: #{forward.1} parent=11 // pred_fallthru
          _
        // Predicated region
        $region37: #{forward.1} parent=11 // pred_check
          %p321 = pneg %p195
        $region38: #{forward.1} parent=11 // pred_check_branch
          %323 = sbr.rel (%p321) target = $region40
        $region39: #{forward.1} parent=11 // pred_region
          %s325 = ssub.s32 4096, 4096
          %326 = vsyncadd [#allocation13], %s325
          %s327 = sshll.u32 [#allocation12], 4
          %s328 = int_to_ptr.vmem [resolvable:$true] %s327
          %333 = dma.hbm_to_vmem [thread:$0]  %s7, 4096, %s328, [#allocation13], 64, 64, 4
        $region40: #{forward.1} parent=11 // pred_fallthru
          _
        // Predicated region
        $region41: #{forward.1} parent=11 // pred_check
          %p334 = pneg %p216
        $region42: #{forward.1} parent=11 // pred_check_branch
          %336 = sbr.rel (%p334) target = $region44
        $region43: #{forward.1} parent=11 // pred_region
          %s338 = ssub.s32 16, 16
          %339 = vsyncadd [#allocation13], %s338
          %s341 = sshll.u32 [#allocation14], 4
          %s342 = int_to_ptr.vmem [resolvable:$true] %s341
          %344 = dma.hbm_to_vmem [thread:$0]  %s8, 16, %s342, [#allocation13]
        $region44: #{forward.1} parent=11 // pred_fallthru
          _
      $region12: #{forward.1} parent=5 // pred_fallthru
        _
      %p345 = scmp.lt.s32.totalorder %s22, 2
      // Predicated region
      $region45: #{forward.1} parent=5 // pred_check
        %p346 = pneg %p345
      $region46: #{forward.1} parent=5 // pred_check_branch
        %348 = sbr.rel (%p346) target = $region48
      $region47: #{forward.1} parent=5 // pred_region
        // Predicated region
        $region49: #{forward.1} parent=47 // pred_check
          %p349 = pneg %p42
        $region50: #{forward.1} parent=47 // pred_check_branch
          %351 = sbr.rel (%p349) target = $region52
        $region51: #{forward.1} parent=47 // pred_region
          %p352 = scmp.lt.s32.totalorder %s22, 1
          %s353 = scalar_select %p352, %s22, 1
          %s354 = smul.addr %s353, 32
          %s355 = smul.addr %s354, 8
          %s356 = scalar_lea.vmem %s0, %s355
        $region52: #{forward.1} parent=47 // pred_fallthru
          _
      $region48: #{forward.1} parent=5 // pred_fallthru
        _
      %p357 = scmp.le.s32.totalorder 1, %s22
      %p358 = scmp.lt.s32.totalorder %s22, 3
      %p359 = pnand %p357, %p358
      %p360 = pneg %p359
      // Predicated region
      $region53: #{forward.1} parent=5 // pred_check
        _
      $region54: #{forward.1} parent=5 // pred_check_branch
        %362 = sbr.rel (%p359) target = $region56
      $region55: #{forward.1} parent=5 // pred_region
        %s363 = ssub.s32 %s22, 1
        // Predicated region
        $region57: #{forward.1} parent=55 // pred_check
          %p364 = pneg %p69
        $region58: #{forward.1} parent=55 // pred_check_branch
          %366 = sbr.rel (%p364) target = $region60
        $region59: #{forward.1} parent=55 // pred_region
          %367 = dma.done [#allocation4], 36864
        $region60: #{forward.1} parent=55 // pred_fallthru
          _
        // Predicated region
        $region61: #{forward.1} parent=55 // pred_check
          %p368 = pneg %p90
        $region62: #{forward.1} parent=55 // pred_check_branch
          %370 = sbr.rel (%p368) target = $region64
        $region63: #{forward.1} parent=55 // pred_region
          %371 = dma.done [#allocation7], 64
        $region64: #{forward.1} parent=55 // pred_fallthru
          _
        // Predicated region
        $region65: #{forward.1} parent=55 // pred_check
          %p372 = pneg %p132
        $region66: #{forward.1} parent=55 // pred_check_branch
          %374 = sbr.rel (%p372) target = $region68
        $region67: #{forward.1} parent=55 // pred_region
          %375 = dma.done [#allocation7], 64
        $region68: #{forward.1} parent=55 // pred_fallthru
          _
        // Predicated region
        $region69: #{forward.1} parent=55 // pred_check
          %p376 = pneg %p153
        $region70: #{forward.1} parent=55 // pred_check_branch
          %378 = sbr.rel (%p376) target = $region72
        $region71: #{forward.1} parent=55 // pred_region
          %379 = dma.done [#allocation10], 16384
        $region72: #{forward.1} parent=55 // pred_fallthru
          _
        // Predicated region
        $region73: #{forward.1} parent=55 // pred_check
          %p380 = pneg %p174
        $region74: #{forward.1} parent=55 // pred_check_branch
          %382 = sbr.rel (%p380) target = $region76
        $region75: #{forward.1} parent=55 // pred_region
          %383 = dma.done [#allocation10], 64
        $region76: #{forward.1} parent=55 // pred_fallthru
          _
        // Predicated region
        $region77: #{forward.1} parent=55 // pred_check
          %p384 = pneg %p195
        $region78: #{forward.1} parent=55 // pred_check_branch
          %386 = sbr.rel (%p384) target = $region80
        $region79: #{forward.1} parent=55 // pred_region
          %387 = dma.done [#allocation13], 4096
        $region80: #{forward.1} parent=55 // pred_fallthru
          _
        // Predicated region
        $region81: #{forward.1} parent=55 // pred_check
          %p388 = pneg %p216
        $region82: #{forward.1} parent=55 // pred_check_branch
          %390 = sbr.rel (%p388) target = $region84
        $region83: #{forward.1} parent=55 // pred_region
          %391 = dma.done [#allocation13], 16
        $region84: #{forward.1} parent=55 // pred_fallthru
          _
        %p392 = scmp.lt.s32.totalorder %s27, 1
        %s393 = scalar_select %p392, %s27, 1
        %s394 = smul.addr %s393, 32
        %s395 = smul.addr %s394, 8
        %s396 = scalar_lea.vmem %s0, %s395
        %p397 = pneg %p48
        %p398 = pneg %p45
        %p399 = pneg %p69
        %p400 = pneg %p66
        %p401 = pneg %p90
        %p402 = pneg %p87
        %p403 = pneg %p111
        %p404 = pneg %p108
        %p405 = pneg %p132
        %p406 = pneg %p129
        %p407 = pneg %p153
        %p408 = pneg %p150
        %p409 = pneg %p174
        %p410 = pneg %p171
        %p411 = pneg %p195
        %p412 = pneg %p192
        %p413 = pneg %p216
        %p414 = pneg %p213
        %p415 = pneg %p242
        %p416 = pneg %p239
        %s417 = sand.u32 %s229, 1
        %s418 = scalar_lea.sflag [#allocation5], %s417
        %s419 = sand.u32 %s229, 1
        %s420 = scalar_lea.vmem [#allocation15], %s419
        %p421 = scmp.lt.s32.totalorder %s27, 1
        %s422 = scalar_select %p421, %s27, 1
        %s423 = smul.addr %s422, 32
        %s424 = smul.addr %s423, 8
        %s425 = scalar_lea.vmem %s0, %s424
        %427 = vst [vmem:[#allocation2] sm:$0xff] 0.0
        %428 = vst [vmem:[#allocation2 + $0x8] sm:$0xff] 0.0
        %429 = vst [vmem:[#allocation2 + $0x10] sm:$0x3] 0.0
        %430 = vst [vmem:[#allocation2 + $0x18] sm:$0xff] 0.0
        %431 = vst [vmem:[#allocation2 + $0x20] sm:$0xff] 0.0
        %432 = vst [vmem:[#allocation2 + $0x28] sm:$0x3] 0.0
        %433 = vst [vmem:[#allocation2 + $0x30] sm:$0xff] 0.0
        %434 = vst [vmem:[#allocation2 + $0x38] sm:$0xff] 0.0
        %435 = vst [vmem:[#allocation2 + $0x40] sm:$0x3] 0.0
        %436 = vst [vmem:[#allocation2 + $0x48] sm:$0xff] 0.0
        %437 = vst [vmem:[#allocation2 + $0x50] sm:$0xff] 0.0
        %438 = vst [vmem:[#allocation2 + $0x58] sm:$0x3] 0.0
        %439 = vst [vmem:[#allocation2 + $0x60] sm:$0xff] 0.0
        %440 = vst [vmem:[#allocation2 + $0x68] sm:$0xff] 0.0
        %441 = vst [vmem:[#allocation2 + $0x70] sm:$0x3] 0.0
        %442 = vst [vmem:[#allocation2 + $0x78] sm:$0xff] 0.0
        %443 = vst [vmem:[#allocation2 + $0x80] sm:$0xff] 0.0
        %444 = vst [vmem:[#allocation2 + $0x88] sm:$0x3] 0.0
        %445 = vst [vmem:[#allocation2 + $0x90] sm:$0xff] 0.0
        %446 = vst [vmem:[#allocation2 + $0x98] sm:$0xff] 0.0
        %447 = vst [vmem:[#allocation2 + $0xa0] sm:$0x3] 0.0
        %448 = vst [vmem:[#allocation2 + $0xa8] sm:$0xff] 0.0
        %449 = vst [vmem:[#allocation2 + $0xb0] sm:$0xff] 0.0
        %450 = vst [vmem:[#allocation2 + $0xb8] sm:$0x3] 0.0
        %451 = vst [vmem:[#allocation2 + $0xc0] sm:$0xff] 0.0
        %452 = vst [vmem:[#allocation2 + $0xc8] sm:$0xff] 0.0
        %453 = vst [vmem:[#allocation2 + $0xd0] sm:$0x3] 0.0
        %454 = vst [vmem:[#allocation2 + $0xd8] sm:$0xff] 0.0
        %455 = vst [vmem:[#allocation2 + $0xe0] sm:$0xff] 0.0
        %456 = vst [vmem:[#allocation2 + $0xe8] sm:$0x3] 0.0
        %457 = vst [vmem:[#allocation2 + $0xf0] sm:$0xff] 0.0
        %458 = vst [vmem:[#allocation2 + $0xf8] sm:$0xff] 0.0
        %459 = vst [vmem:[#allocation2 + $0x100] sm:$0x3] 0.0
        %460 = vst [vmem:[#allocation2 + $0x108] sm:$0xff] 0.0
        %461 = vst [vmem:[#allocation2 + $0x110] sm:$0xff] 0.0
        %462 = vst [vmem:[#allocation2 + $0x118] sm:$0x3] 0.0
        %463 = vst [vmem:[#allocation2 + $0x120] sm:$0xff] 0.0
        %464 = vst [vmem:[#allocation2 + $0x128] sm:$0xff] 0.0
        %465 = vst [vmem:[#allocation2 + $0x130] sm:$0x3] 0.0
        %466 = vst [vmem:[#allocation2 + $0x138] sm:$0xff] 0.0
        %467 = vst [vmem:[#allocation2 + $0x140] sm:$0xff] 0.0
        %468 = vst [vmem:[#allocation2 + $0x148] sm:$0x3] 0.0
        %469 = vst [vmem:[#allocation2 + $0x150] sm:$0xff] 0.0
        %470 = vst [vmem:[#allocation2 + $0x158] sm:$0xff] 0.0
        %471 = vst [vmem:[#allocation2 + $0x160] sm:$0x3] 0.0
        %472 = vst [vmem:[#allocation2 + $0x168] sm:$0xff] 0.0
        %473 = vst [vmem:[#allocation2 + $0x170] sm:$0xff] 0.0
        %474 = vst [vmem:[#allocation2 + $0x178] sm:$0x3] 0.0
        %475 = vst [vmem:[#allocation2 + $0x180] sm:$0xff] 0.0
        %476 = vst [vmem:[#allocation2 + $0x188] sm:$0xff] 0.0
        %477 = vst [vmem:[#allocation2 + $0x190] sm:$0x3] 0.0
        %478 = vst [vmem:[#allocation2 + $0x198] sm:$0xff] 0.0
        %479 = vst [vmem:[#allocation2 + $0x1a0] sm:$0xff] 0.0
        %480 = vst [vmem:[#allocation2 + $0x1a8] sm:$0x3] 0.0
        %v481 = vld [vmem:[%s425] sm:$0xff]
        %v482 = vld [vmem:[%s425 + $0x8] sm:$0xff]
        %v483 = vld [vmem:[%s425 + $0x10] sm:$0xff]
        %v484 = vld [vmem:[%s425 + $0x18] sm:$0xff]
        %v485 = vld [vmem:[%s425 + $0x20] sm:$0xff]
        %v486 = vld [vmem:[%s425 + $0x28] sm:$0xff]
        %v487 = vld [vmem:[%s425 + $0x30] sm:$0xff]
        %v488 = vld [vmem:[%s425 + $0x38] sm:$0xff]
        %v489 = vld [vmem:[%s425 + $0x40] sm:$0xff]
        %v490 = vld [vmem:[%s425 + $0x48] sm:$0xff]
        %v491 = vld [vmem:[%s425 + $0x50] sm:$0xff]
        %v492 = vld [vmem:[%s425 + $0x58] sm:$0xff]
        %v493 = vld [vmem:[%s425 + $0x60] sm:$0xff]
        %v494 = vld [vmem:[%s425 + $0x68] sm:$0xff]
        %v495 = vld [vmem:[%s425 + $0x70] sm:$0xff]
        %v496 = vld [vmem:[%s425 + $0x78] sm:$0xff]
        %v497 = vld [vmem:[%s425 + $0x80] sm:$0xff]
        %v498 = vld [vmem:[%s425 + $0x88] sm:$0xff]
        %v499 = vld [vmem:[%s425 + $0x90] sm:$0xff]
        %v500 = vld [vmem:[%s425 + $0x98] sm:$0xff]
        %v501 = vld [vmem:[%s425 + $0xa0] sm:$0xff]
        %v502 = vld [vmem:[%s425 + $0xa8] sm:$0xff]
        %v503 = vld [vmem:[%s425 + $0xb0] sm:$0xff]
        %v504 = vld [vmem:[%s425 + $0xb8] sm:$0xff]
        %v505 = vld [vmem:[%s425 + $0xc0] sm:$0xff]
        %v506 = vld [vmem:[%s425 + $0xc8] sm:$0xff]
        %v507 = vld [vmem:[%s425 + $0xd0] sm:$0xff]
        %v508 = vld [vmem:[%s425 + $0xd8] sm:$0xff]
        %v509 = vld [vmem:[%s425 + $0xe0] sm:$0xff]
        %v510 = vld [vmem:[%s425 + $0xe8] sm:$0xff]
        %v511 = vld [vmem:[%s425 + $0xf0] sm:$0xff]
        %v512 = vld [vmem:[%s425 + $0xf8] sm:$0xff]
        %s513 = scalar_lea.vmem [#allocation2], 24
        %514 = vst [vmem:[%s513 + $0x1] sm:$0xff] %v481
        %515 = vst [vmem:[%s513 + $0x9] sm:$0xff] %v482
        %516 = vst [vmem:[%s513 + $0x19] sm:$0xff] %v483
        %517 = vst [vmem:[%s513 + $0x21] sm:$0xff] %v484
        %518 = vst [vmem:[%s513 + $0x31] sm:$0xff] %v485
        %519 = vst [vmem:[%s513 + $0x39] sm:$0xff] %v486
        %520 = vst [vmem:[%s513 + $0x49] sm:$0xff] %v487
        %521 = vst [vmem:[%s513 + $0x51] sm:$0xff] %v488
        %522 = vst [vmem:[%s513 + $0x61] sm:$0xff] %v489
        %523 = vst [vmem:[%s513 + $0x69] sm:$0xff] %v490
        %524 = vst [vmem:[%s513 + $0x79] sm:$0xff] %v491
        %525 = vst [vmem:[%s513 + $0x81] sm:$0xff] %v492
        %526 = vst [vmem:[%s513 + $0x91] sm:$0xff] %v493
        %527 = vst [vmem:[%s513 + $0x99] sm:$0xff] %v494
        %528 = vst [vmem:[%s513 + $0xa9] sm:$0xff] %v495
        %529 = vst [vmem:[%s513 + $0xb1] sm:$0xff] %v496
        %530 = vst [vmem:[%s513 + $0xc1] sm:$0xff] %v497
        %531 = vst [vmem:[%s513 + $0xc9] sm:$0xff] %v498
        %532 = vst [vmem:[%s513 + $0xd9] sm:$0xff] %v499
        %533 = vst [vmem:[%s513 + $0xe1] sm:$0xff] %v500
        %534 = vst [vmem:[%s513 + $0xf1] sm:$0xff] %v501
        %535 = vst [vmem:[%s513 + $0xf9] sm:$0xff] %v502
        %536 = vst [vmem:[%s513 + $0x109] sm:$0xff] %v503
        %537 = vst [vmem:[%s513 + $0x111] sm:$0xff] %v504
        %538 = vst [vmem:[%s513 + $0x121] sm:$0xff] %v505
        %539 = vst [vmem:[%s513 + $0x129] sm:$0xff] %v506
        %540 = vst [vmem:[%s513 + $0x139] sm:$0xff] %v507
        %541 = vst [vmem:[%s513 + $0x141] sm:$0xff] %v508
        %542 = vst [vmem:[%s513 + $0x151] sm:$0xff] %v509
        %543 = vst [vmem:[%s513 + $0x159] sm:$0xff] %v510
        %544 = vst [vmem:[%s513 + $0x169] sm:$0xff] %v511
        %545 = vst [vmem:[%s513 + $0x171] sm:$0xff] %v512
        %v546 = vld [vmem:[#allocation2] sm:$0xff]
        %v547 = vld [vmem:[#allocation2 + $0x8] sm:$0xff]
        %v548 = vld [vmem:[#allocation2 + $0x18] sm:$0xff]
        %v549 = vld [vmem:[#allocation2 + $0x20] sm:$0xff]
        %v550 = vld [vmem:[#allocation2 + $0x30] sm:$0xff]
        %v551 = vld [vmem:[#allocation2 + $0x38] sm:$0xff]
        %v552 = vld [vmem:[#allocation2 + $0x48] sm:$0xff]
        %v553 = vld [vmem:[#allocation2 + $0x50] sm:$0xff]
        %v554 = vld [vmem:[#allocation2 + $0x60] sm:$0xff]
        %v555 = vld [vmem:[#allocation2 + $0x68] sm:$0xff]
        %v556 = vld [vmem:[#allocation2 + $0x78] sm:$0xff]
        %v557 = vld [vmem:[#allocation2 + $0x80] sm:$0xff]
        %v558 = vld [vmem:[#allocation2 + $0x90] sm:$0xff]
        %v559 = vld [vmem:[#allocation2 + $0x98] sm:$0xff]
        %v560 = vld [vmem:[#allocation2 + $0xa8] sm:$0xff]
        %v561 = vld [vmem:[#allocation2 + $0xb0] sm:$0xff]
        %v562 = vld [vmem:[#allocation2 + $0xc0] sm:$0xff]
        %v563 = vld [vmem:[#allocation2 + $0xc8] sm:$0xff]
        %v564 = vld [vmem:[#allocation2 + $0xd8] sm:$0xff]
        %v565 = vld [vmem:[#allocation2 + $0xe0] sm:$0xff]
        %v566 = vld [vmem:[#allocation2 + $0xf0] sm:$0xff]
        %v567 = vld [vmem:[#allocation2 + $0xf8] sm:$0xff]
        %v568 = vld [vmem:[#allocation2 + $0x108] sm:$0xff]
        %v569 = vld [vmem:[#allocation2 + $0x110] sm:$0xff]
        %v570 = vld [vmem:[#allocation2 + $0x120] sm:$0xff]
        %v571 = vld [vmem:[#allocation2 + $0x128] sm:$0xff]
        %v572 = vld [vmem:[#allocation2 + $0x138] sm:$0xff]
        %v573 = vld [vmem:[#allocation2 + $0x140] sm:$0xff]
        %v574 = vld [vmem:[#allocation2 + $0x150] sm:$0xff]
        %v575 = vld [vmem:[#allocation2 + $0x158] sm:$0xff]
        %v576 = vld [vmem:[#allocation2 + $0x168] sm:$0xff]
        %v577 = vld [vmem:[#allocation2 + $0x170] sm:$0xff]
        %v578 = vpack.c.bf16 %v547, %v546
        %v579 = vpack.c.bf16 %v549, %v548
        %v580 = vpack.c.bf16 %v551, %v550
        %v581 = vpack.c.bf16 %v553, %v552
        %v582 = vpack.c.bf16 %v555, %v554
        %v583 = vpack.c.bf16 %v557, %v556
        %v584 = vpack.c.bf16 %v559, %v558
        %v585 = vpack.c.bf16 %v561, %v560
        %v586 = vpack.c.bf16 %v563, %v562
        %v587 = vpack.c.bf16 %v565, %v564
        %v588 = vpack.c.bf16 %v567, %v566
        %v589 = vpack.c.bf16 %v569, %v568
        %v590 = vpack.c.bf16 %v571, %v570
        %v591 = vpack.c.bf16 %v573, %v572
        %v592 = vpack.c.bf16 %v575, %v574
        %v593 = vpack.c.bf16 %v577, %v576
        %v594 = vld [vmem:[#allocation3] sm:$0xf]
        %v595 = vld [vmem:[#allocation3 + $0x4] sm:$0xf]
        %v596 = vld [vmem:[#allocation3 + $0x8] sm:$0xf]
        %v597 = vld [vmem:[#allocation3 + $0xc] sm:$0xf]
        %v598 = vld [vmem:[#allocation3 + $0x10] sm:$0xf]
        %v599 = vld [vmem:[#allocation3 + $0x14] sm:$0xf]
        %v600 = vld [vmem:[#allocation3 + $0x18] sm:$0xf]
        %v601 = vld [vmem:[#allocation3 + $0x1c] sm:$0xf]
        %v602 = vld [vmem:[#allocation3 + $0x20] sm:$0xf]
        %v603 = vld [vmem:[#allocation3 + $0x24] sm:$0xf]
        %v604 = vld [vmem:[#allocation3 + $0x28] sm:$0xf]
        %v605 = vld [vmem:[#allocation3 + $0x2c] sm:$0xf]
        %v606 = vld [vmem:[#allocation3 + $0x30] sm:$0xf]
        %v607 = vld [vmem:[#allocation3 + $0x34] sm:$0xf]
        %v608 = vld [vmem:[#allocation3 + $0x38] sm:$0xf]
        %v609 = vld [vmem:[#allocation3 + $0x3c] sm:$0xf]
        %v610 = vld [vmem:[#allocation2 + $0x1] sm:$0xff]
        %v611 = vld [vmem:[#allocation2 + $0x9] sm:$0xff]
        %v612 = vld [vmem:[#allocation2 + $0x19] sm:$0xff]
        %v613 = vld [vmem:[#allocation2 + $0x21] sm:$0xff]
        %v614 = vld [vmem:[#allocation2 + $0x31] sm:$0xff]
        %v615 = vld [vmem:[#allocation2 + $0x39] sm:$0xff]
        %v616 = vld [vmem:[#allocation2 + $0x49] sm:$0xff]
        %v617 = vld [vmem:[#allocation2 + $0x51] sm:$0xff]
        %v618 = vld [vmem:[#allocation2 + $0x61] sm:$0xff]
        %v619 = vld [vmem:[#allocation2 + $0x69] sm:$0xff]
        %v620 = vld [vmem:[#allocation2 + $0x79] sm:$0xff]
        %v621 = vld [vmem:[#allocation2 + $0x81] sm:$0xff]
        %v622 = vld [vmem:[#allocation2 + $0x91] sm:$0xff]
        %v623 = vld [vmem:[#allocation2 + $0x99] sm:$0xff]
        %v624 = vld [vmem:[#allocation2 + $0xa9] sm:$0xff]
        %v625 = vld [vmem:[#allocation2 + $0xb1] sm:$0xff]
        %v626 = vld [vmem:[#allocation2 + $0xc1] sm:$0xff]
        %v627 = vld [vmem:[#allocation2 + $0xc9] sm:$0xff]
        %v628 = vld [vmem:[#allocation2 + $0xd9] sm:$0xff]
        %v629 = vld [vmem:[#allocation2 + $0xe1] sm:$0xff]
        %v630 = vld [vmem:[#allocation2 + $0xf1] sm:$0xff]
        %v631 = vld [vmem:[#allocation2 + $0xf9] sm:$0xff]
        %v632 = vld [vmem:[#allocation2 + $0x109] sm:$0xff]
        %v633 = vld [vmem:[#allocation2 + $0x111] sm:$0xff]
        %v634 = vld [vmem:[#allocation2 + $0x121] sm:$0xff]
        %v635 = vld [vmem:[#allocation2 + $0x129] sm:$0xff]
        %v636 = vld [vmem:[#allocation2 + $0x139] sm:$0xff]
        %v637 = vld [vmem:[#allocation2 + $0x141] sm:$0xff]
        %v638 = vld [vmem:[#allocation2 + $0x151] sm:$0xff]
        %v639 = vld [vmem:[#allocation2 + $0x159] sm:$0xff]
        %v640 = vld [vmem:[#allocation2 + $0x169] sm:$0xff]
        %v641 = vld [vmem:[#allocation2 + $0x171] sm:$0xff]
        %v642 = vpack.c.bf16 %v611, %v610
        %v643 = vpack.c.bf16 %v613, %v612
        %v644 = vpack.c.bf16 %v615, %v614
        %v645 = vpack.c.bf16 %v617, %v616
        %v646 = vpack.c.bf16 %v619, %v618
        %v647 = vpack.c.bf16 %v621, %v620
        %v648 = vpack.c.bf16 %v623, %v622
        %v649 = vpack.c.bf16 %v625, %v624
        %v650 = vpack.c.bf16 %v627, %v626
        %v651 = vpack.c.bf16 %v629, %v628
        %v652 = vpack.c.bf16 %v631, %v630
        %v653 = vpack.c.bf16 %v633, %v632
        %v654 = vpack.c.bf16 %v635, %v634
        %v655 = vpack.c.bf16 %v637, %v636
        %v656 = vpack.c.bf16 %v639, %v638
        %v657 = vpack.c.bf16 %v641, %v640
        %s658 = scalar_lea.vmem [#allocation3], 64
        %v659 = vld [vmem:[%s658] sm:$0xf]
        %v660 = vld [vmem:[%s658 + $0x4] sm:$0xf]
        %v661 = vld [vmem:[%s658 + $0x8] sm:$0xf]
        %v662 = vld [vmem:[%s658 + $0xc] sm:$0xf]
        %v663 = vld [vmem:[%s658 + $0x10] sm:$0xf]
        %v664 = vld [vmem:[%s658 + $0x14] sm:$0xf]
        %v665 = vld [vmem:[%s658 + $0x18] sm:$0xf]
        %v666 = vld [vmem:[%s658 + $0x1c] sm:$0xf]
        %v667 = vld [vmem:[%s658 + $0x20] sm:$0xf]
        %v668 = vld [vmem:[%s658 + $0x24] sm:$0xf]
        %v669 = vld [vmem:[%s658 + $0x28] sm:$0xf]
        %v670 = vld [vmem:[%s658 + $0x2c] sm:$0xf]
        %v671 = vld [vmem:[%s658 + $0x30] sm:$0xf]
        %v672 = vld [vmem:[%s658 + $0x34] sm:$0xf]
        %v673 = vld [vmem:[%s658 + $0x38] sm:$0xf]
        %v674 = vld [vmem:[%s658 + $0x3c] sm:$0xf]
        %v691 = vunpack.c.l.b16 %v659
        %v692 = vunpack.c.l.b16 %v660
        %v693 = vunpack.c.l.b16 %v661
        %v694 = vunpack.c.l.b16 %v662
        %v695 = vunpack.c.l.b16 %v663
        %v696 = vunpack.c.l.b16 %v664
        %v697 = vunpack.c.l.b16 %v665
        %v698 = vunpack.c.l.b16 %v666
        %v699 = vunpack.c.l.b16 %v667
        %v700 = vunpack.c.l.b16 %v668
        %v701 = vunpack.c.l.b16 %v669
        %v702 = vunpack.c.l.b16 %v670
        %v703 = vunpack.c.l.b16 %v671
        %v704 = vunpack.c.l.b16 %v672
        %v705 = vunpack.c.l.b16 %v673
        %v706 = vunpack.c.l.b16 %v674
        %v707 = vpack.c.b16 %v692, %v691
        %v708 = vpack.c.b16 %v694, %v693
        %v709 = vpack.c.b16 %v696, %v695
        %v710 = vpack.c.b16 %v698, %v697
        %v711 = vpack.c.b16 %v700, %v699
        %v712 = vpack.c.b16 %v702, %v701
        %v713 = vpack.c.b16 %v704, %v703
        %v714 = vpack.c.b16 %v706, %v705
        %723 = vmatprep.subr.bf16.mxu0 0
        %724 = vmatpush1.bf16.msra.mxu0 %v707
        %725 = vmatprep.subr.bf16.mxu0 0
        %726 = vmatpush1.bf16.msra.mxu0 %v708
        %727 = vmatprep.subr.bf16.mxu0 0
        %728 = vmatpush1.bf16.msra.mxu0 %v709
        %729 = vmatprep.subr.bf16.mxu0 0
        %730 = vmatpush1.bf16.msra.mxu0 %v710
        %731 = vmatprep.subr.bf16.mxu0 0
        %732 = vmatpush1.bf16.msra.mxu0 %v711
        %733 = vmatprep.subr.bf16.mxu0 0
        %734 = vmatpush1.bf16.msra.mxu0 %v712
        %735 = vmatprep.subr.bf16.mxu0 0
        %736 = vmatpush1.bf16.msra.mxu0 %v713
        %737 = vmatprep.subr.bf16.mxu0 0
        %738 = vmatpush1.bf16.msra.mxu0 %v714
        %739 = vmatprep.subr.bf16.mxu0 0
        %740 = vmatpush1.bf16.msra.mxu0 0
        %741 = vmatprep.subr.bf16.mxu0 0
        %742 = vmatpush1.bf16.msra.mxu0 0
        %743 = vmatprep.subr.bf16.mxu0 0
        %744 = vmatpush1.bf16.msra.mxu0 0
        %745 = vmatprep.subr.bf16.mxu0 0
        %746 = vmatpush1.bf16.msra.mxu0 0
        %747 = vmatprep.subr.bf16.mxu0 0
        %748 = vmatpush1.bf16.msra.mxu0 0
        %749 = vmatprep.subr.bf16.mxu0 0
        %750 = vmatpush1.bf16.msra.mxu0 0
        %751 = vmatprep.subr.bf16.mxu0 0
        %752 = vmatpush1.bf16.msra.mxu0 0
        %753 = vmatprep.subr.bf16.mxu0 0
        %754 = vmatpush1.bf16.msra.mxu0 0
        %755 = vmatprep.mubr.bf16.mxu0 0
        %756 = vmatmul.mubr.bf16.gmra.mrb[0].mxu0 %v642
        %v757 = vpop.f32.mrb[0].mxu0
        %v758 = vadd.f32 0.0, %v757
        %v759 = vpop.f32.mrb[0].mxu0
        %v760 = vpop.f32.mrb[0].mxu0
        %v761 = vadd.f32 0.0, %v760
        %v762 = vpop.f32.mrb[0].mxu0
        %763 = vmatprep.mubr.bf16.mxu0 0
        %764 = vmatmul.mubr.bf16.gmra.mrb[0].mxu0 %v643
        %v765 = vpop.f32.mrb[0].mxu0
        %v766 = vadd.f32 0.0, %v765
        %v767 = vpop.f32.mrb[0].mxu0
        %v768 = vpop.f32.mrb[0].mxu0
        %v769 = vadd.f32 0.0, %v768
        %v770 = vpop.f32.mrb[0].mxu0
        %771 = vmatprep.mubr.bf16.mxu0 0
        %772 = vmatmul.mubr.bf16.gmra.mrb[0].mxu0 %v644
        %v773 = vpop.f32.mrb[0].mxu0
        %v774 = vadd.f32 0.0, %v773
        %v775 = vpop.f32.mrb[0].mxu0
        %v776 = vpop.f32.mrb[0].mxu0
        %v777 = vadd.f32 0.0, %v776
        %v778 = vpop.f32.mrb[0].mxu0
        %779 = vmatprep.mubr.bf16.mxu0 0
        %780 = vmatmul.mubr.bf16.gmra.mrb[0].mxu0 %v645
        %v781 = vpop.f32.mrb[0].mxu0
        %v782 = vadd.f32 0.0, %v781
        %v783 = vpop.f32.mrb[0].mxu0
        %v784 = vpop.f32.mrb[0].mxu0
        %v785 = vadd.f32 0.0, %v784
        %v786 = vpop.f32.mrb[0].mxu0
        %787 = vmatprep.mubr.bf16.mxu0 0
        %788 = vmatmul.mubr.bf16.gmra.mrb[0].mxu0 %v646
        %v789 = vpop.f32.mrb[0].mxu0
        %v790 = vadd.f32 0.0, %v789
        %v791 = vpop.f32.mrb[0].mxu0
        %v792 = vpop.f32.mrb[0].mxu0
        %v793 = vadd.f32 0.0, %v792
        %v794 = vpop.f32.mrb[0].mxu0
        %795 = vmatprep.mubr.bf16.mxu0 0
        %796 = vmatmul.mubr.bf16.gmra.mrb[0].mxu0 %v647
        %v797 = vpop.f32.mrb[0].mxu0
        %v798 = vadd.f32 0.0, %v797
        %v799 = vpop.f32.mrb[0].mxu0
        %v800 = vpop.f32.mrb[0].mxu0
        %v801 = vadd.f32 0.0, %v800
        %v802 = vpop.f32.mrb[0].mxu0
        %803 = vmatprep.mubr.bf16.mxu0 0
        %804 = vmatmul.mubr.bf16.gmra.mrb[0].mxu0 %v648
        %v805 = vpop.f32.mrb[0].mxu0
        %v806 = vadd.f32 0.0, %v805
        %v807 = vpop.f32.mrb[0].mxu0
        %v808 = vpop.f32.mrb[0].mxu0
        %v809 = vadd.f32 0.0, %v808
        %v810 = vpop.f32.mrb[0].mxu0
        %811 = vmatprep.mubr.bf16.mxu0 0
        %812 = vmatmul.mubr.bf16.gmra.mrb[0].mxu0 %v649
        %v813 = vpop.f32.mrb[0].mxu0
        %v814 = vadd.f32 0.0, %v813
        %v815 = vpop.f32.mrb[0].mxu0
        %v816 = vpop.f32.mrb[0].mxu0
        %v817 = vadd.f32 0.0, %v816
        %v818 = vpop.f32.mrb[0].mxu0
        %819 = vmatprep.mubr.bf16.mxu0 0
        %820 = vmatmul.mubr.bf16.gmra.mrb[0].mxu0 %v650
        %v821 = vpop.f32.mrb[0].mxu0
        %v822 = vadd.f32 0.0, %v821
        %v823 = vpop.f32.mrb[0].mxu0
        %v824 = vpop.f32.mrb[0].mxu0
        %v825 = vadd.f32 0.0, %v824
        %v826 = vpop.f32.mrb[0].mxu0
        %827 = vmatprep.mubr.bf16.mxu0 0
        %828 = vmatmul.mubr.bf16.gmra.mrb[0].mxu0 %v651
        %v829 = vpop.f32.mrb[0].mxu0
        %v830 = vadd.f32 0.0, %v829
        %v831 = vpop.f32.mrb[0].mxu0
        %v832 = vpop.f32.mrb[0].mxu0
        %v833 = vadd.f32 0.0, %v832
        %v834 = vpop.f32.mrb[0].mxu0
        %835 = vmatprep.mubr.bf16.mxu0 0
        %836 = vmatmul.mubr.bf16.gmra.mrb[0].mxu0 %v652
        %v837 = vpop.f32.mrb[0].mxu0
        %v838 = vadd.f32 0.0, %v837
        %v839 = vpop.f32.mrb[0].mxu0
        %v840 = vpop.f32.mrb[0].mxu0
        %v841 = vadd.f32 0.0, %v840
        %v842 = vpop.f32.mrb[0].mxu0
        %843 = vmatprep.mubr.bf16.mxu0 0
        %844 = vmatmul.mubr.bf16.gmra.mrb[0].mxu0 %v653
        %v845 = vpop.f32.mrb[0].mxu0
        %v846 = vadd.f32 0.0, %v845
        %v847 = vpop.f32.mrb[0].mxu0
        %v848 = vpop.f32.mrb[0].mxu0
        %v849 = vadd.f32 0.0, %v848
        %v850 = vpop.f32.mrb[0].mxu0
        %851 = vmatprep.mubr.bf16.mxu0 0
        %852 = vmatmul.mubr.bf16.gmra.mrb[0].mxu0 %v654
        %v853 = vpop.f32.mrb[0].mxu0
        %v854 = vadd.f32 0.0, %v853
        %v855 = vpop.f32.mrb[0].mxu0
        %v856 = vpop.f32.mrb[0].mxu0
        %v857 = vadd.f32 0.0, %v856
        %v858 = vpop.f32.mrb[0].mxu0
        %859 = vmatprep.mubr.bf16.mxu0 0
        %860 = vmatmul.mubr.bf16.gmra.mrb[0].mxu0 %v655
        %v861 = vpop.f32.mrb[0].mxu0
        %v862 = vadd.f32 0.0, %v861
        %v863 = vpop.f32.mrb[0].mxu0
        %v864 = vpop.f32.mrb[0].mxu0
        %v865 = vadd.f32 0.0, %v864
        %v866 = vpop.f32.mrb[0].mxu0
        %867 = vmatprep.mubr.bf16.mxu0 0
        %868 = vmatmul.mubr.bf16.gmra.mrb[0].mxu0 %v656
        %v869 = vpop.f32.mrb[0].mxu0
        %v870 = vadd.f32 0.0, %v869
        %v871 = vpop.f32.mrb[0].mxu0
        %v872 = vpop.f32.mrb[0].mxu0
        %v873 = vadd.f32 0.0, %v872
        %v874 = vpop.f32.mrb[0].mxu0
        %875 = vmatprep.mubr.bf16.mxu0 0
        %876 = vmatmul.mubr.bf16.gmra.mrb[0].mxu0 %v657
        %v877 = vpop.f32.mrb[0].mxu0
        %v878 = vadd.f32 0.0, %v877
        %v879 = vpop.f32.mrb[0].mxu0
        %v880 = vpop.f32.mrb[0].mxu0
        %v881 = vadd.f32 0.0, %v880
        %v882 = vpop.f32.mrb[0].mxu0
        %883 = vdwg.mxu0
        %v900 = vunpack.c.l.b16 %v594
        %v901 = vunpack.c.l.b16 %v595
        %v902 = vunpack.c.l.b16 %v596
        %v903 = vunpack.c.l.b16 %v597
        %v904 = vunpack.c.l.b16 %v598
        %v905 = vunpack.c.l.b16 %v599
        %v906 = vunpack.c.l.b16 %v600
        %v907 = vunpack.c.l.b16 %v601
        %v908 = vunpack.c.l.b16 %v602
        %v909 = vunpack.c.l.b16 %v603
        %v910 = vunpack.c.l.b16 %v604
        %v911 = vunpack.c.l.b16 %v605
        %v912 = vunpack.c.l.b16 %v606
        %v913 = vunpack.c.l.b16 %v607
        %v914 = vunpack.c.l.b16 %v608
        %v915 = vunpack.c.l.b16 %v609
        %v916 = vpack.c.b16 %v901, %v900
        %v917 = vpack.c.b16 %v903, %v902
        %v918 = vpack.c.b16 %v905, %v904
        %v919 = vpack.c.b16 %v907, %v906
        %v920 = vpack.c.b16 %v909, %v908
        %v921 = vpack.c.b16 %v911, %v910
        %v922 = vpack.c.b16 %v913, %v912
        %v923 = vpack.c.b16 %v915, %v914
        %932 = vmatprep.subr.bf16.mxu0 0
        %933 = vmatpush1.bf16.msra.mxu0 %v916
        %934 = vmatprep.subr.bf16.mxu0 0
        %935 = vmatpush1.bf16.msra.mxu0 %v917
        %936 = vmatprep.subr.bf16.mxu0 0
        %937 = vmatpush1.bf16.msra.mxu0 %v918
        %938 = vmatprep.subr.bf16.mxu0 0
        %939 = vmatpush1.bf16.msra.mxu0 %v919
        %940 = vmatprep.subr.bf16.mxu0 0
        %941 = vmatpush1.bf16.msra.mxu0 %v920
        %942 = vmatprep.subr.bf16.mxu0 0
        %943 = vmatpush1.bf16.msra.mxu0 %v921
        %944 = vmatprep.subr.bf16.mxu0 0
        %945 = vmatpush1.bf16.msra.mxu0 %v922
        %946 = vmatprep.subr.bf16.mxu0 0
        %947 = vmatpush1.bf16.msra.mxu0 %v923
        %948 = vmatprep.subr.bf16.mxu0 0
        %949 = vmatpush1.bf16.msra.mxu0 0
        %950 = vmatprep.subr.bf16.mxu0 0
        %951 = vmatpush1.bf16.msra.mxu0 0
        %952 = vmatprep.subr.bf16.mxu0 0
        %953 = vmatpush1.bf16.msra.mxu0 0
        %954 = vmatprep.subr.bf16.mxu0 0
        %955 = vmatpush1.bf16.msra.mxu0 0
        %956 = vmatprep.subr.bf16.mxu0 0
        %957 = vmatpush1.bf16.msra.mxu0 0
        %958 = vmatprep.subr.bf16.mxu0 0
        %959 = vmatpush1.bf16.msra.mxu0 0
        %960 = vmatprep.subr.bf16.mxu0 0
        %961 = vmatpush1.bf16.msra.mxu0 0
        %962 = vmatprep.subr.bf16.mxu0 0
        %963 = vmatpush1.bf16.msra.mxu0 0
        %964 = vmatprep.mubr.bf16.mxu0 0
        %965 = vmatmul.mubr.bf16.gmra.mrb[0].mxu0 %v578
        %v966 = vpop.f32.mrb[0].mxu0
        %v967 = vadd.f32 %v758, %v966
        %v968 = vpop.f32.mrb[0].mxu0
        %v969 = vpop.f32.mrb[0].mxu0
        %v970 = vadd.f32 %v761, %v969
        %v971 = vpop.f32.mrb[0].mxu0
        %972 = vmatprep.mubr.bf16.mxu0 0
        %973 = vmatmul.mubr.bf16.gmra.mrb[0].mxu0 %v579
        %v974 = vpop.f32.mrb[0].mxu0
        %v975 = vadd.f32 %v766, %v974
        %v976 = vpop.f32.mrb[0].mxu0
        %v977 = vpop.f32.mrb[0].mxu0
        %v978 = vadd.f32 %v769, %v977
        %v979 = vpop.f32.mrb[0].mxu0
        %980 = vmatprep.mubr.bf16.mxu0 0
        %981 = vmatmul.mubr.bf16.gmra.mrb[0].mxu0 %v580
        %v982 = vpop.f32.mrb[0].mxu0
        %v983 = vadd.f32 %v774, %v982
        %v984 = vpop.f32.mrb[0].mxu0
        %v985 = vpop.f32.mrb[0].mxu0
        %v986 = vadd.f32 %v777, %v985
        %v987 = vpop.f32.mrb[0].mxu0
        %988 = vmatprep.mubr.bf16.mxu0 0
        %989 = vmatmul.mubr.bf16.gmra.mrb[0].mxu0 %v581
        %v990 = vpop.f32.mrb[0].mxu0
        %v991 = vadd.f32 %v782, %v990
        %v992 = vpop.f32.mrb[0].mxu0
        %v993 = vpop.f32.mrb[0].mxu0
        %v994 = vadd.f32 %v785, %v993
        %v995 = vpop.f32.mrb[0].mxu0
        %996 = vmatprep.mubr.bf16.mxu0 0
        %997 = vmatmul.mubr.bf16.gmra.mrb[0].mxu0 %v582
        %v998 = vpop.f32.mrb[0].mxu0
        %v999 = vadd.f32 %v790, %v998
        %v1000 = vpop.f32.mrb[0].mxu0
        %v1001 = vpop.f32.mrb[0].mxu0
        %v1002 = vadd.f32 %v793, %v1001
        %v1003 = vpop.f32.mrb[0].mxu0
        %1004 = vmatprep.mubr.bf16.mxu0 0
        %1005 = vmatmul.mubr.bf16.gmra.mrb[0].mxu0 %v583
        %v1006 = vpop.f32.mrb[0].mxu0
        %v1007 = vadd.f32 %v798, %v1006
        %v1008 = vpop.f32.mrb[0].mxu0
        %v1009 = vpop.f32.mrb[0].mxu0
        %v1010 = vadd.f32 %v801, %v1009
        %v1011 = vpop.f32.mrb[0].mxu0
        %1012 = vmatprep.mubr.bf16.mxu0 0
        %1013 = vmatmul.mubr.bf16.gmra.mrb[0].mxu0 %v584
        %v1014 = vpop.f32.mrb[0].mxu0
        %v1015 = vadd.f32 %v806, %v1014
        %v1016 = vpop.f32.mrb[0].mxu0
        %v1017 = vpop.f32.mrb[0].mxu0
        %v1018 = vadd.f32 %v809, %v1017
        %v1019 = vpop.f32.mrb[0].mxu0
        %1020 = vmatprep.mubr.bf16.mxu0 0
        %1021 = vmatmul.mubr.bf16.gmra.mrb[0].mxu0 %v585
        %v1022 = vpop.f32.mrb[0].mxu0
        %v1023 = vadd.f32 %v814, %v1022
        %v1024 = vpop.f32.mrb[0].mxu0
        %v1025 = vpop.f32.mrb[0].mxu0
        %v1026 = vadd.f32 %v817, %v1025
        %v1027 = vpop.f32.mrb[0].mxu0
        %1028 = vmatprep.mubr.bf16.mxu0 0
        %1029 = vmatmul.mubr.bf16.gmra.mrb[0].mxu0 %v586
        %v1030 = vpop.f32.mrb[0].mxu0
        %v1031 = vadd.f32 %v822, %v1030
        %v1032 = vpop.f32.mrb[0].mxu0
        %v1033 = vpop.f32.mrb[0].mxu0
        %v1034 = vadd.f32 %v825, %v1033
        %v1035 = vpop.f32.mrb[0].mxu0
        %1036 = vmatprep.mubr.bf16.mxu0 0
        %1037 = vmatmul.mubr.bf16.gmra.mrb[0].mxu0 %v587
        %v1038 = vpop.f32.mrb[0].mxu0
        %v1039 = vadd.f32 %v830, %v1038
        %v1040 = vpop.f32.mrb[0].mxu0
        %v1041 = vpop.f32.mrb[0].mxu0
        %v1042 = vadd.f32 %v833, %v1041
        %v1043 = vpop.f32.mrb[0].mxu0
        %1044 = vmatprep.mubr.bf16.mxu0 0
        %1045 = vmatmul.mubr.bf16.gmra.mrb[0].mxu0 %v588
        %v1046 = vpop.f32.mrb[0].mxu0
        %v1047 = vadd.f32 %v838, %v1046
        %v1048 = vpop.f32.mrb[0].mxu0
        %v1049 = vpop.f32.mrb[0].mxu0
        %v1050 = vadd.f32 %v841, %v1049
        %v1051 = vpop.f32.mrb[0].mxu0
        %1052 = vmatprep.mubr.bf16.mxu0 0
        %1053 = vmatmul.mubr.bf16.gmra.mrb[0].mxu0 %v589
        %v1054 = vpop.f32.mrb[0].mxu0
        %v1055 = vadd.f32 %v846, %v1054
        %v1056 = vpop.f32.mrb[0].mxu0
        %v1057 = vpop.f32.mrb[0].mxu0
        %v1058 = vadd.f32 %v849, %v1057
        %v1059 = vpop.f32.mrb[0].mxu0
        %1060 = vmatprep.mubr.bf16.mxu0 0
        %1061 = vmatmul.mubr.bf16.gmra.mrb[0].mxu0 %v590
        %v1062 = vpop.f32.mrb[0].mxu0
        %v1063 = vadd.f32 %v854, %v1062
        %v1064 = vpop.f32.mrb[0].mxu0
        %v1065 = vpop.f32.mrb[0].mxu0
        %v1066 = vadd.f32 %v857, %v1065
        %v1067 = vpop.f32.mrb[0].mxu0
        %1068 = vmatprep.mubr.bf16.mxu0 0
        %1069 = vmatmul.mubr.bf16.gmra.mrb[0].mxu0 %v591
        %v1070 = vpop.f32.mrb[0].mxu0
        %v1071 = vadd.f32 %v862, %v1070
        %v1072 = vpop.f32.mrb[0].mxu0
        %v1073 = vpop.f32.mrb[0].mxu0
        %v1074 = vadd.f32 %v865, %v1073
        %v1075 = vpop.f32.mrb[0].mxu0
        %1076 = vmatprep.mubr.bf16.mxu0 0
        %1077 = vmatmul.mubr.bf16.gmra.mrb[0].mxu0 %v592
        %v1078 = vpop.f32.mrb[0].mxu0
        %v1079 = vadd.f32 %v870, %v1078
        %v1080 = vpop.f32.mrb[0].mxu0
        %v1081 = vpop.f32.mrb[0].mxu0
        %v1082 = vadd.f32 %v873, %v1081
        %v1083 = vpop.f32.mrb[0].mxu0
        %1084 = vmatprep.mubr.bf16.mxu0 0
        %1085 = vmatmul.mubr.bf16.gmra.mrb[0].mxu0 %v593
        %v1086 = vpop.f32.mrb[0].mxu0
        %v1087 = vadd.f32 %v878, %v1086
        %v1088 = vpop.f32.mrb[0].mxu0
        %v1089 = vpop.f32.mrb[0].mxu0
        %v1090 = vadd.f32 %v881, %v1089
        %v1091 = vpop.f32.mrb[0].mxu0
        %1092 = vdwg.mxu0
        %v1093 = vld [vmem:[#allocation2 + $0x2] sm:$0xff]
        %v1094 = vld [vmem:[#allocation2 + $0xa] sm:$0xff]
        %v1095 = vld [vmem:[#allocation2 + $0x1a] sm:$0xff]
        %v1096 = vld [vmem:[#allocation2 + $0x22] sm:$0xff]
        %v1097 = vld [vmem:[#allocation2 + $0x32] sm:$0xff]
        %v1098 = vld [vmem:[#allocation2 + $0x3a] sm:$0xff]
        %v1099 = vld [vmem:[#allocation2 + $0x4a] sm:$0xff]
        %v1100 = vld [vmem:[#allocation2 + $0x52] sm:$0xff]
        %v1101 = vld [vmem:[#allocation2 + $0x62] sm:$0xff]
        %v1102 = vld [vmem:[#allocation2 + $0x6a] sm:$0xff]
        %v1103 = vld [vmem:[#allocation2 + $0x7a] sm:$0xff]
        %v1104 = vld [vmem:[#allocation2 + $0x82] sm:$0xff]
        %v1105 = vld [vmem:[#allocation2 + $0x92] sm:$0xff]
        %v1106 = vld [vmem:[#allocation2 + $0x9a] sm:$0xff]
        %v1107 = vld [vmem:[#allocation2 + $0xaa] sm:$0xff]
        %v1108 = vld [vmem:[#allocation2 + $0xb2] sm:$0xff]
        %v1109 = vld [vmem:[#allocation2 + $0xc2] sm:$0xff]
        %v1110 = vld [vmem:[#allocation2 + $0xca] sm:$0xff]
        %v1111 = vld [vmem:[#allocation2 + $0xda] sm:$0xff]
        %v1112 = vld [vmem:[#allocation2 + $0xe2] sm:$0xff]
        %v1113 = vld [vmem:[#allocation2 + $0xf2] sm:$0xff]
        %v1114 = vld [vmem:[#allocation2 + $0xfa] sm:$0xff]
        %v1115 = vld [vmem:[#allocation2 + $0x10a] sm:$0xff]
        %v1116 = vld [vmem:[#allocation2 + $0x112] sm:$0xff]
        %v1117 = vld [vmem:[#allocation2 + $0x122] sm:$0xff]
        %v1118 = vld [vmem:[#allocation2 + $0x12a] sm:$0xff]
        %v1119 = vld [vmem:[#allocation2 + $0x13a] sm:$0xff]
        %v1120 = vld [vmem:[#allocation2 + $0x142] sm:$0xff]
        %v1121 = vld [vmem:[#allocation2 + $0x152] sm:$0xff]
        %v1122 = vld [vmem:[#allocation2 + $0x15a] sm:$0xff]
        %v1123 = vld [vmem:[#allocation2 + $0x16a] sm:$0xff]
        %v1124 = vld [vmem:[#allocation2 + $0x172] sm:$0xff]
        %v1125 = vpack.c.bf16 %v1094, %v1093
        %v1126 = vpack.c.bf16 %v1096, %v1095
        %v1127 = vpack.c.bf16 %v1098, %v1097
        %v1128 = vpack.c.bf16 %v1100, %v1099
        %v1129 = vpack.c.bf16 %v1102, %v1101
        %v1130 = vpack.c.bf16 %v1104, %v1103
        %v1131 = vpack.c.bf16 %v1106, %v1105
        %v1132 = vpack.c.bf16 %v1108, %v1107
        %v1133 = vpack.c.bf16 %v1110, %v1109
        %v1134 = vpack.c.bf16 %v1112, %v1111
        %v1135 = vpack.c.bf16 %v1114, %v1113
        %v1136 = vpack.c.bf16 %v1116, %v1115
        %v1137 = vpack.c.bf16 %v1118, %v1117
        %v1138 = vpack.c.bf16 %v1120, %v1119
        %v1139 = vpack.c.bf16 %v1122, %v1121
        %v1140 = vpack.c.bf16 %v1124, %v1123
        %s1141 = scalar_lea.vmem [#allocation3], 128
        %v1142 = vld [vmem:[%s1141] sm:$0xf]
        %v1143 = vld [vmem:[%s1141 + $0x4] sm:$0xf]
        %v1144 = vld [vmem:[%s1141 + $0x8] sm:$0xf]
        %v1145 = vld [vmem:[%s1141 + $0xc] sm:$0xf]
        %v1146 = vld [vmem:[%s1141 + $0x10] sm:$0xf]
        %v1147 = vld [vmem:[%s1141 + $0x14] sm:$0xf]
        %v1148 = vld [vmem:[%s1141 + $0x18] sm:$0xf]
        %v1149 = vld [vmem:[%s1141 + $0x1c] sm:$0xf]
        %v1150 = vld [vmem:[%s1141 + $0x20] sm:$0xf]
        %v1151 = vld [vmem:[%s1141 + $0x24] sm:$0xf]
        %v1152 = vld [vmem:[%s1141 + $0x28] sm:$0xf]
        %v1153 = vld [vmem:[%s1141 + $0x2c] sm:$0xf]
        %v1154 = vld [vmem:[%s1141 + $0x30] sm:$0xf]
        %v1155 = vld [vmem:[%s1141 + $0x34] sm:$0xf]
        %v1156 = vld [vmem:[%s1141 + $0x38] sm:$0xf]
        %v1157 = vld [vmem:[%s1141 + $0x3c] sm:$0xf]
        %v1174 = vunpack.c.l.b16 %v1142
        %v1175 = vunpack.c.l.b16 %v1143
        %v1176 = vunpack.c.l.b16 %v1144
        %v1177 = vunpack.c.l.b16 %v1145
        %v1178 = vunpack.c.l.b16 %v1146
        %v1179 = vunpack.c.l.b16 %v1147
        %v1180 = vunpack.c.l.b16 %v1148
        %v1181 = vunpack.c.l.b16 %v1149
        %v1182 = vunpack.c.l.b16 %v1150
        %v1183 = vunpack.c.l.b16 %v1151
        %v1184 = vunpack.c.l.b16 %v1152
        %v1185 = vunpack.c.l.b16 %v1153
        %v1186 = vunpack.c.l.b16 %v1154
        %v1187 = vunpack.c.l.b16 %v1155
        %v1188 = vunpack.c.l.b16 %v1156
        %v1189 = vunpack.c.l.b16 %v1157
        %v1190 = vpack.c.b16 %v1175, %v1174
        %v1191 = vpack.c.b16 %v1177, %v1176
        %v1192 = vpack.c.b16 %v1179, %v1178
        %v1193 = vpack.c.b16 %v1181, %v1180
        %v1194 = vpack.c.b16 %v1183, %v1182
        %v1195 = vpack.c.b16 %v1185, %v1184
        %v1196 = vpack.c.b16 %v1187, %v1186
        %v1197 = vpack.c.b16 %v1189, %v1188
        %1206 = vmatprep.subr.bf16.mxu0 0
        %1207 = vmatpush1.bf16.msra.mxu0 %v1190
        %1208 = vmatprep.subr.bf16.mxu0 0
        %1209 = vmatpush1.bf16.msra.mxu0 %v1191
        %1210 = vmatprep.subr.bf16.mxu0 0
        %1211 = vmatpush1.bf16.msra.mxu0 %v1192
        %1212 = vmatprep.subr.bf16.mxu0 0
        %1213 = vmatpush1.bf16.msra.mxu0 %v1193
        %1214 = vmatprep.subr.bf16.mxu0 0
        %1215 = vmatpush1.bf16.msra.mxu0 %v1194
        %1216 = vmatprep.subr.bf16.mxu0 0
        %1217 = vmatpush1.bf16.msra.mxu0 %v1195
        %1218 = vmatprep.subr.bf16.mxu0 0
        %1219 = vmatpush1.bf16.msra.mxu0 %v1196
        %1220 = vmatprep.subr.bf16.mxu0 0
        %1221 = vmatpush1.bf16.msra.mxu0 %v1197
        %1222 = vmatprep.subr.bf16.mxu0 0
        %1223 = vmatpush1.bf16.msra.mxu0 0
        %1224 = vmatprep.subr.bf16.mxu0 0
        %1225 = vmatpush1.bf16.msra.mxu0 0
        %1226 = vmatprep.subr.bf16.mxu0 0
        %1227 = vmatpush1.bf16.msra.mxu0 0
        %1228 = vmatprep.subr.bf16.mxu0 0
        %1229 = vmatpush1.bf16.msra.mxu0 0
        %1230 = vmatprep.subr.bf16.mxu0 0
        %1231 = vmatpush1.bf16.msra.mxu0 0
        %1232 = vmatprep.subr.bf16.mxu0 0
        %1233 = vmatpush1.bf16.msra.mxu0 0
        %1234 = vmatprep.subr.bf16.mxu0 0
        %1235 = vmatpush1.bf16.msra.mxu0 0
        %1236 = vmatprep.subr.bf16.mxu0 0
        %1237 = vmatpush1.bf16.msra.mxu0 0
        %1238 = vmatprep.mubr.bf16.mxu0 0
        %1239 = vmatmul.mubr.bf16.gmra.mrb[0].mxu0 %v1125
        %v1240 = vpop.f32.mrb[0].mxu0
        %v1241 = vadd.f32 0.0, %v1240
        %v1242 = vpop.f32.mrb[0].mxu0
        %v1243 = vpop.f32.mrb[0].mxu0
        %v1244 = vadd.f32 0.0, %v1243
        %v1245 = vpop.f32.mrb[0].mxu0
        %1246 = vmatprep.mubr.bf16.mxu0 0
        %1247 = vmatmul.mubr.bf16.gmra.mrb[0].mxu0 %v1126
        %v1248 = vpop.f32.mrb[0].mxu0
        %v1249 = vadd.f32 0.0, %v1248
        %v1250 = vpop.f32.mrb[0].mxu0
        %v1251 = vpop.f32.mrb[0].mxu0
        %v1252 = vadd.f32 0.0, %v1251
        %v1253 = vpop.f32.mrb[0].mxu0
        %1254 = vmatprep.mubr.bf16.mxu0 0
        %1255 = vmatmul.mubr.bf16.gmra.mrb[0].mxu0 %v1127
        %v1256 = vpop.f32.mrb[0].mxu0
        %v1257 = vadd.f32 0.0, %v1256
        %v1258 = vpop.f32.mrb[0].mxu0
        %v1259 = vpop.f32.mrb[0].mxu0
        %v1260 = vadd.f32 0.0, %v1259
        %v1261 = vpop.f32.mrb[0].mxu0
        %1262 = vmatprep.mubr.bf16.mxu0 0
        %1263 = vmatmul.mubr.bf16.gmra.mrb[0].mxu0 %v1128
        %v1264 = vpop.f32.mrb[0].mxu0
        %v1265 = vadd.f32 0.0, %v1264
        %v1266 = vpop.f32.mrb[0].mxu0
        %v1267 = vpop.f32.mrb[0].mxu0
        %v1268 = vadd.f32 0.0, %v1267
        %v1269 = vpop.f32.mrb[0].mxu0
        %1270 = vmatprep.mubr.bf16.mxu0 0
        %1271 = vmatmul.mubr.bf16.gmra.mrb[0].mxu0 %v1129
        %v1272 = vpop.f32.mrb[0].mxu0
        %v1273 = vadd.f32 0.0, %v1272
        %v1274 = vpop.f32.mrb[0].mxu0
        %v1275 = vpop.f32.mrb[0].mxu0
        %v1276 = vadd.f32 0.0, %v1275
        %v1277 = vpop.f32.mrb[0].mxu0
        %1278 = vmatprep.mubr.bf16.mxu0 0
        %1279 = vmatmul.mubr.bf16.gmra.mrb[0].mxu0 %v1130
        %v1280 = vpop.f32.mrb[0].mxu0
        %v1281 = vadd.f32 0.0, %v1280
        %v1282 = vpop.f32.mrb[0].mxu0
        %v1283 = vpop.f32.mrb[0].mxu0
        %v1284 = vadd.f32 0.0, %v1283
        %v1285 = vpop.f32.mrb[0].mxu0
        %1286 = vmatprep.mubr.bf16.mxu0 0
        %1287 = vmatmul.mubr.bf16.gmra.mrb[0].mxu0 %v1131
        %v1288 = vpop.f32.mrb[0].mxu0
        %v1289 = vadd.f32 0.0, %v1288
        %v1290 = vpop.f32.mrb[0].mxu0
        %v1291 = vpop.f32.mrb[0].mxu0
        %v1292 = vadd.f32 0.0, %v1291
        %v1293 = vpop.f32.mrb[0].mxu0
        %1294 = vmatprep.mubr.bf16.mxu0 0
        %1295 = vmatmul.mubr.bf16.gmra.mrb[0].mxu0 %v1132
        %v1296 = vpop.f32.mrb[0].mxu0
        %v1297 = vadd.f32 0.0, %v1296
        %v1298 = vpop.f32.mrb[0].mxu0
        %v1299 = vpop.f32.mrb[0].mxu0
        %v1300 = vadd.f32 0.0, %v1299
        %v1301 = vpop.f32.mrb[0].mxu0
        %1302 = vmatprep.mubr.bf16.mxu0 0
        %1303 = vmatmul.mubr.bf16.gmra.mrb[0].mxu0 %v1133
        %v1304 = vpop.f32.mrb[0].mxu0
        %v1305 = vadd.f32 0.0, %v1304
        %v1306 = vpop.f32.mrb[0].mxu0
        %v1307 = vpop.f32.mrb[0].mxu0
        %v1308 = vadd.f32 0.0, %v1307
        %v1309 = vpop.f32.mrb[0].mxu0
        %1310 = vmatprep.mubr.bf16.mxu0 0
        %1311 = vmatmul.mubr.bf16.gmra.mrb[0].mxu0 %v1134
        %v1312 = vpop.f32.mrb[0].mxu0
        %v1313 = vadd.f32 0.0, %v1312
        %v1314 = vpop.f32.mrb[0].mxu0
        %v1315 = vpop.f32.mrb[0].mxu0
        %v1316 = vadd.f32 0.0, %v1315
        %v1317 = vpop.f32.mrb[0].mxu0
        %1318 = vmatprep.mubr.bf16.mxu0 0
        %1319 = vmatmul.mubr.bf16.gmra.mrb[0].mxu0 %v1135
        %v1320 = vpop.f32.mrb[0].mxu0
        %v1321 = vadd.f32 0.0, %v1320
        %v1322 = vpop.f32.mrb[0].mxu0
        %v1323 = vpop.f32.mrb[0].mxu0
        %v1324 = vadd.f32 0.0, %v1323
        %v1325 = vpop.f32.mrb[0].mxu0
        %1326 = vmatprep.mubr.bf16.mxu0 0
        %1327 = vmatmul.mubr.bf16.gmra.mrb[0].mxu0 %v1136
        %v1328 = vpop.f32.mrb[0].mxu0
        %v1329 = vadd.f32 0.0, %v1328
        %v1330 = vpop.f32.mrb[0].mxu0
        %v1331 = vpop.f32.mrb[0].mxu0
        %v1332 = vadd.f32 0.0, %v1331
        %v1333 = vpop.f32.mrb[0].mxu0
        %1334 = vmatprep.mubr.bf16.mxu0 0
        %1335 = vmatmul.mubr.bf16.gmra.mrb[0].mxu0 %v1137
        %v1336 = vpop.f32.mrb[0].mxu0
        %v1337 = vadd.f32 0.0, %v1336
        %v1338 = vpop.f32.mrb[0].mxu0
        %v1339 = vpop.f32.mrb[0].mxu0
        %v1340 = vadd.f32 0.0, %v1339
        %v1341 = vpop.f32.mrb[0].mxu0
        %1342 = vmatprep.mubr.bf16.mxu0 0
        %1343 = vmatmul.mubr.bf16.gmra.mrb[0].mxu0 %v1138
        %v1344 = vpop.f32.mrb[0].mxu0
        %v1345 = vadd.f32 0.0, %v1344
        %v1346 = vpop.f32.mrb[0].mxu0
        %v1347 = vpop.f32.mrb[0].mxu0
        %v1348 = vadd.f32 0.0, %v1347
        %v1349 = vpop.f32.mrb[0].mxu0
        %1350 = vmatprep.mubr.bf16.mxu0 0
        %1351 = vmatmul.mubr.bf16.gmra.mrb[0].mxu0 %v1139
        %v1352 = vpop.f32.mrb[0].mxu0
        %v1353 = vadd.f32 0.0, %v1352
        %v1354 = vpop.f32.mrb[0].mxu0
        %v1355 = vpop.f32.mrb[0].mxu0
        %v1356 = vadd.f32 0.0, %v1355
        %v1357 = vpop.f32.mrb[0].mxu0
        %1358 = vmatprep.mubr.bf16.mxu0 0
        %1359 = vmatmul.mubr.bf16.gmra.mrb[0].mxu0 %v1140
        %v1360 = vpop.f32.mrb[0].mxu0
        %v1361 = vadd.f32 0.0, %v1360
        %v1362 = vpop.f32.mrb[0].mxu0
        %v1363 = vpop.f32.mrb[0].mxu0
        %v1364 = vadd.f32 0.0, %v1363
        %v1365 = vpop.f32.mrb[0].mxu0
        %1366 = vdwg.mxu0
        %v1367 = vadd.f32 %v967, %v1241
        %v1368 = vadd.f32 %v970, %v1244
        %v1369 = vadd.f32 %v975, %v1249
        %v1370 = vadd.f32 %v978, %v1252
        %v1371 = vadd.f32 %v983, %v1257
        %v1372 = vadd.f32 %v986, %v1260
        %v1373 = vadd.f32 %v991, %v1265
        %v1374 = vadd.f32 %v994, %v1268
        %v1375 = vadd.f32 %v999, %v1273
        %v1376 = vadd.f32 %v1002, %v1276
        %v1377 = vadd.f32 %v1007, %v1281
        %v1378 = vadd.f32 %v1010, %v1284
        %v1379 = vadd.f32 %v1015, %v1289
        %v1380 = vadd.f32 %v1018, %v1292
        %v1381 = vadd.f32 %v1023, %v1297
        %v1382 = vadd.f32 %v1026, %v1300
        %v1383 = vadd.f32 %v1031, %v1305
        %v1384 = vadd.f32 %v1034, %v1308
        %v1385 = vadd.f32 %v1039, %v1313
        %v1386 = vadd.f32 %v1042, %v1316
        %v1387 = vadd.f32 %v1047, %v1321
        %v1388 = vadd.f32 %v1050, %v1324
        %v1389 = vadd.f32 %v1055, %v1329
        %v1390 = vadd.f32 %v1058, %v1332
        %v1391 = vadd.f32 %v1063, %v1337
        %v1392 = vadd.f32 %v1066, %v1340
        %v1393 = vadd.f32 %v1071, %v1345
        %v1394 = vadd.f32 %v1074, %v1348
        %v1395 = vadd.f32 %v1079, %v1353
        %v1396 = vadd.f32 %v1082, %v1356
        %v1397 = vadd.f32 %v1087, %v1361
        %v1398 = vadd.f32 %v1090, %v1364
        %v1399 = vld [vmem:[%s513] sm:$0xff]
        %v1400 = vld [vmem:[%s513 + $0x8] sm:$0xff]
        %v1401 = vld [vmem:[%s513 + $0x18] sm:$0xff]
        %v1402 = vld [vmem:[%s513 + $0x20] sm:$0xff]
        %v1403 = vld [vmem:[%s513 + $0x30] sm:$0xff]
        %v1404 = vld [vmem:[%s513 + $0x38] sm:$0xff]
        %v1405 = vld [vmem:[%s513 + $0x48] sm:$0xff]
        %v1406 = vld [vmem:[%s513 + $0x50] sm:$0xff]
        %v1407 = vld [vmem:[%s513 + $0x60] sm:$0xff]
        %v1408 = vld [vmem:[%s513 + $0x68] sm:$0xff]
        %v1409 = vld [vmem:[%s513 + $0x78] sm:$0xff]
        %v1410 = vld [vmem:[%s513 + $0x80] sm:$0xff]
        %v1411 = vld [vmem:[%s513 + $0x90] sm:$0xff]
        %v1412 = vld [vmem:[%s513 + $0x98] sm:$0xff]
        %v1413 = vld [vmem:[%s513 + $0xa8] sm:$0xff]
        %v1414 = vld [vmem:[%s513 + $0xb0] sm:$0xff]
        %v1415 = vld [vmem:[%s513 + $0xc0] sm:$0xff]
        %v1416 = vld [vmem:[%s513 + $0xc8] sm:$0xff]
        %v1417 = vld [vmem:[%s513 + $0xd8] sm:$0xff]
        %v1418 = vld [vmem:[%s513 + $0xe0] sm:$0xff]
        %v1419 = vld [vmem:[%s513 + $0xf0] sm:$0xff]
        %v1420 = vld [vmem:[%s513 + $0xf8] sm:$0xff]
        %v1421 = vld [vmem:[%s513 + $0x108] sm:$0xff]
        %v1422 = vld [vmem:[%s513 + $0x110] sm:$0xff]
        %v1423 = vld [vmem:[%s513 + $0x120] sm:$0xff]
        %v1424 = vld [vmem:[%s513 + $0x128] sm:$0xff]
        %v1425 = vld [vmem:[%s513 + $0x138] sm:$0xff]
        %v1426 = vld [vmem:[%s513 + $0x140] sm:$0xff]
        %v1427 = vld [vmem:[%s513 + $0x150] sm:$0xff]
        %v1428 = vld [vmem:[%s513 + $0x158] sm:$0xff]
        %v1429 = vld [vmem:[%s513 + $0x168] sm:$0xff]
        %v1430 = vld [vmem:[%s513 + $0x170] sm:$0xff]
        %v1431 = vpack.c.bf16 %v1400, %v1399
        %v1432 = vpack.c.bf16 %v1402, %v1401
        %v1433 = vpack.c.bf16 %v1404, %v1403
        %v1434 = vpack.c.bf16 %v1406, %v1405
        %v1435 = vpack.c.bf16 %v1408, %v1407
        %v1436 = vpack.c.bf16 %v1410, %v1409
        %v1437 = vpack.c.bf16 %v1412, %v1411
        %v1438 = vpack.c.bf16 %v1414, %v1413
        %v1439 = vpack.c.bf16 %v1416, %v1415
        %v1440 = vpack.c.bf16 %v1418, %v1417
        %v1441 = vpack.c.bf16 %v1420, %v1419
        %v1442 = vpack.c.bf16 %v1422, %v1421
        %v1443 = vpack.c.bf16 %v1424, %v1423
        %v1444 = vpack.c.bf16 %v1426, %v1425
        %v1445 = vpack.c.bf16 %v1428, %v1427
        %v1446 = vpack.c.bf16 %v1430, %v1429
        %s1447 = scalar_lea.vmem [#allocation3], 192
        %v1448 = vld [vmem:[%s1447] sm:$0xf]
        %v1449 = vld [vmem:[%s1447 + $0x4] sm:$0xf]
        %v1450 = vld [vmem:[%s1447 + $0x8] sm:$0xf]
        %v1451 = vld [vmem:[%s1447 + $0xc] sm:$0xf]
        %v1452 = vld [vmem:[%s1447 + $0x10] sm:$0xf]
        %v1453 = vld [vmem:[%s1447 + $0x14] sm:$0xf]
        %v1454 = vld [vmem:[%s1447 + $0x18] sm:$0xf]
        %v1455 = vld [vmem:[%s1447 + $0x1c] sm:$0xf]
        %v1456 = vld [vmem:[%s1447 + $0x20] sm:$0xf]
        %v1457 = vld [vmem:[%s1447 + $0x24] sm:$0xf]
        %v1458 = vld [vmem:[%s1447 + $0x28] sm:$0xf]
        %v1459 = vld [vmem:[%s1447 + $0x2c] sm:$0xf]
        %v1460 = vld [vmem:[%s1447 + $0x30] sm:$0xf]
        %v1461 = vld [vmem:[%s1447 + $0x34] sm:$0xf]
        %v1462 = vld [vmem:[%s1447 + $0x38] sm:$0xf]
        %v1463 = vld [vmem:[%s1447 + $0x3c] sm:$0xf]
        %v1480 = vunpack.c.l.b16 %v1448
        %v1481 = vunpack.c.l.b16 %v1449
        %v1482 = vunpack.c.l.b16 %v1450
        %v1483 = vunpack.c.l.b16 %v1451
        %v1484 = vunpack.c.l.b16 %v1452
        %v1485 = vunpack.c.l.b16 %v1453
        %v1486 = vunpack.c.l.b16 %v1454
        %v1487 = vunpack.c.l.b16 %v1455
        %v1488 = vunpack.c.l.b16 %v1456
        %v1489 = vunpack.c.l.b16 %v1457
        %v1490 = vunpack.c.l.b16 %v1458
        %v1491 = vunpack.c.l.b16 %v1459
        %v1492 = vunpack.c.l.b16 %v1460
        %v1493 = vunpack.c.l.b16 %v1461
        %v1494 = vunpack.c.l.b16 %v1462
        %v1495 = vunpack.c.l.b16 %v1463
        %v1496 = vpack.c.b16 %v1481, %v1480
        %v1497 = vpack.c.b16 %v1483, %v1482
        %v1498 = vpack.c.b16 %v1485, %v1484
        %v1499 = vpack.c.b16 %v1487, %v1486
        %v1500 = vpack.c.b16 %v1489, %v1488
        %v1501 = vpack.c.b16 %v1491, %v1490
        %v1502 = vpack.c.b16 %v1493, %v1492
        %v1503 = vpack.c.b16 %v1495, %v1494
        %1512 = vmatprep.subr.bf16.mxu0 0
        %1513 = vmatpush1.bf16.msra.mxu0 %v1496
        %1514 = vmatprep.subr.bf16.mxu0 0
        %1515 = vmatpush1.bf16.msra.mxu0 %v1497
        %1516 = vmatprep.subr.bf16.mxu0 0
        %1517 = vmatpush1.bf16.msra.mxu0 %v1498
        %1518 = vmatprep.subr.bf16.mxu0 0
        %1519 = vmatpush1.bf16.msra.mxu0 %v1499
        %1520 = vmatprep.subr.bf16.mxu0 0
        %1521 = vmatpush1.bf16.msra.mxu0 %v1500
        %1522 = vmatprep.subr.bf16.mxu0 0
        %1523 = vmatpush1.bf16.msra.mxu0 %v1501
        %1524 = vmatprep.subr.bf16.mxu0 0
        %1525 = vmatpush1.bf16.msra.mxu0 %v1502
        %1526 = vmatprep.subr.bf16.mxu0 0
        %1527 = vmatpush1.bf16.msra.mxu0 %v1503
        %1528 = vmatprep.subr.bf16.mxu0 0
        %1529 = vmatpush1.bf16.msra.mxu0 0
        %1530 = vmatprep.subr.bf16.mxu0 0
        %1531 = vmatpush1.bf16.msra.mxu0 0
        %1532 = vmatprep.subr.bf16.mxu0 0
        %1533 = vmatpush1.bf16.msra.mxu0 0
        %1534 = vmatprep.subr.bf16.mxu0 0
        %1535 = vmatpush1.bf16.msra.mxu0 0
        %1536 = vmatprep.subr.bf16.mxu0 0
        %1537 = vmatpush1.bf16.msra.mxu0 0
        %1538 = vmatprep.subr.bf16.mxu0 0
        %1539 = vmatpush1.bf16.msra.mxu0 0
        %1540 = vmatprep.subr.bf16.mxu0 0
        %1541 = vmatpush1.bf16.msra.mxu0 0
        %1542 = vmatprep.subr.bf16.mxu0 0
        %1543 = vmatpush1.bf16.msra.mxu0 0
        %1544 = vmatprep.mubr.bf16.mxu0 0
        %1545 = vmatmul.mubr.bf16.gmra.mrb[0].mxu0 %v1431
        %v1546 = vpop.f32.mrb[0].mxu0
        %v1547 = vadd.f32 0.0, %v1546
        %v1548 = vpop.f32.mrb[0].mxu0
        %v1549 = vpop.f32.mrb[0].mxu0
        %v1550 = vadd.f32 0.0, %v1549
        %v1551 = vpop.f32.mrb[0].mxu0
        %1552 = vmatprep.mubr.bf16.mxu0 0
        %1553 = vmatmul.mubr.bf16.gmra.mrb[0].mxu0 %v1432
        %v1554 = vpop.f32.mrb[0].mxu0
        %v1555 = vadd.f32 0.0, %v1554
        %v1556 = vpop.f32.mrb[0].mxu0
        %v1557 = vpop.f32.mrb[0].mxu0
        %v1558 = vadd.f32 0.0, %v1557
        %v1559 = vpop.f32.mrb[0].mxu0
        %1560 = vmatprep.mubr.bf16.mxu0 0
        %1561 = vmatmul.mubr.bf16.gmra.mrb[0].mxu0 %v1433
        %v1562 = vpop.f32.mrb[0].mxu0
        %v1563 = vadd.f32 0.0, %v1562
        %v1564 = vpop.f32.mrb[0].mxu0
        %v1565 = vpop.f32.mrb[0].mxu0
        %v1566 = vadd.f32 0.0, %v1565
        %v1567 = vpop.f32.mrb[0].mxu0
        %1568 = vmatprep.mubr.bf16.mxu0 0
        %1569 = vmatmul.mubr.bf16.gmra.mrb[0].mxu0 %v1434
        %v1570 = vpop.f32.mrb[0].mxu0
        %v1571 = vadd.f32 0.0, %v1570
        %v1572 = vpop.f32.mrb[0].mxu0
        %v1573 = vpop.f32.mrb[0].mxu0
        %v1574 = vadd.f32 0.0, %v1573
        %v1575 = vpop.f32.mrb[0].mxu0
        %1576 = vmatprep.mubr.bf16.mxu0 0
        %1577 = vmatmul.mubr.bf16.gmra.mrb[0].mxu0 %v1435
        %v1578 = vpop.f32.mrb[0].mxu0
        %v1579 = vadd.f32 0.0, %v1578
        %v1580 = vpop.f32.mrb[0].mxu0
        %v1581 = vpop.f32.mrb[0].mxu0
        %v1582 = vadd.f32 0.0, %v1581
        %v1583 = vpop.f32.mrb[0].mxu0
        %1584 = vmatprep.mubr.bf16.mxu0 0
        %1585 = vmatmul.mubr.bf16.gmra.mrb[0].mxu0 %v1436
        %v1586 = vpop.f32.mrb[0].mxu0
        %v1587 = vadd.f32 0.0, %v1586
        %v1588 = vpop.f32.mrb[0].mxu0
        %v1589 = vpop.f32.mrb[0].mxu0
        %v1590 = vadd.f32 0.0, %v1589
        %v1591 = vpop.f32.mrb[0].mxu0
        %1592 = vmatprep.mubr.bf16.mxu0 0
        %1593 = vmatmul.mubr.bf16.gmra.mrb[0].mxu0 %v1437
        %v1594 = vpop.f32.mrb[0].mxu0
        %v1595 = vadd.f32 0.0, %v1594
        %v1596 = vpop.f32.mrb[0].mxu0
        %v1597 = vpop.f32.mrb[0].mxu0
        %v1598 = vadd.f32 0.0, %v1597
        %v1599 = vpop.f32.mrb[0].mxu0
        %1600 = vmatprep.mubr.bf16.mxu0 0
        %1601 = vmatmul.mubr.bf16.gmra.mrb[0].mxu0 %v1438
        %v1602 = vpop.f32.mrb[0].mxu0
        %v1603 = vadd.f32 0.0, %v1602
        %v1604 = vpop.f32.mrb[0].mxu0
        %v1605 = vpop.f32.mrb[0].mxu0
        %v1606 = vadd.f32 0.0, %v1605
        %v1607 = vpop.f32.mrb[0].mxu0
        %1608 = vmatprep.mubr.bf16.mxu0 0
        %1609 = vmatmul.mubr.bf16.gmra.mrb[0].mxu0 %v1439
        %v1610 = vpop.f32.mrb[0].mxu0
        %v1611 = vadd.f32 0.0, %v1610
        %v1612 = vpop.f32.mrb[0].mxu0
        %v1613 = vpop.f32.mrb[0].mxu0
        %v1614 = vadd.f32 0.0, %v1613
        %v1615 = vpop.f32.mrb[0].mxu0
        %1616 = vmatprep.mubr.bf16.mxu0 0
        %1617 = vmatmul.mubr.bf16.gmra.mrb[0].mxu0 %v1440
        %v1618 = vpop.f32.mrb[0].mxu0
        %v1619 = vadd.f32 0.0, %v1618
        %v1620 = vpop.f32.mrb[0].mxu0
        %v1621 = vpop.f32.mrb[0].mxu0
        %v1622 = vadd.f32 0.0, %v1621
        %v1623 = vpop.f32.mrb[0].mxu0
        %1624 = vmatprep.mubr.bf16.mxu0 0
        %1625 = vmatmul.mubr.bf16.gmra.mrb[0].mxu0 %v1441
        %v1626 = vpop.f32.mrb[0].mxu0
        %v1627 = vadd.f32 0.0, %v1626
        %v1628 = vpop.f32.mrb[0].mxu0
        %v1629 = vpop.f32.mrb[0].mxu0
        %v1630 = vadd.f32 0.0, %v1629
        %v1631 = vpop.f32.mrb[0].mxu0
        %1632 = vmatprep.mubr.bf16.mxu0 0
        %1633 = vmatmul.mubr.bf16.gmra.mrb[0].mxu0 %v1442
        %v1634 = vpop.f32.mrb[0].mxu0
        %v1635 = vadd.f32 0.0, %v1634
        %v1636 = vpop.f32.mrb[0].mxu0
        %v1637 = vpop.f32.mrb[0].mxu0
        %v1638 = vadd.f32 0.0, %v1637
        %v1639 = vpop.f32.mrb[0].mxu0
        %1640 = vmatprep.mubr.bf16.mxu0 0
        %1641 = vmatmul.mubr.bf16.gmra.mrb[0].mxu0 %v1443
        %v1642 = vpop.f32.mrb[0].mxu0
        %v1643 = vadd.f32 0.0, %v1642
        %v1644 = vpop.f32.mrb[0].mxu0
        %v1645 = vpop.f32.mrb[0].mxu0
        %v1646 = vadd.f32 0.0, %v1645
        %v1647 = vpop.f32.mrb[0].mxu0
        %1648 = vmatprep.mubr.bf16.mxu0 0
        %1649 = vmatmul.mubr.bf16.gmra.mrb[0].mxu0 %v1444
        %v1650 = vpop.f32.mrb[0].mxu0
        %v1651 = vadd.f32 0.0, %v1650
        %v1652 = vpop.f32.mrb[0].mxu0
        %v1653 = vpop.f32.mrb[0].mxu0
        %v1654 = vadd.f32 0.0, %v1653
        %v1655 = vpop.f32.mrb[0].mxu0
        %1656 = vmatprep.mubr.bf16.mxu0 0
        %1657 = vmatmul.mubr.bf16.gmra.mrb[0].mxu0 %v1445
        %v1658 = vpop.f32.mrb[0].mxu0
        %v1659 = vadd.f32 0.0, %v1658
        %v1660 = vpop.f32.mrb[0].mxu0
        %v1661 = vpop.f32.mrb[0].mxu0
        %v1662 = vadd.f32 0.0, %v1661
        %v1663 = vpop.f32.mrb[0].mxu0
        %1664 = vmatprep.mubr.bf16.mxu0 0
        %1665 = vmatmul.mubr.bf16.gmra.mrb[0].mxu0 %v1446
        %v1666 = vpop.f32.mrb[0].mxu0
        %v1667 = vadd.f32 0.0, %v1666
        %v1668 = vpop.f32.mrb[0].mxu0
        %v1669 = vpop.f32.mrb[0].mxu0
        %v1670 = vadd.f32 0.0, %v1669
        %v1671 = vpop.f32.mrb[0].mxu0
        %1672 = vdwg.mxu0
        %v1673 = vadd.f32 %v1367, %v1547
        %v1674 = vadd.f32 %v1368, %v1550
        %v1675 = vadd.f32 %v1369, %v1555
        %v1676 = vadd.f32 %v1370, %v1558
        %v1677 = vadd.f32 %v1371, %v1563
        %v1678 = vadd.f32 %v1372, %v1566
        %v1679 = vadd.f32 %v1373, %v1571
        %v1680 = vadd.f32 %v1374, %v1574
        %v1681 = vadd.f32 %v1375, %v1579
        %v1682 = vadd.f32 %v1376, %v1582
        %v1683 = vadd.f32 %v1377, %v1587
        %v1684 = vadd.f32 %v1378, %v1590
        %v1685 = vadd.f32 %v1379, %v1595
        %v1686 = vadd.f32 %v1380, %v1598
        %v1687 = vadd.f32 %v1381, %v1603
        %v1688 = vadd.f32 %v1382, %v1606
        %v1689 = vadd.f32 %v1383, %v1611
        %v1690 = vadd.f32 %v1384, %v1614
        %v1691 = vadd.f32 %v1385, %v1619
        %v1692 = vadd.f32 %v1386, %v1622
        %v1693 = vadd.f32 %v1387, %v1627
        %v1694 = vadd.f32 %v1388, %v1630
        %v1695 = vadd.f32 %v1389, %v1635
        %v1696 = vadd.f32 %v1390, %v1638
        %v1697 = vadd.f32 %v1391, %v1643
        %v1698 = vadd.f32 %v1392, %v1646
        %v1699 = vadd.f32 %v1393, %v1651
        %v1700 = vadd.f32 %v1394, %v1654
        %v1701 = vadd.f32 %v1395, %v1659
        %v1702 = vadd.f32 %v1396, %v1662
        %v1703 = vadd.f32 %v1397, %v1667
        %v1704 = vadd.f32 %v1398, %v1670
        %v1705 = vld [vmem:[%s513 + $0x1] sm:$0xff]
        %v1706 = vld [vmem:[%s513 + $0x9] sm:$0xff]
        %v1707 = vld [vmem:[%s513 + $0x19] sm:$0xff]
        %v1708 = vld [vmem:[%s513 + $0x21] sm:$0xff]
        %v1709 = vld [vmem:[%s513 + $0x31] sm:$0xff]
        %v1710 = vld [vmem:[%s513 + $0x39] sm:$0xff]
        %v1711 = vld [vmem:[%s513 + $0x49] sm:$0xff]
        %v1712 = vld [vmem:[%s513 + $0x51] sm:$0xff]
        %v1713 = vld [vmem:[%s513 + $0x61] sm:$0xff]
        %v1714 = vld [vmem:[%s513 + $0x69] sm:$0xff]
        %v1715 = vld [vmem:[%s513 + $0x79] sm:$0xff]
        %v1716 = vld [vmem:[%s513 + $0x81] sm:$0xff]
        %v1717 = vld [vmem:[%s513 + $0x91] sm:$0xff]
        %v1718 = vld [vmem:[%s513 + $0x99] sm:$0xff]
        %v1719 = vld [vmem:[%s513 + $0xa9] sm:$0xff]
        %v1720 = vld [vmem:[%s513 + $0xb1] sm:$0xff]
        %v1721 = vld [vmem:[%s513 + $0xc1] sm:$0xff]
        %v1722 = vld [vmem:[%s513 + $0xc9] sm:$0xff]
        %v1723 = vld [vmem:[%s513 + $0xd9] sm:$0xff]
        %v1724 = vld [vmem:[%s513 + $0xe1] sm:$0xff]
        %v1725 = vld [vmem:[%s513 + $0xf1] sm:$0xff]
        %v1726 = vld [vmem:[%s513 + $0xf9] sm:$0xff]
        %v1727 = vld [vmem:[%s513 + $0x109] sm:$0xff]
        %v1728 = vld [vmem:[%s513 + $0x111] sm:$0xff]
        %v1729 = vld [vmem:[%s513 + $0x121] sm:$0xff]
        %v1730 = vld [vmem:[%s513 + $0x129] sm:$0xff]
        %v1731 = vld [vmem:[%s513 + $0x139] sm:$0xff]
        %v1732 = vld [vmem:[%s513 + $0x141] sm:$0xff]
        %v1733 = vld [vmem:[%s513 + $0x151] sm:$0xff]
        %v1734 = vld [vmem:[%s513 + $0x159] sm:$0xff]
        %v1735 = vld [vmem:[%s513 + $0x169] sm:$0xff]
        %v1736 = vld [vmem:[%s513 + $0x171] sm:$0xff]
        %v1737 = vpack.c.bf16 %v1706, %v1705
        %v1738 = vpack.c.bf16 %v1708, %v1707
        %v1739 = vpack.c.bf16 %v1710, %v1709
        %v1740 = vpack.c.bf16 %v1712, %v1711
        %v1741 = vpack.c.bf16 %v1714, %v1713
        %v1742 = vpack.c.bf16 %v1716, %v1715
        %v1743 = vpack.c.bf16 %v1718, %v1717
        %v1744 = vpack.c.bf16 %v1720, %v1719
        %v1745 = vpack.c.bf16 %v1722, %v1721
        %v1746 = vpack.c.bf16 %v1724, %v1723
        %v1747 = vpack.c.bf16 %v1726, %v1725
        %v1748 = vpack.c.bf16 %v1728, %v1727
        %v1749 = vpack.c.bf16 %v1730, %v1729
        %v1750 = vpack.c.bf16 %v1732, %v1731
        %v1751 = vpack.c.bf16 %v1734, %v1733
        %v1752 = vpack.c.bf16 %v1736, %v1735
        %s1753 = scalar_lea.vmem [#allocation3], 256
        %v1754 = vld [vmem:[%s1753] sm:$0xf]
        %v1755 = vld [vmem:[%s1753 + $0x4] sm:$0xf]
        %v1756 = vld [vmem:[%s1753 + $0x8] sm:$0xf]
        %v1757 = vld [vmem:[%s1753 + $0xc] sm:$0xf]
        %v1758 = vld [vmem:[%s1753 + $0x10] sm:$0xf]
        %v1759 = vld [vmem:[%s1753 + $0x14] sm:$0xf]
        %v1760 = vld [vmem:[%s1753 + $0x18] sm:$0xf]
        %v1761 = vld [vmem:[%s1753 + $0x1c] sm:$0xf]
        %v1762 = vld [vmem:[%s1753 + $0x20] sm:$0xf]
        %v1763 = vld [vmem:[%s1753 + $0x24] sm:$0xf]
        %v1764 = vld [vmem:[%s1753 + $0x28] sm:$0xf]
        %v1765 = vld [vmem:[%s1753 + $0x2c] sm:$0xf]
        %v1766 = vld [vmem:[%s1753 + $0x30] sm:$0xf]
        %v1767 = vld [vmem:[%s1753 + $0x34] sm:$0xf]
        %v1768 = vld [vmem:[%s1753 + $0x38] sm:$0xf]
        %v1769 = vld [vmem:[%s1753 + $0x3c] sm:$0xf]
        %v1786 = vunpack.c.l.b16 %v1754
        %v1787 = vunpack.c.l.b16 %v1755
        %v1788 = vunpack.c.l.b16 %v1756
        %v1789 = vunpack.c.l.b16 %v1757
        %v1790 = vunpack.c.l.b16 %v1758
        %v1791 = vunpack.c.l.b16 %v1759
        %v1792 = vunpack.c.l.b16 %v1760
        %v1793 = vunpack.c.l.b16 %v1761
        %v1794 = vunpack.c.l.b16 %v1762
        %v1795 = vunpack.c.l.b16 %v1763
        %v1796 = vunpack.c.l.b16 %v1764
        %v1797 = vunpack.c.l.b16 %v1765
        %v1798 = vunpack.c.l.b16 %v1766
        %v1799 = vunpack.c.l.b16 %v1767
        %v1800 = vunpack.c.l.b16 %v1768
        %v1801 = vunpack.c.l.b16 %v1769
        %v1802 = vpack.c.b16 %v1787, %v1786
        %v1803 = vpack.c.b16 %v1789, %v1788
        %v1804 = vpack.c.b16 %v1791, %v1790
        %v1805 = vpack.c.b16 %v1793, %v1792
        %v1806 = vpack.c.b16 %v1795, %v1794
        %v1807 = vpack.c.b16 %v1797, %v1796
        %v1808 = vpack.c.b16 %v1799, %v1798
        %v1809 = vpack.c.b16 %v1801, %v1800
        %1818 = vmatprep.subr.bf16.mxu0 0
        %1819 = vmatpush1.bf16.msra.mxu0 %v1802
        %1820 = vmatprep.subr.bf16.mxu0 0
        %1821 = vmatpush1.bf16.msra.mxu0 %v1803
        %1822 = vmatprep.subr.bf16.mxu0 0
        %1823 = vmatpush1.bf16.msra.mxu0 %v1804
        %1824 = vmatprep.subr.bf16.mxu0 0
        %1825 = vmatpush1.bf16.msra.mxu0 %v1805
        %1826 = vmatprep.subr.bf16.mxu0 0
        %1827 = vmatpush1.bf16.msra.mxu0 %v1806
        %1828 = vmatprep.subr.bf16.mxu0 0
        %1829 = vmatpush1.bf16.msra.mxu0 %v1807
        %1830 = vmatprep.subr.bf16.mxu0 0
        %1831 = vmatpush1.bf16.msra.mxu0 %v1808
        %1832 = vmatprep.subr.bf16.mxu0 0
        %1833 = vmatpush1.bf16.msra.mxu0 %v1809
        %1834 = vmatprep.subr.bf16.mxu0 0
        %1835 = vmatpush1.bf16.msra.mxu0 0
        %1836 = vmatprep.subr.bf16.mxu0 0
        %1837 = vmatpush1.bf16.msra.mxu0 0
        %1838 = vmatprep.subr.bf16.mxu0 0
        %1839 = vmatpush1.bf16.msra.mxu0 0
        %1840 = vmatprep.subr.bf16.mxu0 0
        %1841 = vmatpush1.bf16.msra.mxu0 0
        %1842 = vmatprep.subr.bf16.mxu0 0
        %1843 = vmatpush1.bf16.msra.mxu0 0
        %1844 = vmatprep.subr.bf16.mxu0 0
        %1845 = vmatpush1.bf16.msra.mxu0 0
        %1846 = vmatprep.subr.bf16.mxu0 0
        %1847 = vmatpush1.bf16.msra.mxu0 0
        %1848 = vmatprep.subr.bf16.mxu0 0
        %1849 = vmatpush1.bf16.msra.mxu0 0
        %1850 = vmatprep.mubr.bf16.mxu0 0
        %1851 = vmatmul.mubr.bf16.gmra.mrb[0].mxu0 %v1737
        %v1852 = vpop.f32.mrb[0].mxu0
        %v1853 = vadd.f32 0.0, %v1852
        %v1854 = vpop.f32.mrb[0].mxu0
        %v1855 = vpop.f32.mrb[0].mxu0
        %v1856 = vadd.f32 0.0, %v1855
        %v1857 = vpop.f32.mrb[0].mxu0
        %1858 = vmatprep.mubr.bf16.mxu0 0
        %1859 = vmatmul.mubr.bf16.gmra.mrb[0].mxu0 %v1738
        %v1860 = vpop.f32.mrb[0].mxu0
        %v1861 = vadd.f32 0.0, %v1860
        %v1862 = vpop.f32.mrb[0].mxu0
        %v1863 = vpop.f32.mrb[0].mxu0
        %v1864 = vadd.f32 0.0, %v1863
        %v1865 = vpop.f32.mrb[0].mxu0
        %1866 = vmatprep.mubr.bf16.mxu0 0
        %1867 = vmatmul.mubr.bf16.gmra.mrb[0].mxu0 %v1739
        %v1868 = vpop.f32.mrb[0].mxu0
        %v1869 = vadd.f32 0.0, %v1868
        %v1870 = vpop.f32.mrb[0].mxu0
        %v1871 = vpop.f32.mrb[0].mxu0
        %v1872 = vadd.f32 0.0, %v1871
        %v1873 = vpop.f32.mrb[0].mxu0
        %1874 = vmatprep.mubr.bf16.mxu0 0
        %1875 = vmatmul.mubr.bf16.gmra.mrb[0].mxu0 %v1740
        %v1876 = vpop.f32.mrb[0].mxu0
        %v1877 = vadd.f32 0.0, %v1876
        %v1878 = vpop.f32.mrb[0].mxu0
        %v1879 = vpop.f32.mrb[0].mxu0
        %v1880 = vadd.f32 0.0, %v1879
        %v1881 = vpop.f32.mrb[0].mxu0
        %1882 = vmatprep.mubr.bf16.mxu0 0
        %1883 = vmatmul.mubr.bf16.gmra.mrb[0].mxu0 %v1741
        %v1884 = vpop.f32.mrb[0].mxu0
        %v1885 = vadd.f32 0.0, %v1884
        %v1886 = vpop.f32.mrb[0].mxu0
        %v1887 = vpop.f32.mrb[0].mxu0
        %v1888 = vadd.f32 0.0, %v1887
        %v1889 = vpop.f32.mrb[0].mxu0
        %1890 = vmatprep.mubr.bf16.mxu0 0
        %1891 = vmatmul.mubr.bf16.gmra.mrb[0].mxu0 %v1742
        %v1892 = vpop.f32.mrb[0].mxu0
        %v1893 = vadd.f32 0.0, %v1892
        %v1894 = vpop.f32.mrb[0].mxu0
        %v1895 = vpop.f32.mrb[0].mxu0
        %v1896 = vadd.f32 0.0, %v1895
        %v1897 = vpop.f32.mrb[0].mxu0
        %1898 = vmatprep.mubr.bf16.mxu0 0
        %1899 = vmatmul.mubr.bf16.gmra.mrb[0].mxu0 %v1743
        %v1900 = vpop.f32.mrb[0].mxu0
        %v1901 = vadd.f32 0.0, %v1900
        %v1902 = vpop.f32.mrb[0].mxu0
        %v1903 = vpop.f32.mrb[0].mxu0
        %v1904 = vadd.f32 0.0, %v1903
        %v1905 = vpop.f32.mrb[0].mxu0
        %1906 = vmatprep.mubr.bf16.mxu0 0
        %1907 = vmatmul.mubr.bf16.gmra.mrb[0].mxu0 %v1744
        %v1908 = vpop.f32.mrb[0].mxu0
        %v1909 = vadd.f32 0.0, %v1908
        %v1910 = vpop.f32.mrb[0].mxu0
        %v1911 = vpop.f32.mrb[0].mxu0
        %v1912 = vadd.f32 0.0, %v1911
        %v1913 = vpop.f32.mrb[0].mxu0
        %1914 = vmatprep.mubr.bf16.mxu0 0
        %1915 = vmatmul.mubr.bf16.gmra.mrb[0].mxu0 %v1745
        %v1916 = vpop.f32.mrb[0].mxu0
        %v1917 = vadd.f32 0.0, %v1916
        %v1918 = vpop.f32.mrb[0].mxu0
        %v1919 = vpop.f32.mrb[0].mxu0
        %v1920 = vadd.f32 0.0, %v1919
        %v1921 = vpop.f32.mrb[0].mxu0
        %1922 = vmatprep.mubr.bf16.mxu0 0
        %1923 = vmatmul.mubr.bf16.gmra.mrb[0].mxu0 %v1746
        %v1924 = vpop.f32.mrb[0].mxu0
        %v1925 = vadd.f32 0.0, %v1924
        %v1926 = vpop.f32.mrb[0].mxu0
        %v1927 = vpop.f32.mrb[0].mxu0
        %v1928 = vadd.f32 0.0, %v1927
        %v1929 = vpop.f32.mrb[0].mxu0
        %1930 = vmatprep.mubr.bf16.mxu0 0
        %1931 = vmatmul.mubr.bf16.gmra.mrb[0].mxu0 %v1747
        %v1932 = vpop.f32.mrb[0].mxu0
        %v1933 = vadd.f32 0.0, %v1932
        %v1934 = vpop.f32.mrb[0].mxu0
        %v1935 = vpop.f32.mrb[0].mxu0
        %v1936 = vadd.f32 0.0, %v1935
        %v1937 = vpop.f32.mrb[0].mxu0
        %1938 = vmatprep.mubr.bf16.mxu0 0
        %1939 = vmatmul.mubr.bf16.gmra.mrb[0].mxu0 %v1748
        %v1940 = vpop.f32.mrb[0].mxu0
        %v1941 = vadd.f32 0.0, %v1940
        %v1942 = vpop.f32.mrb[0].mxu0
        %v1943 = vpop.f32.mrb[0].mxu0
        %v1944 = vadd.f32 0.0, %v1943
        %v1945 = vpop.f32.mrb[0].mxu0
        %1946 = vmatprep.mubr.bf16.mxu0 0
        %1947 = vmatmul.mubr.bf16.gmra.mrb[0].mxu0 %v1749
        %v1948 = vpop.f32.mrb[0].mxu0
        %v1949 = vadd.f32 0.0, %v1948
        %v1950 = vpop.f32.mrb[0].mxu0
        %v1951 = vpop.f32.mrb[0].mxu0
        %v1952 = vadd.f32 0.0, %v1951
        %v1953 = vpop.f32.mrb[0].mxu0
        %1954 = vmatprep.mubr.bf16.mxu0 0
        %1955 = vmatmul.mubr.bf16.gmra.mrb[0].mxu0 %v1750
        %v1956 = vpop.f32.mrb[0].mxu0
        %v1957 = vadd.f32 0.0, %v1956
        %v1958 = vpop.f32.mrb[0].mxu0
        %v1959 = vpop.f32.mrb[0].mxu0
        %v1960 = vadd.f32 0.0, %v1959
        %v1961 = vpop.f32.mrb[0].mxu0
        %1962 = vmatprep.mubr.bf16.mxu0 0
        %1963 = vmatmul.mubr.bf16.gmra.mrb[0].mxu0 %v1751
        %v1964 = vpop.f32.mrb[0].mxu0
        %v1965 = vadd.f32 0.0, %v1964
        %v1966 = vpop.f32.mrb[0].mxu0
        %v1967 = vpop.f32.mrb[0].mxu0
        %v1968 = vadd.f32 0.0, %v1967
        %v1969 = vpop.f32.mrb[0].mxu0
        %1970 = vmatprep.mubr.bf16.mxu0 0
        %1971 = vmatmul.mubr.bf16.gmra.mrb[0].mxu0 %v1752
        %v1972 = vpop.f32.mrb[0].mxu0
        %v1973 = vadd.f32 0.0, %v1972
        %v1974 = vpop.f32.mrb[0].mxu0
        %v1975 = vpop.f32.mrb[0].mxu0
        %v1976 = vadd.f32 0.0, %v1975
        %v1977 = vpop.f32.mrb[0].mxu0
        %1978 = vdwg.mxu0
        %v1979 = vadd.f32 %v1673, %v1853
        %v1980 = vadd.f32 %v1674, %v1856
        %v1981 = vadd.f32 %v1675, %v1861
        %v1982 = vadd.f32 %v1676, %v1864
        %v1983 = vadd.f32 %v1677, %v1869
        %v1984 = vadd.f32 %v1678, %v1872
        %v1985 = vadd.f32 %v1679, %v1877
        %v1986 = vadd.f32 %v1680, %v1880
        %v1987 = vadd.f32 %v1681, %v1885
        %v1988 = vadd.f32 %v1682, %v1888
        %v1989 = vadd.f32 %v1683, %v1893
        %v1990 = vadd.f32 %v1684, %v1896
        %v1991 = vadd.f32 %v1685, %v1901
        %v1992 = vadd.f32 %v1686, %v1904
        %v1993 = vadd.f32 %v1687, %v1909
        %v1994 = vadd.f32 %v1688, %v1912
        %v1995 = vadd.f32 %v1689, %v1917
        %v1996 = vadd.f32 %v1690, %v1920
        %v1997 = vadd.f32 %v1691, %v1925
        %v1998 = vadd.f32 %v1692, %v1928
        %v1999 = vadd.f32 %v1693, %v1933
        %v2000 = vadd.f32 %v1694, %v1936
        %v2001 = vadd.f32 %v1695, %v1941
        %v2002 = vadd.f32 %v1696, %v1944
        %v2003 = vadd.f32 %v1697, %v1949
        %v2004 = vadd.f32 %v1698, %v1952
        %v2005 = vadd.f32 %v1699, %v1957
        %v2006 = vadd.f32 %v1700, %v1960
        %v2007 = vadd.f32 %v1701, %v1965
        %v2008 = vadd.f32 %v1702, %v1968
        %v2009 = vadd.f32 %v1703, %v1973
        %v2010 = vadd.f32 %v1704, %v1976
        %v2011 = vld [vmem:[%s513 + $0x2] sm:$0xff]
        %v2012 = vld [vmem:[%s513 + $0xa] sm:$0xff]
        %v2013 = vld [vmem:[%s513 + $0x1a] sm:$0xff]
        %v2014 = vld [vmem:[%s513 + $0x22] sm:$0xff]
        %v2015 = vld [vmem:[%s513 + $0x32] sm:$0xff]
        %v2016 = vld [vmem:[%s513 + $0x3a] sm:$0xff]
        %v2017 = vld [vmem:[%s513 + $0x4a] sm:$0xff]
        %v2018 = vld [vmem:[%s513 + $0x52] sm:$0xff]
        %v2019 = vld [vmem:[%s513 + $0x62] sm:$0xff]
        %v2020 = vld [vmem:[%s513 + $0x6a] sm:$0xff]
        %v2021 = vld [vmem:[%s513 + $0x7a] sm:$0xff]
        %v2022 = vld [vmem:[%s513 + $0x82] sm:$0xff]
        %v2023 = vld [vmem:[%s513 + $0x92] sm:$0xff]
        %v2024 = vld [vmem:[%s513 + $0x9a] sm:$0xff]
        %v2025 = vld [vmem:[%s513 + $0xaa] sm:$0xff]
        %v2026 = vld [vmem:[%s513 + $0xb2] sm:$0xff]
        %v2027 = vld [vmem:[%s513 + $0xc2] sm:$0xff]
        %v2028 = vld [vmem:[%s513 + $0xca] sm:$0xff]
        %v2029 = vld [vmem:[%s513 + $0xda] sm:$0xff]
        %v2030 = vld [vmem:[%s513 + $0xe2] sm:$0xff]
        %v2031 = vld [vmem:[%s513 + $0xf2] sm:$0xff]
        %v2032 = vld [vmem:[%s513 + $0xfa] sm:$0xff]
        %v2033 = vld [vmem:[%s513 + $0x10a] sm:$0xff]
        %v2034 = vld [vmem:[%s513 + $0x112] sm:$0xff]
        %v2035 = vld [vmem:[%s513 + $0x122] sm:$0xff]
        %v2036 = vld [vmem:[%s513 + $0x12a] sm:$0xff]
        %v2037 = vld [vmem:[%s513 + $0x13a] sm:$0xff]
        %v2038 = vld [vmem:[%s513 + $0x142] sm:$0xff]
        %v2039 = vld [vmem:[%s513 + $0x152] sm:$0xff]
        %v2040 = vld [vmem:[%s513 + $0x15a] sm:$0xff]
        %v2041 = vld [vmem:[%s513 + $0x16a] sm:$0xff]
        %v2042 = vld [vmem:[%s513 + $0x172] sm:$0xff]
        %v2043 = vpack.c.bf16 %v2012, %v2011
        %v2044 = vpack.c.bf16 %v2014, %v2013
        %v2045 = vpack.c.bf16 %v2016, %v2015
        %v2046 = vpack.c.bf16 %v2018, %v2017
        %v2047 = vpack.c.bf16 %v2020, %v2019
        %v2048 = vpack.c.bf16 %v2022, %v2021
        %v2049 = vpack.c.bf16 %v2024, %v2023
        %v2050 = vpack.c.bf16 %v2026, %v2025
        %v2051 = vpack.c.bf16 %v2028, %v2027
        %v2052 = vpack.c.bf16 %v2030, %v2029
        %v2053 = vpack.c.bf16 %v2032, %v2031
        %v2054 = vpack.c.bf16 %v2034, %v2033
        %v2055 = vpack.c.bf16 %v2036, %v2035
        %v2056 = vpack.c.bf16 %v2038, %v2037
        %v2057 = vpack.c.bf16 %v2040, %v2039
        %v2058 = vpack.c.bf16 %v2042, %v2041
        %s2059 = scalar_lea.vmem [#allocation3], 320
        %v2060 = vld [vmem:[%s2059] sm:$0xf]
        %v2061 = vld [vmem:[%s2059 + $0x4] sm:$0xf]
        %v2062 = vld [vmem:[%s2059 + $0x8] sm:$0xf]
        %v2063 = vld [vmem:[%s2059 + $0xc] sm:$0xf]
        %v2064 = vld [vmem:[%s2059 + $0x10] sm:$0xf]
        %v2065 = vld [vmem:[%s2059 + $0x14] sm:$0xf]
        %v2066 = vld [vmem:[%s2059 + $0x18] sm:$0xf]
        %v2067 = vld [vmem:[%s2059 + $0x1c] sm:$0xf]
        %v2068 = vld [vmem:[%s2059 + $0x20] sm:$0xf]
        %v2069 = vld [vmem:[%s2059 + $0x24] sm:$0xf]
        %v2070 = vld [vmem:[%s2059 + $0x28] sm:$0xf]
        %v2071 = vld [vmem:[%s2059 + $0x2c] sm:$0xf]
        %v2072 = vld [vmem:[%s2059 + $0x30] sm:$0xf]
        %v2073 = vld [vmem:[%s2059 + $0x34] sm:$0xf]
        %v2074 = vld [vmem:[%s2059 + $0x38] sm:$0xf]
        %v2075 = vld [vmem:[%s2059 + $0x3c] sm:$0xf]
        %v2092 = vunpack.c.l.b16 %v2060
        %v2093 = vunpack.c.l.b16 %v2061
        %v2094 = vunpack.c.l.b16 %v2062
        %v2095 = vunpack.c.l.b16 %v2063
        %v2096 = vunpack.c.l.b16 %v2064
        %v2097 = vunpack.c.l.b16 %v2065
        %v2098 = vunpack.c.l.b16 %v2066
        %v2099 = vunpack.c.l.b16 %v2067
        %v2100 = vunpack.c.l.b16 %v2068
        %v2101 = vunpack.c.l.b16 %v2069
        %v2102 = vunpack.c.l.b16 %v2070
        %v2103 = vunpack.c.l.b16 %v2071
        %v2104 = vunpack.c.l.b16 %v2072
        %v2105 = vunpack.c.l.b16 %v2073
        %v2106 = vunpack.c.l.b16 %v2074
        %v2107 = vunpack.c.l.b16 %v2075
        %v2108 = vpack.c.b16 %v2093, %v2092
        %v2109 = vpack.c.b16 %v2095, %v2094
        %v2110 = vpack.c.b16 %v2097, %v2096
        %v2111 = vpack.c.b16 %v2099, %v2098
        %v2112 = vpack.c.b16 %v2101, %v2100
        %v2113 = vpack.c.b16 %v2103, %v2102
        %v2114 = vpack.c.b16 %v2105, %v2104
        %v2115 = vpack.c.b16 %v2107, %v2106
        %2124 = vmatprep.subr.bf16.mxu0 0
        %2125 = vmatpush1.bf16.msra.mxu0 %v2108
        %2126 = vmatprep.subr.bf16.mxu0 0
        %2127 = vmatpush1.bf16.msra.mxu0 %v2109
        %2128 = vmatprep.subr.bf16.mxu0 0
        %2129 = vmatpush1.bf16.msra.mxu0 %v2110
        %2130 = vmatprep.subr.bf16.mxu0 0
        %2131 = vmatpush1.bf16.msra.mxu0 %v2111
        %2132 = vmatprep.subr.bf16.mxu0 0
        %2133 = vmatpush1.bf16.msra.mxu0 %v2112
        %2134 = vmatprep.subr.bf16.mxu0 0
        %2135 = vmatpush1.bf16.msra.mxu0 %v2113
        %2136 = vmatprep.subr.bf16.mxu0 0
        %2137 = vmatpush1.bf16.msra.mxu0 %v2114
        %2138 = vmatprep.subr.bf16.mxu0 0
        %2139 = vmatpush1.bf16.msra.mxu0 %v2115
        %2140 = vmatprep.subr.bf16.mxu0 0
        %2141 = vmatpush1.bf16.msra.mxu0 0
        %2142 = vmatprep.subr.bf16.mxu0 0
        %2143 = vmatpush1.bf16.msra.mxu0 0
        %2144 = vmatprep.subr.bf16.mxu0 0
        %2145 = vmatpush1.bf16.msra.mxu0 0
        %2146 = vmatprep.subr.bf16.mxu0 0
        %2147 = vmatpush1.bf16.msra.mxu0 0
        %2148 = vmatprep.subr.bf16.mxu0 0
        %2149 = vmatpush1.bf16.msra.mxu0 0
        %2150 = vmatprep.subr.bf16.mxu0 0
        %2151 = vmatpush1.bf16.msra.mxu0 0
        %2152 = vmatprep.subr.bf16.mxu0 0
        %2153 = vmatpush1.bf16.msra.mxu0 0
        %2154 = vmatprep.subr.bf16.mxu0 0
        %2155 = vmatpush1.bf16.msra.mxu0 0
        %2156 = vmatprep.mubr.bf16.mxu0 0
        %2157 = vmatmul.mubr.bf16.gmra.mrb[0].mxu0 %v2043
        %v2158 = vpop.f32.mrb[0].mxu0
        %v2159 = vadd.f32 0.0, %v2158
        %v2160 = vpop.f32.mrb[0].mxu0
        %v2161 = vpop.f32.mrb[0].mxu0
        %v2162 = vadd.f32 0.0, %v2161
        %v2163 = vpop.f32.mrb[0].mxu0
        %2164 = vmatprep.mubr.bf16.mxu0 0
        %2165 = vmatmul.mubr.bf16.gmra.mrb[0].mxu0 %v2044
        %v2166 = vpop.f32.mrb[0].mxu0
        %v2167 = vadd.f32 0.0, %v2166
        %v2168 = vpop.f32.mrb[0].mxu0
        %v2169 = vpop.f32.mrb[0].mxu0
        %v2170 = vadd.f32 0.0, %v2169
        %v2171 = vpop.f32.mrb[0].mxu0
        %2172 = vmatprep.mubr.bf16.mxu0 0
        %2173 = vmatmul.mubr.bf16.gmra.mrb[0].mxu0 %v2045
        %v2174 = vpop.f32.mrb[0].mxu0
        %v2175 = vadd.f32 0.0, %v2174
        %v2176 = vpop.f32.mrb[0].mxu0
        %v2177 = vpop.f32.mrb[0].mxu0
        %v2178 = vadd.f32 0.0, %v2177
        %v2179 = vpop.f32.mrb[0].mxu0
        %2180 = vmatprep.mubr.bf16.mxu0 0
        %2181 = vmatmul.mubr.bf16.gmra.mrb[0].mxu0 %v2046
        %v2182 = vpop.f32.mrb[0].mxu0
        %v2183 = vadd.f32 0.0, %v2182
        %v2184 = vpop.f32.mrb[0].mxu0
        %v2185 = vpop.f32.mrb[0].mxu0
        %v2186 = vadd.f32 0.0, %v2185
        %v2187 = vpop.f32.mrb[0].mxu0
        %2188 = vmatprep.mubr.bf16.mxu0 0
        %2189 = vmatmul.mubr.bf16.gmra.mrb[0].mxu0 %v2047
        %v2190 = vpop.f32.mrb[0].mxu0
        %v2191 = vadd.f32 0.0, %v2190
        %v2192 = vpop.f32.mrb[0].mxu0
        %v2193 = vpop.f32.mrb[0].mxu0
        %v2194 = vadd.f32 0.0, %v2193
        %v2195 = vpop.f32.mrb[0].mxu0
        %2196 = vmatprep.mubr.bf16.mxu0 0
        %2197 = vmatmul.mubr.bf16.gmra.mrb[0].mxu0 %v2048
        %v2198 = vpop.f32.mrb[0].mxu0
        %v2199 = vadd.f32 0.0, %v2198
        %v2200 = vpop.f32.mrb[0].mxu0
        %v2201 = vpop.f32.mrb[0].mxu0
        %v2202 = vadd.f32 0.0, %v2201
        %v2203 = vpop.f32.mrb[0].mxu0
        %2204 = vmatprep.mubr.bf16.mxu0 0
        %2205 = vmatmul.mubr.bf16.gmra.mrb[0].mxu0 %v2049
        %v2206 = vpop.f32.mrb[0].mxu0
        %v2207 = vadd.f32 0.0, %v2206
        %v2208 = vpop.f32.mrb[0].mxu0
        %v2209 = vpop.f32.mrb[0].mxu0
        %v2210 = vadd.f32 0.0, %v2209
        %v2211 = vpop.f32.mrb[0].mxu0
        %2212 = vmatprep.mubr.bf16.mxu0 0
        %2213 = vmatmul.mubr.bf16.gmra.mrb[0].mxu0 %v2050
        %v2214 = vpop.f32.mrb[0].mxu0
        %v2215 = vadd.f32 0.0, %v2214
        %v2216 = vpop.f32.mrb[0].mxu0
        %v2217 = vpop.f32.mrb[0].mxu0
        %v2218 = vadd.f32 0.0, %v2217
        %v2219 = vpop.f32.mrb[0].mxu0
        %2220 = vmatprep.mubr.bf16.mxu0 0
        %2221 = vmatmul.mubr.bf16.gmra.mrb[0].mxu0 %v2051
        %v2222 = vpop.f32.mrb[0].mxu0
        %v2223 = vadd.f32 0.0, %v2222
        %v2224 = vpop.f32.mrb[0].mxu0
        %v2225 = vpop.f32.mrb[0].mxu0
        %v2226 = vadd.f32 0.0, %v2225
        %v2227 = vpop.f32.mrb[0].mxu0
        %2228 = vmatprep.mubr.bf16.mxu0 0
        %2229 = vmatmul.mubr.bf16.gmra.mrb[0].mxu0 %v2052
        %v2230 = vpop.f32.mrb[0].mxu0
        %v2231 = vadd.f32 0.0, %v2230
        %v2232 = vpop.f32.mrb[0].mxu0
        %v2233 = vpop.f32.mrb[0].mxu0
        %v2234 = vadd.f32 0.0, %v2233
        %v2235 = vpop.f32.mrb[0].mxu0
        %2236 = vmatprep.mubr.bf16.mxu0 0
        %2237 = vmatmul.mubr.bf16.gmra.mrb[0].mxu0 %v2053
        %v2238 = vpop.f32.mrb[0].mxu0
        %v2239 = vadd.f32 0.0, %v2238
        %v2240 = vpop.f32.mrb[0].mxu0
        %v2241 = vpop.f32.mrb[0].mxu0
        %v2242 = vadd.f32 0.0, %v2241
        %v2243 = vpop.f32.mrb[0].mxu0
        %2244 = vmatprep.mubr.bf16.mxu0 0
        %2245 = vmatmul.mubr.bf16.gmra.mrb[0].mxu0 %v2054
        %v2246 = vpop.f32.mrb[0].mxu0
        %v2247 = vadd.f32 0.0, %v2246
        %v2248 = vpop.f32.mrb[0].mxu0
        %v2249 = vpop.f32.mrb[0].mxu0
        %v2250 = vadd.f32 0.0, %v2249
        %v2251 = vpop.f32.mrb[0].mxu0
        %2252 = vmatprep.mubr.bf16.mxu0 0
        %2253 = vmatmul.mubr.bf16.gmra.mrb[0].mxu0 %v2055
        %v2254 = vpop.f32.mrb[0].mxu0
        %v2255 = vadd.f32 0.0, %v2254
        %v2256 = vpop.f32.mrb[0].mxu0
        %v2257 = vpop.f32.mrb[0].mxu0
        %v2258 = vadd.f32 0.0, %v2257
        %v2259 = vpop.f32.mrb[0].mxu0
        %2260 = vmatprep.mubr.bf16.mxu0 0
        %2261 = vmatmul.mubr.bf16.gmra.mrb[0].mxu0 %v2056
        %v2262 = vpop.f32.mrb[0].mxu0
        %v2263 = vadd.f32 0.0, %v2262
        %v2264 = vpop.f32.mrb[0].mxu0
        %v2265 = vpop.f32.mrb[0].mxu0
        %v2266 = vadd.f32 0.0, %v2265
        %v2267 = vpop.f32.mrb[0].mxu0
        %2268 = vmatprep.mubr.bf16.mxu0 0
        %2269 = vmatmul.mubr.bf16.gmra.mrb[0].mxu0 %v2057
        %v2270 = vpop.f32.mrb[0].mxu0
        %v2271 = vadd.f32 0.0, %v2270
        %v2272 = vpop.f32.mrb[0].mxu0
        %v2273 = vpop.f32.mrb[0].mxu0
        %v2274 = vadd.f32 0.0, %v2273
        %v2275 = vpop.f32.mrb[0].mxu0
        %2276 = vmatprep.mubr.bf16.mxu0 0
        %2277 = vmatmul.mubr.bf16.gmra.mrb[0].mxu0 %v2058
        %v2278 = vpop.f32.mrb[0].mxu0
        %v2279 = vadd.f32 0.0, %v2278
        %v2280 = vpop.f32.mrb[0].mxu0
        %v2281 = vpop.f32.mrb[0].mxu0
        %v2282 = vadd.f32 0.0, %v2281
        %v2283 = vpop.f32.mrb[0].mxu0
        %2284 = vdwg.mxu0
        %v2285 = vadd.f32 %v1979, %v2159
        %v2286 = vadd.f32 %v1980, %v2162
        %v2287 = vadd.f32 %v1981, %v2167
        %v2288 = vadd.f32 %v1982, %v2170
        %v2289 = vadd.f32 %v1983, %v2175
        %v2290 = vadd.f32 %v1984, %v2178
        %v2291 = vadd.f32 %v1985, %v2183
        %v2292 = vadd.f32 %v1986, %v2186
        %v2293 = vadd.f32 %v1987, %v2191
        %v2294 = vadd.f32 %v1988, %v2194
        %v2295 = vadd.f32 %v1989, %v2199
        %v2296 = vadd.f32 %v1990, %v2202
        %v2297 = vadd.f32 %v1991, %v2207
        %v2298 = vadd.f32 %v1992, %v2210
        %v2299 = vadd.f32 %v1993, %v2215
        %v2300 = vadd.f32 %v1994, %v2218
        %v2301 = vadd.f32 %v1995, %v2223
        %v2302 = vadd.f32 %v1996, %v2226
        %v2303 = vadd.f32 %v1997, %v2231
        %v2304 = vadd.f32 %v1998, %v2234
        %v2305 = vadd.f32 %v1999, %v2239
        %v2306 = vadd.f32 %v2000, %v2242
        %v2307 = vadd.f32 %v2001, %v2247
        %v2308 = vadd.f32 %v2002, %v2250
        %v2309 = vadd.f32 %v2003, %v2255
        %v2310 = vadd.f32 %v2004, %v2258
        %v2311 = vadd.f32 %v2005, %v2263
        %v2312 = vadd.f32 %v2006, %v2266
        %v2313 = vadd.f32 %v2007, %v2271
        %v2314 = vadd.f32 %v2008, %v2274
        %v2315 = vadd.f32 %v2009, %v2279
        %v2316 = vadd.f32 %v2010, %v2282
        %s2317 = scalar_lea.vmem [#allocation2], 48
        %v2318 = vld [vmem:[%s2317] sm:$0xff]
        %v2319 = vld [vmem:[%s2317 + $0x8] sm:$0xff]
        %v2320 = vld [vmem:[%s2317 + $0x18] sm:$0xff]
        %v2321 = vld [vmem:[%s2317 + $0x20] sm:$0xff]
        %v2322 = vld [vmem:[%s2317 + $0x30] sm:$0xff]
        %v2323 = vld [vmem:[%s2317 + $0x38] sm:$0xff]
        %v2324 = vld [vmem:[%s2317 + $0x48] sm:$0xff]
        %v2325 = vld [vmem:[%s2317 + $0x50] sm:$0xff]
        %v2326 = vld [vmem:[%s2317 + $0x60] sm:$0xff]
        %v2327 = vld [vmem:[%s2317 + $0x68] sm:$0xff]
        %v2328 = vld [vmem:[%s2317 + $0x78] sm:$0xff]
        %v2329 = vld [vmem:[%s2317 + $0x80] sm:$0xff]
        %v2330 = vld [vmem:[%s2317 + $0x90] sm:$0xff]
        %v2331 = vld [vmem:[%s2317 + $0x98] sm:$0xff]
        %v2332 = vld [vmem:[%s2317 + $0xa8] sm:$0xff]
        %v2333 = vld [vmem:[%s2317 + $0xb0] sm:$0xff]
        %v2334 = vld [vmem:[%s2317 + $0xc0] sm:$0xff]
        %v2335 = vld [vmem:[%s2317 + $0xc8] sm:$0xff]
        %v2336 = vld [vmem:[%s2317 + $0xd8] sm:$0xff]
        %v2337 = vld [vmem:[%s2317 + $0xe0] sm:$0xff]
        %v2338 = vld [vmem:[%s2317 + $0xf0] sm:$0xff]
        %v2339 = vld [vmem:[%s2317 + $0xf8] sm:$0xff]
        %v2340 = vld [vmem:[%s2317 + $0x108] sm:$0xff]
        %v2341 = vld [vmem:[%s2317 + $0x110] sm:$0xff]
        %v2342 = vld [vmem:[%s2317 + $0x120] sm:$0xff]
        %v2343 = vld [vmem:[%s2317 + $0x128] sm:$0xff]
        %v2344 = vld [vmem:[%s2317 + $0x138] sm:$0xff]
        %v2345 = vld [vmem:[%s2317 + $0x140] sm:$0xff]
        %v2346 = vld [vmem:[%s2317 + $0x150] sm:$0xff]
        %v2347 = vld [vmem:[%s2317 + $0x158] sm:$0xff]
        %v2348 = vld [vmem:[%s2317 + $0x168] sm:$0xff]
        %v2349 = vld [vmem:[%s2317 + $0x170] sm:$0xff]
        %v2350 = vpack.c.bf16 %v2319, %v2318
        %v2351 = vpack.c.bf16 %v2321, %v2320
        %v2352 = vpack.c.bf16 %v2323, %v2322
        %v2353 = vpack.c.bf16 %v2325, %v2324
        %v2354 = vpack.c.bf16 %v2327, %v2326
        %v2355 = vpack.c.bf16 %v2329, %v2328
        %v2356 = vpack.c.bf16 %v2331, %v2330
        %v2357 = vpack.c.bf16 %v2333, %v2332
        %v2358 = vpack.c.bf16 %v2335, %v2334
        %v2359 = vpack.c.bf16 %v2337, %v2336
        %v2360 = vpack.c.bf16 %v2339, %v2338
        %v2361 = vpack.c.bf16 %v2341, %v2340
        %v2362 = vpack.c.bf16 %v2343, %v2342
        %v2363 = vpack.c.bf16 %v2345, %v2344
        %v2364 = vpack.c.bf16 %v2347, %v2346
        %v2365 = vpack.c.bf16 %v2349, %v2348
        %s2366 = scalar_lea.vmem [#allocation3], 384
        %v2367 = vld [vmem:[%s2366] sm:$0xf]
        %v2368 = vld [vmem:[%s2366 + $0x4] sm:$0xf]
        %v2369 = vld [vmem:[%s2366 + $0x8] sm:$0xf]
        %v2370 = vld [vmem:[%s2366 + $0xc] sm:$0xf]
        %v2371 = vld [vmem:[%s2366 + $0x10] sm:$0xf]
        %v2372 = vld [vmem:[%s2366 + $0x14] sm:$0xf]
        %v2373 = vld [vmem:[%s2366 + $0x18] sm:$0xf]
        %v2374 = vld [vmem:[%s2366 + $0x1c] sm:$0xf]
        %v2375 = vld [vmem:[%s2366 + $0x20] sm:$0xf]
        %v2376 = vld [vmem:[%s2366 + $0x24] sm:$0xf]
        %v2377 = vld [vmem:[%s2366 + $0x28] sm:$0xf]
        %v2378 = vld [vmem:[%s2366 + $0x2c] sm:$0xf]
        %v2379 = vld [vmem:[%s2366 + $0x30] sm:$0xf]
        %v2380 = vld [vmem:[%s2366 + $0x34] sm:$0xf]
        %v2381 = vld [vmem:[%s2366 + $0x38] sm:$0xf]
        %v2382 = vld [vmem:[%s2366 + $0x3c] sm:$0xf]
        %v2399 = vunpack.c.l.b16 %v2367
        %v2400 = vunpack.c.l.b16 %v2368
        %v2401 = vunpack.c.l.b16 %v2369
        %v2402 = vunpack.c.l.b16 %v2370
        %v2403 = vunpack.c.l.b16 %v2371
        %v2404 = vunpack.c.l.b16 %v2372
        %v2405 = vunpack.c.l.b16 %v2373
        %v2406 = vunpack.c.l.b16 %v2374
        %v2407 = vunpack.c.l.b16 %v2375
        %v2408 = vunpack.c.l.b16 %v2376
        %v2409 = vunpack.c.l.b16 %v2377
        %v2410 = vunpack.c.l.b16 %v2378
        %v2411 = vunpack.c.l.b16 %v2379
        %v2412 = vunpack.c.l.b16 %v2380
        %v2413 = vunpack.c.l.b16 %v2381
        %v2414 = vunpack.c.l.b16 %v2382
        %v2415 = vpack.c.b16 %v2400, %v2399
        %v2416 = vpack.c.b16 %v2402, %v2401
        %v2417 = vpack.c.b16 %v2404, %v2403
        %v2418 = vpack.c.b16 %v2406, %v2405
        %v2419 = vpack.c.b16 %v2408, %v2407
        %v2420 = vpack.c.b16 %v2410, %v2409
        %v2421 = vpack.c.b16 %v2412, %v2411
        %v2422 = vpack.c.b16 %v2414, %v2413
        %2431 = vmatprep.subr.bf16.mxu0 0
        %2432 = vmatpush1.bf16.msra.mxu0 %v2415
        %2433 = vmatprep.subr.bf16.mxu0 0
        %2434 = vmatpush1.bf16.msra.mxu0 %v2416
        %2435 = vmatprep.subr.bf16.mxu0 0
        %2436 = vmatpush1.bf16.msra.mxu0 %v2417
        %2437 = vmatprep.subr.bf16.mxu0 0
        %2438 = vmatpush1.bf16.msra.mxu0 %v2418
        %2439 = vmatprep.subr.bf16.mxu0 0
        %2440 = vmatpush1.bf16.msra.mxu0 %v2419
        %2441 = vmatprep.subr.bf16.mxu0 0
        %2442 = vmatpush1.bf16.msra.mxu0 %v2420
        %2443 = vmatprep.subr.bf16.mxu0 0
        %2444 = vmatpush1.bf16.msra.mxu0 %v2421
        %2445 = vmatprep.subr.bf16.mxu0 0
        %2446 = vmatpush1.bf16.msra.mxu0 %v2422
        %2447 = vmatprep.subr.bf16.mxu0 0
        %2448 = vmatpush1.bf16.msra.mxu0 0
        %2449 = vmatprep.subr.bf16.mxu0 0
        %2450 = vmatpush1.bf16.msra.mxu0 0
        %2451 = vmatprep.subr.bf16.mxu0 0
        %2452 = vmatpush1.bf16.msra.mxu0 0
        %2453 = vmatprep.subr.bf16.mxu0 0
        %2454 = vmatpush1.bf16.msra.mxu0 0
        %2455 = vmatprep.subr.bf16.mxu0 0
        %2456 = vmatpush1.bf16.msra.mxu0 0
        %2457 = vmatprep.subr.bf16.mxu0 0
        %2458 = vmatpush1.bf16.msra.mxu0 0
        %2459 = vmatprep.subr.bf16.mxu0 0
        %2460 = vmatpush1.bf16.msra.mxu0 0
        %2461 = vmatprep.subr.bf16.mxu0 0
        %2462 = vmatpush1.bf16.msra.mxu0 0
        %2463 = vmatprep.mubr.bf16.mxu0 0
        %2464 = vmatmul.mubr.bf16.gmra.mrb[0].mxu0 %v2350
        %v2465 = vpop.f32.mrb[0].mxu0
        %v2466 = vadd.f32 0.0, %v2465
        %v2467 = vpop.f32.mrb[0].mxu0
        %v2468 = vpop.f32.mrb[0].mxu0
        %v2469 = vadd.f32 0.0, %v2468
        %v2470 = vpop.f32.mrb[0].mxu0
        %2471 = vmatprep.mubr.bf16.mxu0 0
        %2472 = vmatmul.mubr.bf16.gmra.mrb[0].mxu0 %v2351
        %v2473 = vpop.f32.mrb[0].mxu0
        %v2474 = vadd.f32 0.0, %v2473
        %v2475 = vpop.f32.mrb[0].mxu0
        %v2476 = vpop.f32.mrb[0].mxu0
        %v2477 = vadd.f32 0.0, %v2476
        %v2478 = vpop.f32.mrb[0].mxu0
        %2479 = vmatprep.mubr.bf16.mxu0 0
        %2480 = vmatmul.mubr.bf16.gmra.mrb[0].mxu0 %v2352
        %v2481 = vpop.f32.mrb[0].mxu0
        %v2482 = vadd.f32 0.0, %v2481
        %v2483 = vpop.f32.mrb[0].mxu0
        %v2484 = vpop.f32.mrb[0].mxu0
        %v2485 = vadd.f32 0.0, %v2484
        %v2486 = vpop.f32.mrb[0].mxu0
        %2487 = vmatprep.mubr.bf16.mxu0 0
        %2488 = vmatmul.mubr.bf16.gmra.mrb[0].mxu0 %v2353
        %v2489 = vpop.f32.mrb[0].mxu0
        %v2490 = vadd.f32 0.0, %v2489
        %v2491 = vpop.f32.mrb[0].mxu0
        %v2492 = vpop.f32.mrb[0].mxu0
        %v2493 = vadd.f32 0.0, %v2492
        %v2494 = vpop.f32.mrb[0].mxu0
        %2495 = vmatprep.mubr.bf16.mxu0 0
        %2496 = vmatmul.mubr.bf16.gmra.mrb[0].mxu0 %v2354
        %v2497 = vpop.f32.mrb[0].mxu0
        %v2498 = vadd.f32 0.0, %v2497
        %v2499 = vpop.f32.mrb[0].mxu0
        %v2500 = vpop.f32.mrb[0].mxu0
        %v2501 = vadd.f32 0.0, %v2500
        %v2502 = vpop.f32.mrb[0].mxu0
        %2503 = vmatprep.mubr.bf16.mxu0 0
        %2504 = vmatmul.mubr.bf16.gmra.mrb[0].mxu0 %v2355
        %v2505 = vpop.f32.mrb[0].mxu0
        %v2506 = vadd.f32 0.0, %v2505
        %v2507 = vpop.f32.mrb[0].mxu0
        %v2508 = vpop.f32.mrb[0].mxu0
        %v2509 = vadd.f32 0.0, %v2508
        %v2510 = vpop.f32.mrb[0].mxu0
        %2511 = vmatprep.mubr.bf16.mxu0 0
        %2512 = vmatmul.mubr.bf16.gmra.mrb[0].mxu0 %v2356
        %v2513 = vpop.f32.mrb[0].mxu0
        %v2514 = vadd.f32 0.0, %v2513
        %v2515 = vpop.f32.mrb[0].mxu0
        %v2516 = vpop.f32.mrb[0].mxu0
        %v2517 = vadd.f32 0.0, %v2516
        %v2518 = vpop.f32.mrb[0].mxu0
        %2519 = vmatprep.mubr.bf16.mxu0 0
        %2520 = vmatmul.mubr.bf16.gmra.mrb[0].mxu0 %v2357
        %v2521 = vpop.f32.mrb[0].mxu0
        %v2522 = vadd.f32 0.0, %v2521
        %v2523 = vpop.f32.mrb[0].mxu0
        %v2524 = vpop.f32.mrb[0].mxu0
        %v2525 = vadd.f32 0.0, %v2524
        %v2526 = vpop.f32.mrb[0].mxu0
        %2527 = vmatprep.mubr.bf16.mxu0 0
        %2528 = vmatmul.mubr.bf16.gmra.mrb[0].mxu0 %v2358
        %v2529 = vpop.f32.mrb[0].mxu0
        %v2530 = vadd.f32 0.0, %v2529
        %v2531 = vpop.f32.mrb[0].mxu0
        %v2532 = vpop.f32.mrb[0].mxu0
        %v2533 = vadd.f32 0.0, %v2532
        %v2534 = vpop.f32.mrb[0].mxu0
        %2535 = vmatprep.mubr.bf16.mxu0 0
        %2536 = vmatmul.mubr.bf16.gmra.mrb[0].mxu0 %v2359
        %v2537 = vpop.f32.mrb[0].mxu0
        %v2538 = vadd.f32 0.0, %v2537
        %v2539 = vpop.f32.mrb[0].mxu0
        %v2540 = vpop.f32.mrb[0].mxu0
        %v2541 = vadd.f32 0.0, %v2540
        %v2542 = vpop.f32.mrb[0].mxu0
        %2543 = vmatprep.mubr.bf16.mxu0 0
        %2544 = vmatmul.mubr.bf16.gmra.mrb[0].mxu0 %v2360
        %v2545 = vpop.f32.mrb[0].mxu0
        %v2546 = vadd.f32 0.0, %v2545
        %v2547 = vpop.f32.mrb[0].mxu0
        %v2548 = vpop.f32.mrb[0].mxu0
        %v2549 = vadd.f32 0.0, %v2548
        %v2550 = vpop.f32.mrb[0].mxu0
        %2551 = vmatprep.mubr.bf16.mxu0 0
        %2552 = vmatmul.mubr.bf16.gmra.mrb[0].mxu0 %v2361
        %v2553 = vpop.f32.mrb[0].mxu0
        %v2554 = vadd.f32 0.0, %v2553
        %v2555 = vpop.f32.mrb[0].mxu0
        %v2556 = vpop.f32.mrb[0].mxu0
        %v2557 = vadd.f32 0.0, %v2556
        %v2558 = vpop.f32.mrb[0].mxu0
        %2559 = vmatprep.mubr.bf16.mxu0 0
        %2560 = vmatmul.mubr.bf16.gmra.mrb[0].mxu0 %v2362
        %v2561 = vpop.f32.mrb[0].mxu0
        %v2562 = vadd.f32 0.0, %v2561
        %v2563 = vpop.f32.mrb[0].mxu0
        %v2564 = vpop.f32.mrb[0].mxu0
        %v2565 = vadd.f32 0.0, %v2564
        %v2566 = vpop.f32.mrb[0].mxu0
        %2567 = vmatprep.mubr.bf16.mxu0 0
        %2568 = vmatmul.mubr.bf16.gmra.mrb[0].mxu0 %v2363
        %v2569 = vpop.f32.mrb[0].mxu0
        %v2570 = vadd.f32 0.0, %v2569
        %v2571 = vpop.f32.mrb[0].mxu0
        %v2572 = vpop.f32.mrb[0].mxu0
        %v2573 = vadd.f32 0.0, %v2572
        %v2574 = vpop.f32.mrb[0].mxu0
        %2575 = vmatprep.mubr.bf16.mxu0 0
        %2576 = vmatmul.mubr.bf16.gmra.mrb[0].mxu0 %v2364
        %v2577 = vpop.f32.mrb[0].mxu0
        %v2578 = vadd.f32 0.0, %v2577
        %v2579 = vpop.f32.mrb[0].mxu0
        %v2580 = vpop.f32.mrb[0].mxu0
        %v2581 = vadd.f32 0.0, %v2580
        %v2582 = vpop.f32.mrb[0].mxu0
        %2583 = vmatprep.mubr.bf16.mxu0 0
        %2584 = vmatmul.mubr.bf16.gmra.mrb[0].mxu0 %v2365
        %v2585 = vpop.f32.mrb[0].mxu0
        %v2586 = vadd.f32 0.0, %v2585
        %v2587 = vpop.f32.mrb[0].mxu0
        %v2588 = vpop.f32.mrb[0].mxu0
        %v2589 = vadd.f32 0.0, %v2588
        %v2590 = vpop.f32.mrb[0].mxu0
        %2591 = vdwg.mxu0
        %v2592 = vadd.f32 %v2285, %v2466
        %v2593 = vadd.f32 %v2286, %v2469
        %v2594 = vadd.f32 %v2287, %v2474
        %v2595 = vadd.f32 %v2288, %v2477
        %v2596 = vadd.f32 %v2289, %v2482
        %v2597 = vadd.f32 %v2290, %v2485
        %v2598 = vadd.f32 %v2291, %v2490
        %v2599 = vadd.f32 %v2292, %v2493
        %v2600 = vadd.f32 %v2293, %v2498
        %v2601 = vadd.f32 %v2294, %v2501
        %v2602 = vadd.f32 %v2295, %v2506
        %v2603 = vadd.f32 %v2296, %v2509
        %v2604 = vadd.f32 %v2297, %v2514
        %v2605 = vadd.f32 %v2298, %v2517
        %v2606 = vadd.f32 %v2299, %v2522
        %v2607 = vadd.f32 %v2300, %v2525
        %v2608 = vadd.f32 %v2301, %v2530
        %v2609 = vadd.f32 %v2302, %v2533
        %v2610 = vadd.f32 %v2303, %v2538
        %v2611 = vadd.f32 %v2304, %v2541
        %v2612 = vadd.f32 %v2305, %v2546
        %v2613 = vadd.f32 %v2306, %v2549
        %v2614 = vadd.f32 %v2307, %v2554
        %v2615 = vadd.f32 %v2308, %v2557
        %v2616 = vadd.f32 %v2309, %v2562
        %v2617 = vadd.f32 %v2310, %v2565
        %v2618 = vadd.f32 %v2311, %v2570
        %v2619 = vadd.f32 %v2312, %v2573
        %v2620 = vadd.f32 %v2313, %v2578
        %v2621 = vadd.f32 %v2314, %v2581
        %v2622 = vadd.f32 %v2315, %v2586
        %v2623 = vadd.f32 %v2316, %v2589
        %v2624 = vld [vmem:[%s2317 + $0x1] sm:$0xff]
        %v2625 = vld [vmem:[%s2317 + $0x9] sm:$0xff]
        %v2626 = vld [vmem:[%s2317 + $0x19] sm:$0xff]
        %v2627 = vld [vmem:[%s2317 + $0x21] sm:$0xff]
        %v2628 = vld [vmem:[%s2317 + $0x31] sm:$0xff]
        %v2629 = vld [vmem:[%s2317 + $0x39] sm:$0xff]
        %v2630 = vld [vmem:[%s2317 + $0x49] sm:$0xff]
        %v2631 = vld [vmem:[%s2317 + $0x51] sm:$0xff]
        %v2632 = vld [vmem:[%s2317 + $0x61] sm:$0xff]
        %v2633 = vld [vmem:[%s2317 + $0x69] sm:$0xff]
        %v2634 = vld [vmem:[%s2317 + $0x79] sm:$0xff]
        %v2635 = vld [vmem:[%s2317 + $0x81] sm:$0xff]
        %v2636 = vld [vmem:[%s2317 + $0x91] sm:$0xff]
        %v2637 = vld [vmem:[%s2317 + $0x99] sm:$0xff]
        %v2638 = vld [vmem:[%s2317 + $0xa9] sm:$0xff]
        %v2639 = vld [vmem:[%s2317 + $0xb1] sm:$0xff]
        %v2640 = vld [vmem:[%s2317 + $0xc1] sm:$0xff]
        %v2641 = vld [vmem:[%s2317 + $0xc9] sm:$0xff]
        %v2642 = vld [vmem:[%s2317 + $0xd9] sm:$0xff]
        %v2643 = vld [vmem:[%s2317 + $0xe1] sm:$0xff]
        %v2644 = vld [vmem:[%s2317 + $0xf1] sm:$0xff]
        %v2645 = vld [vmem:[%s2317 + $0xf9] sm:$0xff]
        %v2646 = vld [vmem:[%s2317 + $0x109] sm:$0xff]
        %v2647 = vld [vmem:[%s2317 + $0x111] sm:$0xff]
        %v2648 = vld [vmem:[%s2317 + $0x121] sm:$0xff]
        %v2649 = vld [vmem:[%s2317 + $0x129] sm:$0xff]
        %v2650 = vld [vmem:[%s2317 + $0x139] sm:$0xff]
        %v2651 = vld [vmem:[%s2317 + $0x141] sm:$0xff]
        %v2652 = vld [vmem:[%s2317 + $0x151] sm:$0xff]
        %v2653 = vld [vmem:[%s2317 + $0x159] sm:$0xff]
        %v2654 = vld [vmem:[%s2317 + $0x169] sm:$0xff]
        %v2655 = vld [vmem:[%s2317 + $0x171] sm:$0xff]
        %v2656 = vpack.c.bf16 %v2625, %v2624
        %v2657 = vpack.c.bf16 %v2627, %v2626
        %v2658 = vpack.c.bf16 %v2629, %v2628
        %v2659 = vpack.c.bf16 %v2631, %v2630
        %v2660 = vpack.c.bf16 %v2633, %v2632
        %v2661 = vpack.c.bf16 %v2635, %v2634
        %v2662 = vpack.c.bf16 %v2637, %v2636
        %v2663 = vpack.c.bf16 %v2639, %v2638
        %v2664 = vpack.c.bf16 %v2641, %v2640
        %v2665 = vpack.c.bf16 %v2643, %v2642
        %v2666 = vpack.c.bf16 %v2645, %v2644
        %v2667 = vpack.c.bf16 %v2647, %v2646
        %v2668 = vpack.c.bf16 %v2649, %v2648
        %v2669 = vpack.c.bf16 %v2651, %v2650
        %v2670 = vpack.c.bf16 %v2653, %v2652
        %v2671 = vpack.c.bf16 %v2655, %v2654
        %s2672 = scalar_lea.vmem [#allocation3], 448
        %v2673 = vld [vmem:[%s2672] sm:$0xf]
        %v2674 = vld [vmem:[%s2672 + $0x4] sm:$0xf]
        %v2675 = vld [vmem:[%s2672 + $0x8] sm:$0xf]
        %v2676 = vld [vmem:[%s2672 + $0xc] sm:$0xf]
        %v2677 = vld [vmem:[%s2672 + $0x10] sm:$0xf]
        %v2678 = vld [vmem:[%s2672 + $0x14] sm:$0xf]
        %v2679 = vld [vmem:[%s2672 + $0x18] sm:$0xf]
        %v2680 = vld [vmem:[%s2672 + $0x1c] sm:$0xf]
        %v2681 = vld [vmem:[%s2672 + $0x20] sm:$0xf]
        %v2682 = vld [vmem:[%s2672 + $0x24] sm:$0xf]
        %v2683 = vld [vmem:[%s2672 + $0x28] sm:$0xf]
        %v2684 = vld [vmem:[%s2672 + $0x2c] sm:$0xf]
        %v2685 = vld [vmem:[%s2672 + $0x30] sm:$0xf]
        %v2686 = vld [vmem:[%s2672 + $0x34] sm:$0xf]
        %v2687 = vld [vmem:[%s2672 + $0x38] sm:$0xf]
        %v2688 = vld [vmem:[%s2672 + $0x3c] sm:$0xf]
        %v2705 = vunpack.c.l.b16 %v2673
        %v2706 = vunpack.c.l.b16 %v2674
        %v2707 = vunpack.c.l.b16 %v2675
        %v2708 = vunpack.c.l.b16 %v2676
        %v2709 = vunpack.c.l.b16 %v2677
        %v2710 = vunpack.c.l.b16 %v2678
        %v2711 = vunpack.c.l.b16 %v2679
        %v2712 = vunpack.c.l.b16 %v2680
        %v2713 = vunpack.c.l.b16 %v2681
        %v2714 = vunpack.c.l.b16 %v2682
        %v2715 = vunpack.c.l.b16 %v2683
        %v2716 = vunpack.c.l.b16 %v2684
        %v2717 = vunpack.c.l.b16 %v2685
        %v2718 = vunpack.c.l.b16 %v2686
        %v2719 = vunpack.c.l.b16 %v2687
        %v2720 = vunpack.c.l.b16 %v2688
        %v2721 = vpack.c.b16 %v2706, %v2705
        %v2722 = vpack.c.b16 %v2708, %v2707
        %v2723 = vpack.c.b16 %v2710, %v2709
        %v2724 = vpack.c.b16 %v2712, %v2711
        %v2725 = vpack.c.b16 %v2714, %v2713
        %v2726 = vpack.c.b16 %v2716, %v2715
        %v2727 = vpack.c.b16 %v2718, %v2717
        %v2728 = vpack.c.b16 %v2720, %v2719
        %2737 = vmatprep.subr.bf16.mxu0 0
        %2738 = vmatpush1.bf16.msra.mxu0 %v2721
        %2739 = vmatprep.subr.bf16.mxu0 0
        %2740 = vmatpush1.bf16.msra.mxu0 %v2722
        %2741 = vmatprep.subr.bf16.mxu0 0
        %2742 = vmatpush1.bf16.msra.mxu0 %v2723
        %2743 = vmatprep.subr.bf16.mxu0 0
        %2744 = vmatpush1.bf16.msra.mxu0 %v2724
        %2745 = vmatprep.subr.bf16.mxu0 0
        %2746 = vmatpush1.bf16.msra.mxu0 %v2725
        %2747 = vmatprep.subr.bf16.mxu0 0
        %2748 = vmatpush1.bf16.msra.mxu0 %v2726
        %2749 = vmatprep.subr.bf16.mxu0 0
        %2750 = vmatpush1.bf16.msra.mxu0 %v2727
        %2751 = vmatprep.subr.bf16.mxu0 0
        %2752 = vmatpush1.bf16.msra.mxu0 %v2728
        %2753 = vmatprep.subr.bf16.mxu0 0
        %2754 = vmatpush1.bf16.msra.mxu0 0
        %2755 = vmatprep.subr.bf16.mxu0 0
        %2756 = vmatpush1.bf16.msra.mxu0 0
        %2757 = vmatprep.subr.bf16.mxu0 0
        %2758 = vmatpush1.bf16.msra.mxu0 0
        %2759 = vmatprep.subr.bf16.mxu0 0
        %2760 = vmatpush1.bf16.msra.mxu0 0
        %2761 = vmatprep.subr.bf16.mxu0 0
        %2762 = vmatpush1.bf16.msra.mxu0 0
        %2763 = vmatprep.subr.bf16.mxu0 0
        %2764 = vmatpush1.bf16.msra.mxu0 0
        %2765 = vmatprep.subr.bf16.mxu0 0
        %2766 = vmatpush1.bf16.msra.mxu0 0
        %2767 = vmatprep.subr.bf16.mxu0 0
        %2768 = vmatpush1.bf16.msra.mxu0 0
        %2769 = vmatprep.mubr.bf16.mxu0 0
        %2770 = vmatmul.mubr.bf16.gmra.mrb[0].mxu0 %v2656
        %v2771 = vpop.f32.mrb[0].mxu0
        %v2772 = vadd.f32 0.0, %v2771
        %v2773 = vpop.f32.mrb[0].mxu0
        %v2774 = vpop.f32.mrb[0].mxu0
        %v2775 = vadd.f32 0.0, %v2774
        %v2776 = vpop.f32.mrb[0].mxu0
        %2777 = vmatprep.mubr.bf16.mxu0 0
        %2778 = vmatmul.mubr.bf16.gmra.mrb[0].mxu0 %v2657
        %v2779 = vpop.f32.mrb[0].mxu0
        %v2780 = vadd.f32 0.0, %v2779
        %v2781 = vpop.f32.mrb[0].mxu0
        %v2782 = vpop.f32.mrb[0].mxu0
        %v2783 = vadd.f32 0.0, %v2782
        %v2784 = vpop.f32.mrb[0].mxu0
        %2785 = vmatprep.mubr.bf16.mxu0 0
        %2786 = vmatmul.mubr.bf16.gmra.mrb[0].mxu0 %v2658
        %v2787 = vpop.f32.mrb[0].mxu0
        %v2788 = vadd.f32 0.0, %v2787
        %v2789 = vpop.f32.mrb[0].mxu0
        %v2790 = vpop.f32.mrb[0].mxu0
        %v2791 = vadd.f32 0.0, %v2790
        %v2792 = vpop.f32.mrb[0].mxu0
        %2793 = vmatprep.mubr.bf16.mxu0 0
        %2794 = vmatmul.mubr.bf16.gmra.mrb[0].mxu0 %v2659
        %v2795 = vpop.f32.mrb[0].mxu0
        %v2796 = vadd.f32 0.0, %v2795
        %v2797 = vpop.f32.mrb[0].mxu0
        %v2798 = vpop.f32.mrb[0].mxu0
        %v2799 = vadd.f32 0.0, %v2798
        %v2800 = vpop.f32.mrb[0].mxu0
        %2801 = vmatprep.mubr.bf16.mxu0 0
        %2802 = vmatmul.mubr.bf16.gmra.mrb[0].mxu0 %v2660
        %v2803 = vpop.f32.mrb[0].mxu0
        %v2804 = vadd.f32 0.0, %v2803
        %v2805 = vpop.f32.mrb[0].mxu0
        %v2806 = vpop.f32.mrb[0].mxu0
        %v2807 = vadd.f32 0.0, %v2806
        %v2808 = vpop.f32.mrb[0].mxu0
        %2809 = vmatprep.mubr.bf16.mxu0 0
        %2810 = vmatmul.mubr.bf16.gmra.mrb[0].mxu0 %v2661
        %v2811 = vpop.f32.mrb[0].mxu0
        %v2812 = vadd.f32 0.0, %v2811
        %v2813 = vpop.f32.mrb[0].mxu0
        %v2814 = vpop.f32.mrb[0].mxu0
        %v2815 = vadd.f32 0.0, %v2814
        %v2816 = vpop.f32.mrb[0].mxu0
        %2817 = vmatprep.mubr.bf16.mxu0 0
        %2818 = vmatmul.mubr.bf16.gmra.mrb[0].mxu0 %v2662
        %v2819 = vpop.f32.mrb[0].mxu0
        %v2820 = vadd.f32 0.0, %v2819
        %v2821 = vpop.f32.mrb[0].mxu0
        %v2822 = vpop.f32.mrb[0].mxu0
        %v2823 = vadd.f32 0.0, %v2822
        %v2824 = vpop.f32.mrb[0].mxu0
        %2825 = vmatprep.mubr.bf16.mxu0 0
        %2826 = vmatmul.mubr.bf16.gmra.mrb[0].mxu0 %v2663
        %v2827 = vpop.f32.mrb[0].mxu0
        %v2828 = vadd.f32 0.0, %v2827
        %v2829 = vpop.f32.mrb[0].mxu0
        %v2830 = vpop.f32.mrb[0].mxu0
        %v2831 = vadd.f32 0.0, %v2830
        %v2832 = vpop.f32.mrb[0].mxu0
        %2833 = vmatprep.mubr.bf16.mxu0 0
        %2834 = vmatmul.mubr.bf16.gmra.mrb[0].mxu0 %v2664
        %v2835 = vpop.f32.mrb[0].mxu0
        %v2836 = vadd.f32 0.0, %v2835
        %v2837 = vpop.f32.mrb[0].mxu0
        %v2838 = vpop.f32.mrb[0].mxu0
        %v2839 = vadd.f32 0.0, %v2838
        %v2840 = vpop.f32.mrb[0].mxu0
        %2841 = vmatprep.mubr.bf16.mxu0 0
        %2842 = vmatmul.mubr.bf16.gmra.mrb[0].mxu0 %v2665
        %v2843 = vpop.f32.mrb[0].mxu0
        %v2844 = vadd.f32 0.0, %v2843
        %v2845 = vpop.f32.mrb[0].mxu0
        %v2846 = vpop.f32.mrb[0].mxu0
        %v2847 = vadd.f32 0.0, %v2846
        %v2848 = vpop.f32.mrb[0].mxu0
        %2849 = vmatprep.mubr.bf16.mxu0 0
        %2850 = vmatmul.mubr.bf16.gmra.mrb[0].mxu0 %v2666
        %v2851 = vpop.f32.mrb[0].mxu0
        %v2852 = vadd.f32 0.0, %v2851
        %v2853 = vpop.f32.mrb[0].mxu0
        %v2854 = vpop.f32.mrb[0].mxu0
        %v2855 = vadd.f32 0.0, %v2854
        %v2856 = vpop.f32.mrb[0].mxu0
        %2857 = vmatprep.mubr.bf16.mxu0 0
        %2858 = vmatmul.mubr.bf16.gmra.mrb[0].mxu0 %v2667
        %v2859 = vpop.f32.mrb[0].mxu0
        %v2860 = vadd.f32 0.0, %v2859
        %v2861 = vpop.f32.mrb[0].mxu0
        %v2862 = vpop.f32.mrb[0].mxu0
        %v2863 = vadd.f32 0.0, %v2862
        %v2864 = vpop.f32.mrb[0].mxu0
        %2865 = vmatprep.mubr.bf16.mxu0 0
        %2866 = vmatmul.mubr.bf16.gmra.mrb[0].mxu0 %v2668
        %v2867 = vpop.f32.mrb[0].mxu0
        %v2868 = vadd.f32 0.0, %v2867
        %v2869 = vpop.f32.mrb[0].mxu0
        %v2870 = vpop.f32.mrb[0].mxu0
        %v2871 = vadd.f32 0.0, %v2870
        %v2872 = vpop.f32.mrb[0].mxu0
        %2873 = vmatprep.mubr.bf16.mxu0 0
        %2874 = vmatmul.mubr.bf16.gmra.mrb[0].mxu0 %v2669
        %v2875 = vpop.f32.mrb[0].mxu0
        %v2876 = vadd.f32 0.0, %v2875
        %v2877 = vpop.f32.mrb[0].mxu0
        %v2878 = vpop.f32.mrb[0].mxu0
        %v2879 = vadd.f32 0.0, %v2878
        %v2880 = vpop.f32.mrb[0].mxu0
        %2881 = vmatprep.mubr.bf16.mxu0 0
        %2882 = vmatmul.mubr.bf16.gmra.mrb[0].mxu0 %v2670
        %v2883 = vpop.f32.mrb[0].mxu0
        %v2884 = vadd.f32 0.0, %v2883
        %v2885 = vpop.f32.mrb[0].mxu0
        %v2886 = vpop.f32.mrb[0].mxu0
        %v2887 = vadd.f32 0.0, %v2886
        %v2888 = vpop.f32.mrb[0].mxu0
        %2889 = vmatprep.mubr.bf16.mxu0 0
        %2890 = vmatmul.mubr.bf16.gmra.mrb[0].mxu0 %v2671
        %v2891 = vpop.f32.mrb[0].mxu0
        %v2892 = vadd.f32 0.0, %v2891
        %v2893 = vpop.f32.mrb[0].mxu0
        %v2894 = vpop.f32.mrb[0].mxu0
        %v2895 = vadd.f32 0.0, %v2894
        %v2896 = vpop.f32.mrb[0].mxu0
        %2897 = vdwg.mxu0
        %v2898 = vadd.f32 %v2592, %v2772
        %v2899 = vadd.f32 %v2593, %v2775
        %v2900 = vadd.f32 %v2594, %v2780
        %v2901 = vadd.f32 %v2595, %v2783
        %v2902 = vadd.f32 %v2596, %v2788
        %v2903 = vadd.f32 %v2597, %v2791
        %v2904 = vadd.f32 %v2598, %v2796
        %v2905 = vadd.f32 %v2599, %v2799
        %v2906 = vadd.f32 %v2600, %v2804
        %v2907 = vadd.f32 %v2601, %v2807
        %v2908 = vadd.f32 %v2602, %v2812
        %v2909 = vadd.f32 %v2603, %v2815
        %v2910 = vadd.f32 %v2604, %v2820
        %v2911 = vadd.f32 %v2605, %v2823
        %v2912 = vadd.f32 %v2606, %v2828
        %v2913 = vadd.f32 %v2607, %v2831
        %v2914 = vadd.f32 %v2608, %v2836
        %v2915 = vadd.f32 %v2609, %v2839
        %v2916 = vadd.f32 %v2610, %v2844
        %v2917 = vadd.f32 %v2611, %v2847
        %v2918 = vadd.f32 %v2612, %v2852
        %v2919 = vadd.f32 %v2613, %v2855
        %v2920 = vadd.f32 %v2614, %v2860
        %v2921 = vadd.f32 %v2615, %v2863
        %v2922 = vadd.f32 %v2616, %v2868
        %v2923 = vadd.f32 %v2617, %v2871
        %v2924 = vadd.f32 %v2618, %v2876
        %v2925 = vadd.f32 %v2619, %v2879
        %v2926 = vadd.f32 %v2620, %v2884
        %v2927 = vadd.f32 %v2621, %v2887
        %v2928 = vadd.f32 %v2622, %v2892
        %v2929 = vadd.f32 %v2623, %v2895
        %v2930 = vld [vmem:[%s2317 + $0x2] sm:$0xff]
        %v2931 = vld [vmem:[%s2317 + $0xa] sm:$0xff]
        %v2932 = vld [vmem:[%s2317 + $0x1a] sm:$0xff]
        %v2933 = vld [vmem:[%s2317 + $0x22] sm:$0xff]
        %v2934 = vld [vmem:[%s2317 + $0x32] sm:$0xff]
        %v2935 = vld [vmem:[%s2317 + $0x3a] sm:$0xff]
        %v2936 = vld [vmem:[%s2317 + $0x4a] sm:$0xff]
        %v2937 = vld [vmem:[%s2317 + $0x52] sm:$0xff]
        %v2938 = vld [vmem:[%s2317 + $0x62] sm:$0xff]
        %v2939 = vld [vmem:[%s2317 + $0x6a] sm:$0xff]
        %v2940 = vld [vmem:[%s2317 + $0x7a] sm:$0xff]
        %v2941 = vld [vmem:[%s2317 + $0x82] sm:$0xff]
        %v2942 = vld [vmem:[%s2317 + $0x92] sm:$0xff]
        %v2943 = vld [vmem:[%s2317 + $0x9a] sm:$0xff]
        %v2944 = vld [vmem:[%s2317 + $0xaa] sm:$0xff]
        %v2945 = vld [vmem:[%s2317 + $0xb2] sm:$0xff]
        %v2946 = vld [vmem:[%s2317 + $0xc2] sm:$0xff]
        %v2947 = vld [vmem:[%s2317 + $0xca] sm:$0xff]
        %v2948 = vld [vmem:[%s2317 + $0xda] sm:$0xff]
        %v2949 = vld [vmem:[%s2317 + $0xe2] sm:$0xff]
        %v2950 = vld [vmem:[%s2317 + $0xf2] sm:$0xff]
        %v2951 = vld [vmem:[%s2317 + $0xfa] sm:$0xff]
        %v2952 = vld [vmem:[%s2317 + $0x10a] sm:$0xff]
        %v2953 = vld [vmem:[%s2317 + $0x112] sm:$0xff]
        %v2954 = vld [vmem:[%s2317 + $0x122] sm:$0xff]
        %v2955 = vld [vmem:[%s2317 + $0x12a] sm:$0xff]
        %v2956 = vld [vmem:[%s2317 + $0x13a] sm:$0xff]
        %v2957 = vld [vmem:[%s2317 + $0x142] sm:$0xff]
        %v2958 = vld [vmem:[%s2317 + $0x152] sm:$0xff]
        %v2959 = vld [vmem:[%s2317 + $0x15a] sm:$0xff]
        %v2960 = vld [vmem:[%s2317 + $0x16a] sm:$0xff]
        %v2961 = vld [vmem:[%s2317 + $0x172] sm:$0xff]
        %v2962 = vpack.c.bf16 %v2931, %v2930
        %v2963 = vpack.c.bf16 %v2933, %v2932
        %v2964 = vpack.c.bf16 %v2935, %v2934
        %v2965 = vpack.c.bf16 %v2937, %v2936
        %v2966 = vpack.c.bf16 %v2939, %v2938
        %v2967 = vpack.c.bf16 %v2941, %v2940
        %v2968 = vpack.c.bf16 %v2943, %v2942
        %v2969 = vpack.c.bf16 %v2945, %v2944
        %v2970 = vpack.c.bf16 %v2947, %v2946
        %v2971 = vpack.c.bf16 %v2949, %v2948
        %v2972 = vpack.c.bf16 %v2951, %v2950
        %v2973 = vpack.c.bf16 %v2953, %v2952
        %v2974 = vpack.c.bf16 %v2955, %v2954
        %v2975 = vpack.c.bf16 %v2957, %v2956
        %v2976 = vpack.c.bf16 %v2959, %v2958
        %v2977 = vpack.c.bf16 %v2961, %v2960
        %s2978 = scalar_lea.vmem [#allocation3], 512
        %v2979 = vld [vmem:[%s2978] sm:$0xf]
        %v2980 = vld [vmem:[%s2978 + $0x4] sm:$0xf]
        %v2981 = vld [vmem:[%s2978 + $0x8] sm:$0xf]
        %v2982 = vld [vmem:[%s2978 + $0xc] sm:$0xf]
        %v2983 = vld [vmem:[%s2978 + $0x10] sm:$0xf]
        %v2984 = vld [vmem:[%s2978 + $0x14] sm:$0xf]
        %v2985 = vld [vmem:[%s2978 + $0x18] sm:$0xf]
        %v2986 = vld [vmem:[%s2978 + $0x1c] sm:$0xf]
        %v2987 = vld [vmem:[%s2978 + $0x20] sm:$0xf]
        %v2988 = vld [vmem:[%s2978 + $0x24] sm:$0xf]
        %v2989 = vld [vmem:[%s2978 + $0x28] sm:$0xf]
        %v2990 = vld [vmem:[%s2978 + $0x2c] sm:$0xf]
        %v2991 = vld [vmem:[%s2978 + $0x30] sm:$0xf]
        %v2992 = vld [vmem:[%s2978 + $0x34] sm:$0xf]
        %v2993 = vld [vmem:[%s2978 + $0x38] sm:$0xf]
        %v2994 = vld [vmem:[%s2978 + $0x3c] sm:$0xf]
        %v3011 = vunpack.c.l.b16 %v2979
        %v3012 = vunpack.c.l.b16 %v2980
        %v3013 = vunpack.c.l.b16 %v2981
        %v3014 = vunpack.c.l.b16 %v2982
        %v3015 = vunpack.c.l.b16 %v2983
        %v3016 = vunpack.c.l.b16 %v2984
        %v3017 = vunpack.c.l.b16 %v2985
        %v3018 = vunpack.c.l.b16 %v2986
        %v3019 = vunpack.c.l.b16 %v2987
        %v3020 = vunpack.c.l.b16 %v2988
        %v3021 = vunpack.c.l.b16 %v2989
        %v3022 = vunpack.c.l.b16 %v2990
        %v3023 = vunpack.c.l.b16 %v2991
        %v3024 = vunpack.c.l.b16 %v2992
        %v3025 = vunpack.c.l.b16 %v2993
        %v3026 = vunpack.c.l.b16 %v2994
        %v3027 = vpack.c.b16 %v3012, %v3011
        %v3028 = vpack.c.b16 %v3014, %v3013
        %v3029 = vpack.c.b16 %v3016, %v3015
        %v3030 = vpack.c.b16 %v3018, %v3017
        %v3031 = vpack.c.b16 %v3020, %v3019
        %v3032 = vpack.c.b16 %v3022, %v3021
        %v3033 = vpack.c.b16 %v3024, %v3023
        %v3034 = vpack.c.b16 %v3026, %v3025
        %3043 = vmatprep.subr.bf16.mxu0 0
        %3044 = vmatpush1.bf16.msra.mxu0 %v3027
        %3045 = vmatprep.subr.bf16.mxu0 0
        %3046 = vmatpush1.bf16.msra.mxu0 %v3028
        %3047 = vmatprep.subr.bf16.mxu0 0
        %3048 = vmatpush1.bf16.msra.mxu0 %v3029
        %3049 = vmatprep.subr.bf16.mxu0 0
        %3050 = vmatpush1.bf16.msra.mxu0 %v3030
        %3051 = vmatprep.subr.bf16.mxu0 0
        %3052 = vmatpush1.bf16.msra.mxu0 %v3031
        %3053 = vmatprep.subr.bf16.mxu0 0
        %3054 = vmatpush1.bf16.msra.mxu0 %v3032
        %3055 = vmatprep.subr.bf16.mxu0 0
        %3056 = vmatpush1.bf16.msra.mxu0 %v3033
        %3057 = vmatprep.subr.bf16.mxu0 0
        %3058 = vmatpush1.bf16.msra.mxu0 %v3034
        %3059 = vmatprep.subr.bf16.mxu0 0
        %3060 = vmatpush1.bf16.msra.mxu0 0
        %3061 = vmatprep.subr.bf16.mxu0 0
        %3062 = vmatpush1.bf16.msra.mxu0 0
        %3063 = vmatprep.subr.bf16.mxu0 0
        %3064 = vmatpush1.bf16.msra.mxu0 0
        %3065 = vmatprep.subr.bf16.mxu0 0
        %3066 = vmatpush1.bf16.msra.mxu0 0
        %3067 = vmatprep.subr.bf16.mxu0 0
        %3068 = vmatpush1.bf16.msra.mxu0 0
        %3069 = vmatprep.subr.bf16.mxu0 0
        %3070 = vmatpush1.bf16.msra.mxu0 0
        %3071 = vmatprep.subr.bf16.mxu0 0
        %3072 = vmatpush1.bf16.msra.mxu0 0
        %3073 = vmatprep.subr.bf16.mxu0 0
        %3074 = vmatpush1.bf16.msra.mxu0 0
        %3075 = vmatprep.mubr.bf16.mxu0 0
        %3076 = vmatmul.mubr.bf16.gmra.mrb[0].mxu0 %v2962
        %v3077 = vpop.f32.mrb[0].mxu0
        %v3078 = vadd.f32 0.0, %v3077
        %v3079 = vpop.f32.mrb[0].mxu0
        %v3080 = vpop.f32.mrb[0].mxu0
        %v3081 = vadd.f32 0.0, %v3080
        %v3082 = vpop.f32.mrb[0].mxu0
        %3083 = vmatprep.mubr.bf16.mxu0 0
        %3084 = vmatmul.mubr.bf16.gmra.mrb[0].mxu0 %v2963
        %v3085 = vpop.f32.mrb[0].mxu0
        %v3086 = vadd.f32 0.0, %v3085
        %v3087 = vpop.f32.mrb[0].mxu0
        %v3088 = vpop.f32.mrb[0].mxu0
        %v3089 = vadd.f32 0.0, %v3088
        %v3090 = vpop.f32.mrb[0].mxu0
        %3091 = vmatprep.mubr.bf16.mxu0 0
        %3092 = vmatmul.mubr.bf16.gmra.mrb[0].mxu0 %v2964
        %v3093 = vpop.f32.mrb[0].mxu0
        %v3094 = vadd.f32 0.0, %v3093
        %v3095 = vpop.f32.mrb[0].mxu0
        %v3096 = vpop.f32.mrb[0].mxu0
        %v3097 = vadd.f32 0.0, %v3096
        %v3098 = vpop.f32.mrb[0].mxu0
        %3099 = vmatprep.mubr.bf16.mxu0 0
        %3100 = vmatmul.mubr.bf16.gmra.mrb[0].mxu0 %v2965
        %v3101 = vpop.f32.mrb[0].mxu0
        %v3102 = vadd.f32 0.0, %v3101
        %v3103 = vpop.f32.mrb[0].mxu0
        %v3104 = vpop.f32.mrb[0].mxu0
        %v3105 = vadd.f32 0.0, %v3104
        %v3106 = vpop.f32.mrb[0].mxu0
        %3107 = vmatprep.mubr.bf16.mxu0 0
        %3108 = vmatmul.mubr.bf16.gmra.mrb[0].mxu0 %v2966
        %v3109 = vpop.f32.mrb[0].mxu0
        %v3110 = vadd.f32 0.0, %v3109
        %v3111 = vpop.f32.mrb[0].mxu0
        %v3112 = vpop.f32.mrb[0].mxu0
        %v3113 = vadd.f32 0.0, %v3112
        %v3114 = vpop.f32.mrb[0].mxu0
        %3115 = vmatprep.mubr.bf16.mxu0 0
        %3116 = vmatmul.mubr.bf16.gmra.mrb[0].mxu0 %v2967
        %v3117 = vpop.f32.mrb[0].mxu0
        %v3118 = vadd.f32 0.0, %v3117
        %v3119 = vpop.f32.mrb[0].mxu0
        %v3120 = vpop.f32.mrb[0].mxu0
        %v3121 = vadd.f32 0.0, %v3120
        %v3122 = vpop.f32.mrb[0].mxu0
        %3123 = vmatprep.mubr.bf16.mxu0 0
        %3124 = vmatmul.mubr.bf16.gmra.mrb[0].mxu0 %v2968
        %v3125 = vpop.f32.mrb[0].mxu0
        %v3126 = vadd.f32 0.0, %v3125
        %v3127 = vpop.f32.mrb[0].mxu0
        %v3128 = vpop.f32.mrb[0].mxu0
        %v3129 = vadd.f32 0.0, %v3128
        %v3130 = vpop.f32.mrb[0].mxu0
        %3131 = vmatprep.mubr.bf16.mxu0 0
        %3132 = vmatmul.mubr.bf16.gmra.mrb[0].mxu0 %v2969
        %v3133 = vpop.f32.mrb[0].mxu0
        %v3134 = vadd.f32 0.0, %v3133
        %v3135 = vpop.f32.mrb[0].mxu0
        %v3136 = vpop.f32.mrb[0].mxu0
        %v3137 = vadd.f32 0.0, %v3136
        %v3138 = vpop.f32.mrb[0].mxu0
        %3139 = vmatprep.mubr.bf16.mxu0 0
        %3140 = vmatmul.mubr.bf16.gmra.mrb[0].mxu0 %v2970
        %v3141 = vpop.f32.mrb[0].mxu0
        %v3142 = vadd.f32 0.0, %v3141
        %v3143 = vpop.f32.mrb[0].mxu0
        %v3144 = vpop.f32.mrb[0].mxu0
        %v3145 = vadd.f32 0.0, %v3144
        %v3146 = vpop.f32.mrb[0].mxu0
        %3147 = vmatprep.mubr.bf16.mxu0 0
        %3148 = vmatmul.mubr.bf16.gmra.mrb[0].mxu0 %v2971
        %v3149 = vpop.f32.mrb[0].mxu0
        %v3150 = vadd.f32 0.0, %v3149
        %v3151 = vpop.f32.mrb[0].mxu0
        %v3152 = vpop.f32.mrb[0].mxu0
        %v3153 = vadd.f32 0.0, %v3152
        %v3154 = vpop.f32.mrb[0].mxu0
        %3155 = vmatprep.mubr.bf16.mxu0 0
        %3156 = vmatmul.mubr.bf16.gmra.mrb[0].mxu0 %v2972
        %v3157 = vpop.f32.mrb[0].mxu0
        %v3158 = vadd.f32 0.0, %v3157
        %v3159 = vpop.f32.mrb[0].mxu0
        %v3160 = vpop.f32.mrb[0].mxu0
        %v3161 = vadd.f32 0.0, %v3160
        %v3162 = vpop.f32.mrb[0].mxu0
        %3163 = vmatprep.mubr.bf16.mxu0 0
        %3164 = vmatmul.mubr.bf16.gmra.mrb[0].mxu0 %v2973
        %v3165 = vpop.f32.mrb[0].mxu0
        %v3166 = vadd.f32 0.0, %v3165
        %v3167 = vpop.f32.mrb[0].mxu0
        %v3168 = vpop.f32.mrb[0].mxu0
        %v3169 = vadd.f32 0.0, %v3168
        %v3170 = vpop.f32.mrb[0].mxu0
        %3171 = vmatprep.mubr.bf16.mxu0 0
        %3172 = vmatmul.mubr.bf16.gmra.mrb[0].mxu0 %v2974
        %v3173 = vpop.f32.mrb[0].mxu0
        %v3174 = vadd.f32 0.0, %v3173
        %v3175 = vpop.f32.mrb[0].mxu0
        %v3176 = vpop.f32.mrb[0].mxu0
        %v3177 = vadd.f32 0.0, %v3176
        %v3178 = vpop.f32.mrb[0].mxu0
        %3179 = vmatprep.mubr.bf16.mxu0 0
        %3180 = vmatmul.mubr.bf16.gmra.mrb[0].mxu0 %v2975
        %v3181 = vpop.f32.mrb[0].mxu0
        %v3182 = vadd.f32 0.0, %v3181
        %v3183 = vpop.f32.mrb[0].mxu0
        %v3184 = vpop.f32.mrb[0].mxu0
        %v3185 = vadd.f32 0.0, %v3184
        %v3186 = vpop.f32.mrb[0].mxu0
        %3187 = vmatprep.mubr.bf16.mxu0 0
        %3188 = vmatmul.mubr.bf16.gmra.mrb[0].mxu0 %v2976
        %v3189 = vpop.f32.mrb[0].mxu0
        %v3190 = vadd.f32 0.0, %v3189
        %v3191 = vpop.f32.mrb[0].mxu0
        %v3192 = vpop.f32.mrb[0].mxu0
        %v3193 = vadd.f32 0.0, %v3192
        %v3194 = vpop.f32.mrb[0].mxu0
        %3195 = vmatprep.mubr.bf16.mxu0 0
        %3196 = vmatmul.mubr.bf16.gmra.mrb[0].mxu0 %v2977
        %v3197 = vpop.f32.mrb[0].mxu0
        %v3198 = vadd.f32 0.0, %v3197
        %v3199 = vpop.f32.mrb[0].mxu0
        %v3200 = vpop.f32.mrb[0].mxu0
        %v3201 = vadd.f32 0.0, %v3200
        %v3202 = vpop.f32.mrb[0].mxu0
        %3203 = vdwg.mxu0
        %v3204 = vadd.f32 %v2898, %v3078
        %v3205 = vadd.f32 %v2899, %v3081
        %v3206 = vadd.f32 %v2900, %v3086
        %v3207 = vadd.f32 %v2901, %v3089
        %v3208 = vadd.f32 %v2902, %v3094
        %v3209 = vadd.f32 %v2903, %v3097
        %v3210 = vadd.f32 %v2904, %v3102
        %v3211 = vadd.f32 %v2905, %v3105
        %v3212 = vadd.f32 %v2906, %v3110
        %v3213 = vadd.f32 %v2907, %v3113
        %v3214 = vadd.f32 %v2908, %v3118
        %v3215 = vadd.f32 %v2909, %v3121
        %v3216 = vadd.f32 %v2910, %v3126
        %v3217 = vadd.f32 %v2911, %v3129
        %v3218 = vadd.f32 %v2912, %v3134
        %v3219 = vadd.f32 %v2913, %v3137
        %v3220 = vadd.f32 %v2914, %v3142
        %v3221 = vadd.f32 %v2915, %v3145
        %v3222 = vadd.f32 %v2916, %v3150
        %v3223 = vadd.f32 %v2917, %v3153
        %v3224 = vadd.f32 %v2918, %v3158
        %v3225 = vadd.f32 %v2919, %v3161
        %v3226 = vadd.f32 %v2920, %v3166
        %v3227 = vadd.f32 %v2921, %v3169
        %v3228 = vadd.f32 %v2922, %v3174
        %v3229 = vadd.f32 %v2923, %v3177
        %v3230 = vadd.f32 %v2924, %v3182
        %v3231 = vadd.f32 %v2925, %v3185
        %v3232 = vadd.f32 %v2926, %v3190
        %v3233 = vadd.f32 %v2927, %v3193
        %v3234 = vadd.f32 %v2928, %v3198
        %v3235 = vadd.f32 %v2929, %v3201
        %v3236 = vld [vmem:[#allocation6] sm:$0x1]
        %v3238 = vlaneseq
        %v3239 = vshrl.u32 %v3238, 7
        %v3240 = vsub.s32 0, %v3239
        %v3241 = vrot.slane %v3236, %v3240
        %v3243 = vadd.f32 %v3204, %v3241
        %v3244 = vadd.f32 %v3205, %v3241
        %v3245 = vadd.f32 %v3206, %v3241
        %v3246 = vadd.f32 %v3207, %v3241
        %v3247 = vadd.f32 %v3208, %v3241
        %v3248 = vadd.f32 %v3209, %v3241
        %v3249 = vadd.f32 %v3210, %v3241
        %v3250 = vadd.f32 %v3211, %v3241
        %v3251 = vadd.f32 %v3212, %v3241
        %v3252 = vadd.f32 %v3213, %v3241
        %v3253 = vadd.f32 %v3214, %v3241
        %v3254 = vadd.f32 %v3215, %v3241
        %v3255 = vadd.f32 %v3216, %v3241
        %v3256 = vadd.f32 %v3217, %v3241
        %v3257 = vadd.f32 %v3218, %v3241
        %v3258 = vadd.f32 %v3219, %v3241
        %v3259 = vadd.f32 %v3220, %v3241
        %v3260 = vadd.f32 %v3221, %v3241
        %v3261 = vadd.f32 %v3222, %v3241
        %v3262 = vadd.f32 %v3223, %v3241
        %v3263 = vadd.f32 %v3224, %v3241
        %v3264 = vadd.f32 %v3225, %v3241
        %v3265 = vadd.f32 %v3226, %v3241
        %v3266 = vadd.f32 %v3227, %v3241
        %v3267 = vadd.f32 %v3228, %v3241
        %v3268 = vadd.f32 %v3229, %v3241
        %v3269 = vadd.f32 %v3230, %v3241
        %v3270 = vadd.f32 %v3231, %v3241
        %v3271 = vadd.f32 %v3232, %v3241
        %v3272 = vadd.f32 %v3233, %v3241
        %v3273 = vadd.f32 %v3234, %v3241
        %v3274 = vadd.f32 %v3235, %v3241
        %v3275 = vmax.f32 %v3243, 0.0
        %v3276 = vmax.f32 %v3244, 0.0
        %v3277 = vmax.f32 %v3245, 0.0
        %v3278 = vmax.f32 %v3246, 0.0
        %v3279 = vmax.f32 %v3247, 0.0
        %v3280 = vmax.f32 %v3248, 0.0
        %v3281 = vmax.f32 %v3249, 0.0
        %v3282 = vmax.f32 %v3250, 0.0
        %v3283 = vmax.f32 %v3251, 0.0
        %v3284 = vmax.f32 %v3252, 0.0
        %v3285 = vmax.f32 %v3253, 0.0
        %v3286 = vmax.f32 %v3254, 0.0
        %v3287 = vmax.f32 %v3255, 0.0
        %v3288 = vmax.f32 %v3256, 0.0
        %v3289 = vmax.f32 %v3257, 0.0
        %v3290 = vmax.f32 %v3258, 0.0
        %v3291 = vmax.f32 %v3259, 0.0
        %v3292 = vmax.f32 %v3260, 0.0
        %v3293 = vmax.f32 %v3261, 0.0
        %v3294 = vmax.f32 %v3262, 0.0
        %v3295 = vmax.f32 %v3263, 0.0
        %v3296 = vmax.f32 %v3264, 0.0
        %v3297 = vmax.f32 %v3265, 0.0
        %v3298 = vmax.f32 %v3266, 0.0
        %v3299 = vmax.f32 %v3267, 0.0
        %v3300 = vmax.f32 %v3268, 0.0
        %v3301 = vmax.f32 %v3269, 0.0
        %v3302 = vmax.f32 %v3270, 0.0
        %v3303 = vmax.f32 %v3271, 0.0
        %v3304 = vmax.f32 %v3272, 0.0
        %v3305 = vmax.f32 %v3273, 0.0
        %v3306 = vmax.f32 %v3274, 0.0
        %v3307 = vmax.f32 %v3275, %v3277
        %v3308 = vmax.f32 %v3276, %v3278
        %v3309 = vmax.f32 %v3279, %v3281
        %v3310 = vmax.f32 %v3280, %v3282
        %v3311 = vmax.f32 %v3283, %v3285
        %v3312 = vmax.f32 %v3284, %v3286
        %v3313 = vmax.f32 %v3287, %v3289
        %v3314 = vmax.f32 %v3288, %v3290
        %v3315 = vmax.f32 %v3291, %v3293
        %v3316 = vmax.f32 %v3292, %v3294
        %v3317 = vmax.f32 %v3295, %v3297
        %v3318 = vmax.f32 %v3296, %v3298
        %v3319 = vmax.f32 %v3299, %v3301
        %v3320 = vmax.f32 %v3300, %v3302
        %v3321 = vmax.f32 %v3303, %v3305
        %v3322 = vmax.f32 %v3304, %v3306
        %v3331 = vrot.slane %v3307, 1
        %v3332 = vrot.slane %v3309, 1
        %v3333 = vrot.slane %v3311, 1
        %v3334 = vrot.slane %v3313, 1
        %v3335 = vrot.slane %v3315, 1
        %v3336 = vrot.slane %v3317, 1
        %v3337 = vrot.slane %v3319, 1
        %v3338 = vrot.slane %v3321, 1
        %v3347 = vmax.f32 %v3307, %v3331
        %v3348 = vmax.f32 %v3309, %v3332
        %v3349 = vmax.f32 %v3311, %v3333
        %v3350 = vmax.f32 %v3313, %v3334
        %v3351 = vmax.f32 %v3315, %v3335
        %v3352 = vmax.f32 %v3317, %v3336
        %v3353 = vmax.f32 %v3319, %v3337
        %v3354 = vmax.f32 %v3321, %v3338
        %v3363 = vrot.slane %v3308, 1
        %v3364 = vrot.slane %v3310, 1
        %v3365 = vrot.slane %v3312, 1
        %v3366 = vrot.slane %v3314, 1
        %v3367 = vrot.slane %v3316, 1
        %v3368 = vrot.slane %v3318, 1
        %v3369 = vrot.slane %v3320, 1
        %v3370 = vrot.slane %v3322, 1
        %v3379 = vmax.f32 %v3308, %v3363
        %v3380 = vmax.f32 %v3310, %v3364
        %v3381 = vmax.f32 %v3312, %v3365
        %v3382 = vmax.f32 %v3314, %v3366
        %v3383 = vmax.f32 %v3316, %v3367
        %v3384 = vmax.f32 %v3318, %v3368
        %v3385 = vmax.f32 %v3320, %v3369
        %v3386 = vmax.f32 %v3322, %v3370
        %v3395 = vrot.slane %v3347, 1
        %v3396 = vrot.slane %v3348, 1
        %v3397 = vrot.slane %v3349, 1
        %v3398 = vrot.slane %v3350, 1
        %v3399 = vrot.slane %v3351, 1
        %v3400 = vrot.slane %v3352, 1
        %v3401 = vrot.slane %v3353, 1
        %v3402 = vrot.slane %v3354, 1
        %v3411 = vrot.slane %v3347, 2
        %v3412 = vrot.slane %v3348, 2
        %v3413 = vrot.slane %v3349, 2
        %v3414 = vrot.slane %v3350, 2
        %v3415 = vrot.slane %v3351, 2
        %v3416 = vrot.slane %v3352, 2
        %v3417 = vrot.slane %v3353, 2
        %v3418 = vrot.slane %v3354, 2
        %v3427 = vrot.slane %v3347, 3
        %v3428 = vrot.slane %v3348, 3
        %v3429 = vrot.slane %v3349, 3
        %v3430 = vrot.slane %v3350, 3
        %v3431 = vrot.slane %v3351, 3
        %v3432 = vrot.slane %v3352, 3
        %v3433 = vrot.slane %v3353, 3
        %v3434 = vrot.slane %v3354, 3
        %v3451 = vrot.slane %v3379, 4
        %v3452 = vrot.slane %v3380, 4
        %v3453 = vrot.slane %v3381, 4
        %v3454 = vrot.slane %v3382, 4
        %v3455 = vrot.slane %v3383, 4
        %v3456 = vrot.slane %v3384, 4
        %v3457 = vrot.slane %v3385, 4
        %v3458 = vrot.slane %v3386, 4
        %v3467 = vrot.slane %v3379, 5
        %v3468 = vrot.slane %v3380, 5
        %v3469 = vrot.slane %v3381, 5
        %v3470 = vrot.slane %v3382, 5
        %v3471 = vrot.slane %v3383, 5
        %v3472 = vrot.slane %v3384, 5
        %v3473 = vrot.slane %v3385, 5
        %v3474 = vrot.slane %v3386, 5
        %v3483 = vrot.slane %v3379, 6
        %v3484 = vrot.slane %v3380, 6
        %v3485 = vrot.slane %v3381, 6
        %v3486 = vrot.slane %v3382, 6
        %v3487 = vrot.slane %v3383, 6
        %v3488 = vrot.slane %v3384, 6
        %v3489 = vrot.slane %v3385, 6
        %v3490 = vrot.slane %v3386, 6
        %v3499 = vrot.slane %v3379, 7
        %v3500 = vrot.slane %v3380, 7
        %v3501 = vrot.slane %v3381, 7
        %v3502 = vrot.slane %v3382, 7
        %v3503 = vrot.slane %v3383, 7
        %v3504 = vrot.slane %v3384, 7
        %v3505 = vrot.slane %v3385, 7
        %v3506 = vrot.slane %v3386, 7
        %vm3515 = vcmask 1040384
        %v3516 = vsel %vm3515, %v3347, %v3395
        %v3517 = vsel %vm3515, %v3348, %v3396
        %v3518 = vsel %vm3515, %v3349, %v3397
        %v3519 = vsel %vm3515, %v3350, %v3398
        %v3520 = vsel %vm3515, %v3351, %v3399
        %v3521 = vsel %vm3515, %v3352, %v3400
        %v3522 = vsel %vm3515, %v3353, %v3401
        %v3523 = vsel %vm3515, %v3354, %v3402
        %vm3524 = vcmask 1041408
        %v3525 = vsel %vm3524, %v3516, %v3411
        %v3526 = vsel %vm3524, %v3517, %v3412
        %v3527 = vsel %vm3524, %v3518, %v3413
        %v3528 = vsel %vm3524, %v3519, %v3414
        %v3529 = vsel %vm3524, %v3520, %v3415
        %v3530 = vsel %vm3524, %v3521, %v3416
        %v3531 = vsel %vm3524, %v3522, %v3417
        %v3532 = vsel %vm3524, %v3523, %v3418
        %vm3533 = vcmask 1042432
        %v3534 = vsel %vm3533, %v3525, %v3427
        %v3535 = vsel %vm3533, %v3526, %v3428
        %v3536 = vsel %vm3533, %v3527, %v3429
        %v3537 = vsel %vm3533, %v3528, %v3430
        %v3538 = vsel %vm3533, %v3529, %v3431
        %v3539 = vsel %vm3533, %v3530, %v3432
        %v3540 = vsel %vm3533, %v3531, %v3433
        %v3541 = vsel %vm3533, %v3532, %v3434
        %vm3542 = vcmask 1043456
        %v3543 = vsel %vm3542, %v3534, %v3451
        %v3544 = vsel %vm3542, %v3535, %v3452
        %v3545 = vsel %vm3542, %v3536, %v3453
        %v3546 = vsel %vm3542, %v3537, %v3454
        %v3547 = vsel %vm3542, %v3538, %v3455
        %v3548 = vsel %vm3542, %v3539, %v3456
        %v3549 = vsel %vm3542, %v3540, %v3457
        %v3550 = vsel %vm3542, %v3541, %v3458
        %vm3551 = vcmask 1044480
        %v3552 = vsel %vm3551, %v3543, %v3467
        %v3553 = vsel %vm3551, %v3544, %v3468
        %v3554 = vsel %vm3551, %v3545, %v3469
        %v3555 = vsel %vm3551, %v3546, %v3470
        %v3556 = vsel %vm3551, %v3547, %v3471
        %v3557 = vsel %vm3551, %v3548, %v3472
        %v3558 = vsel %vm3551, %v3549, %v3473
        %v3559 = vsel %vm3551, %v3550, %v3474
        %vm3560 = vcmask 1045504
        %v3561 = vsel %vm3560, %v3552, %v3483
        %v3562 = vsel %vm3560, %v3553, %v3484
        %v3563 = vsel %vm3560, %v3554, %v3485
        %v3564 = vsel %vm3560, %v3555, %v3486
        %v3565 = vsel %vm3560, %v3556, %v3487
        %v3566 = vsel %vm3560, %v3557, %v3488
        %v3567 = vsel %vm3560, %v3558, %v3489
        %v3568 = vsel %vm3560, %v3559, %v3490
        %vm3569 = vcmask 1046528
        %v3570 = vsel %vm3569, %v3561, %v3499
        %v3571 = vsel %vm3569, %v3562, %v3500
        %v3572 = vsel %vm3569, %v3563, %v3501
        %v3573 = vsel %vm3569, %v3564, %v3502
        %v3574 = vsel %vm3569, %v3565, %v3503
        %v3575 = vsel %vm3569, %v3566, %v3504
        %v3576 = vsel %vm3569, %v3567, %v3505
        %v3577 = vsel %vm3569, %v3568, %v3506
        %3578 = vst [vmem:[#allocation2] sm:$0xff] 0.0
        %3579 = vst [vmem:[#allocation2 + $0x8] sm:$0x3] 0.0
        %3580 = vst [vmem:[#allocation2 + $0x18] sm:$0xff] 0.0
        %3581 = vst [vmem:[#allocation2 + $0x20] sm:$0x3] 0.0
        %3582 = vst [vmem:[#allocation2 + $0x30] sm:$0xff] 0.0
        %3583 = vst [vmem:[#allocation2 + $0x38] sm:$0x3] 0.0
        %3584 = vst [vmem:[#allocation2 + $0x48] sm:$0xff] 0.0
        %3585 = vst [vmem:[#allocation2 + $0x50] sm:$0x3] 0.0
        %3586 = vst [vmem:[#allocation2 + $0x60] sm:$0xff] 0.0
        %3587 = vst [vmem:[#allocation2 + $0x68] sm:$0x3] 0.0
        %3588 = vst [vmem:[#allocation2 + $0x78] sm:$0xff] 0.0
        %3589 = vst [vmem:[#allocation2 + $0x80] sm:$0x3] 0.0
        %3590 = vst [vmem:[#allocation2 + $0x90] sm:$0xff] 0.0
        %3591 = vst [vmem:[#allocation2 + $0x98] sm:$0x3] 0.0
        %3592 = vst [vmem:[#allocation2 + $0xa8] sm:$0xff] 0.0
        %3593 = vst [vmem:[#allocation2 + $0xb0] sm:$0x3] 0.0
        %3594 = vst [vmem:[#allocation2 + $0xc0] sm:$0xff] 0.0
        %3595 = vst [vmem:[#allocation2 + $0xc8] sm:$0x3] 0.0
        %3596 = vst [vmem:[#allocation2 + $0xd8] sm:$0xff] 0.0
        %3597 = vst [vmem:[#allocation2 + $0xe0] sm:$0x3] 0.0
        %3598 = vst [vmem:[%s513 + $0x1] sm:$0xff] %v3570
        %3599 = vst [vmem:[%s513 + $0x19] sm:$0xff] %v3571
        %3600 = vst [vmem:[%s513 + $0x31] sm:$0xff] %v3572
        %3601 = vst [vmem:[%s513 + $0x49] sm:$0xff] %v3573
        %3602 = vst [vmem:[%s513 + $0x61] sm:$0xff] %v3574
        %3603 = vst [vmem:[%s513 + $0x79] sm:$0xff] %v3575
        %3604 = vst [vmem:[%s513 + $0x91] sm:$0xff] %v3576
        %3605 = vst [vmem:[%s513 + $0xa9] sm:$0xff] %v3577
        %v3606 = vld [vmem:[#allocation2] sm:$0xff]
        %v3607 = vld [vmem:[#allocation2 + $0x18] sm:$0xff]
        %v3608 = vld [vmem:[#allocation2 + $0x30] sm:$0xff]
        %v3609 = vld [vmem:[#allocation2 + $0x48] sm:$0xff]
        %v3610 = vld [vmem:[#allocation2 + $0x60] sm:$0xff]
        %v3611 = vld [vmem:[#allocation2 + $0x78] sm:$0xff]
        %v3612 = vld [vmem:[#allocation2 + $0x90] sm:$0xff]
        %v3613 = vld [vmem:[#allocation2 + $0xa8] sm:$0xff]
        %v3614 = vpack.c.bf16 %v3607, %v3606
        %v3615 = vpack.c.bf16 %v3609, %v3608
        %v3616 = vpack.c.bf16 %v3611, %v3610
        %v3617 = vpack.c.bf16 %v3613, %v3612
        %s3618 = scalar_lea.vmem [#allocation3], 576
        %v3619 = vld [vmem:[%s3618] sm:$0xf]
        %v3620 = vld [vmem:[%s3618 + $0x4] sm:$0xf]
        %v3621 = vld [vmem:[%s3618 + $0x8] sm:$0xf]
        %v3622 = vld [vmem:[%s3618 + $0xc] sm:$0xf]
        %v3623 = vld [vmem:[%s3618 + $0x10] sm:$0xf]
        %v3624 = vld [vmem:[%s3618 + $0x14] sm:$0xf]
        %v3625 = vld [vmem:[%s3618 + $0x18] sm:$0xf]
        %v3626 = vld [vmem:[%s3618 + $0x1c] sm:$0xf]
        %v3627 = vld [vmem:[%s3618 + $0x20] sm:$0xf]
        %v3628 = vld [vmem:[%s3618 + $0x24] sm:$0xf]
        %v3629 = vld [vmem:[%s3618 + $0x28] sm:$0xf]
        %v3630 = vld [vmem:[%s3618 + $0x2c] sm:$0xf]
        %v3631 = vld [vmem:[%s3618 + $0x30] sm:$0xf]
        %v3632 = vld [vmem:[%s3618 + $0x34] sm:$0xf]
        %v3633 = vld [vmem:[%s3618 + $0x38] sm:$0xf]
        %v3634 = vld [vmem:[%s3618 + $0x3c] sm:$0xf]
        %v3635 = vld [vmem:[#allocation2 + $0x1] sm:$0xff]
        %v3636 = vld [vmem:[#allocation2 + $0x19] sm:$0xff]
        %v3637 = vld [vmem:[#allocation2 + $0x31] sm:$0xff]
        %v3638 = vld [vmem:[#allocation2 + $0x49] sm:$0xff]
        %v3639 = vld [vmem:[#allocation2 + $0x61] sm:$0xff]
        %v3640 = vld [vmem:[#allocation2 + $0x79] sm:$0xff]
        %v3641 = vld [vmem:[#allocation2 + $0x91] sm:$0xff]
        %v3642 = vld [vmem:[#allocation2 + $0xa9] sm:$0xff]
        %v3643 = vpack.c.bf16 %v3636, %v3635
        %v3644 = vpack.c.bf16 %v3638, %v3637
        %v3645 = vpack.c.bf16 %v3640, %v3639
        %v3646 = vpack.c.bf16 %v3642, %v3641
        %s3647 = scalar_lea.vmem [#allocation3], 640
        %v3648 = vld [vmem:[%s3647] sm:$0xf]
        %v3649 = vld [vmem:[%s3647 + $0x4] sm:$0xf]
        %v3650 = vld [vmem:[%s3647 + $0x8] sm:$0xf]
        %v3651 = vld [vmem:[%s3647 + $0xc] sm:$0xf]
        %v3652 = vld [vmem:[%s3647 + $0x10] sm:$0xf]
        %v3653 = vld [vmem:[%s3647 + $0x14] sm:$0xf]
        %v3654 = vld [vmem:[%s3647 + $0x18] sm:$0xf]
        %v3655 = vld [vmem:[%s3647 + $0x1c] sm:$0xf]
        %v3656 = vld [vmem:[%s3647 + $0x20] sm:$0xf]
        %v3657 = vld [vmem:[%s3647 + $0x24] sm:$0xf]
        %v3658 = vld [vmem:[%s3647 + $0x28] sm:$0xf]
        %v3659 = vld [vmem:[%s3647 + $0x2c] sm:$0xf]
        %v3660 = vld [vmem:[%s3647 + $0x30] sm:$0xf]
        %v3661 = vld [vmem:[%s3647 + $0x34] sm:$0xf]
        %v3662 = vld [vmem:[%s3647 + $0x38] sm:$0xf]
        %v3663 = vld [vmem:[%s3647 + $0x3c] sm:$0xf]
        %v3680 = vunpack.c.l.b16 %v3648
        %v3681 = vunpack.c.l.b16 %v3649
        %v3682 = vunpack.c.l.b16 %v3650
        %v3683 = vunpack.c.l.b16 %v3651
        %v3684 = vunpack.c.l.b16 %v3652
        %v3685 = vunpack.c.l.b16 %v3653
        %v3686 = vunpack.c.l.b16 %v3654
        %v3687 = vunpack.c.l.b16 %v3655
        %v3688 = vunpack.c.l.b16 %v3656
        %v3689 = vunpack.c.l.b16 %v3657
        %v3690 = vunpack.c.l.b16 %v3658
        %v3691 = vunpack.c.l.b16 %v3659
        %v3692 = vunpack.c.l.b16 %v3660
        %v3693 = vunpack.c.l.b16 %v3661
        %v3694 = vunpack.c.l.b16 %v3662
        %v3695 = vunpack.c.l.b16 %v3663
        %v3696 = vpack.c.b16 %v3681, %v3680
        %v3697 = vpack.c.b16 %v3683, %v3682
        %v3698 = vpack.c.b16 %v3685, %v3684
        %v3699 = vpack.c.b16 %v3687, %v3686
        %v3700 = vpack.c.b16 %v3689, %v3688
        %v3701 = vpack.c.b16 %v3691, %v3690
        %v3702 = vpack.c.b16 %v3693, %v3692
        %v3703 = vpack.c.b16 %v3695, %v3694
        %3712 = vmatprep.subr.bf16.mxu0 0
        %3713 = vmatpush1.bf16.msra.mxu0 %v3696
        %3714 = vmatprep.subr.bf16.mxu0 0
        %3715 = vmatpush1.bf16.msra.mxu0 %v3697
        %3716 = vmatprep.subr.bf16.mxu0 0
        %3717 = vmatpush1.bf16.msra.mxu0 %v3698
        %3718 = vmatprep.subr.bf16.mxu0 0
        %3719 = vmatpush1.bf16.msra.mxu0 %v3699
        %3720 = vmatprep.subr.bf16.mxu0 0
        %3721 = vmatpush1.bf16.msra.mxu0 %v3700
        %3722 = vmatprep.subr.bf16.mxu0 0
        %3723 = vmatpush1.bf16.msra.mxu0 %v3701
        %3724 = vmatprep.subr.bf16.mxu0 0
        %3725 = vmatpush1.bf16.msra.mxu0 %v3702
        %3726 = vmatprep.subr.bf16.mxu0 0
        %3727 = vmatpush1.bf16.msra.mxu0 %v3703
        %3728 = vmatprep.subr.bf16.mxu0 0
        %3729 = vmatpush1.bf16.msra.mxu0 0
        %3730 = vmatprep.subr.bf16.mxu0 0
        %3731 = vmatpush1.bf16.msra.mxu0 0
        %3732 = vmatprep.subr.bf16.mxu0 0
        %3733 = vmatpush1.bf16.msra.mxu0 0
        %3734 = vmatprep.subr.bf16.mxu0 0
        %3735 = vmatpush1.bf16.msra.mxu0 0
        %3736 = vmatprep.subr.bf16.mxu0 0
        %3737 = vmatpush1.bf16.msra.mxu0 0
        %3738 = vmatprep.subr.bf16.mxu0 0
        %3739 = vmatpush1.bf16.msra.mxu0 0
        %3740 = vmatprep.subr.bf16.mxu0 0
        %3741 = vmatpush1.bf16.msra.mxu0 0
        %3742 = vmatprep.subr.bf16.mxu0 0
        %3743 = vmatpush1.bf16.msra.mxu0 0
        %3744 = vmatprep.mubr.bf16.mxu0 0
        %3745 = vmatmul.mubr.bf16.gmra.mrb[0].mxu0 %v3643
        %v3746 = vpop.f32.mrb[0].mxu0
        %v3747 = vadd.f32 0.0, %v3746
        %v3748 = vpop.f32.mrb[0].mxu0
        %v3749 = vpop.f32.mrb[0].mxu0
        %v3750 = vadd.f32 0.0, %v3749
        %v3751 = vpop.f32.mrb[0].mxu0
        %3752 = vmatprep.mubr.bf16.mxu0 0
        %3753 = vmatmul.mubr.bf16.gmra.mrb[0].mxu0 %v3644
        %v3754 = vpop.f32.mrb[0].mxu0
        %v3755 = vadd.f32 0.0, %v3754
        %v3756 = vpop.f32.mrb[0].mxu0
        %v3757 = vpop.f32.mrb[0].mxu0
        %v3758 = vadd.f32 0.0, %v3757
        %v3759 = vpop.f32.mrb[0].mxu0
        %3760 = vmatprep.mubr.bf16.mxu0 0
        %3761 = vmatmul.mubr.bf16.gmra.mrb[0].mxu0 %v3645
        %v3762 = vpop.f32.mrb[0].mxu0
        %v3763 = vadd.f32 0.0, %v3762
        %v3764 = vpop.f32.mrb[0].mxu0
        %v3765 = vpop.f32.mrb[0].mxu0
        %v3766 = vadd.f32 0.0, %v3765
        %v3767 = vpop.f32.mrb[0].mxu0
        %3768 = vmatprep.mubr.bf16.mxu0 0
        %3769 = vmatmul.mubr.bf16.gmra.mrb[0].mxu0 %v3646
        %v3770 = vpop.f32.mrb[0].mxu0
        %v3771 = vadd.f32 0.0, %v3770
        %v3772 = vpop.f32.mrb[0].mxu0
        %v3773 = vpop.f32.mrb[0].mxu0
        %v3774 = vadd.f32 0.0, %v3773
        %v3775 = vpop.f32.mrb[0].mxu0
        %3776 = vdwg.mxu0
        %v3793 = vunpack.c.l.b16 %v3619
        %v3794 = vunpack.c.l.b16 %v3620
        %v3795 = vunpack.c.l.b16 %v3621
        %v3796 = vunpack.c.l.b16 %v3622
        %v3797 = vunpack.c.l.b16 %v3623
        %v3798 = vunpack.c.l.b16 %v3624
        %v3799 = vunpack.c.l.b16 %v3625
        %v3800 = vunpack.c.l.b16 %v3626
        %v3801 = vunpack.c.l.b16 %v3627
        %v3802 = vunpack.c.l.b16 %v3628
        %v3803 = vunpack.c.l.b16 %v3629
        %v3804 = vunpack.c.l.b16 %v3630
        %v3805 = vunpack.c.l.b16 %v3631
        %v3806 = vunpack.c.l.b16 %v3632
        %v3807 = vunpack.c.l.b16 %v3633
        %v3808 = vunpack.c.l.b16 %v3634
        %v3809 = vpack.c.b16 %v3794, %v3793
        %v3810 = vpack.c.b16 %v3796, %v3795
        %v3811 = vpack.c.b16 %v3798, %v3797
        %v3812 = vpack.c.b16 %v3800, %v3799
        %v3813 = vpack.c.b16 %v3802, %v3801
        %v3814 = vpack.c.b16 %v3804, %v3803
        %v3815 = vpack.c.b16 %v3806, %v3805
        %v3816 = vpack.c.b16 %v3808, %v3807
        %3825 = vmatprep.subr.bf16.mxu0 0
        %3826 = vmatpush1.bf16.msra.mxu0 %v3809
        %3827 = vmatprep.subr.bf16.mxu0 0
        %3828 = vmatpush1.bf16.msra.mxu0 %v3810
        %3829 = vmatprep.subr.bf16.mxu0 0
        %3830 = vmatpush1.bf16.msra.mxu0 %v3811
        %3831 = vmatprep.subr.bf16.mxu0 0
        %3832 = vmatpush1.bf16.msra.mxu0 %v3812
        %3833 = vmatprep.subr.bf16.mxu0 0
        %3834 = vmatpush1.bf16.msra.mxu0 %v3813
        %3835 = vmatprep.subr.bf16.mxu0 0
        %3836 = vmatpush1.bf16.msra.mxu0 %v3814
        %3837 = vmatprep.subr.bf16.mxu0 0
        %3838 = vmatpush1.bf16.msra.mxu0 %v3815
        %3839 = vmatprep.subr.bf16.mxu0 0
        %3840 = vmatpush1.bf16.msra.mxu0 %v3816
        %3841 = vmatprep.subr.bf16.mxu0 0
        %3842 = vmatpush1.bf16.msra.mxu0 0
        %3843 = vmatprep.subr.bf16.mxu0 0
        %3844 = vmatpush1.bf16.msra.mxu0 0
        %3845 = vmatprep.subr.bf16.mxu0 0
        %3846 = vmatpush1.bf16.msra.mxu0 0
        %3847 = vmatprep.subr.bf16.mxu0 0
        %3848 = vmatpush1.bf16.msra.mxu0 0
        %3849 = vmatprep.subr.bf16.mxu0 0
        %3850 = vmatpush1.bf16.msra.mxu0 0
        %3851 = vmatprep.subr.bf16.mxu0 0
        %3852 = vmatpush1.bf16.msra.mxu0 0
        %3853 = vmatprep.subr.bf16.mxu0 0
        %3854 = vmatpush1.bf16.msra.mxu0 0
        %3855 = vmatprep.subr.bf16.mxu0 0
        %3856 = vmatpush1.bf16.msra.mxu0 0
        %3857 = vmatprep.mubr.bf16.mxu0 0
        %3858 = vmatmul.mubr.bf16.gmra.mrb[0].mxu0 %v3614
        %v3859 = vpop.f32.mrb[0].mxu0
        %v3860 = vadd.f32 %v3747, %v3859
        %v3861 = vpop.f32.mrb[0].mxu0
        %v3862 = vpop.f32.mrb[0].mxu0
        %v3863 = vadd.f32 %v3750, %v3862
        %v3864 = vpop.f32.mrb[0].mxu0
        %3865 = vmatprep.mubr.bf16.mxu0 0
        %3866 = vmatmul.mubr.bf16.gmra.mrb[0].mxu0 %v3615
        %v3867 = vpop.f32.mrb[0].mxu0
        %v3868 = vadd.f32 %v3755, %v3867
        %v3869 = vpop.f32.mrb[0].mxu0
        %v3870 = vpop.f32.mrb[0].mxu0
        %v3871 = vadd.f32 %v3758, %v3870
        %v3872 = vpop.f32.mrb[0].mxu0
        %3873 = vmatprep.mubr.bf16.mxu0 0
        %3874 = vmatmul.mubr.bf16.gmra.mrb[0].mxu0 %v3616
        %v3875 = vpop.f32.mrb[0].mxu0
        %v3876 = vadd.f32 %v3763, %v3875
        %v3877 = vpop.f32.mrb[0].mxu0
        %v3878 = vpop.f32.mrb[0].mxu0
        %v3879 = vadd.f32 %v3766, %v3878
        %v3880 = vpop.f32.mrb[0].mxu0
        %3881 = vmatprep.mubr.bf16.mxu0 0
        %3882 = vmatmul.mubr.bf16.gmra.mrb[0].mxu0 %v3617
        %v3883 = vpop.f32.mrb[0].mxu0
        %v3884 = vadd.f32 %v3771, %v3883
        %v3885 = vpop.f32.mrb[0].mxu0
        %v3886 = vpop.f32.mrb[0].mxu0
        %v3887 = vadd.f32 %v3774, %v3886
        %v3888 = vpop.f32.mrb[0].mxu0
        %3889 = vdwg.mxu0
        %v3890 = vld [vmem:[#allocation2 + $0x2] sm:$0xff]
        %v3891 = vld [vmem:[#allocation2 + $0x1a] sm:$0xff]
        %v3892 = vld [vmem:[#allocation2 + $0x32] sm:$0xff]
        %v3893 = vld [vmem:[#allocation2 + $0x4a] sm:$0xff]
        %v3894 = vld [vmem:[#allocation2 + $0x62] sm:$0xff]
        %v3895 = vld [vmem:[#allocation2 + $0x7a] sm:$0xff]
        %v3896 = vld [vmem:[#allocation2 + $0x92] sm:$0xff]
        %v3897 = vld [vmem:[#allocation2 + $0xaa] sm:$0xff]
        %v3898 = vpack.c.bf16 %v3891, %v3890
        %v3899 = vpack.c.bf16 %v3893, %v3892
        %v3900 = vpack.c.bf16 %v3895, %v3894
        %v3901 = vpack.c.bf16 %v3897, %v3896
        %s3902 = scalar_lea.vmem [#allocation3], 704
        %v3903 = vld [vmem:[%s3902] sm:$0xf]
        %v3904 = vld [vmem:[%s3902 + $0x4] sm:$0xf]
        %v3905 = vld [vmem:[%s3902 + $0x8] sm:$0xf]
        %v3906 = vld [vmem:[%s3902 + $0xc] sm:$0xf]
        %v3907 = vld [vmem:[%s3902 + $0x10] sm:$0xf]
        %v3908 = vld [vmem:[%s3902 + $0x14] sm:$0xf]
        %v3909 = vld [vmem:[%s3902 + $0x18] sm:$0xf]
        %v3910 = vld [vmem:[%s3902 + $0x1c] sm:$0xf]
        %v3911 = vld [vmem:[%s3902 + $0x20] sm:$0xf]
        %v3912 = vld [vmem:[%s3902 + $0x24] sm:$0xf]
        %v3913 = vld [vmem:[%s3902 + $0x28] sm:$0xf]
        %v3914 = vld [vmem:[%s3902 + $0x2c] sm:$0xf]
        %v3915 = vld [vmem:[%s3902 + $0x30] sm:$0xf]
        %v3916 = vld [vmem:[%s3902 + $0x34] sm:$0xf]
        %v3917 = vld [vmem:[%s3902 + $0x38] sm:$0xf]
        %v3918 = vld [vmem:[%s3902 + $0x3c] sm:$0xf]
        %v3935 = vunpack.c.l.b16 %v3903
        %v3936 = vunpack.c.l.b16 %v3904
        %v3937 = vunpack.c.l.b16 %v3905
        %v3938 = vunpack.c.l.b16 %v3906
        %v3939 = vunpack.c.l.b16 %v3907
        %v3940 = vunpack.c.l.b16 %v3908
        %v3941 = vunpack.c.l.b16 %v3909
        %v3942 = vunpack.c.l.b16 %v3910
        %v3943 = vunpack.c.l.b16 %v3911
        %v3944 = vunpack.c.l.b16 %v3912
        %v3945 = vunpack.c.l.b16 %v3913
        %v3946 = vunpack.c.l.b16 %v3914
        %v3947 = vunpack.c.l.b16 %v3915
        %v3948 = vunpack.c.l.b16 %v3916
        %v3949 = vunpack.c.l.b16 %v3917
        %v3950 = vunpack.c.l.b16 %v3918
        %v3951 = vpack.c.b16 %v3936, %v3935
        %v3952 = vpack.c.b16 %v3938, %v3937
        %v3953 = vpack.c.b16 %v3940, %v3939
        %v3954 = vpack.c.b16 %v3942, %v3941
        %v3955 = vpack.c.b16 %v3944, %v3943
        %v3956 = vpack.c.b16 %v3946, %v3945
        %v3957 = vpack.c.b16 %v3948, %v3947
        %v3958 = vpack.c.b16 %v3950, %v3949
        %3967 = vmatprep.subr.bf16.mxu0 0
        %3968 = vmatpush1.bf16.msra.mxu0 %v3951
        %3969 = vmatprep.subr.bf16.mxu0 0
        %3970 = vmatpush1.bf16.msra.mxu0 %v3952
        %3971 = vmatprep.subr.bf16.mxu0 0
        %3972 = vmatpush1.bf16.msra.mxu0 %v3953
        %3973 = vmatprep.subr.bf16.mxu0 0
        %3974 = vmatpush1.bf16.msra.mxu0 %v3954
        %3975 = vmatprep.subr.bf16.mxu0 0
        %3976 = vmatpush1.bf16.msra.mxu0 %v3955
        %3977 = vmatprep.subr.bf16.mxu0 0
        %3978 = vmatpush1.bf16.msra.mxu0 %v3956
        %3979 = vmatprep.subr.bf16.mxu0 0
        %3980 = vmatpush1.bf16.msra.mxu0 %v3957
        %3981 = vmatprep.subr.bf16.mxu0 0
        %3982 = vmatpush1.bf16.msra.mxu0 %v3958
        %3983 = vmatprep.subr.bf16.mxu0 0
        %3984 = vmatpush1.bf16.msra.mxu0 0
        %3985 = vmatprep.subr.bf16.mxu0 0
        %3986 = vmatpush1.bf16.msra.mxu0 0
        %3987 = vmatprep.subr.bf16.mxu0 0
        %3988 = vmatpush1.bf16.msra.mxu0 0
        %3989 = vmatprep.subr.bf16.mxu0 0
        %3990 = vmatpush1.bf16.msra.mxu0 0
        %3991 = vmatprep.subr.bf16.mxu0 0
        %3992 = vmatpush1.bf16.msra.mxu0 0
        %3993 = vmatprep.subr.bf16.mxu0 0
        %3994 = vmatpush1.bf16.msra.mxu0 0
        %3995 = vmatprep.subr.bf16.mxu0 0
        %3996 = vmatpush1.bf16.msra.mxu0 0
        %3997 = vmatprep.subr.bf16.mxu0 0
        %3998 = vmatpush1.bf16.msra.mxu0 0
        %3999 = vmatprep.mubr.bf16.mxu0 0
        %4000 = vmatmul.mubr.bf16.gmra.mrb[0].mxu0 %v3898
        %v4001 = vpop.f32.mrb[0].mxu0
        %v4002 = vadd.f32 0.0, %v4001
        %v4003 = vpop.f32.mrb[0].mxu0
        %v4004 = vpop.f32.mrb[0].mxu0
        %v4005 = vadd.f32 0.0, %v4004
        %v4006 = vpop.f32.mrb[0].mxu0
        %4007 = vmatprep.mubr.bf16.mxu0 0
        %4008 = vmatmul.mubr.bf16.gmra.mrb[0].mxu0 %v3899
        %v4009 = vpop.f32.mrb[0].mxu0
        %v4010 = vadd.f32 0.0, %v4009
        %v4011 = vpop.f32.mrb[0].mxu0
        %v4012 = vpop.f32.mrb[0].mxu0
        %v4013 = vadd.f32 0.0, %v4012
        %v4014 = vpop.f32.mrb[0].mxu0
        %4015 = vmatprep.mubr.bf16.mxu0 0
        %4016 = vmatmul.mubr.bf16.gmra.mrb[0].mxu0 %v3900
        %v4017 = vpop.f32.mrb[0].mxu0
        %v4018 = vadd.f32 0.0, %v4017
        %v4019 = vpop.f32.mrb[0].mxu0
        %v4020 = vpop.f32.mrb[0].mxu0
        %v4021 = vadd.f32 0.0, %v4020
        %v4022 = vpop.f32.mrb[0].mxu0
        %4023 = vmatprep.mubr.bf16.mxu0 0
        %4024 = vmatmul.mubr.bf16.gmra.mrb[0].mxu0 %v3901
        %v4025 = vpop.f32.mrb[0].mxu0
        %v4026 = vadd.f32 0.0, %v4025
        %v4027 = vpop.f32.mrb[0].mxu0
        %v4028 = vpop.f32.mrb[0].mxu0
        %v4029 = vadd.f32 0.0, %v4028
        %v4030 = vpop.f32.mrb[0].mxu0
        %4031 = vdwg.mxu0
        %v4032 = vadd.f32 %v3860, %v4002
        %v4033 = vadd.f32 %v3863, %v4005
        %v4034 = vadd.f32 %v3868, %v4010
        %v4035 = vadd.f32 %v3871, %v4013
        %v4036 = vadd.f32 %v3876, %v4018
        %v4037 = vadd.f32 %v3879, %v4021
        %v4038 = vadd.f32 %v3884, %v4026
        %v4039 = vadd.f32 %v3887, %v4029
        %v4040 = vld [vmem:[%s513] sm:$0xff]
        %v4041 = vld [vmem:[%s513 + $0x18] sm:$0xff]
        %v4042 = vld [vmem:[%s513 + $0x30] sm:$0xff]
        %v4043 = vld [vmem:[%s513 + $0x48] sm:$0xff]
        %v4044 = vld [vmem:[%s513 + $0x60] sm:$0xff]
        %v4045 = vld [vmem:[%s513 + $0x78] sm:$0xff]
        %v4046 = vld [vmem:[%s513 + $0x90] sm:$0xff]
        %v4047 = vld [vmem:[%s513 + $0xa8] sm:$0xff]
        %v4048 = vpack.c.bf16 %v4041, %v4040
        %v4049 = vpack.c.bf16 %v4043, %v4042
        %v4050 = vpack.c.bf16 %v4045, %v4044
        %v4051 = vpack.c.bf16 %v4047, %v4046
        %s4052 = scalar_lea.vmem [#allocation3], 768
        %v4053 = vld [vmem:[%s4052] sm:$0xf]
        %v4054 = vld [vmem:[%s4052 + $0x4] sm:$0xf]
        %v4055 = vld [vmem:[%s4052 + $0x8] sm:$0xf]
        %v4056 = vld [vmem:[%s4052 + $0xc] sm:$0xf]
        %v4057 = vld [vmem:[%s4052 + $0x10] sm:$0xf]
        %v4058 = vld [vmem:[%s4052 + $0x14] sm:$0xf]
        %v4059 = vld [vmem:[%s4052 + $0x18] sm:$0xf]
        %v4060 = vld [vmem:[%s4052 + $0x1c] sm:$0xf]
        %v4061 = vld [vmem:[%s4052 + $0x20] sm:$0xf]
        %v4062 = vld [vmem:[%s4052 + $0x24] sm:$0xf]
        %v4063 = vld [vmem:[%s4052 + $0x28] sm:$0xf]
        %v4064 = vld [vmem:[%s4052 + $0x2c] sm:$0xf]
        %v4065 = vld [vmem:[%s4052 + $0x30] sm:$0xf]
        %v4066 = vld [vmem:[%s4052 + $0x34] sm:$0xf]
        %v4067 = vld [vmem:[%s4052 + $0x38] sm:$0xf]
        %v4068 = vld [vmem:[%s4052 + $0x3c] sm:$0xf]
        %v4085 = vunpack.c.l.b16 %v4053
        %v4086 = vunpack.c.l.b16 %v4054
        %v4087 = vunpack.c.l.b16 %v4055
        %v4088 = vunpack.c.l.b16 %v4056
        %v4089 = vunpack.c.l.b16 %v4057
        %v4090 = vunpack.c.l.b16 %v4058
        %v4091 = vunpack.c.l.b16 %v4059
        %v4092 = vunpack.c.l.b16 %v4060
        %v4093 = vunpack.c.l.b16 %v4061
        %v4094 = vunpack.c.l.b16 %v4062
        %v4095 = vunpack.c.l.b16 %v4063
        %v4096 = vunpack.c.l.b16 %v4064
        %v4097 = vunpack.c.l.b16 %v4065
        %v4098 = vunpack.c.l.b16 %v4066
        %v4099 = vunpack.c.l.b16 %v4067
        %v4100 = vunpack.c.l.b16 %v4068
        %v4101 = vpack.c.b16 %v4086, %v4085
        %v4102 = vpack.c.b16 %v4088, %v4087
        %v4103 = vpack.c.b16 %v4090, %v4089
        %v4104 = vpack.c.b16 %v4092, %v4091
        %v4105 = vpack.c.b16 %v4094, %v4093
        %v4106 = vpack.c.b16 %v4096, %v4095
        %v4107 = vpack.c.b16 %v4098, %v4097
        %v4108 = vpack.c.b16 %v4100, %v4099
        %4117 = vmatprep.subr.bf16.mxu0 0
        %4118 = vmatpush1.bf16.msra.mxu0 %v4101
        %4119 = vmatprep.subr.bf16.mxu0 0
        %4120 = vmatpush1.bf16.msra.mxu0 %v4102
        %4121 = vmatprep.subr.bf16.mxu0 0
        %4122 = vmatpush1.bf16.msra.mxu0 %v4103
        %4123 = vmatprep.subr.bf16.mxu0 0
        %4124 = vmatpush1.bf16.msra.mxu0 %v4104
        %4125 = vmatprep.subr.bf16.mxu0 0
        %4126 = vmatpush1.bf16.msra.mxu0 %v4105
        %4127 = vmatprep.subr.bf16.mxu0 0
        %4128 = vmatpush1.bf16.msra.mxu0 %v4106
        %4129 = vmatprep.subr.bf16.mxu0 0
        %4130 = vmatpush1.bf16.msra.mxu0 %v4107
        %4131 = vmatprep.subr.bf16.mxu0 0
        %4132 = vmatpush1.bf16.msra.mxu0 %v4108
        %4133 = vmatprep.subr.bf16.mxu0 0
        %4134 = vmatpush1.bf16.msra.mxu0 0
        %4135 = vmatprep.subr.bf16.mxu0 0
        %4136 = vmatpush1.bf16.msra.mxu0 0
        %4137 = vmatprep.subr.bf16.mxu0 0
        %4138 = vmatpush1.bf16.msra.mxu0 0
        %4139 = vmatprep.subr.bf16.mxu0 0
        %4140 = vmatpush1.bf16.msra.mxu0 0
        %4141 = vmatprep.subr.bf16.mxu0 0
        %4142 = vmatpush1.bf16.msra.mxu0 0
        %4143 = vmatprep.subr.bf16.mxu0 0
        %4144 = vmatpush1.bf16.msra.mxu0 0
        %4145 = vmatprep.subr.bf16.mxu0 0
        %4146 = vmatpush1.bf16.msra.mxu0 0
        %4147 = vmatprep.subr.bf16.mxu0 0
        %4148 = vmatpush1.bf16.msra.mxu0 0
        %4149 = vmatprep.mubr.bf16.mxu0 0
        %4150 = vmatmul.mubr.bf16.gmra.mrb[0].mxu0 %v4048
        %v4151 = vpop.f32.mrb[0].mxu0
        %v4152 = vadd.f32 0.0, %v4151
        %v4153 = vpop.f32.mrb[0].mxu0
        %v4154 = vpop.f32.mrb[0].mxu0
        %v4155 = vadd.f32 0.0, %v4154
        %v4156 = vpop.f32.mrb[0].mxu0
        %4157 = vmatprep.mubr.bf16.mxu0 0
        %4158 = vmatmul.mubr.bf16.gmra.mrb[0].mxu0 %v4049
        %v4159 = vpop.f32.mrb[0].mxu0
        %v4160 = vadd.f32 0.0, %v4159
        %v4161 = vpop.f32.mrb[0].mxu0
        %v4162 = vpop.f32.mrb[0].mxu0
        %v4163 = vadd.f32 0.0, %v4162
        %v4164 = vpop.f32.mrb[0].mxu0
        %4165 = vmatprep.mubr.bf16.mxu0 0
        %4166 = vmatmul.mubr.bf16.gmra.mrb[0].mxu0 %v4050
        %v4167 = vpop.f32.mrb[0].mxu0
        %v4168 = vadd.f32 0.0, %v4167
        %v4169 = vpop.f32.mrb[0].mxu0
        %v4170 = vpop.f32.mrb[0].mxu0
        %v4171 = vadd.f32 0.0, %v4170
        %v4172 = vpop.f32.mrb[0].mxu0
        %4173 = vmatprep.mubr.bf16.mxu0 0
        %4174 = vmatmul.mubr.bf16.gmra.mrb[0].mxu0 %v4051
        %v4175 = vpop.f32.mrb[0].mxu0
        %v4176 = vadd.f32 0.0, %v4175
        %v4177 = vpop.f32.mrb[0].mxu0
        %v4178 = vpop.f32.mrb[0].mxu0
        %v4179 = vadd.f32 0.0, %v4178
        %v4180 = vpop.f32.mrb[0].mxu0
        %4181 = vdwg.mxu0
        %v4182 = vadd.f32 %v4032, %v4152
        %v4183 = vadd.f32 %v4033, %v4155
        %v4184 = vadd.f32 %v4034, %v4160
        %v4185 = vadd.f32 %v4035, %v4163
        %v4186 = vadd.f32 %v4036, %v4168
        %v4187 = vadd.f32 %v4037, %v4171
        %v4188 = vadd.f32 %v4038, %v4176
        %v4189 = vadd.f32 %v4039, %v4179
        %v4190 = vld [vmem:[%s513 + $0x1] sm:$0xff]
        %v4191 = vld [vmem:[%s513 + $0x19] sm:$0xff]
        %v4192 = vld [vmem:[%s513 + $0x31] sm:$0xff]
        %v4193 = vld [vmem:[%s513 + $0x49] sm:$0xff]
        %v4194 = vld [vmem:[%s513 + $0x61] sm:$0xff]
        %v4195 = vld [vmem:[%s513 + $0x79] sm:$0xff]
        %v4196 = vld [vmem:[%s513 + $0x91] sm:$0xff]
        %v4197 = vld [vmem:[%s513 + $0xa9] sm:$0xff]
        %v4198 = vpack.c.bf16 %v4191, %v4190
        %v4199 = vpack.c.bf16 %v4193, %v4192
        %v4200 = vpack.c.bf16 %v4195, %v4194
        %v4201 = vpack.c.bf16 %v4197, %v4196
        %s4202 = scalar_lea.vmem [#allocation3], 832
        %v4203 = vld [vmem:[%s4202] sm:$0xf]
        %v4204 = vld [vmem:[%s4202 + $0x4] sm:$0xf]
        %v4205 = vld [vmem:[%s4202 + $0x8] sm:$0xf]
        %v4206 = vld [vmem:[%s4202 + $0xc] sm:$0xf]
        %v4207 = vld [vmem:[%s4202 + $0x10] sm:$0xf]
        %v4208 = vld [vmem:[%s4202 + $0x14] sm:$0xf]
        %v4209 = vld [vmem:[%s4202 + $0x18] sm:$0xf]
        %v4210 = vld [vmem:[%s4202 + $0x1c] sm:$0xf]
        %v4211 = vld [vmem:[%s4202 + $0x20] sm:$0xf]
        %v4212 = vld [vmem:[%s4202 + $0x24] sm:$0xf]
        %v4213 = vld [vmem:[%s4202 + $0x28] sm:$0xf]
        %v4214 = vld [vmem:[%s4202 + $0x2c] sm:$0xf]
        %v4215 = vld [vmem:[%s4202 + $0x30] sm:$0xf]
        %v4216 = vld [vmem:[%s4202 + $0x34] sm:$0xf]
        %v4217 = vld [vmem:[%s4202 + $0x38] sm:$0xf]
        %v4218 = vld [vmem:[%s4202 + $0x3c] sm:$0xf]
        %v4235 = vunpack.c.l.b16 %v4203
        %v4236 = vunpack.c.l.b16 %v4204
        %v4237 = vunpack.c.l.b16 %v4205
        %v4238 = vunpack.c.l.b16 %v4206
        %v4239 = vunpack.c.l.b16 %v4207
        %v4240 = vunpack.c.l.b16 %v4208
        %v4241 = vunpack.c.l.b16 %v4209
        %v4242 = vunpack.c.l.b16 %v4210
        %v4243 = vunpack.c.l.b16 %v4211
        %v4244 = vunpack.c.l.b16 %v4212
        %v4245 = vunpack.c.l.b16 %v4213
        %v4246 = vunpack.c.l.b16 %v4214
        %v4247 = vunpack.c.l.b16 %v4215
        %v4248 = vunpack.c.l.b16 %v4216
        %v4249 = vunpack.c.l.b16 %v4217
        %v4250 = vunpack.c.l.b16 %v4218
        %v4251 = vpack.c.b16 %v4236, %v4235
        %v4252 = vpack.c.b16 %v4238, %v4237
        %v4253 = vpack.c.b16 %v4240, %v4239
        %v4254 = vpack.c.b16 %v4242, %v4241
        %v4255 = vpack.c.b16 %v4244, %v4243
        %v4256 = vpack.c.b16 %v4246, %v4245
        %v4257 = vpack.c.b16 %v4248, %v4247
        %v4258 = vpack.c.b16 %v4250, %v4249
        %4267 = vmatprep.subr.bf16.mxu0 0
        %4268 = vmatpush1.bf16.msra.mxu0 %v4251
        %4269 = vmatprep.subr.bf16.mxu0 0
        %4270 = vmatpush1.bf16.msra.mxu0 %v4252
        %4271 = vmatprep.subr.bf16.mxu0 0
        %4272 = vmatpush1.bf16.msra.mxu0 %v4253
        %4273 = vmatprep.subr.bf16.mxu0 0
        %4274 = vmatpush1.bf16.msra.mxu0 %v4254
        %4275 = vmatprep.subr.bf16.mxu0 0
        %4276 = vmatpush1.bf16.msra.mxu0 %v4255
        %4277 = vmatprep.subr.bf16.mxu0 0
        %4278 = vmatpush1.bf16.msra.mxu0 %v4256
        %4279 = vmatprep.subr.bf16.mxu0 0
        %4280 = vmatpush1.bf16.msra.mxu0 %v4257
        %4281 = vmatprep.subr.bf16.mxu0 0
        %4282 = vmatpush1.bf16.msra.mxu0 %v4258
        %4283 = vmatprep.subr.bf16.mxu0 0
        %4284 = vmatpush1.bf16.msra.mxu0 0
        %4285 = vmatprep.subr.bf16.mxu0 0
        %4286 = vmatpush1.bf16.msra.mxu0 0
        %4287 = vmatprep.subr.bf16.mxu0 0
        %4288 = vmatpush1.bf16.msra.mxu0 0
        %4289 = vmatprep.subr.bf16.mxu0 0
        %4290 = vmatpush1.bf16.msra.mxu0 0
        %4291 = vmatprep.subr.bf16.mxu0 0
        %4292 = vmatpush1.bf16.msra.mxu0 0
        %4293 = vmatprep.subr.bf16.mxu0 0
        %4294 = vmatpush1.bf16.msra.mxu0 0
        %4295 = vmatprep.subr.bf16.mxu0 0
        %4296 = vmatpush1.bf16.msra.mxu0 0
        %4297 = vmatprep.subr.bf16.mxu0 0
        %4298 = vmatpush1.bf16.msra.mxu0 0
        %4299 = vmatprep.mubr.bf16.mxu0 0
        %4300 = vmatmul.mubr.bf16.gmra.mrb[0].mxu0 %v4198
        %v4301 = vpop.f32.mrb[0].mxu0
        %v4302 = vadd.f32 0.0, %v4301
        %v4303 = vpop.f32.mrb[0].mxu0
        %v4304 = vpop.f32.mrb[0].mxu0
        %v4305 = vadd.f32 0.0, %v4304
        %v4306 = vpop.f32.mrb[0].mxu0
        %4307 = vmatprep.mubr.bf16.mxu0 0
        %4308 = vmatmul.mubr.bf16.gmra.mrb[0].mxu0 %v4199
        %v4309 = vpop.f32.mrb[0].mxu0
        %v4310 = vadd.f32 0.0, %v4309
        %v4311 = vpop.f32.mrb[0].mxu0
        %v4312 = vpop.f32.mrb[0].mxu0
        %v4313 = vadd.f32 0.0, %v4312
        %v4314 = vpop.f32.mrb[0].mxu0
        %4315 = vmatprep.mubr.bf16.mxu0 0
        %4316 = vmatmul.mubr.bf16.gmra.mrb[0].mxu0 %v4200
        %v4317 = vpop.f32.mrb[0].mxu0
        %v4318 = vadd.f32 0.0, %v4317
        %v4319 = vpop.f32.mrb[0].mxu0
        %v4320 = vpop.f32.mrb[0].mxu0
        %v4321 = vadd.f32 0.0, %v4320
        %v4322 = vpop.f32.mrb[0].mxu0
        %4323 = vmatprep.mubr.bf16.mxu0 0
        %4324 = vmatmul.mubr.bf16.gmra.mrb[0].mxu0 %v4201
        %v4325 = vpop.f32.mrb[0].mxu0
        %v4326 = vadd.f32 0.0, %v4325
        %v4327 = vpop.f32.mrb[0].mxu0
        %v4328 = vpop.f32.mrb[0].mxu0
        %v4329 = vadd.f32 0.0, %v4328
        %v4330 = vpop.f32.mrb[0].mxu0
        %4331 = vdwg.mxu0
        %v4332 = vadd.f32 %v4182, %v4302
        %v4333 = vadd.f32 %v4183, %v4305
        %v4334 = vadd.f32 %v4184, %v4310
        %v4335 = vadd.f32 %v4185, %v4313
        %v4336 = vadd.f32 %v4186, %v4318
        %v4337 = vadd.f32 %v4187, %v4321
        %v4338 = vadd.f32 %v4188, %v4326
        %v4339 = vadd.f32 %v4189, %v4329
        %v4340 = vld [vmem:[%s513 + $0x2] sm:$0xff]
        %v4341 = vld [vmem:[%s513 + $0x1a] sm:$0xff]
        %v4342 = vld [vmem:[%s513 + $0x32] sm:$0xff]
        %v4343 = vld [vmem:[%s513 + $0x4a] sm:$0xff]
        %v4344 = vld [vmem:[%s513 + $0x62] sm:$0xff]
        %v4345 = vld [vmem:[%s513 + $0x7a] sm:$0xff]
        %v4346 = vld [vmem:[%s513 + $0x92] sm:$0xff]
        %v4347 = vld [vmem:[%s513 + $0xaa] sm:$0xff]
        %v4348 = vpack.c.bf16 %v4341, %v4340
        %v4349 = vpack.c.bf16 %v4343, %v4342
        %v4350 = vpack.c.bf16 %v4345, %v4344
        %v4351 = vpack.c.bf16 %v4347, %v4346
        %s4352 = scalar_lea.vmem [#allocation3], 896
        %v4353 = vld [vmem:[%s4352] sm:$0xf]
        %v4354 = vld [vmem:[%s4352 + $0x4] sm:$0xf]
        %v4355 = vld [vmem:[%s4352 + $0x8] sm:$0xf]
        %v4356 = vld [vmem:[%s4352 + $0xc] sm:$0xf]
        %v4357 = vld [vmem:[%s4352 + $0x10] sm:$0xf]
        %v4358 = vld [vmem:[%s4352 + $0x14] sm:$0xf]
        %v4359 = vld [vmem:[%s4352 + $0x18] sm:$0xf]
        %v4360 = vld [vmem:[%s4352 + $0x1c] sm:$0xf]
        %v4361 = vld [vmem:[%s4352 + $0x20] sm:$0xf]
        %v4362 = vld [vmem:[%s4352 + $0x24] sm:$0xf]
        %v4363 = vld [vmem:[%s4352 + $0x28] sm:$0xf]
        %v4364 = vld [vmem:[%s4352 + $0x2c] sm:$0xf]
        %v4365 = vld [vmem:[%s4352 + $0x30] sm:$0xf]
        %v4366 = vld [vmem:[%s4352 + $0x34] sm:$0xf]
        %v4367 = vld [vmem:[%s4352 + $0x38] sm:$0xf]
        %v4368 = vld [vmem:[%s4352 + $0x3c] sm:$0xf]
        %v4385 = vunpack.c.l.b16 %v4353
        %v4386 = vunpack.c.l.b16 %v4354
        %v4387 = vunpack.c.l.b16 %v4355
        %v4388 = vunpack.c.l.b16 %v4356
        %v4389 = vunpack.c.l.b16 %v4357
        %v4390 = vunpack.c.l.b16 %v4358
        %v4391 = vunpack.c.l.b16 %v4359
        %v4392 = vunpack.c.l.b16 %v4360
        %v4393 = vunpack.c.l.b16 %v4361
        %v4394 = vunpack.c.l.b16 %v4362
        %v4395 = vunpack.c.l.b16 %v4363
        %v4396 = vunpack.c.l.b16 %v4364
        %v4397 = vunpack.c.l.b16 %v4365
        %v4398 = vunpack.c.l.b16 %v4366
        %v4399 = vunpack.c.l.b16 %v4367
        %v4400 = vunpack.c.l.b16 %v4368
        %v4401 = vpack.c.b16 %v4386, %v4385
        %v4402 = vpack.c.b16 %v4388, %v4387
        %v4403 = vpack.c.b16 %v4390, %v4389
        %v4404 = vpack.c.b16 %v4392, %v4391
        %v4405 = vpack.c.b16 %v4394, %v4393
        %v4406 = vpack.c.b16 %v4396, %v4395
        %v4407 = vpack.c.b16 %v4398, %v4397
        %v4408 = vpack.c.b16 %v4400, %v4399
        %4417 = vmatprep.subr.bf16.mxu0 0
        %4418 = vmatpush1.bf16.msra.mxu0 %v4401
        %4419 = vmatprep.subr.bf16.mxu0 0
        %4420 = vmatpush1.bf16.msra.mxu0 %v4402
        %4421 = vmatprep.subr.bf16.mxu0 0
        %4422 = vmatpush1.bf16.msra.mxu0 %v4403
        %4423 = vmatprep.subr.bf16.mxu0 0
        %4424 = vmatpush1.bf16.msra.mxu0 %v4404
        %4425 = vmatprep.subr.bf16.mxu0 0
        %4426 = vmatpush1.bf16.msra.mxu0 %v4405
        %4427 = vmatprep.subr.bf16.mxu0 0
        %4428 = vmatpush1.bf16.msra.mxu0 %v4406
        %4429 = vmatprep.subr.bf16.mxu0 0
        %4430 = vmatpush1.bf16.msra.mxu0 %v4407
        %4431 = vmatprep.subr.bf16.mxu0 0
        %4432 = vmatpush1.bf16.msra.mxu0 %v4408
        %4433 = vmatprep.subr.bf16.mxu0 0
        %4434 = vmatpush1.bf16.msra.mxu0 0
        %4435 = vmatprep.subr.bf16.mxu0 0
        %4436 = vmatpush1.bf16.msra.mxu0 0
        %4437 = vmatprep.subr.bf16.mxu0 0
        %4438 = vmatpush1.bf16.msra.mxu0 0
        %4439 = vmatprep.subr.bf16.mxu0 0
        %4440 = vmatpush1.bf16.msra.mxu0 0
        %4441 = vmatprep.subr.bf16.mxu0 0
        %4442 = vmatpush1.bf16.msra.mxu0 0
        %4443 = vmatprep.subr.bf16.mxu0 0
        %4444 = vmatpush1.bf16.msra.mxu0 0
        %4445 = vmatprep.subr.bf16.mxu0 0
        %4446 = vmatpush1.bf16.msra.mxu0 0
        %4447 = vmatprep.subr.bf16.mxu0 0
        %4448 = vmatpush1.bf16.msra.mxu0 0
        %4449 = vmatprep.mubr.bf16.mxu0 0
        %4450 = vmatmul.mubr.bf16.gmra.mrb[0].mxu0 %v4348
        %v4451 = vpop.f32.mrb[0].mxu0
        %v4452 = vadd.f32 0.0, %v4451
        %v4453 = vpop.f32.mrb[0].mxu0
        %v4454 = vpop.f32.mrb[0].mxu0
        %v4455 = vadd.f32 0.0, %v4454
        %v4456 = vpop.f32.mrb[0].mxu0
        %4457 = vmatprep.mubr.bf16.mxu0 0
        %4458 = vmatmul.mubr.bf16.gmra.mrb[0].mxu0 %v4349
        %v4459 = vpop.f32.mrb[0].mxu0
        %v4460 = vadd.f32 0.0, %v4459
        %v4461 = vpop.f32.mrb[0].mxu0
        %v4462 = vpop.f32.mrb[0].mxu0
        %v4463 = vadd.f32 0.0, %v4462
        %v4464 = vpop.f32.mrb[0].mxu0
        %4465 = vmatprep.mubr.bf16.mxu0 0
        %4466 = vmatmul.mubr.bf16.gmra.mrb[0].mxu0 %v4350
        %v4467 = vpop.f32.mrb[0].mxu0
        %v4468 = vadd.f32 0.0, %v4467
        %v4469 = vpop.f32.mrb[0].mxu0
        %v4470 = vpop.f32.mrb[0].mxu0
        %v4471 = vadd.f32 0.0, %v4470
        %v4472 = vpop.f32.mrb[0].mxu0
        %4473 = vmatprep.mubr.bf16.mxu0 0
        %4474 = vmatmul.mubr.bf16.gmra.mrb[0].mxu0 %v4351
        %v4475 = vpop.f32.mrb[0].mxu0
        %v4476 = vadd.f32 0.0, %v4475
        %v4477 = vpop.f32.mrb[0].mxu0
        %v4478 = vpop.f32.mrb[0].mxu0
        %v4479 = vadd.f32 0.0, %v4478
        %v4480 = vpop.f32.mrb[0].mxu0
        %4481 = vdwg.mxu0
        %v4482 = vadd.f32 %v4332, %v4452
        %v4483 = vadd.f32 %v4333, %v4455
        %v4484 = vadd.f32 %v4334, %v4460
        %v4485 = vadd.f32 %v4335, %v4463
        %v4486 = vadd.f32 %v4336, %v4468
        %v4487 = vadd.f32 %v4337, %v4471
        %v4488 = vadd.f32 %v4338, %v4476
        %v4489 = vadd.f32 %v4339, %v4479
        %v4490 = vld [vmem:[%s2317] sm:$0xff]
        %v4491 = vld [vmem:[%s2317 + $0x18] sm:$0xff]
        %v4492 = vld [vmem:[%s2317 + $0x30] sm:$0xff]
        %v4493 = vld [vmem:[%s2317 + $0x48] sm:$0xff]
        %v4494 = vld [vmem:[%s2317 + $0x60] sm:$0xff]
        %v4495 = vld [vmem:[%s2317 + $0x78] sm:$0xff]
        %v4496 = vld [vmem:[%s2317 + $0x90] sm:$0xff]
        %v4497 = vld [vmem:[%s2317 + $0xa8] sm:$0xff]
        %v4498 = vpack.c.bf16 %v4491, %v4490
        %v4499 = vpack.c.bf16 %v4493, %v4492
        %v4500 = vpack.c.bf16 %v4495, %v4494
        %v4501 = vpack.c.bf16 %v4497, %v4496
        %s4502 = scalar_lea.vmem [#allocation3], 960
        %v4503 = vld [vmem:[%s4502] sm:$0xf]
        %v4504 = vld [vmem:[%s4502 + $0x4] sm:$0xf]
        %v4505 = vld [vmem:[%s4502 + $0x8] sm:$0xf]
        %v4506 = vld [vmem:[%s4502 + $0xc] sm:$0xf]
        %v4507 = vld [vmem:[%s4502 + $0x10] sm:$0xf]
        %v4508 = vld [vmem:[%s4502 + $0x14] sm:$0xf]
        %v4509 = vld [vmem:[%s4502 + $0x18] sm:$0xf]
        %v4510 = vld [vmem:[%s4502 + $0x1c] sm:$0xf]
        %v4511 = vld [vmem:[%s4502 + $0x20] sm:$0xf]
        %v4512 = vld [vmem:[%s4502 + $0x24] sm:$0xf]
        %v4513 = vld [vmem:[%s4502 + $0x28] sm:$0xf]
        %v4514 = vld [vmem:[%s4502 + $0x2c] sm:$0xf]
        %v4515 = vld [vmem:[%s4502 + $0x30] sm:$0xf]
        %v4516 = vld [vmem:[%s4502 + $0x34] sm:$0xf]
        %v4517 = vld [vmem:[%s4502 + $0x38] sm:$0xf]
        %v4518 = vld [vmem:[%s4502 + $0x3c] sm:$0xf]
        %v4535 = vunpack.c.l.b16 %v4503
        %v4536 = vunpack.c.l.b16 %v4504
        %v4537 = vunpack.c.l.b16 %v4505
        %v4538 = vunpack.c.l.b16 %v4506
        %v4539 = vunpack.c.l.b16 %v4507
        %v4540 = vunpack.c.l.b16 %v4508
        %v4541 = vunpack.c.l.b16 %v4509
        %v4542 = vunpack.c.l.b16 %v4510
        %v4543 = vunpack.c.l.b16 %v4511
        %v4544 = vunpack.c.l.b16 %v4512
        %v4545 = vunpack.c.l.b16 %v4513
        %v4546 = vunpack.c.l.b16 %v4514
        %v4547 = vunpack.c.l.b16 %v4515
        %v4548 = vunpack.c.l.b16 %v4516
        %v4549 = vunpack.c.l.b16 %v4517
        %v4550 = vunpack.c.l.b16 %v4518
        %v4551 = vpack.c.b16 %v4536, %v4535
        %v4552 = vpack.c.b16 %v4538, %v4537
        %v4553 = vpack.c.b16 %v4540, %v4539
        %v4554 = vpack.c.b16 %v4542, %v4541
        %v4555 = vpack.c.b16 %v4544, %v4543
        %v4556 = vpack.c.b16 %v4546, %v4545
        %v4557 = vpack.c.b16 %v4548, %v4547
        %v4558 = vpack.c.b16 %v4550, %v4549
        %4567 = vmatprep.subr.bf16.mxu0 0
        %4568 = vmatpush1.bf16.msra.mxu0 %v4551
        %4569 = vmatprep.subr.bf16.mxu0 0
        %4570 = vmatpush1.bf16.msra.mxu0 %v4552
        %4571 = vmatprep.subr.bf16.mxu0 0
        %4572 = vmatpush1.bf16.msra.mxu0 %v4553
        %4573 = vmatprep.subr.bf16.mxu0 0
        %4574 = vmatpush1.bf16.msra.mxu0 %v4554
        %4575 = vmatprep.subr.bf16.mxu0 0
        %4576 = vmatpush1.bf16.msra.mxu0 %v4555
        %4577 = vmatprep.subr.bf16.mxu0 0
        %4578 = vmatpush1.bf16.msra.mxu0 %v4556
        %4579 = vmatprep.subr.bf16.mxu0 0
        %4580 = vmatpush1.bf16.msra.mxu0 %v4557
        %4581 = vmatprep.subr.bf16.mxu0 0
        %4582 = vmatpush1.bf16.msra.mxu0 %v4558
        %4583 = vmatprep.subr.bf16.mxu0 0
        %4584 = vmatpush1.bf16.msra.mxu0 0
        %4585 = vmatprep.subr.bf16.mxu0 0
        %4586 = vmatpush1.bf16.msra.mxu0 0
        %4587 = vmatprep.subr.bf16.mxu0 0
        %4588 = vmatpush1.bf16.msra.mxu0 0
        %4589 = vmatprep.subr.bf16.mxu0 0
        %4590 = vmatpush1.bf16.msra.mxu0 0
        %4591 = vmatprep.subr.bf16.mxu0 0
        %4592 = vmatpush1.bf16.msra.mxu0 0
        %4593 = vmatprep.subr.bf16.mxu0 0
        %4594 = vmatpush1.bf16.msra.mxu0 0
        %4595 = vmatprep.subr.bf16.mxu0 0
        %4596 = vmatpush1.bf16.msra.mxu0 0
        %4597 = vmatprep.subr.bf16.mxu0 0
        %4598 = vmatpush1.bf16.msra.mxu0 0
        %4599 = vmatprep.mubr.bf16.mxu0 0
        %4600 = vmatmul.mubr.bf16.gmra.mrb[0].mxu0 %v4498
        %v4601 = vpop.f32.mrb[0].mxu0
        %v4602 = vadd.f32 0.0, %v4601
        %v4603 = vpop.f32.mrb[0].mxu0
        %v4604 = vpop.f32.mrb[0].mxu0
        %v4605 = vadd.f32 0.0, %v4604
        %v4606 = vpop.f32.mrb[0].mxu0
        %4607 = vmatprep.mubr.bf16.mxu0 0
        %4608 = vmatmul.mubr.bf16.gmra.mrb[0].mxu0 %v4499
        %v4609 = vpop.f32.mrb[0].mxu0
        %v4610 = vadd.f32 0.0, %v4609
        %v4611 = vpop.f32.mrb[0].mxu0
        %v4612 = vpop.f32.mrb[0].mxu0
        %v4613 = vadd.f32 0.0, %v4612
        %v4614 = vpop.f32.mrb[0].mxu0
        %4615 = vmatprep.mubr.bf16.mxu0 0
        %4616 = vmatmul.mubr.bf16.gmra.mrb[0].mxu0 %v4500
        %v4617 = vpop.f32.mrb[0].mxu0
        %v4618 = vadd.f32 0.0, %v4617
        %v4619 = vpop.f32.mrb[0].mxu0
        %v4620 = vpop.f32.mrb[0].mxu0
        %v4621 = vadd.f32 0.0, %v4620
        %v4622 = vpop.f32.mrb[0].mxu0
        %4623 = vmatprep.mubr.bf16.mxu0 0
        %4624 = vmatmul.mubr.bf16.gmra.mrb[0].mxu0 %v4501
        %v4625 = vpop.f32.mrb[0].mxu0
        %v4626 = vadd.f32 0.0, %v4625
        %v4627 = vpop.f32.mrb[0].mxu0
        %v4628 = vpop.f32.mrb[0].mxu0
        %v4629 = vadd.f32 0.0, %v4628
        %v4630 = vpop.f32.mrb[0].mxu0
        %4631 = vdwg.mxu0
        %v4632 = vadd.f32 %v4482, %v4602
        %v4633 = vadd.f32 %v4483, %v4605
        %v4634 = vadd.f32 %v4484, %v4610
        %v4635 = vadd.f32 %v4485, %v4613
        %v4636 = vadd.f32 %v4486, %v4618
        %v4637 = vadd.f32 %v4487, %v4621
        %v4638 = vadd.f32 %v4488, %v4626
        %v4639 = vadd.f32 %v4489, %v4629
        %v4640 = vld [vmem:[%s2317 + $0x1] sm:$0xff]
        %v4641 = vld [vmem:[%s2317 + $0x19] sm:$0xff]
        %v4642 = vld [vmem:[%s2317 + $0x31] sm:$0xff]
        %v4643 = vld [vmem:[%s2317 + $0x49] sm:$0xff]
        %v4644 = vld [vmem:[%s2317 + $0x61] sm:$0xff]
        %v4645 = vld [vmem:[%s2317 + $0x79] sm:$0xff]
        %v4646 = vld [vmem:[%s2317 + $0x91] sm:$0xff]
        %v4647 = vld [vmem:[%s2317 + $0xa9] sm:$0xff]
        %v4648 = vpack.c.bf16 %v4641, %v4640
        %v4649 = vpack.c.bf16 %v4643, %v4642
        %v4650 = vpack.c.bf16 %v4645, %v4644
        %v4651 = vpack.c.bf16 %v4647, %v4646
        %s4652 = scalar_lea.vmem [#allocation3], 1024
        %v4653 = vld [vmem:[%s4652] sm:$0xf]
        %v4654 = vld [vmem:[%s4652 + $0x4] sm:$0xf]
        %v4655 = vld [vmem:[%s4652 + $0x8] sm:$0xf]
        %v4656 = vld [vmem:[%s4652 + $0xc] sm:$0xf]
        %v4657 = vld [vmem:[%s4652 + $0x10] sm:$0xf]
        %v4658 = vld [vmem:[%s4652 + $0x14] sm:$0xf]
        %v4659 = vld [vmem:[%s4652 + $0x18] sm:$0xf]
        %v4660 = vld [vmem:[%s4652 + $0x1c] sm:$0xf]
        %v4661 = vld [vmem:[%s4652 + $0x20] sm:$0xf]
        %v4662 = vld [vmem:[%s4652 + $0x24] sm:$0xf]
        %v4663 = vld [vmem:[%s4652 + $0x28] sm:$0xf]
        %v4664 = vld [vmem:[%s4652 + $0x2c] sm:$0xf]
        %v4665 = vld [vmem:[%s4652 + $0x30] sm:$0xf]
        %v4666 = vld [vmem:[%s4652 + $0x34] sm:$0xf]
        %v4667 = vld [vmem:[%s4652 + $0x38] sm:$0xf]
        %v4668 = vld [vmem:[%s4652 + $0x3c] sm:$0xf]
        %v4685 = vunpack.c.l.b16 %v4653
        %v4686 = vunpack.c.l.b16 %v4654
        %v4687 = vunpack.c.l.b16 %v4655
        %v4688 = vunpack.c.l.b16 %v4656
        %v4689 = vunpack.c.l.b16 %v4657
        %v4690 = vunpack.c.l.b16 %v4658
        %v4691 = vunpack.c.l.b16 %v4659
        %v4692 = vunpack.c.l.b16 %v4660
        %v4693 = vunpack.c.l.b16 %v4661
        %v4694 = vunpack.c.l.b16 %v4662
        %v4695 = vunpack.c.l.b16 %v4663
        %v4696 = vunpack.c.l.b16 %v4664
        %v4697 = vunpack.c.l.b16 %v4665
        %v4698 = vunpack.c.l.b16 %v4666
        %v4699 = vunpack.c.l.b16 %v4667
        %v4700 = vunpack.c.l.b16 %v4668
        %v4701 = vpack.c.b16 %v4686, %v4685
        %v4702 = vpack.c.b16 %v4688, %v4687
        %v4703 = vpack.c.b16 %v4690, %v4689
        %v4704 = vpack.c.b16 %v4692, %v4691
        %v4705 = vpack.c.b16 %v4694, %v4693
        %v4706 = vpack.c.b16 %v4696, %v4695
        %v4707 = vpack.c.b16 %v4698, %v4697
        %v4708 = vpack.c.b16 %v4700, %v4699
        %4717 = vmatprep.subr.bf16.mxu0 0
        %4718 = vmatpush1.bf16.msra.mxu0 %v4701
        %4719 = vmatprep.subr.bf16.mxu0 0
        %4720 = vmatpush1.bf16.msra.mxu0 %v4702
        %4721 = vmatprep.subr.bf16.mxu0 0
        %4722 = vmatpush1.bf16.msra.mxu0 %v4703
        %4723 = vmatprep.subr.bf16.mxu0 0
        %4724 = vmatpush1.bf16.msra.mxu0 %v4704
        %4725 = vmatprep.subr.bf16.mxu0 0
        %4726 = vmatpush1.bf16.msra.mxu0 %v4705
        %4727 = vmatprep.subr.bf16.mxu0 0
        %4728 = vmatpush1.bf16.msra.mxu0 %v4706
        %4729 = vmatprep.subr.bf16.mxu0 0
        %4730 = vmatpush1.bf16.msra.mxu0 %v4707
        %4731 = vmatprep.subr.bf16.mxu0 0
        %4732 = vmatpush1.bf16.msra.mxu0 %v4708
        %4733 = vmatprep.subr.bf16.mxu0 0
        %4734 = vmatpush1.bf16.msra.mxu0 0
        %4735 = vmatprep.subr.bf16.mxu0 0
        %4736 = vmatpush1.bf16.msra.mxu0 0
        %4737 = vmatprep.subr.bf16.mxu0 0
        %4738 = vmatpush1.bf16.msra.mxu0 0
        %4739 = vmatprep.subr.bf16.mxu0 0
        %4740 = vmatpush1.bf16.msra.mxu0 0
        %4741 = vmatprep.subr.bf16.mxu0 0
        %4742 = vmatpush1.bf16.msra.mxu0 0
        %4743 = vmatprep.subr.bf16.mxu0 0
        %4744 = vmatpush1.bf16.msra.mxu0 0
        %4745 = vmatprep.subr.bf16.mxu0 0
        %4746 = vmatpush1.bf16.msra.mxu0 0
        %4747 = vmatprep.subr.bf16.mxu0 0
        %4748 = vmatpush1.bf16.msra.mxu0 0
        %4749 = vmatprep.mubr.bf16.mxu0 0
        %4750 = vmatmul.mubr.bf16.gmra.mrb[0].mxu0 %v4648
        %v4751 = vpop.f32.mrb[0].mxu0
        %v4752 = vadd.f32 0.0, %v4751
        %v4753 = vpop.f32.mrb[0].mxu0
        %v4754 = vpop.f32.mrb[0].mxu0
        %v4755 = vadd.f32 0.0, %v4754
        %v4756 = vpop.f32.mrb[0].mxu0
        %4757 = vmatprep.mubr.bf16.mxu0 0
        %4758 = vmatmul.mubr.bf16.gmra.mrb[0].mxu0 %v4649
        %v4759 = vpop.f32.mrb[0].mxu0
        %v4760 = vadd.f32 0.0, %v4759
        %v4761 = vpop.f32.mrb[0].mxu0
        %v4762 = vpop.f32.mrb[0].mxu0
        %v4763 = vadd.f32 0.0, %v4762
        %v4764 = vpop.f32.mrb[0].mxu0
        %4765 = vmatprep.mubr.bf16.mxu0 0
        %4766 = vmatmul.mubr.bf16.gmra.mrb[0].mxu0 %v4650
        %v4767 = vpop.f32.mrb[0].mxu0
        %v4768 = vadd.f32 0.0, %v4767
        %v4769 = vpop.f32.mrb[0].mxu0
        %v4770 = vpop.f32.mrb[0].mxu0
        %v4771 = vadd.f32 0.0, %v4770
        %v4772 = vpop.f32.mrb[0].mxu0
        %4773 = vmatprep.mubr.bf16.mxu0 0
        %4774 = vmatmul.mubr.bf16.gmra.mrb[0].mxu0 %v4651
        %v4775 = vpop.f32.mrb[0].mxu0
        %v4776 = vadd.f32 0.0, %v4775
        %v4777 = vpop.f32.mrb[0].mxu0
        %v4778 = vpop.f32.mrb[0].mxu0
        %v4779 = vadd.f32 0.0, %v4778
        %v4780 = vpop.f32.mrb[0].mxu0
        %4781 = vdwg.mxu0
        %v4782 = vadd.f32 %v4632, %v4752
        %v4783 = vadd.f32 %v4633, %v4755
        %v4784 = vadd.f32 %v4634, %v4760
        %v4785 = vadd.f32 %v4635, %v4763
        %v4786 = vadd.f32 %v4636, %v4768
        %v4787 = vadd.f32 %v4637, %v4771
        %v4788 = vadd.f32 %v4638, %v4776
        %v4789 = vadd.f32 %v4639, %v4779
        %v4790 = vld [vmem:[%s2317 + $0x2] sm:$0xff]
        %v4791 = vld [vmem:[%s2317 + $0x1a] sm:$0xff]
        %v4792 = vld [vmem:[%s2317 + $0x32] sm:$0xff]
        %v4793 = vld [vmem:[%s2317 + $0x4a] sm:$0xff]
        %v4794 = vld [vmem:[%s2317 + $0x62] sm:$0xff]
        %v4795 = vld [vmem:[%s2317 + $0x7a] sm:$0xff]
        %v4796 = vld [vmem:[%s2317 + $0x92] sm:$0xff]
        %v4797 = vld [vmem:[%s2317 + $0xaa] sm:$0xff]
        %v4798 = vpack.c.bf16 %v4791, %v4790
        %v4799 = vpack.c.bf16 %v4793, %v4792
        %v4800 = vpack.c.bf16 %v4795, %v4794
        %v4801 = vpack.c.bf16 %v4797, %v4796
        %s4802 = scalar_lea.vmem [#allocation3], 1088
        %v4803 = vld [vmem:[%s4802] sm:$0xf]
        %v4804 = vld [vmem:[%s4802 + $0x4] sm:$0xf]
        %v4805 = vld [vmem:[%s4802 + $0x8] sm:$0xf]
        %v4806 = vld [vmem:[%s4802 + $0xc] sm:$0xf]
        %v4807 = vld [vmem:[%s4802 + $0x10] sm:$0xf]
        %v4808 = vld [vmem:[%s4802 + $0x14] sm:$0xf]
        %v4809 = vld [vmem:[%s4802 + $0x18] sm:$0xf]
        %v4810 = vld [vmem:[%s4802 + $0x1c] sm:$0xf]
        %v4811 = vld [vmem:[%s4802 + $0x20] sm:$0xf]
        %v4812 = vld [vmem:[%s4802 + $0x24] sm:$0xf]
        %v4813 = vld [vmem:[%s4802 + $0x28] sm:$0xf]
        %v4814 = vld [vmem:[%s4802 + $0x2c] sm:$0xf]
        %v4815 = vld [vmem:[%s4802 + $0x30] sm:$0xf]
        %v4816 = vld [vmem:[%s4802 + $0x34] sm:$0xf]
        %v4817 = vld [vmem:[%s4802 + $0x38] sm:$0xf]
        %v4818 = vld [vmem:[%s4802 + $0x3c] sm:$0xf]
        %v4835 = vunpack.c.l.b16 %v4803
        %v4836 = vunpack.c.l.b16 %v4804
        %v4837 = vunpack.c.l.b16 %v4805
        %v4838 = vunpack.c.l.b16 %v4806
        %v4839 = vunpack.c.l.b16 %v4807
        %v4840 = vunpack.c.l.b16 %v4808
        %v4841 = vunpack.c.l.b16 %v4809
        %v4842 = vunpack.c.l.b16 %v4810
        %v4843 = vunpack.c.l.b16 %v4811
        %v4844 = vunpack.c.l.b16 %v4812
        %v4845 = vunpack.c.l.b16 %v4813
        %v4846 = vunpack.c.l.b16 %v4814
        %v4847 = vunpack.c.l.b16 %v4815
        %v4848 = vunpack.c.l.b16 %v4816
        %v4849 = vunpack.c.l.b16 %v4817
        %v4850 = vunpack.c.l.b16 %v4818
        %v4851 = vpack.c.b16 %v4836, %v4835
        %v4852 = vpack.c.b16 %v4838, %v4837
        %v4853 = vpack.c.b16 %v4840, %v4839
        %v4854 = vpack.c.b16 %v4842, %v4841
        %v4855 = vpack.c.b16 %v4844, %v4843
        %v4856 = vpack.c.b16 %v4846, %v4845
        %v4857 = vpack.c.b16 %v4848, %v4847
        %v4858 = vpack.c.b16 %v4850, %v4849
        %4867 = vmatprep.subr.bf16.mxu0 0
        %4868 = vmatpush1.bf16.msra.mxu0 %v4851
        %4869 = vmatprep.subr.bf16.mxu0 0
        %4870 = vmatpush1.bf16.msra.mxu0 %v4852
        %4871 = vmatprep.subr.bf16.mxu0 0
        %4872 = vmatpush1.bf16.msra.mxu0 %v4853
        %4873 = vmatprep.subr.bf16.mxu0 0
        %4874 = vmatpush1.bf16.msra.mxu0 %v4854
        %4875 = vmatprep.subr.bf16.mxu0 0
        %4876 = vmatpush1.bf16.msra.mxu0 %v4855
        %4877 = vmatprep.subr.bf16.mxu0 0
        %4878 = vmatpush1.bf16.msra.mxu0 %v4856
        %4879 = vmatprep.subr.bf16.mxu0 0
        %4880 = vmatpush1.bf16.msra.mxu0 %v4857
        %4881 = vmatprep.subr.bf16.mxu0 0
        %4882 = vmatpush1.bf16.msra.mxu0 %v4858
        %4883 = vmatprep.subr.bf16.mxu0 0
        %4884 = vmatpush1.bf16.msra.mxu0 0
        %4885 = vmatprep.subr.bf16.mxu0 0
        %4886 = vmatpush1.bf16.msra.mxu0 0
        %4887 = vmatprep.subr.bf16.mxu0 0
        %4888 = vmatpush1.bf16.msra.mxu0 0
        %4889 = vmatprep.subr.bf16.mxu0 0
        %4890 = vmatpush1.bf16.msra.mxu0 0
        %4891 = vmatprep.subr.bf16.mxu0 0
        %4892 = vmatpush1.bf16.msra.mxu0 0
        %4893 = vmatprep.subr.bf16.mxu0 0
        %4894 = vmatpush1.bf16.msra.mxu0 0
        %4895 = vmatprep.subr.bf16.mxu0 0
        %4896 = vmatpush1.bf16.msra.mxu0 0
        %4897 = vmatprep.subr.bf16.mxu0 0
        %4898 = vmatpush1.bf16.msra.mxu0 0
        %4899 = vmatprep.mubr.bf16.mxu0 0
        %4900 = vmatmul.mubr.bf16.gmra.mrb[0].mxu0 %v4798
        %v4901 = vpop.f32.mrb[0].mxu0
        %v4902 = vadd.f32 0.0, %v4901
        %v4903 = vpop.f32.mrb[0].mxu0
        %v4904 = vpop.f32.mrb[0].mxu0
        %v4905 = vadd.f32 0.0, %v4904
        %v4906 = vpop.f32.mrb[0].mxu0
        %4907 = vmatprep.mubr.bf16.mxu0 0
        %4908 = vmatmul.mubr.bf16.gmra.mrb[0].mxu0 %v4799
        %v4909 = vpop.f32.mrb[0].mxu0
        %v4910 = vadd.f32 0.0, %v4909
        %v4911 = vpop.f32.mrb[0].mxu0
        %v4912 = vpop.f32.mrb[0].mxu0
        %v4913 = vadd.f32 0.0, %v4912
        %v4914 = vpop.f32.mrb[0].mxu0
        %4915 = vmatprep.mubr.bf16.mxu0 0
        %4916 = vmatmul.mubr.bf16.gmra.mrb[0].mxu0 %v4800
        %v4917 = vpop.f32.mrb[0].mxu0
        %v4918 = vadd.f32 0.0, %v4917
        %v4919 = vpop.f32.mrb[0].mxu0
        %v4920 = vpop.f32.mrb[0].mxu0
        %v4921 = vadd.f32 0.0, %v4920
        %v4922 = vpop.f32.mrb[0].mxu0
        %4923 = vmatprep.mubr.bf16.mxu0 0
        %4924 = vmatmul.mubr.bf16.gmra.mrb[0].mxu0 %v4801
        %v4925 = vpop.f32.mrb[0].mxu0
        %v4926 = vadd.f32 0.0, %v4925
        %v4927 = vpop.f32.mrb[0].mxu0
        %v4928 = vpop.f32.mrb[0].mxu0
        %v4929 = vadd.f32 0.0, %v4928
        %v4930 = vpop.f32.mrb[0].mxu0
        %4931 = vdwg.mxu0
        %v4932 = vadd.f32 %v4782, %v4902
        %v4933 = vadd.f32 %v4783, %v4905
        %v4934 = vadd.f32 %v4784, %v4910
        %v4935 = vadd.f32 %v4785, %v4913
        %v4936 = vadd.f32 %v4786, %v4918
        %v4937 = vadd.f32 %v4787, %v4921
        %v4938 = vadd.f32 %v4788, %v4926
        %v4939 = vadd.f32 %v4789, %v4929
        %s4940 = scalar_lea.vmem [#allocation6], 1
        %v4941 = vld [vmem:[%s4940] sm:$0x1]
        %v4943 = vlaneseq
        %v4944 = vshrl.u32 %v4943, 7
        %v4945 = vsub.s32 0, %v4944
        %v4946 = vrot.slane %v4941, %v4945
        %v4948 = vadd.f32 %v4932, %v4946
        %v4949 = vadd.f32 %v4933, %v4946
        %v4950 = vadd.f32 %v4934, %v4946
        %v4951 = vadd.f32 %v4935, %v4946
        %v4952 = vadd.f32 %v4936, %v4946
        %v4953 = vadd.f32 %v4937, %v4946
        %v4954 = vadd.f32 %v4938, %v4946
        %v4955 = vadd.f32 %v4939, %v4946
        %v4956 = vmax.f32 %v4948, 0.0
        %v4957 = vmax.f32 %v4949, 0.0
        %v4958 = vmax.f32 %v4950, 0.0
        %v4959 = vmax.f32 %v4951, 0.0
        %v4960 = vmax.f32 %v4952, 0.0
        %v4961 = vmax.f32 %v4953, 0.0
        %v4962 = vmax.f32 %v4954, 0.0
        %v4963 = vmax.f32 %v4955, 0.0
        %v4964 = vmax.f32 %v4956, %v4957
        %v4965 = vmax.f32 %v4958, %v4959
        %v4966 = vmax.f32 %v4960, %v4961
        %v4967 = vmax.f32 %v4962, %v4963
        %v4972 = vrot.slane %v4964, 1
        %v4973 = vrot.slane %v4965, 1
        %v4974 = vrot.slane %v4966, 1
        %v4975 = vrot.slane %v4967, 1
        %v4980 = vmax.f32 %v4964, %v4972
        %v4981 = vmax.f32 %v4965, %v4973
        %v4982 = vmax.f32 %v4966, %v4974
        %v4983 = vmax.f32 %v4967, %v4975
        %v4988 = vrot.slane %v4980, 1
        %v4989 = vrot.slane %v4981, 1
        %v4990 = vrot.slane %v4982, 1
        %v4991 = vrot.slane %v4983, 1
        %v4996 = vrot.slane %v4980, 2
        %v4997 = vrot.slane %v4981, 2
        %v4998 = vrot.slane %v4982, 2
        %v4999 = vrot.slane %v4983, 2
        %v5004 = vrot.slane %v4980, 3
        %v5005 = vrot.slane %v4981, 3
        %v5006 = vrot.slane %v4982, 3
        %v5007 = vrot.slane %v4983, 3
        %v5012 = vsel %vm3515, %v4980, %v4988
        %v5013 = vsel %vm3515, %v4981, %v4989
        %v5014 = vsel %vm3515, %v4982, %v4990
        %v5015 = vsel %vm3515, %v4983, %v4991
        %v5016 = vsel %vm3524, %v5012, %v4996
        %v5017 = vsel %vm3524, %v5013, %v4997
        %v5018 = vsel %vm3524, %v5014, %v4998
        %v5019 = vsel %vm3524, %v5015, %v4999
        %v5020 = vsel %vm3533, %v5016, %v5004
        %v5021 = vsel %vm3533, %v5017, %v5005
        %v5022 = vsel %vm3533, %v5018, %v5006
        %v5023 = vsel %vm3533, %v5019, %v5007
        %5024 = vst [vmem:[#allocation2] sm:$0x3f] 0.0
        %5025 = vst [vmem:[#allocation2 + $0x18] sm:$0x3f] 0.0
        %5026 = vst [vmem:[#allocation2 + $0x30] sm:$0x3f] 0.0
        %5027 = vst [vmem:[#allocation2 + $0x48] sm:$0x3f] 0.0
        %5028 = vst [vmem:[#allocation2 + $0x60] sm:$0x3f] 0.0
        %5029 = vst [vmem:[#allocation2 + $0x78] sm:$0x3f] 0.0
        %5030 = vst [vmem:[%s513 + $0x1] sm:$0xf] %v5020
        %5031 = vst [vmem:[%s513 + $0x19] sm:$0xf] %v5021
        %5032 = vst [vmem:[%s513 + $0x31] sm:$0xf] %v5022
        %5033 = vst [vmem:[%s513 + $0x49] sm:$0xf] %v5023
        %v5034 = vld [vmem:[#allocation2] sm:$0xf]
        %v5035 = vld [vmem:[#allocation2 + $0x18] sm:$0xf]
        %v5036 = vld [vmem:[#allocation2 + $0x30] sm:$0xf]
        %v5037 = vld [vmem:[#allocation2 + $0x48] sm:$0xf]
        %v5042 = vcombine.low %v5034, %v5035
        %v5043 = vcombine.low %v5036, %v5037
        %v5046 = vpack.c.bf16 %v5043, %v5042
        %s5047 = scalar_lea.vmem [#allocation3], 1152
        %v5048 = vld [vmem:[%s5047] sm:$0xf]
        %v5049 = vld [vmem:[%s5047 + $0x4] sm:$0xf]
        %v5050 = vld [vmem:[%s5047 + $0x8] sm:$0xf]
        %v5051 = vld [vmem:[%s5047 + $0xc] sm:$0xf]
        %v5052 = vld [vmem:[%s5047 + $0x10] sm:$0xf]
        %v5053 = vld [vmem:[%s5047 + $0x14] sm:$0xf]
        %v5054 = vld [vmem:[%s5047 + $0x18] sm:$0xf]
        %v5055 = vld [vmem:[%s5047 + $0x1c] sm:$0xf]
        %v5056 = vld [vmem:[%s5047 + $0x20] sm:$0xf]
        %v5057 = vld [vmem:[%s5047 + $0x24] sm:$0xf]
        %v5058 = vld [vmem:[%s5047 + $0x28] sm:$0xf]
        %v5059 = vld [vmem:[%s5047 + $0x2c] sm:$0xf]
        %v5060 = vld [vmem:[%s5047 + $0x30] sm:$0xf]
        %v5061 = vld [vmem:[%s5047 + $0x34] sm:$0xf]
        %v5062 = vld [vmem:[%s5047 + $0x38] sm:$0xf]
        %v5063 = vld [vmem:[%s5047 + $0x3c] sm:$0xf]
        %v5064 = vld [vmem:[#allocation2 + $0x1] sm:$0xf]
        %v5065 = vld [vmem:[#allocation2 + $0x19] sm:$0xf]
        %v5066 = vld [vmem:[#allocation2 + $0x31] sm:$0xf]
        %v5067 = vld [vmem:[#allocation2 + $0x49] sm:$0xf]
        %v5072 = vcombine.low %v5064, %v5065
        %v5073 = vcombine.low %v5066, %v5067
        %v5076 = vpack.c.bf16 %v5073, %v5072
        %s5077 = scalar_lea.vmem [#allocation3], 1216
        %v5078 = vld [vmem:[%s5077] sm:$0xf]
        %v5079 = vld [vmem:[%s5077 + $0x4] sm:$0xf]
        %v5080 = vld [vmem:[%s5077 + $0x8] sm:$0xf]
        %v5081 = vld [vmem:[%s5077 + $0xc] sm:$0xf]
        %v5082 = vld [vmem:[%s5077 + $0x10] sm:$0xf]
        %v5083 = vld [vmem:[%s5077 + $0x14] sm:$0xf]
        %v5084 = vld [vmem:[%s5077 + $0x18] sm:$0xf]
        %v5085 = vld [vmem:[%s5077 + $0x1c] sm:$0xf]
        %v5086 = vld [vmem:[%s5077 + $0x20] sm:$0xf]
        %v5087 = vld [vmem:[%s5077 + $0x24] sm:$0xf]
        %v5088 = vld [vmem:[%s5077 + $0x28] sm:$0xf]
        %v5089 = vld [vmem:[%s5077 + $0x2c] sm:$0xf]
        %v5090 = vld [vmem:[%s5077 + $0x30] sm:$0xf]
        %v5091 = vld [vmem:[%s5077 + $0x34] sm:$0xf]
        %v5092 = vld [vmem:[%s5077 + $0x38] sm:$0xf]
        %v5093 = vld [vmem:[%s5077 + $0x3c] sm:$0xf]
        %v5110 = vunpack.c.l.b16 %v5078
        %v5111 = vunpack.c.l.b16 %v5079
        %v5112 = vunpack.c.l.b16 %v5080
        %v5113 = vunpack.c.l.b16 %v5081
        %v5114 = vunpack.c.l.b16 %v5082
        %v5115 = vunpack.c.l.b16 %v5083
        %v5116 = vunpack.c.l.b16 %v5084
        %v5117 = vunpack.c.l.b16 %v5085
        %v5118 = vunpack.c.l.b16 %v5086
        %v5119 = vunpack.c.l.b16 %v5087
        %v5120 = vunpack.c.l.b16 %v5088
        %v5121 = vunpack.c.l.b16 %v5089
        %v5122 = vunpack.c.l.b16 %v5090
        %v5123 = vunpack.c.l.b16 %v5091
        %v5124 = vunpack.c.l.b16 %v5092
        %v5125 = vunpack.c.l.b16 %v5093
        %v5126 = vpack.c.b16 %v5111, %v5110
        %v5127 = vpack.c.b16 %v5113, %v5112
        %v5128 = vpack.c.b16 %v5115, %v5114
        %v5129 = vpack.c.b16 %v5117, %v5116
        %v5130 = vpack.c.b16 %v5119, %v5118
        %v5131 = vpack.c.b16 %v5121, %v5120
        %v5132 = vpack.c.b16 %v5123, %v5122
        %v5133 = vpack.c.b16 %v5125, %v5124
        %5142 = vmatprep.subr.bf16.mxu0 0
        %5143 = vmatpush1.bf16.msra.mxu0 %v5126
        %5144 = vmatprep.subr.bf16.mxu0 0
        %5145 = vmatpush1.bf16.msra.mxu0 %v5127
        %5146 = vmatprep.subr.bf16.mxu0 0
        %5147 = vmatpush1.bf16.msra.mxu0 %v5128
        %5148 = vmatprep.subr.bf16.mxu0 0
        %5149 = vmatpush1.bf16.msra.mxu0 %v5129
        %5150 = vmatprep.subr.bf16.mxu0 0
        %5151 = vmatpush1.bf16.msra.mxu0 %v5130
        %5152 = vmatprep.subr.bf16.mxu0 0
        %5153 = vmatpush1.bf16.msra.mxu0 %v5131
        %5154 = vmatprep.subr.bf16.mxu0 0
        %5155 = vmatpush1.bf16.msra.mxu0 %v5132
        %5156 = vmatprep.subr.bf16.mxu0 0
        %5157 = vmatpush1.bf16.msra.mxu0 %v5133
        %5158 = vmatprep.subr.bf16.mxu0 0
        %5159 = vmatpush1.bf16.msra.mxu0 0
        %5160 = vmatprep.subr.bf16.mxu0 0
        %5161 = vmatpush1.bf16.msra.mxu0 0
        %5162 = vmatprep.subr.bf16.mxu0 0
        %5163 = vmatpush1.bf16.msra.mxu0 0
        %5164 = vmatprep.subr.bf16.mxu0 0
        %5165 = vmatpush1.bf16.msra.mxu0 0
        %5166 = vmatprep.subr.bf16.mxu0 0
        %5167 = vmatpush1.bf16.msra.mxu0 0
        %5168 = vmatprep.subr.bf16.mxu0 0
        %5169 = vmatpush1.bf16.msra.mxu0 0
        %5170 = vmatprep.subr.bf16.mxu0 0
        %5171 = vmatpush1.bf16.msra.mxu0 0
        %5172 = vmatprep.subr.bf16.mxu0 0
        %5173 = vmatpush1.bf16.msra.mxu0 0
        %5174 = vmatprep.mubr.bf16.mxu0 0
        %5175 = vmatmul.mubr.bf16.gmra.mrb[0].mxu0 %v5076
        %v5176 = vpop.f32.mrb[0].mxu0
        %v5177 = vadd.f32 0.0, %v5176
        %v5178 = vpop.f32.mrb[0].mxu0
        %v5179 = vpop.f32.mrb[0].mxu0
        %v5180 = vadd.f32 0.0, %v5179
        %v5181 = vpop.f32.mrb[0].mxu0
        %5182 = vdwg.mxu0
        %v5199 = vunpack.c.l.b16 %v5048
        %v5200 = vunpack.c.l.b16 %v5049
        %v5201 = vunpack.c.l.b16 %v5050
        %v5202 = vunpack.c.l.b16 %v5051
        %v5203 = vunpack.c.l.b16 %v5052
        %v5204 = vunpack.c.l.b16 %v5053
        %v5205 = vunpack.c.l.b16 %v5054
        %v5206 = vunpack.c.l.b16 %v5055
        %v5207 = vunpack.c.l.b16 %v5056
        %v5208 = vunpack.c.l.b16 %v5057
        %v5209 = vunpack.c.l.b16 %v5058
        %v5210 = vunpack.c.l.b16 %v5059
        %v5211 = vunpack.c.l.b16 %v5060
        %v5212 = vunpack.c.l.b16 %v5061
        %v5213 = vunpack.c.l.b16 %v5062
        %v5214 = vunpack.c.l.b16 %v5063
        %v5215 = vpack.c.b16 %v5200, %v5199
        %v5216 = vpack.c.b16 %v5202, %v5201
        %v5217 = vpack.c.b16 %v5204, %v5203
        %v5218 = vpack.c.b16 %v5206, %v5205
        %v5219 = vpack.c.b16 %v5208, %v5207
        %v5220 = vpack.c.b16 %v5210, %v5209
        %v5221 = vpack.c.b16 %v5212, %v5211
        %v5222 = vpack.c.b16 %v5214, %v5213
        %5231 = vmatprep.subr.bf16.mxu0 0
        %5232 = vmatpush1.bf16.msra.mxu0 %v5215
        %5233 = vmatprep.subr.bf16.mxu0 0
        %5234 = vmatpush1.bf16.msra.mxu0 %v5216
        %5235 = vmatprep.subr.bf16.mxu0 0
        %5236 = vmatpush1.bf16.msra.mxu0 %v5217
        %5237 = vmatprep.subr.bf16.mxu0 0
        %5238 = vmatpush1.bf16.msra.mxu0 %v5218
        %5239 = vmatprep.subr.bf16.mxu0 0
        %5240 = vmatpush1.bf16.msra.mxu0 %v5219
        %5241 = vmatprep.subr.bf16.mxu0 0
        %5242 = vmatpush1.bf16.msra.mxu0 %v5220
        %5243 = vmatprep.subr.bf16.mxu0 0
        %5244 = vmatpush1.bf16.msra.mxu0 %v5221
        %5245 = vmatprep.subr.bf16.mxu0 0
        %5246 = vmatpush1.bf16.msra.mxu0 %v5222
        %5247 = vmatprep.subr.bf16.mxu0 0
        %5248 = vmatpush1.bf16.msra.mxu0 0
        %5249 = vmatprep.subr.bf16.mxu0 0
        %5250 = vmatpush1.bf16.msra.mxu0 0
        %5251 = vmatprep.subr.bf16.mxu0 0
        %5252 = vmatpush1.bf16.msra.mxu0 0
        %5253 = vmatprep.subr.bf16.mxu0 0
        %5254 = vmatpush1.bf16.msra.mxu0 0
        %5255 = vmatprep.subr.bf16.mxu0 0
        %5256 = vmatpush1.bf16.msra.mxu0 0
        %5257 = vmatprep.subr.bf16.mxu0 0
        %5258 = vmatpush1.bf16.msra.mxu0 0
        %5259 = vmatprep.subr.bf16.mxu0 0
        %5260 = vmatpush1.bf16.msra.mxu0 0
        %5261 = vmatprep.subr.bf16.mxu0 0
        %5262 = vmatpush1.bf16.msra.mxu0 0
        %5263 = vmatprep.mubr.bf16.mxu0 0
        %5264 = vmatmul.mubr.bf16.gmra.mrb[0].mxu0 %v5046
        %v5265 = vpop.f32.mrb[0].mxu0
        %v5266 = vadd.f32 %v5177, %v5265
        %v5267 = vpop.f32.mrb[0].mxu0
        %v5268 = vpop.f32.mrb[0].mxu0
        %v5269 = vadd.f32 %v5180, %v5268
        %v5270 = vpop.f32.mrb[0].mxu0
        %5271 = vdwg.mxu0
        %v5272 = vld [vmem:[#allocation2 + $0x2] sm:$0xf]
        %v5273 = vld [vmem:[#allocation2 + $0x1a] sm:$0xf]
        %v5274 = vld [vmem:[#allocation2 + $0x32] sm:$0xf]
        %v5275 = vld [vmem:[#allocation2 + $0x4a] sm:$0xf]
        %v5280 = vcombine.low %v5272, %v5273
        %v5281 = vcombine.low %v5274, %v5275
        %v5284 = vpack.c.bf16 %v5281, %v5280
        %s5285 = scalar_lea.vmem [#allocation3], 1280
        %v5286 = vld [vmem:[%s5285] sm:$0xf]
        %v5287 = vld [vmem:[%s5285 + $0x4] sm:$0xf]
        %v5288 = vld [vmem:[%s5285 + $0x8] sm:$0xf]
        %v5289 = vld [vmem:[%s5285 + $0xc] sm:$0xf]
        %v5290 = vld [vmem:[%s5285 + $0x10] sm:$0xf]
        %v5291 = vld [vmem:[%s5285 + $0x14] sm:$0xf]
        %v5292 = vld [vmem:[%s5285 + $0x18] sm:$0xf]
        %v5293 = vld [vmem:[%s5285 + $0x1c] sm:$0xf]
        %v5294 = vld [vmem:[%s5285 + $0x20] sm:$0xf]
        %v5295 = vld [vmem:[%s5285 + $0x24] sm:$0xf]
        %v5296 = vld [vmem:[%s5285 + $0x28] sm:$0xf]
        %v5297 = vld [vmem:[%s5285 + $0x2c] sm:$0xf]
        %v5298 = vld [vmem:[%s5285 + $0x30] sm:$0xf]
        %v5299 = vld [vmem:[%s5285 + $0x34] sm:$0xf]
        %v5300 = vld [vmem:[%s5285 + $0x38] sm:$0xf]
        %v5301 = vld [vmem:[%s5285 + $0x3c] sm:$0xf]
        %v5318 = vunpack.c.l.b16 %v5286
        %v5319 = vunpack.c.l.b16 %v5287
        %v5320 = vunpack.c.l.b16 %v5288
        %v5321 = vunpack.c.l.b16 %v5289
        %v5322 = vunpack.c.l.b16 %v5290
        %v5323 = vunpack.c.l.b16 %v5291
        %v5324 = vunpack.c.l.b16 %v5292
        %v5325 = vunpack.c.l.b16 %v5293
        %v5326 = vunpack.c.l.b16 %v5294
        %v5327 = vunpack.c.l.b16 %v5295
        %v5328 = vunpack.c.l.b16 %v5296
        %v5329 = vunpack.c.l.b16 %v5297
        %v5330 = vunpack.c.l.b16 %v5298
        %v5331 = vunpack.c.l.b16 %v5299
        %v5332 = vunpack.c.l.b16 %v5300
        %v5333 = vunpack.c.l.b16 %v5301
        %v5334 = vpack.c.b16 %v5319, %v5318
        %v5335 = vpack.c.b16 %v5321, %v5320
        %v5336 = vpack.c.b16 %v5323, %v5322
        %v5337 = vpack.c.b16 %v5325, %v5324
        %v5338 = vpack.c.b16 %v5327, %v5326
        %v5339 = vpack.c.b16 %v5329, %v5328
        %v5340 = vpack.c.b16 %v5331, %v5330
        %v5341 = vpack.c.b16 %v5333, %v5332
        %5350 = vmatprep.subr.bf16.mxu0 0
        %5351 = vmatpush1.bf16.msra.mxu0 %v5334
        %5352 = vmatprep.subr.bf16.mxu0 0
        %5353 = vmatpush1.bf16.msra.mxu0 %v5335
        %5354 = vmatprep.subr.bf16.mxu0 0
        %5355 = vmatpush1.bf16.msra.mxu0 %v5336
        %5356 = vmatprep.subr.bf16.mxu0 0
        %5357 = vmatpush1.bf16.msra.mxu0 %v5337
        %5358 = vmatprep.subr.bf16.mxu0 0
        %5359 = vmatpush1.bf16.msra.mxu0 %v5338
        %5360 = vmatprep.subr.bf16.mxu0 0
        %5361 = vmatpush1.bf16.msra.mxu0 %v5339
        %5362 = vmatprep.subr.bf16.mxu0 0
        %5363 = vmatpush1.bf16.msra.mxu0 %v5340
        %5364 = vmatprep.subr.bf16.mxu0 0
        %5365 = vmatpush1.bf16.msra.mxu0 %v5341
        %5366 = vmatprep.subr.bf16.mxu0 0
        %5367 = vmatpush1.bf16.msra.mxu0 0
        %5368 = vmatprep.subr.bf16.mxu0 0
        %5369 = vmatpush1.bf16.msra.mxu0 0
        %5370 = vmatprep.subr.bf16.mxu0 0
        %5371 = vmatpush1.bf16.msra.mxu0 0
        %5372 = vmatprep.subr.bf16.mxu0 0
        %5373 = vmatpush1.bf16.msra.mxu0 0
        %5374 = vmatprep.subr.bf16.mxu0 0
        %5375 = vmatpush1.bf16.msra.mxu0 0
        %5376 = vmatprep.subr.bf16.mxu0 0
        %5377 = vmatpush1.bf16.msra.mxu0 0
        %5378 = vmatprep.subr.bf16.mxu0 0
        %5379 = vmatpush1.bf16.msra.mxu0 0
        %5380 = vmatprep.subr.bf16.mxu0 0
        %5381 = vmatpush1.bf16.msra.mxu0 0
        %5382 = vmatprep.mubr.bf16.mxu0 0
        %5383 = vmatmul.mubr.bf16.gmra.mrb[0].mxu0 %v5284
        %v5384 = vpop.f32.mrb[0].mxu0
        %v5385 = vadd.f32 0.0, %v5384
        %v5386 = vpop.f32.mrb[0].mxu0
        %v5387 = vpop.f32.mrb[0].mxu0
        %v5388 = vadd.f32 0.0, %v5387
        %v5389 = vpop.f32.mrb[0].mxu0
        %5390 = vdwg.mxu0
        %v5391 = vadd.f32 %v5266, %v5385
        %v5392 = vadd.f32 %v5269, %v5388
        %v5393 = vld [vmem:[%s513] sm:$0xf]
        %v5394 = vld [vmem:[%s513 + $0x18] sm:$0xf]
        %v5395 = vld [vmem:[%s513 + $0x30] sm:$0xf]
        %v5396 = vld [vmem:[%s513 + $0x48] sm:$0xf]
        %v5401 = vcombine.low %v5393, %v5394
        %v5402 = vcombine.low %v5395, %v5396
        %v5405 = vpack.c.bf16 %v5402, %v5401
        %s5406 = scalar_lea.vmem [#allocation3], 1344
        %v5407 = vld [vmem:[%s5406] sm:$0xf]
        %v5408 = vld [vmem:[%s5406 + $0x4] sm:$0xf]
        %v5409 = vld [vmem:[%s5406 + $0x8] sm:$0xf]
        %v5410 = vld [vmem:[%s5406 + $0xc] sm:$0xf]
        %v5411 = vld [vmem:[%s5406 + $0x10] sm:$0xf]
        %v5412 = vld [vmem:[%s5406 + $0x14] sm:$0xf]
        %v5413 = vld [vmem:[%s5406 + $0x18] sm:$0xf]
        %v5414 = vld [vmem:[%s5406 + $0x1c] sm:$0xf]
        %v5415 = vld [vmem:[%s5406 + $0x20] sm:$0xf]
        %v5416 = vld [vmem:[%s5406 + $0x24] sm:$0xf]
        %v5417 = vld [vmem:[%s5406 + $0x28] sm:$0xf]
        %v5418 = vld [vmem:[%s5406 + $0x2c] sm:$0xf]
        %v5419 = vld [vmem:[%s5406 + $0x30] sm:$0xf]
        %v5420 = vld [vmem:[%s5406 + $0x34] sm:$0xf]
        %v5421 = vld [vmem:[%s5406 + $0x38] sm:$0xf]
        %v5422 = vld [vmem:[%s5406 + $0x3c] sm:$0xf]
        %v5439 = vunpack.c.l.b16 %v5407
        %v5440 = vunpack.c.l.b16 %v5408
        %v5441 = vunpack.c.l.b16 %v5409
        %v5442 = vunpack.c.l.b16 %v5410
        %v5443 = vunpack.c.l.b16 %v5411
        %v5444 = vunpack.c.l.b16 %v5412
        %v5445 = vunpack.c.l.b16 %v5413
        %v5446 = vunpack.c.l.b16 %v5414
        %v5447 = vunpack.c.l.b16 %v5415
        %v5448 = vunpack.c.l.b16 %v5416
        %v5449 = vunpack.c.l.b16 %v5417
        %v5450 = vunpack.c.l.b16 %v5418
        %v5451 = vunpack.c.l.b16 %v5419
        %v5452 = vunpack.c.l.b16 %v5420
        %v5453 = vunpack.c.l.b16 %v5421
        %v5454 = vunpack.c.l.b16 %v5422
        %v5455 = vpack.c.b16 %v5440, %v5439
        %v5456 = vpack.c.b16 %v5442, %v5441
        %v5457 = vpack.c.b16 %v5444, %v5443
        %v5458 = vpack.c.b16 %v5446, %v5445
        %v5459 = vpack.c.b16 %v5448, %v5447
        %v5460 = vpack.c.b16 %v5450, %v5449
        %v5461 = vpack.c.b16 %v5452, %v5451
        %v5462 = vpack.c.b16 %v5454, %v5453
        %5471 = vmatprep.subr.bf16.mxu0 0
        %5472 = vmatpush1.bf16.msra.mxu0 %v5455
        %5473 = vmatprep.subr.bf16.mxu0 0
        %5474 = vmatpush1.bf16.msra.mxu0 %v5456
        %5475 = vmatprep.subr.bf16.mxu0 0
        %5476 = vmatpush1.bf16.msra.mxu0 %v5457
        %5477 = vmatprep.subr.bf16.mxu0 0
        %5478 = vmatpush1.bf16.msra.mxu0 %v5458
        %5479 = vmatprep.subr.bf16.mxu0 0
        %5480 = vmatpush1.bf16.msra.mxu0 %v5459
        %5481 = vmatprep.subr.bf16.mxu0 0
        %5482 = vmatpush1.bf16.msra.mxu0 %v5460
        %5483 = vmatprep.subr.bf16.mxu0 0
        %5484 = vmatpush1.bf16.msra.mxu0 %v5461
        %5485 = vmatprep.subr.bf16.mxu0 0
        %5486 = vmatpush1.bf16.msra.mxu0 %v5462
        %5487 = vmatprep.subr.bf16.mxu0 0
        %5488 = vmatpush1.bf16.msra.mxu0 0
        %5489 = vmatprep.subr.bf16.mxu0 0
        %5490 = vmatpush1.bf16.msra.mxu0 0
        %5491 = vmatprep.subr.bf16.mxu0 0
        %5492 = vmatpush1.bf16.msra.mxu0 0
        %5493 = vmatprep.subr.bf16.mxu0 0
        %5494 = vmatpush1.bf16.msra.mxu0 0
        %5495 = vmatprep.subr.bf16.mxu0 0
        %5496 = vmatpush1.bf16.msra.mxu0 0
        %5497 = vmatprep.subr.bf16.mxu0 0
        %5498 = vmatpush1.bf16.msra.mxu0 0
        %5499 = vmatprep.subr.bf16.mxu0 0
        %5500 = vmatpush1.bf16.msra.mxu0 0
        %5501 = vmatprep.subr.bf16.mxu0 0
        %5502 = vmatpush1.bf16.msra.mxu0 0
        %5503 = vmatprep.mubr.bf16.mxu0 0
        %5504 = vmatmul.mubr.bf16.gmra.mrb[0].mxu0 %v5405
        %v5505 = vpop.f32.mrb[0].mxu0
        %v5506 = vadd.f32 0.0, %v5505
        %v5507 = vpop.f32.mrb[0].mxu0
        %v5508 = vpop.f32.mrb[0].mxu0
        %v5509 = vadd.f32 0.0, %v5508
        %v5510 = vpop.f32.mrb[0].mxu0
        %5511 = vdwg.mxu0
        %v5512 = vadd.f32 %v5391, %v5506
        %v5513 = vadd.f32 %v5392, %v5509
        %v5514 = vld [vmem:[%s513 + $0x1] sm:$0xf]
        %v5515 = vld [vmem:[%s513 + $0x19] sm:$0xf]
        %v5516 = vld [vmem:[%s513 + $0x31] sm:$0xf]
        %v5517 = vld [vmem:[%s513 + $0x49] sm:$0xf]
        %v5522 = vcombine.low %v5514, %v5515
        %v5523 = vcombine.low %v5516, %v5517
        %v5526 = vpack.c.bf16 %v5523, %v5522
        %s5527 = scalar_lea.vmem [#allocation3], 1408
        %v5528 = vld [vmem:[%s5527] sm:$0xf]
        %v5529 = vld [vmem:[%s5527 + $0x4] sm:$0xf]
        %v5530 = vld [vmem:[%s5527 + $0x8] sm:$0xf]
        %v5531 = vld [vmem:[%s5527 + $0xc] sm:$0xf]
        %v5532 = vld [vmem:[%s5527 + $0x10] sm:$0xf]
        %v5533 = vld [vmem:[%s5527 + $0x14] sm:$0xf]
        %v5534 = vld [vmem:[%s5527 + $0x18] sm:$0xf]
        %v5535 = vld [vmem:[%s5527 + $0x1c] sm:$0xf]
        %v5536 = vld [vmem:[%s5527 + $0x20] sm:$0xf]
        %v5537 = vld [vmem:[%s5527 + $0x24] sm:$0xf]
        %v5538 = vld [vmem:[%s5527 + $0x28] sm:$0xf]
        %v5539 = vld [vmem:[%s5527 + $0x2c] sm:$0xf]
        %v5540 = vld [vmem:[%s5527 + $0x30] sm:$0xf]
        %v5541 = vld [vmem:[%s5527 + $0x34] sm:$0xf]
        %v5542 = vld [vmem:[%s5527 + $0x38] sm:$0xf]
        %v5543 = vld [vmem:[%s5527 + $0x3c] sm:$0xf]
        %v5560 = vunpack.c.l.b16 %v5528
        %v5561 = vunpack.c.l.b16 %v5529
        %v5562 = vunpack.c.l.b16 %v5530
        %v5563 = vunpack.c.l.b16 %v5531
        %v5564 = vunpack.c.l.b16 %v5532
        %v5565 = vunpack.c.l.b16 %v5533
        %v5566 = vunpack.c.l.b16 %v5534
        %v5567 = vunpack.c.l.b16 %v5535
        %v5568 = vunpack.c.l.b16 %v5536
        %v5569 = vunpack.c.l.b16 %v5537
        %v5570 = vunpack.c.l.b16 %v5538
        %v5571 = vunpack.c.l.b16 %v5539
        %v5572 = vunpack.c.l.b16 %v5540
        %v5573 = vunpack.c.l.b16 %v5541
        %v5574 = vunpack.c.l.b16 %v5542
        %v5575 = vunpack.c.l.b16 %v5543
        %v5576 = vpack.c.b16 %v5561, %v5560
        %v5577 = vpack.c.b16 %v5563, %v5562
        %v5578 = vpack.c.b16 %v5565, %v5564
        %v5579 = vpack.c.b16 %v5567, %v5566
        %v5580 = vpack.c.b16 %v5569, %v5568
        %v5581 = vpack.c.b16 %v5571, %v5570
        %v5582 = vpack.c.b16 %v5573, %v5572
        %v5583 = vpack.c.b16 %v5575, %v5574
        %5592 = vmatprep.subr.bf16.mxu0 0
        %5593 = vmatpush1.bf16.msra.mxu0 %v5576
        %5594 = vmatprep.subr.bf16.mxu0 0
        %5595 = vmatpush1.bf16.msra.mxu0 %v5577
        %5596 = vmatprep.subr.bf16.mxu0 0
        %5597 = vmatpush1.bf16.msra.mxu0 %v5578
        %5598 = vmatprep.subr.bf16.mxu0 0
        %5599 = vmatpush1.bf16.msra.mxu0 %v5579
        %5600 = vmatprep.subr.bf16.mxu0 0
        %5601 = vmatpush1.bf16.msra.mxu0 %v5580
        %5602 = vmatprep.subr.bf16.mxu0 0
        %5603 = vmatpush1.bf16.msra.mxu0 %v5581
        %5604 = vmatprep.subr.bf16.mxu0 0
        %5605 = vmatpush1.bf16.msra.mxu0 %v5582
        %5606 = vmatprep.subr.bf16.mxu0 0
        %5607 = vmatpush1.bf16.msra.mxu0 %v5583
        %5608 = vmatprep.subr.bf16.mxu0 0
        %5609 = vmatpush1.bf16.msra.mxu0 0
        %5610 = vmatprep.subr.bf16.mxu0 0
        %5611 = vmatpush1.bf16.msra.mxu0 0
        %5612 = vmatprep.subr.bf16.mxu0 0
        %5613 = vmatpush1.bf16.msra.mxu0 0
        %5614 = vmatprep.subr.bf16.mxu0 0
        %5615 = vmatpush1.bf16.msra.mxu0 0
        %5616 = vmatprep.subr.bf16.mxu0 0
        %5617 = vmatpush1.bf16.msra.mxu0 0
        %5618 = vmatprep.subr.bf16.mxu0 0
        %5619 = vmatpush1.bf16.msra.mxu0 0
        %5620 = vmatprep.subr.bf16.mxu0 0
        %5621 = vmatpush1.bf16.msra.mxu0 0
        %5622 = vmatprep.subr.bf16.mxu0 0
        %5623 = vmatpush1.bf16.msra.mxu0 0
        %5624 = vmatprep.mubr.bf16.mxu0 0
        %5625 = vmatmul.mubr.bf16.gmra.mrb[0].mxu0 %v5526
        %v5626 = vpop.f32.mrb[0].mxu0
        %v5627 = vadd.f32 0.0, %v5626
        %v5628 = vpop.f32.mrb[0].mxu0
        %v5629 = vpop.f32.mrb[0].mxu0
        %v5630 = vadd.f32 0.0, %v5629
        %v5631 = vpop.f32.mrb[0].mxu0
        %5632 = vdwg.mxu0
        %v5633 = vadd.f32 %v5512, %v5627
        %v5634 = vadd.f32 %v5513, %v5630
        %v5635 = vld [vmem:[%s513 + $0x2] sm:$0xf]
        %v5636 = vld [vmem:[%s513 + $0x1a] sm:$0xf]
        %v5637 = vld [vmem:[%s513 + $0x32] sm:$0xf]
        %v5638 = vld [vmem:[%s513 + $0x4a] sm:$0xf]
        %v5643 = vcombine.low %v5635, %v5636
        %v5644 = vcombine.low %v5637, %v5638
        %v5647 = vpack.c.bf16 %v5644, %v5643
        %s5648 = scalar_lea.vmem [#allocation3], 1472
        %v5649 = vld [vmem:[%s5648] sm:$0xf]
        %v5650 = vld [vmem:[%s5648 + $0x4] sm:$0xf]
        %v5651 = vld [vmem:[%s5648 + $0x8] sm:$0xf]
        %v5652 = vld [vmem:[%s5648 + $0xc] sm:$0xf]
        %v5653 = vld [vmem:[%s5648 + $0x10] sm:$0xf]
        %v5654 = vld [vmem:[%s5648 + $0x14] sm:$0xf]
        %v5655 = vld [vmem:[%s5648 + $0x18] sm:$0xf]
        %v5656 = vld [vmem:[%s5648 + $0x1c] sm:$0xf]
        %v5657 = vld [vmem:[%s5648 + $0x20] sm:$0xf]
        %v5658 = vld [vmem:[%s5648 + $0x24] sm:$0xf]
        %v5659 = vld [vmem:[%s5648 + $0x28] sm:$0xf]
        %v5660 = vld [vmem:[%s5648 + $0x2c] sm:$0xf]
        %v5661 = vld [vmem:[%s5648 + $0x30] sm:$0xf]
        %v5662 = vld [vmem:[%s5648 + $0x34] sm:$0xf]
        %v5663 = vld [vmem:[%s5648 + $0x38] sm:$0xf]
        %v5664 = vld [vmem:[%s5648 + $0x3c] sm:$0xf]
        %v5681 = vunpack.c.l.b16 %v5649
        %v5682 = vunpack.c.l.b16 %v5650
        %v5683 = vunpack.c.l.b16 %v5651
        %v5684 = vunpack.c.l.b16 %v5652
        %v5685 = vunpack.c.l.b16 %v5653
        %v5686 = vunpack.c.l.b16 %v5654
        %v5687 = vunpack.c.l.b16 %v5655
        %v5688 = vunpack.c.l.b16 %v5656
        %v5689 = vunpack.c.l.b16 %v5657
        %v5690 = vunpack.c.l.b16 %v5658
        %v5691 = vunpack.c.l.b16 %v5659
        %v5692 = vunpack.c.l.b16 %v5660
        %v5693 = vunpack.c.l.b16 %v5661
        %v5694 = vunpack.c.l.b16 %v5662
        %v5695 = vunpack.c.l.b16 %v5663
        %v5696 = vunpack.c.l.b16 %v5664
        %v5697 = vpack.c.b16 %v5682, %v5681
        %v5698 = vpack.c.b16 %v5684, %v5683
        %v5699 = vpack.c.b16 %v5686, %v5685
        %v5700 = vpack.c.b16 %v5688, %v5687
        %v5701 = vpack.c.b16 %v5690, %v5689
        %v5702 = vpack.c.b16 %v5692, %v5691
        %v5703 = vpack.c.b16 %v5694, %v5693
        %v5704 = vpack.c.b16 %v5696, %v5695
        %5713 = vmatprep.subr.bf16.mxu0 0
        %5714 = vmatpush1.bf16.msra.mxu0 %v5697
        %5715 = vmatprep.subr.bf16.mxu0 0
        %5716 = vmatpush1.bf16.msra.mxu0 %v5698
        %5717 = vmatprep.subr.bf16.mxu0 0
        %5718 = vmatpush1.bf16.msra.mxu0 %v5699
        %5719 = vmatprep.subr.bf16.mxu0 0
        %5720 = vmatpush1.bf16.msra.mxu0 %v5700
        %5721 = vmatprep.subr.bf16.mxu0 0
        %5722 = vmatpush1.bf16.msra.mxu0 %v5701
        %5723 = vmatprep.subr.bf16.mxu0 0
        %5724 = vmatpush1.bf16.msra.mxu0 %v5702
        %5725 = vmatprep.subr.bf16.mxu0 0
        %5726 = vmatpush1.bf16.msra.mxu0 %v5703
        %5727 = vmatprep.subr.bf16.mxu0 0
        %5728 = vmatpush1.bf16.msra.mxu0 %v5704
        %5729 = vmatprep.subr.bf16.mxu0 0
        %5730 = vmatpush1.bf16.msra.mxu0 0
        %5731 = vmatprep.subr.bf16.mxu0 0
        %5732 = vmatpush1.bf16.msra.mxu0 0
        %5733 = vmatprep.subr.bf16.mxu0 0
        %5734 = vmatpush1.bf16.msra.mxu0 0
        %5735 = vmatprep.subr.bf16.mxu0 0
        %5736 = vmatpush1.bf16.msra.mxu0 0
        %5737 = vmatprep.subr.bf16.mxu0 0
        %5738 = vmatpush1.bf16.msra.mxu0 0
        %5739 = vmatprep.subr.bf16.mxu0 0
        %5740 = vmatpush1.bf16.msra.mxu0 0
        %5741 = vmatprep.subr.bf16.mxu0 0
        %5742 = vmatpush1.bf16.msra.mxu0 0
        %5743 = vmatprep.subr.bf16.mxu0 0
        %5744 = vmatpush1.bf16.msra.mxu0 0
        %5745 = vmatprep.mubr.bf16.mxu0 0
        %5746 = vmatmul.mubr.bf16.gmra.mrb[0].mxu0 %v5647
        %v5747 = vpop.f32.mrb[0].mxu0
        %v5748 = vadd.f32 0.0, %v5747
        %v5749 = vpop.f32.mrb[0].mxu0
        %v5750 = vpop.f32.mrb[0].mxu0
        %v5751 = vadd.f32 0.0, %v5750
        %v5752 = vpop.f32.mrb[0].mxu0
        %5753 = vdwg.mxu0
        %v5754 = vadd.f32 %v5633, %v5748
        %v5755 = vadd.f32 %v5634, %v5751
        %v5756 = vld [vmem:[%s2317] sm:$0xf]
        %v5757 = vld [vmem:[%s2317 + $0x18] sm:$0xf]
        %v5758 = vld [vmem:[%s2317 + $0x30] sm:$0xf]
        %v5759 = vld [vmem:[%s2317 + $0x48] sm:$0xf]
        %v5764 = vcombine.low %v5756, %v5757
        %v5765 = vcombine.low %v5758, %v5759
        %v5768 = vpack.c.bf16 %v5765, %v5764
        %s5769 = scalar_lea.vmem [#allocation3], 1536
        %v5770 = vld [vmem:[%s5769] sm:$0xf]
        %v5771 = vld [vmem:[%s5769 + $0x4] sm:$0xf]
        %v5772 = vld [vmem:[%s5769 + $0x8] sm:$0xf]
        %v5773 = vld [vmem:[%s5769 + $0xc] sm:$0xf]
        %v5774 = vld [vmem:[%s5769 + $0x10] sm:$0xf]
        %v5775 = vld [vmem:[%s5769 + $0x14] sm:$0xf]
        %v5776 = vld [vmem:[%s5769 + $0x18] sm:$0xf]
        %v5777 = vld [vmem:[%s5769 + $0x1c] sm:$0xf]
        %v5778 = vld [vmem:[%s5769 + $0x20] sm:$0xf]
        %v5779 = vld [vmem:[%s5769 + $0x24] sm:$0xf]
        %v5780 = vld [vmem:[%s5769 + $0x28] sm:$0xf]
        %v5781 = vld [vmem:[%s5769 + $0x2c] sm:$0xf]
        %v5782 = vld [vmem:[%s5769 + $0x30] sm:$0xf]
        %v5783 = vld [vmem:[%s5769 + $0x34] sm:$0xf]
        %v5784 = vld [vmem:[%s5769 + $0x38] sm:$0xf]
        %v5785 = vld [vmem:[%s5769 + $0x3c] sm:$0xf]
        %v5802 = vunpack.c.l.b16 %v5770
        %v5803 = vunpack.c.l.b16 %v5771
        %v5804 = vunpack.c.l.b16 %v5772
        %v5805 = vunpack.c.l.b16 %v5773
        %v5806 = vunpack.c.l.b16 %v5774
        %v5807 = vunpack.c.l.b16 %v5775
        %v5808 = vunpack.c.l.b16 %v5776
        %v5809 = vunpack.c.l.b16 %v5777
        %v5810 = vunpack.c.l.b16 %v5778
        %v5811 = vunpack.c.l.b16 %v5779
        %v5812 = vunpack.c.l.b16 %v5780
        %v5813 = vunpack.c.l.b16 %v5781
        %v5814 = vunpack.c.l.b16 %v5782
        %v5815 = vunpack.c.l.b16 %v5783
        %v5816 = vunpack.c.l.b16 %v5784
        %v5817 = vunpack.c.l.b16 %v5785
        %v5818 = vpack.c.b16 %v5803, %v5802
        %v5819 = vpack.c.b16 %v5805, %v5804
        %v5820 = vpack.c.b16 %v5807, %v5806
        %v5821 = vpack.c.b16 %v5809, %v5808
        %v5822 = vpack.c.b16 %v5811, %v5810
        %v5823 = vpack.c.b16 %v5813, %v5812
        %v5824 = vpack.c.b16 %v5815, %v5814
        %v5825 = vpack.c.b16 %v5817, %v5816
        %5834 = vmatprep.subr.bf16.mxu0 0
        %5835 = vmatpush1.bf16.msra.mxu0 %v5818
        %5836 = vmatprep.subr.bf16.mxu0 0
        %5837 = vmatpush1.bf16.msra.mxu0 %v5819
        %5838 = vmatprep.subr.bf16.mxu0 0
        %5839 = vmatpush1.bf16.msra.mxu0 %v5820
        %5840 = vmatprep.subr.bf16.mxu0 0
        %5841 = vmatpush1.bf16.msra.mxu0 %v5821
        %5842 = vmatprep.subr.bf16.mxu0 0
        %5843 = vmatpush1.bf16.msra.mxu0 %v5822
        %5844 = vmatprep.subr.bf16.mxu0 0
        %5845 = vmatpush1.bf16.msra.mxu0 %v5823
        %5846 = vmatprep.subr.bf16.mxu0 0
        %5847 = vmatpush1.bf16.msra.mxu0 %v5824
        %5848 = vmatprep.subr.bf16.mxu0 0
        %5849 = vmatpush1.bf16.msra.mxu0 %v5825
        %5850 = vmatprep.subr.bf16.mxu0 0
        %5851 = vmatpush1.bf16.msra.mxu0 0
        %5852 = vmatprep.subr.bf16.mxu0 0
        %5853 = vmatpush1.bf16.msra.mxu0 0
        %5854 = vmatprep.subr.bf16.mxu0 0
        %5855 = vmatpush1.bf16.msra.mxu0 0
        %5856 = vmatprep.subr.bf16.mxu0 0
        %5857 = vmatpush1.bf16.msra.mxu0 0
        %5858 = vmatprep.subr.bf16.mxu0 0
        %5859 = vmatpush1.bf16.msra.mxu0 0
        %5860 = vmatprep.subr.bf16.mxu0 0
        %5861 = vmatpush1.bf16.msra.mxu0 0
        %5862 = vmatprep.subr.bf16.mxu0 0
        %5863 = vmatpush1.bf16.msra.mxu0 0
        %5864 = vmatprep.subr.bf16.mxu0 0
        %5865 = vmatpush1.bf16.msra.mxu0 0
        %5866 = vmatprep.mubr.bf16.mxu0 0
        %5867 = vmatmul.mubr.bf16.gmra.mrb[0].mxu0 %v5768
        %v5868 = vpop.f32.mrb[0].mxu0
        %v5869 = vadd.f32 0.0, %v5868
        %v5870 = vpop.f32.mrb[0].mxu0
        %v5871 = vpop.f32.mrb[0].mxu0
        %v5872 = vadd.f32 0.0, %v5871
        %v5873 = vpop.f32.mrb[0].mxu0
        %5874 = vdwg.mxu0
        %v5875 = vadd.f32 %v5754, %v5869
        %v5876 = vadd.f32 %v5755, %v5872
        %v5877 = vld [vmem:[%s2317 + $0x1] sm:$0xf]
        %v5878 = vld [vmem:[%s2317 + $0x19] sm:$0xf]
        %v5879 = vld [vmem:[%s2317 + $0x31] sm:$0xf]
        %v5880 = vld [vmem:[%s2317 + $0x49] sm:$0xf]
        %v5885 = vcombine.low %v5877, %v5878
        %v5886 = vcombine.low %v5879, %v5880
        %v5889 = vpack.c.bf16 %v5886, %v5885
        %s5890 = scalar_lea.vmem [#allocation3], 1600
        %v5891 = vld [vmem:[%s5890] sm:$0xf]
        %v5892 = vld [vmem:[%s5890 + $0x4] sm:$0xf]
        %v5893 = vld [vmem:[%s5890 + $0x8] sm:$0xf]
        %v5894 = vld [vmem:[%s5890 + $0xc] sm:$0xf]
        %v5895 = vld [vmem:[%s5890 + $0x10] sm:$0xf]
        %v5896 = vld [vmem:[%s5890 + $0x14] sm:$0xf]
        %v5897 = vld [vmem:[%s5890 + $0x18] sm:$0xf]
        %v5898 = vld [vmem:[%s5890 + $0x1c] sm:$0xf]
        %v5899 = vld [vmem:[%s5890 + $0x20] sm:$0xf]
        %v5900 = vld [vmem:[%s5890 + $0x24] sm:$0xf]
        %v5901 = vld [vmem:[%s5890 + $0x28] sm:$0xf]
        %v5902 = vld [vmem:[%s5890 + $0x2c] sm:$0xf]
        %v5903 = vld [vmem:[%s5890 + $0x30] sm:$0xf]
        %v5904 = vld [vmem:[%s5890 + $0x34] sm:$0xf]
        %v5905 = vld [vmem:[%s5890 + $0x38] sm:$0xf]
        %v5906 = vld [vmem:[%s5890 + $0x3c] sm:$0xf]
        %v5923 = vunpack.c.l.b16 %v5891
        %v5924 = vunpack.c.l.b16 %v5892
        %v5925 = vunpack.c.l.b16 %v5893
        %v5926 = vunpack.c.l.b16 %v5894
        %v5927 = vunpack.c.l.b16 %v5895
        %v5928 = vunpack.c.l.b16 %v5896
        %v5929 = vunpack.c.l.b16 %v5897
        %v5930 = vunpack.c.l.b16 %v5898
        %v5931 = vunpack.c.l.b16 %v5899
        %v5932 = vunpack.c.l.b16 %v5900
        %v5933 = vunpack.c.l.b16 %v5901
        %v5934 = vunpack.c.l.b16 %v5902
        %v5935 = vunpack.c.l.b16 %v5903
        %v5936 = vunpack.c.l.b16 %v5904
        %v5937 = vunpack.c.l.b16 %v5905
        %v5938 = vunpack.c.l.b16 %v5906
        %v5939 = vpack.c.b16 %v5924, %v5923
        %v5940 = vpack.c.b16 %v5926, %v5925
        %v5941 = vpack.c.b16 %v5928, %v5927
        %v5942 = vpack.c.b16 %v5930, %v5929
        %v5943 = vpack.c.b16 %v5932, %v5931
        %v5944 = vpack.c.b16 %v5934, %v5933
        %v5945 = vpack.c.b16 %v5936, %v5935
        %v5946 = vpack.c.b16 %v5938, %v5937
        %5955 = vmatprep.subr.bf16.mxu0 0
        %5956 = vmatpush1.bf16.msra.mxu0 %v5939
        %5957 = vmatprep.subr.bf16.mxu0 0
        %5958 = vmatpush1.bf16.msra.mxu0 %v5940
        %5959 = vmatprep.subr.bf16.mxu0 0
        %5960 = vmatpush1.bf16.msra.mxu0 %v5941
        %5961 = vmatprep.subr.bf16.mxu0 0
        %5962 = vmatpush1.bf16.msra.mxu0 %v5942
        %5963 = vmatprep.subr.bf16.mxu0 0
        %5964 = vmatpush1.bf16.msra.mxu0 %v5943
        %5965 = vmatprep.subr.bf16.mxu0 0
        %5966 = vmatpush1.bf16.msra.mxu0 %v5944
        %5967 = vmatprep.subr.bf16.mxu0 0
        %5968 = vmatpush1.bf16.msra.mxu0 %v5945
        %5969 = vmatprep.subr.bf16.mxu0 0
        %5970 = vmatpush1.bf16.msra.mxu0 %v5946
        %5971 = vmatprep.subr.bf16.mxu0 0
        %5972 = vmatpush1.bf16.msra.mxu0 0
        %5973 = vmatprep.subr.bf16.mxu0 0
        %5974 = vmatpush1.bf16.msra.mxu0 0
        %5975 = vmatprep.subr.bf16.mxu0 0
        %5976 = vmatpush1.bf16.msra.mxu0 0
        %5977 = vmatprep.subr.bf16.mxu0 0
        %5978 = vmatpush1.bf16.msra.mxu0 0
        %5979 = vmatprep.subr.bf16.mxu0 0
        %5980 = vmatpush1.bf16.msra.mxu0 0
        %5981 = vmatprep.subr.bf16.mxu0 0
        %5982 = vmatpush1.bf16.msra.mxu0 0
        %5983 = vmatprep.subr.bf16.mxu0 0
        %5984 = vmatpush1.bf16.msra.mxu0 0
        %5985 = vmatprep.subr.bf16.mxu0 0
        %5986 = vmatpush1.bf16.msra.mxu0 0
        %5987 = vmatprep.mubr.bf16.mxu0 0
        %5988 = vmatmul.mubr.bf16.gmra.mrb[0].mxu0 %v5889
        %v5989 = vpop.f32.mrb[0].mxu0
        %v5990 = vadd.f32 0.0, %v5989
        %v5991 = vpop.f32.mrb[0].mxu0
        %v5992 = vpop.f32.mrb[0].mxu0
        %v5993 = vadd.f32 0.0, %v5992
        %v5994 = vpop.f32.mrb[0].mxu0
        %5995 = vdwg.mxu0
        %v5996 = vadd.f32 %v5875, %v5990
        %v5997 = vadd.f32 %v5876, %v5993
        %v5998 = vld [vmem:[%s2317 + $0x2] sm:$0xf]
        %v5999 = vld [vmem:[%s2317 + $0x1a] sm:$0xf]
        %v6000 = vld [vmem:[%s2317 + $0x32] sm:$0xf]
        %v6001 = vld [vmem:[%s2317 + $0x4a] sm:$0xf]
        %v6006 = vcombine.low %v5998, %v5999
        %v6007 = vcombine.low %v6000, %v6001
        %v6010 = vpack.c.bf16 %v6007, %v6006
        %s6011 = scalar_lea.vmem [#allocation3], 1664
        %v6012 = vld [vmem:[%s6011] sm:$0xf]
        %v6013 = vld [vmem:[%s6011 + $0x4] sm:$0xf]
        %v6014 = vld [vmem:[%s6011 + $0x8] sm:$0xf]
        %v6015 = vld [vmem:[%s6011 + $0xc] sm:$0xf]
        %v6016 = vld [vmem:[%s6011 + $0x10] sm:$0xf]
        %v6017 = vld [vmem:[%s6011 + $0x14] sm:$0xf]
        %v6018 = vld [vmem:[%s6011 + $0x18] sm:$0xf]
        %v6019 = vld [vmem:[%s6011 + $0x1c] sm:$0xf]
        %v6020 = vld [vmem:[%s6011 + $0x20] sm:$0xf]
        %v6021 = vld [vmem:[%s6011 + $0x24] sm:$0xf]
        %v6022 = vld [vmem:[%s6011 + $0x28] sm:$0xf]
        %v6023 = vld [vmem:[%s6011 + $0x2c] sm:$0xf]
        %v6024 = vld [vmem:[%s6011 + $0x30] sm:$0xf]
        %v6025 = vld [vmem:[%s6011 + $0x34] sm:$0xf]
        %v6026 = vld [vmem:[%s6011 + $0x38] sm:$0xf]
        %v6027 = vld [vmem:[%s6011 + $0x3c] sm:$0xf]
        %v6044 = vunpack.c.l.b16 %v6012
        %v6045 = vunpack.c.l.b16 %v6013
        %v6046 = vunpack.c.l.b16 %v6014
        %v6047 = vunpack.c.l.b16 %v6015
        %v6048 = vunpack.c.l.b16 %v6016
        %v6049 = vunpack.c.l.b16 %v6017
        %v6050 = vunpack.c.l.b16 %v6018
        %v6051 = vunpack.c.l.b16 %v6019
        %v6052 = vunpack.c.l.b16 %v6020
        %v6053 = vunpack.c.l.b16 %v6021
        %v6054 = vunpack.c.l.b16 %v6022
        %v6055 = vunpack.c.l.b16 %v6023
        %v6056 = vunpack.c.l.b16 %v6024
        %v6057 = vunpack.c.l.b16 %v6025
        %v6058 = vunpack.c.l.b16 %v6026
        %v6059 = vunpack.c.l.b16 %v6027
        %v6060 = vpack.c.b16 %v6045, %v6044
        %v6061 = vpack.c.b16 %v6047, %v6046
        %v6062 = vpack.c.b16 %v6049, %v6048
        %v6063 = vpack.c.b16 %v6051, %v6050
        %v6064 = vpack.c.b16 %v6053, %v6052
        %v6065 = vpack.c.b16 %v6055, %v6054
        %v6066 = vpack.c.b16 %v6057, %v6056
        %v6067 = vpack.c.b16 %v6059, %v6058
        %6076 = vmatprep.subr.bf16.mxu0 0
        %6077 = vmatpush1.bf16.msra.mxu0 %v6060
        %6078 = vmatprep.subr.bf16.mxu0 0
        %6079 = vmatpush1.bf16.msra.mxu0 %v6061
        %6080 = vmatprep.subr.bf16.mxu0 0
        %6081 = vmatpush1.bf16.msra.mxu0 %v6062
        %6082 = vmatprep.subr.bf16.mxu0 0
        %6083 = vmatpush1.bf16.msra.mxu0 %v6063
        %6084 = vmatprep.subr.bf16.mxu0 0
        %6085 = vmatpush1.bf16.msra.mxu0 %v6064
        %6086 = vmatprep.subr.bf16.mxu0 0
        %6087 = vmatpush1.bf16.msra.mxu0 %v6065
        %6088 = vmatprep.subr.bf16.mxu0 0
        %6089 = vmatpush1.bf16.msra.mxu0 %v6066
        %6090 = vmatprep.subr.bf16.mxu0 0
        %6091 = vmatpush1.bf16.msra.mxu0 %v6067
        %6092 = vmatprep.subr.bf16.mxu0 0
        %6093 = vmatpush1.bf16.msra.mxu0 0
        %6094 = vmatprep.subr.bf16.mxu0 0
        %6095 = vmatpush1.bf16.msra.mxu0 0
        %6096 = vmatprep.subr.bf16.mxu0 0
        %6097 = vmatpush1.bf16.msra.mxu0 0
        %6098 = vmatprep.subr.bf16.mxu0 0
        %6099 = vmatpush1.bf16.msra.mxu0 0
        %6100 = vmatprep.subr.bf16.mxu0 0
        %6101 = vmatpush1.bf16.msra.mxu0 0
        %6102 = vmatprep.subr.bf16.mxu0 0
        %6103 = vmatpush1.bf16.msra.mxu0 0
        %6104 = vmatprep.subr.bf16.mxu0 0
        %6105 = vmatpush1.bf16.msra.mxu0 0
        %6106 = vmatprep.subr.bf16.mxu0 0
        %6107 = vmatpush1.bf16.msra.mxu0 0
        %6108 = vmatprep.mubr.bf16.mxu0 0
        %6109 = vmatmul.mubr.bf16.gmra.mrb[0].mxu0 %v6010
        %v6110 = vpop.f32.mrb[0].mxu0
        %v6111 = vadd.f32 0.0, %v6110
        %v6112 = vpop.f32.mrb[0].mxu0
        %v6113 = vpop.f32.mrb[0].mxu0
        %v6114 = vadd.f32 0.0, %v6113
        %v6115 = vpop.f32.mrb[0].mxu0
        %6116 = vdwg.mxu0
        %v6117 = vadd.f32 %v5996, %v6111
        %v6118 = vadd.f32 %v5997, %v6114
        %s6119 = scalar_lea.vmem [#allocation6], 2
        %v6120 = vld [vmem:[%s6119] sm:$0x1]
        %v6122 = vlaneseq
        %v6123 = vshrl.u32 %v6122, 7
        %v6124 = vsub.s32 0, %v6123
        %v6125 = vrot.slane %v6120, %v6124
        %v6127 = vadd.f32 %v6117, %v6125
        %v6128 = vadd.f32 %v6118, %v6125
        %v6129 = vmax.f32 %v6127, 0.0
        %v6130 = vmax.f32 %v6128, 0.0
        %v6133 = vcombine.high %v6129, %v6129
        %v6134 = vcombine.high %v6130, %v6130
        %v6137 = vmax.f32 %v6129, %v6133
        %v6138 = vmax.f32 %v6130, %v6134
        %v6141 = vrot.slane %v6137, 5
        %v6142 = vrot.slane %v6141, 4
        %v6143 = vrot.slane %v6138, 5
        %v6144 = vrot.slane %v6143, 4
        %v6147 = vmax.f32 %v6137, %v6142
        %v6148 = vmax.f32 %v6138, %v6144
        %v6151 = vlaneseq
        %v6152 = vshrl.u32 %v6151, 7
        %v6153 = vsub.s32 2, %v6152
        %v6154 = vrot.slane %v6147, %v6153
        %v6155 = vlaneseq
        %v6156 = vshrl.u32 %v6155, 7
        %v6157 = vsub.s32 2, %v6156
        %v6158 = vrot.slane %v6148, %v6157
        %v6161 = vsel %vm3515, %v6147, %v6154
        %v6162 = vsel %vm3515, %v6148, %v6158
        %6163 = vst [vmem:[#allocation2] sm:$0xf] 0.0
        %6164 = vst [vmem:[#allocation2 + $0x18] sm:$0xf] 0.0
        %6165 = vst [vmem:[#allocation2 + $0x30] sm:$0xf] 0.0
        %6166 = vst [vmem:[#allocation2 + $0x48] sm:$0xf] 0.0
        %6167 = vst [vmem:[%s513 + $0x1] sm:$0x3] %v6161
        %6168 = vst [vmem:[%s513 + $0x19] sm:$0x3] %v6162
        %v6169 = vld [vmem:[#allocation2] sm:$0x3]
        %v6170 = vld [vmem:[#allocation2 + $0x18] sm:$0x3]
        %v6173 = vcombine.low %v6169, %v6170
        %v6175 = vunpack.c.l.s4 1983009808
        %v6176 = vunpack.c.0.s8 %v6175
        %v6177 = vlaneseq
        %v6178 = vshrl.u32 %v6177, 7
        %v6179 = vsub.s32 %v6176, %v6178
        %v6180 = vrot.slane %v6173, %v6179
        %v6182 = vpack.c.bf16 %v6180, %v6180
        %s6183 = scalar_lea.vmem [#allocation3], 1728
        %v6184 = vld [vmem:[%s6183] sm:$0xf]
        %v6185 = vld [vmem:[%s6183 + $0x4] sm:$0xf]
        %v6186 = vld [vmem:[%s6183 + $0x8] sm:$0xf]
        %v6187 = vld [vmem:[%s6183 + $0xc] sm:$0xf]
        %v6188 = vld [vmem:[%s6183 + $0x10] sm:$0xf]
        %v6189 = vld [vmem:[%s6183 + $0x14] sm:$0xf]
        %v6190 = vld [vmem:[%s6183 + $0x18] sm:$0xf]
        %v6191 = vld [vmem:[%s6183 + $0x1c] sm:$0xf]
        %v6192 = vld [vmem:[%s6183 + $0x20] sm:$0xf]
        %v6193 = vld [vmem:[%s6183 + $0x24] sm:$0xf]
        %v6194 = vld [vmem:[%s6183 + $0x28] sm:$0xf]
        %v6195 = vld [vmem:[%s6183 + $0x2c] sm:$0xf]
        %v6196 = vld [vmem:[%s6183 + $0x30] sm:$0xf]
        %v6197 = vld [vmem:[%s6183 + $0x34] sm:$0xf]
        %v6198 = vld [vmem:[%s6183 + $0x38] sm:$0xf]
        %v6199 = vld [vmem:[%s6183 + $0x3c] sm:$0xf]
        %v6200 = vld [vmem:[#allocation2 + $0x1] sm:$0x3]
        %v6201 = vld [vmem:[#allocation2 + $0x19] sm:$0x3]
        %v6204 = vcombine.low %v6200, %v6201
        %v6206 = vunpack.c.l.s4 1983009808
        %v6207 = vunpack.c.0.s8 %v6206
        %v6208 = vlaneseq
        %v6209 = vshrl.u32 %v6208, 7
        %v6210 = vsub.s32 %v6207, %v6209
        %v6211 = vrot.slane %v6204, %v6210
        %v6213 = vpack.c.bf16 %v6211, %v6211
        %s6214 = scalar_lea.vmem [#allocation3], 1792
        %v6215 = vld [vmem:[%s6214] sm:$0xf]
        %v6216 = vld [vmem:[%s6214 + $0x4] sm:$0xf]
        %v6217 = vld [vmem:[%s6214 + $0x8] sm:$0xf]
        %v6218 = vld [vmem:[%s6214 + $0xc] sm:$0xf]
        %v6219 = vld [vmem:[%s6214 + $0x10] sm:$0xf]
        %v6220 = vld [vmem:[%s6214 + $0x14] sm:$0xf]
        %v6221 = vld [vmem:[%s6214 + $0x18] sm:$0xf]
        %v6222 = vld [vmem:[%s6214 + $0x1c] sm:$0xf]
        %v6223 = vld [vmem:[%s6214 + $0x20] sm:$0xf]
        %v6224 = vld [vmem:[%s6214 + $0x24] sm:$0xf]
        %v6225 = vld [vmem:[%s6214 + $0x28] sm:$0xf]
        %v6226 = vld [vmem:[%s6214 + $0x2c] sm:$0xf]
        %v6227 = vld [vmem:[%s6214 + $0x30] sm:$0xf]
        %v6228 = vld [vmem:[%s6214 + $0x34] sm:$0xf]
        %v6229 = vld [vmem:[%s6214 + $0x38] sm:$0xf]
        %v6230 = vld [vmem:[%s6214 + $0x3c] sm:$0xf]
        %v6247 = vunpack.c.l.b16 %v6215
        %v6248 = vunpack.c.l.b16 %v6216
        %v6249 = vunpack.c.l.b16 %v6217
        %v6250 = vunpack.c.l.b16 %v6218
        %v6251 = vunpack.c.l.b16 %v6219
        %v6252 = vunpack.c.l.b16 %v6220
        %v6253 = vunpack.c.l.b16 %v6221
        %v6254 = vunpack.c.l.b16 %v6222
        %v6255 = vunpack.c.l.b16 %v6223
        %v6256 = vunpack.c.l.b16 %v6224
        %v6257 = vunpack.c.l.b16 %v6225
        %v6258 = vunpack.c.l.b16 %v6226
        %v6259 = vunpack.c.l.b16 %v6227
        %v6260 = vunpack.c.l.b16 %v6228
        %v6261 = vunpack.c.l.b16 %v6229
        %v6262 = vunpack.c.l.b16 %v6230
        %v6263 = vpack.c.b16 %v6248, %v6247
        %v6264 = vpack.c.b16 %v6250, %v6249
        %v6265 = vpack.c.b16 %v6252, %v6251
        %v6266 = vpack.c.b16 %v6254, %v6253
        %v6267 = vpack.c.b16 %v6256, %v6255
        %v6268 = vpack.c.b16 %v6258, %v6257
        %v6269 = vpack.c.b16 %v6260, %v6259
        %v6270 = vpack.c.b16 %v6262, %v6261
        %6279 = vmatprep.subr.bf16.mxu0 0
        %6280 = vmatpush1.bf16.msra.mxu0 %v6263
        %6281 = vmatprep.subr.bf16.mxu0 0
        %6282 = vmatpush1.bf16.msra.mxu0 %v6264
        %6283 = vmatprep.subr.bf16.mxu0 0
        %6284 = vmatpush1.bf16.msra.mxu0 %v6265
        %6285 = vmatprep.subr.bf16.mxu0 0
        %6286 = vmatpush1.bf16.msra.mxu0 %v6266
        %6287 = vmatprep.subr.bf16.mxu0 0
        %6288 = vmatpush1.bf16.msra.mxu0 %v6267
        %6289 = vmatprep.subr.bf16.mxu0 0
        %6290 = vmatpush1.bf16.msra.mxu0 %v6268
        %6291 = vmatprep.subr.bf16.mxu0 0
        %6292 = vmatpush1.bf16.msra.mxu0 %v6269
        %6293 = vmatprep.subr.bf16.mxu0 0
        %6294 = vmatpush1.bf16.msra.mxu0 %v6270
        %6295 = vmatprep.subr.bf16.mxu0 0
        %6296 = vmatpush1.bf16.msra.mxu0 0
        %6297 = vmatprep.subr.bf16.mxu0 0
        %6298 = vmatpush1.bf16.msra.mxu0 0
        %6299 = vmatprep.subr.bf16.mxu0 0
        %6300 = vmatpush1.bf16.msra.mxu0 0
        %6301 = vmatprep.subr.bf16.mxu0 0
        %6302 = vmatpush1.bf16.msra.mxu0 0
        %6303 = vmatprep.subr.bf16.mxu0 0
        %6304 = vmatpush1.bf16.msra.mxu0 0
        %6305 = vmatprep.subr.bf16.mxu0 0
        %6306 = vmatpush1.bf16.msra.mxu0 0
        %6307 = vmatprep.subr.bf16.mxu0 0
        %6308 = vmatpush1.bf16.msra.mxu0 0
        %6309 = vmatprep.subr.bf16.mxu0 0
        %6310 = vmatpush1.bf16.msra.mxu0 0
        %6311 = vmatprep.mubr.bf16.mxu0 0
        %6312 = vmatmul.mubr.bf16.gmra.mrb[0].mxu0 %v6213
        %v6313 = vpop.f32.mrb[0].mxu0
        %v6314 = vadd.f32 0.0, %v6313
        %v6315 = vpop.f32.mrb[0].mxu0
        %v6316 = vpop.f32.mrb[0].mxu0
        %v6317 = vpop.f32.mrb[0].mxu0
        %6318 = vdwg.mxu0
        %v6335 = vunpack.c.l.b16 %v6184
        %v6336 = vunpack.c.l.b16 %v6185
        %v6337 = vunpack.c.l.b16 %v6186
        %v6338 = vunpack.c.l.b16 %v6187
        %v6339 = vunpack.c.l.b16 %v6188
        %v6340 = vunpack.c.l.b16 %v6189
        %v6341 = vunpack.c.l.b16 %v6190
        %v6342 = vunpack.c.l.b16 %v6191
        %v6343 = vunpack.c.l.b16 %v6192
        %v6344 = vunpack.c.l.b16 %v6193
        %v6345 = vunpack.c.l.b16 %v6194
        %v6346 = vunpack.c.l.b16 %v6195
        %v6347 = vunpack.c.l.b16 %v6196
        %v6348 = vunpack.c.l.b16 %v6197
        %v6349 = vunpack.c.l.b16 %v6198
        %v6350 = vunpack.c.l.b16 %v6199
        %v6351 = vpack.c.b16 %v6336, %v6335
        %v6352 = vpack.c.b16 %v6338, %v6337
        %v6353 = vpack.c.b16 %v6340, %v6339
        %v6354 = vpack.c.b16 %v6342, %v6341
        %v6355 = vpack.c.b16 %v6344, %v6343
        %v6356 = vpack.c.b16 %v6346, %v6345
        %v6357 = vpack.c.b16 %v6348, %v6347
        %v6358 = vpack.c.b16 %v6350, %v6349
        %6367 = vmatprep.subr.bf16.mxu0 0
        %6368 = vmatpush1.bf16.msra.mxu0 %v6351
        %6369 = vmatprep.subr.bf16.mxu0 0
        %6370 = vmatpush1.bf16.msra.mxu0 %v6352
        %6371 = vmatprep.subr.bf16.mxu0 0
        %6372 = vmatpush1.bf16.msra.mxu0 %v6353
        %6373 = vmatprep.subr.bf16.mxu0 0
        %6374 = vmatpush1.bf16.msra.mxu0 %v6354
        %6375 = vmatprep.subr.bf16.mxu0 0
        %6376 = vmatpush1.bf16.msra.mxu0 %v6355
        %6377 = vmatprep.subr.bf16.mxu0 0
        %6378 = vmatpush1.bf16.msra.mxu0 %v6356
        %6379 = vmatprep.subr.bf16.mxu0 0
        %6380 = vmatpush1.bf16.msra.mxu0 %v6357
        %6381 = vmatprep.subr.bf16.mxu0 0
        %6382 = vmatpush1.bf16.msra.mxu0 %v6358
        %6383 = vmatprep.subr.bf16.mxu0 0
        %6384 = vmatpush1.bf16.msra.mxu0 0
        %6385 = vmatprep.subr.bf16.mxu0 0
        %6386 = vmatpush1.bf16.msra.mxu0 0
        %6387 = vmatprep.subr.bf16.mxu0 0
        %6388 = vmatpush1.bf16.msra.mxu0 0
        %6389 = vmatprep.subr.bf16.mxu0 0
        %6390 = vmatpush1.bf16.msra.mxu0 0
        %6391 = vmatprep.subr.bf16.mxu0 0
        %6392 = vmatpush1.bf16.msra.mxu0 0
        %6393 = vmatprep.subr.bf16.mxu0 0
        %6394 = vmatpush1.bf16.msra.mxu0 0
        %6395 = vmatprep.subr.bf16.mxu0 0
        %6396 = vmatpush1.bf16.msra.mxu0 0
        %6397 = vmatprep.subr.bf16.mxu0 0
        %6398 = vmatpush1.bf16.msra.mxu0 0
        %6399 = vmatprep.mubr.bf16.mxu0 0
        %6400 = vmatmul.mubr.bf16.gmra.mrb[0].mxu0 %v6182
        %v6401 = vpop.f32.mrb[0].mxu0
        %v6402 = vadd.f32 %v6314, %v6401
        %v6403 = vpop.f32.mrb[0].mxu0
        %v6404 = vpop.f32.mrb[0].mxu0
        %v6405 = vpop.f32.mrb[0].mxu0
        %6406 = vdwg.mxu0
        %v6407 = vld [vmem:[#allocation2 + $0x2] sm:$0x3]
        %v6408 = vld [vmem:[#allocation2 + $0x1a] sm:$0x3]
        %v6411 = vcombine.low %v6407, %v6408
        %v6413 = vunpack.c.l.s4 1983009808
        %v6414 = vunpack.c.0.s8 %v6413
        %v6415 = vlaneseq
        %v6416 = vshrl.u32 %v6415, 7
        %v6417 = vsub.s32 %v6414, %v6416
        %v6418 = vrot.slane %v6411, %v6417
        %v6420 = vpack.c.bf16 %v6418, %v6418
        %s6421 = scalar_lea.vmem [#allocation3], 1856
        %v6422 = vld [vmem:[%s6421] sm:$0xf]
        %v6423 = vld [vmem:[%s6421 + $0x4] sm:$0xf]
        %v6424 = vld [vmem:[%s6421 + $0x8] sm:$0xf]
        %v6425 = vld [vmem:[%s6421 + $0xc] sm:$0xf]
        %v6426 = vld [vmem:[%s6421 + $0x10] sm:$0xf]
        %v6427 = vld [vmem:[%s6421 + $0x14] sm:$0xf]
        %v6428 = vld [vmem:[%s6421 + $0x18] sm:$0xf]
        %v6429 = vld [vmem:[%s6421 + $0x1c] sm:$0xf]
        %v6430 = vld [vmem:[%s6421 + $0x20] sm:$0xf]
        %v6431 = vld [vmem:[%s6421 + $0x24] sm:$0xf]
        %v6432 = vld [vmem:[%s6421 + $0x28] sm:$0xf]
        %v6433 = vld [vmem:[%s6421 + $0x2c] sm:$0xf]
        %v6434 = vld [vmem:[%s6421 + $0x30] sm:$0xf]
        %v6435 = vld [vmem:[%s6421 + $0x34] sm:$0xf]
        %v6436 = vld [vmem:[%s6421 + $0x38] sm:$0xf]
        %v6437 = vld [vmem:[%s6421 + $0x3c] sm:$0xf]
        %v6454 = vunpack.c.l.b16 %v6422
        %v6455 = vunpack.c.l.b16 %v6423
        %v6456 = vunpack.c.l.b16 %v6424
        %v6457 = vunpack.c.l.b16 %v6425
        %v6458 = vunpack.c.l.b16 %v6426
        %v6459 = vunpack.c.l.b16 %v6427
        %v6460 = vunpack.c.l.b16 %v6428
        %v6461 = vunpack.c.l.b16 %v6429
        %v6462 = vunpack.c.l.b16 %v6430
        %v6463 = vunpack.c.l.b16 %v6431
        %v6464 = vunpack.c.l.b16 %v6432
        %v6465 = vunpack.c.l.b16 %v6433
        %v6466 = vunpack.c.l.b16 %v6434
        %v6467 = vunpack.c.l.b16 %v6435
        %v6468 = vunpack.c.l.b16 %v6436
        %v6469 = vunpack.c.l.b16 %v6437
        %v6470 = vpack.c.b16 %v6455, %v6454
        %v6471 = vpack.c.b16 %v6457, %v6456
        %v6472 = vpack.c.b16 %v6459, %v6458
        %v6473 = vpack.c.b16 %v6461, %v6460
        %v6474 = vpack.c.b16 %v6463, %v6462
        %v6475 = vpack.c.b16 %v6465, %v6464
        %v6476 = vpack.c.b16 %v6467, %v6466
        %v6477 = vpack.c.b16 %v6469, %v6468
        %6486 = vmatprep.subr.bf16.mxu0 0
        %6487 = vmatpush1.bf16.msra.mxu0 %v6470
        %6488 = vmatprep.subr.bf16.mxu0 0
        %6489 = vmatpush1.bf16.msra.mxu0 %v6471
        %6490 = vmatprep.subr.bf16.mxu0 0
        %6491 = vmatpush1.bf16.msra.mxu0 %v6472
        %6492 = vmatprep.subr.bf16.mxu0 0
        %6493 = vmatpush1.bf16.msra.mxu0 %v6473
        %6494 = vmatprep.subr.bf16.mxu0 0
        %6495 = vmatpush1.bf16.msra.mxu0 %v6474
        %6496 = vmatprep.subr.bf16.mxu0 0
        %6497 = vmatpush1.bf16.msra.mxu0 %v6475
        %6498 = vmatprep.subr.bf16.mxu0 0
        %6499 = vmatpush1.bf16.msra.mxu0 %v6476
        %6500 = vmatprep.subr.bf16.mxu0 0
        %6501 = vmatpush1.bf16.msra.mxu0 %v6477
        %6502 = vmatprep.subr.bf16.mxu0 0
        %6503 = vmatpush1.bf16.msra.mxu0 0
        %6504 = vmatprep.subr.bf16.mxu0 0
        %6505 = vmatpush1.bf16.msra.mxu0 0
        %6506 = vmatprep.subr.bf16.mxu0 0
        %6507 = vmatpush1.bf16.msra.mxu0 0
        %6508 = vmatprep.subr.bf16.mxu0 0
        %6509 = vmatpush1.bf16.msra.mxu0 0
        %6510 = vmatprep.subr.bf16.mxu0 0
        %6511 = vmatpush1.bf16.msra.mxu0 0
        %6512 = vmatprep.subr.bf16.mxu0 0
        %6513 = vmatpush1.bf16.msra.mxu0 0
        %6514 = vmatprep.subr.bf16.mxu0 0
        %6515 = vmatpush1.bf16.msra.mxu0 0
        %6516 = vmatprep.subr.bf16.mxu0 0
        %6517 = vmatpush1.bf16.msra.mxu0 0
        %6518 = vmatprep.mubr.bf16.mxu0 0
        %6519 = vmatmul.mubr.bf16.gmra.mrb[0].mxu0 %v6420
        %v6520 = vpop.f32.mrb[0].mxu0
        %v6521 = vadd.f32 0.0, %v6520
        %v6522 = vpop.f32.mrb[0].mxu0
        %v6523 = vpop.f32.mrb[0].mxu0
        %v6524 = vpop.f32.mrb[0].mxu0
        %6525 = vdwg.mxu0
        %v6526 = vadd.f32 %v6402, %v6521
        %v6527 = vld [vmem:[%s513] sm:$0x3]
        %v6528 = vld [vmem:[%s513 + $0x18] sm:$0x3]
        %v6531 = vcombine.low %v6527, %v6528
        %v6533 = vunpack.c.l.s4 1983009808
        %v6534 = vunpack.c.0.s8 %v6533
        %v6535 = vlaneseq
        %v6536 = vshrl.u32 %v6535, 7
        %v6537 = vsub.s32 %v6534, %v6536
        %v6538 = vrot.slane %v6531, %v6537
        %v6540 = vpack.c.bf16 %v6538, %v6538
        %s6541 = scalar_lea.vmem [#allocation3], 1920
        %v6542 = vld [vmem:[%s6541] sm:$0xf]
        %v6543 = vld [vmem:[%s6541 + $0x4] sm:$0xf]
        %v6544 = vld [vmem:[%s6541 + $0x8] sm:$0xf]
        %v6545 = vld [vmem:[%s6541 + $0xc] sm:$0xf]
        %v6546 = vld [vmem:[%s6541 + $0x10] sm:$0xf]
        %v6547 = vld [vmem:[%s6541 + $0x14] sm:$0xf]
        %v6548 = vld [vmem:[%s6541 + $0x18] sm:$0xf]
        %v6549 = vld [vmem:[%s6541 + $0x1c] sm:$0xf]
        %v6550 = vld [vmem:[%s6541 + $0x20] sm:$0xf]
        %v6551 = vld [vmem:[%s6541 + $0x24] sm:$0xf]
        %v6552 = vld [vmem:[%s6541 + $0x28] sm:$0xf]
        %v6553 = vld [vmem:[%s6541 + $0x2c] sm:$0xf]
        %v6554 = vld [vmem:[%s6541 + $0x30] sm:$0xf]
        %v6555 = vld [vmem:[%s6541 + $0x34] sm:$0xf]
        %v6556 = vld [vmem:[%s6541 + $0x38] sm:$0xf]
        %v6557 = vld [vmem:[%s6541 + $0x3c] sm:$0xf]
        %v6574 = vunpack.c.l.b16 %v6542
        %v6575 = vunpack.c.l.b16 %v6543
        %v6576 = vunpack.c.l.b16 %v6544
        %v6577 = vunpack.c.l.b16 %v6545
        %v6578 = vunpack.c.l.b16 %v6546
        %v6579 = vunpack.c.l.b16 %v6547
        %v6580 = vunpack.c.l.b16 %v6548
        %v6581 = vunpack.c.l.b16 %v6549
        %v6582 = vunpack.c.l.b16 %v6550
        %v6583 = vunpack.c.l.b16 %v6551
        %v6584 = vunpack.c.l.b16 %v6552
        %v6585 = vunpack.c.l.b16 %v6553
        %v6586 = vunpack.c.l.b16 %v6554
        %v6587 = vunpack.c.l.b16 %v6555
        %v6588 = vunpack.c.l.b16 %v6556
        %v6589 = vunpack.c.l.b16 %v6557
        %v6590 = vpack.c.b16 %v6575, %v6574
        %v6591 = vpack.c.b16 %v6577, %v6576
        %v6592 = vpack.c.b16 %v6579, %v6578
        %v6593 = vpack.c.b16 %v6581, %v6580
        %v6594 = vpack.c.b16 %v6583, %v6582
        %v6595 = vpack.c.b16 %v6585, %v6584
        %v6596 = vpack.c.b16 %v6587, %v6586
        %v6597 = vpack.c.b16 %v6589, %v6588
        %6606 = vmatprep.subr.bf16.mxu0 0
        %6607 = vmatpush1.bf16.msra.mxu0 %v6590
        %6608 = vmatprep.subr.bf16.mxu0 0
        %6609 = vmatpush1.bf16.msra.mxu0 %v6591
        %6610 = vmatprep.subr.bf16.mxu0 0
        %6611 = vmatpush1.bf16.msra.mxu0 %v6592
        %6612 = vmatprep.subr.bf16.mxu0 0
        %6613 = vmatpush1.bf16.msra.mxu0 %v6593
        %6614 = vmatprep.subr.bf16.mxu0 0
        %6615 = vmatpush1.bf16.msra.mxu0 %v6594
        %6616 = vmatprep.subr.bf16.mxu0 0
        %6617 = vmatpush1.bf16.msra.mxu0 %v6595
        %6618 = vmatprep.subr.bf16.mxu0 0
        %6619 = vmatpush1.bf16.msra.mxu0 %v6596
        %6620 = vmatprep.subr.bf16.mxu0 0
        %6621 = vmatpush1.bf16.msra.mxu0 %v6597
        %6622 = vmatprep.subr.bf16.mxu0 0
        %6623 = vmatpush1.bf16.msra.mxu0 0
        %6624 = vmatprep.subr.bf16.mxu0 0
        %6625 = vmatpush1.bf16.msra.mxu0 0
        %6626 = vmatprep.subr.bf16.mxu0 0
        %6627 = vmatpush1.bf16.msra.mxu0 0
        %6628 = vmatprep.subr.bf16.mxu0 0
        %6629 = vmatpush1.bf16.msra.mxu0 0
        %6630 = vmatprep.subr.bf16.mxu0 0
        %6631 = vmatpush1.bf16.msra.mxu0 0
        %6632 = vmatprep.subr.bf16.mxu0 0
        %6633 = vmatpush1.bf16.msra.mxu0 0
        %6634 = vmatprep.subr.bf16.mxu0 0
        %6635 = vmatpush1.bf16.msra.mxu0 0
        %6636 = vmatprep.subr.bf16.mxu0 0
        %6637 = vmatpush1.bf16.msra.mxu0 0
        %6638 = vmatprep.mubr.bf16.mxu0 0
        %6639 = vmatmul.mubr.bf16.gmra.mrb[0].mxu0 %v6540
        %v6640 = vpop.f32.mrb[0].mxu0
        %v6641 = vadd.f32 0.0, %v6640
        %v6642 = vpop.f32.mrb[0].mxu0
        %v6643 = vpop.f32.mrb[0].mxu0
        %v6644 = vpop.f32.mrb[0].mxu0
        %6645 = vdwg.mxu0
        %v6646 = vadd.f32 %v6526, %v6641
        %v6647 = vld [vmem:[%s513 + $0x1] sm:$0x3]
        %v6648 = vld [vmem:[%s513 + $0x19] sm:$0x3]
        %v6651 = vcombine.low %v6647, %v6648
        %v6653 = vunpack.c.l.s4 1983009808
        %v6654 = vunpack.c.0.s8 %v6653
        %v6655 = vlaneseq
        %v6656 = vshrl.u32 %v6655, 7
        %v6657 = vsub.s32 %v6654, %v6656
        %v6658 = vrot.slane %v6651, %v6657
        %v6660 = vpack.c.bf16 %v6658, %v6658
        %s6661 = scalar_lea.vmem [#allocation3], 1984
        %v6662 = vld [vmem:[%s6661] sm:$0xf]
        %v6663 = vld [vmem:[%s6661 + $0x4] sm:$0xf]
        %v6664 = vld [vmem:[%s6661 + $0x8] sm:$0xf]
        %v6665 = vld [vmem:[%s6661 + $0xc] sm:$0xf]
        %v6666 = vld [vmem:[%s6661 + $0x10] sm:$0xf]
        %v6667 = vld [vmem:[%s6661 + $0x14] sm:$0xf]
        %v6668 = vld [vmem:[%s6661 + $0x18] sm:$0xf]
        %v6669 = vld [vmem:[%s6661 + $0x1c] sm:$0xf]
        %v6670 = vld [vmem:[%s6661 + $0x20] sm:$0xf]
        %v6671 = vld [vmem:[%s6661 + $0x24] sm:$0xf]
        %v6672 = vld [vmem:[%s6661 + $0x28] sm:$0xf]
        %v6673 = vld [vmem:[%s6661 + $0x2c] sm:$0xf]
        %v6674 = vld [vmem:[%s6661 + $0x30] sm:$0xf]
        %v6675 = vld [vmem:[%s6661 + $0x34] sm:$0xf]
        %v6676 = vld [vmem:[%s6661 + $0x38] sm:$0xf]
        %v6677 = vld [vmem:[%s6661 + $0x3c] sm:$0xf]
        %v6694 = vunpack.c.l.b16 %v6662
        %v6695 = vunpack.c.l.b16 %v6663
        %v6696 = vunpack.c.l.b16 %v6664
        %v6697 = vunpack.c.l.b16 %v6665
        %v6698 = vunpack.c.l.b16 %v6666
        %v6699 = vunpack.c.l.b16 %v6667
        %v6700 = vunpack.c.l.b16 %v6668
        %v6701 = vunpack.c.l.b16 %v6669
        %v6702 = vunpack.c.l.b16 %v6670
        %v6703 = vunpack.c.l.b16 %v6671
        %v6704 = vunpack.c.l.b16 %v6672
        %v6705 = vunpack.c.l.b16 %v6673
        %v6706 = vunpack.c.l.b16 %v6674
        %v6707 = vunpack.c.l.b16 %v6675
        %v6708 = vunpack.c.l.b16 %v6676
        %v6709 = vunpack.c.l.b16 %v6677
        %v6710 = vpack.c.b16 %v6695, %v6694
        %v6711 = vpack.c.b16 %v6697, %v6696
        %v6712 = vpack.c.b16 %v6699, %v6698
        %v6713 = vpack.c.b16 %v6701, %v6700
        %v6714 = vpack.c.b16 %v6703, %v6702
        %v6715 = vpack.c.b16 %v6705, %v6704
        %v6716 = vpack.c.b16 %v6707, %v6706
        %v6717 = vpack.c.b16 %v6709, %v6708
        %6726 = vmatprep.subr.bf16.mxu0 0
        %6727 = vmatpush1.bf16.msra.mxu0 %v6710
        %6728 = vmatprep.subr.bf16.mxu0 0
        %6729 = vmatpush1.bf16.msra.mxu0 %v6711
        %6730 = vmatprep.subr.bf16.mxu0 0
        %6731 = vmatpush1.bf16.msra.mxu0 %v6712
        %6732 = vmatprep.subr.bf16.mxu0 0
        %6733 = vmatpush1.bf16.msra.mxu0 %v6713
        %6734 = vmatprep.subr.bf16.mxu0 0
        %6735 = vmatpush1.bf16.msra.mxu0 %v6714
        %6736 = vmatprep.subr.bf16.mxu0 0
        %6737 = vmatpush1.bf16.msra.mxu0 %v6715
        %6738 = vmatprep.subr.bf16.mxu0 0
        %6739 = vmatpush1.bf16.msra.mxu0 %v6716
        %6740 = vmatprep.subr.bf16.mxu0 0
        %6741 = vmatpush1.bf16.msra.mxu0 %v6717
        %6742 = vmatprep.subr.bf16.mxu0 0
        %6743 = vmatpush1.bf16.msra.mxu0 0
        %6744 = vmatprep.subr.bf16.mxu0 0
        %6745 = vmatpush1.bf16.msra.mxu0 0
        %6746 = vmatprep.subr.bf16.mxu0 0
        %6747 = vmatpush1.bf16.msra.mxu0 0
        %6748 = vmatprep.subr.bf16.mxu0 0
        %6749 = vmatpush1.bf16.msra.mxu0 0
        %6750 = vmatprep.subr.bf16.mxu0 0
        %6751 = vmatpush1.bf16.msra.mxu0 0
        %6752 = vmatprep.subr.bf16.mxu0 0
        %6753 = vmatpush1.bf16.msra.mxu0 0
        %6754 = vmatprep.subr.bf16.mxu0 0
        %6755 = vmatpush1.bf16.msra.mxu0 0
        %6756 = vmatprep.subr.bf16.mxu0 0
        %6757 = vmatpush1.bf16.msra.mxu0 0
        %6758 = vmatprep.mubr.bf16.mxu0 0
        %6759 = vmatmul.mubr.bf16.gmra.mrb[0].mxu0 %v6660
        %v6760 = vpop.f32.mrb[0].mxu0
        %v6761 = vadd.f32 0.0, %v6760
        %v6762 = vpop.f32.mrb[0].mxu0
        %v6763 = vpop.f32.mrb[0].mxu0
        %v6764 = vpop.f32.mrb[0].mxu0
        %6765 = vdwg.mxu0
        %v6766 = vadd.f32 %v6646, %v6761
        %v6767 = vld [vmem:[%s513 + $0x2] sm:$0x3]
        %v6768 = vld [vmem:[%s513 + $0x1a] sm:$0x3]
        %v6771 = vcombine.low %v6767, %v6768
        %v6773 = vunpack.c.l.s4 1983009808
        %v6774 = vunpack.c.0.s8 %v6773
        %v6775 = vlaneseq
        %v6776 = vshrl.u32 %v6775, 7
        %v6777 = vsub.s32 %v6774, %v6776
        %v6778 = vrot.slane %v6771, %v6777
        %v6780 = vpack.c.bf16 %v6778, %v6778
        %s6781 = scalar_lea.vmem [#allocation3], 2048
        %v6782 = vld [vmem:[%s6781] sm:$0xf]
        %v6783 = vld [vmem:[%s6781 + $0x4] sm:$0xf]
        %v6784 = vld [vmem:[%s6781 + $0x8] sm:$0xf]
        %v6785 = vld [vmem:[%s6781 + $0xc] sm:$0xf]
        %v6786 = vld [vmem:[%s6781 + $0x10] sm:$0xf]
        %v6787 = vld [vmem:[%s6781 + $0x14] sm:$0xf]
        %v6788 = vld [vmem:[%s6781 + $0x18] sm:$0xf]
        %v6789 = vld [vmem:[%s6781 + $0x1c] sm:$0xf]
        %v6790 = vld [vmem:[%s6781 + $0x20] sm:$0xf]
        %v6791 = vld [vmem:[%s6781 + $0x24] sm:$0xf]
        %v6792 = vld [vmem:[%s6781 + $0x28] sm:$0xf]
        %v6793 = vld [vmem:[%s6781 + $0x2c] sm:$0xf]
        %v6794 = vld [vmem:[%s6781 + $0x30] sm:$0xf]
        %v6795 = vld [vmem:[%s6781 + $0x34] sm:$0xf]
        %v6796 = vld [vmem:[%s6781 + $0x38] sm:$0xf]
        %v6797 = vld [vmem:[%s6781 + $0x3c] sm:$0xf]
        %v6814 = vunpack.c.l.b16 %v6782
        %v6815 = vunpack.c.l.b16 %v6783
        %v6816 = vunpack.c.l.b16 %v6784
        %v6817 = vunpack.c.l.b16 %v6785
        %v6818 = vunpack.c.l.b16 %v6786
        %v6819 = vunpack.c.l.b16 %v6787
        %v6820 = vunpack.c.l.b16 %v6788
        %v6821 = vunpack.c.l.b16 %v6789
        %v6822 = vunpack.c.l.b16 %v6790
        %v6823 = vunpack.c.l.b16 %v6791
        %v6824 = vunpack.c.l.b16 %v6792
        %v6825 = vunpack.c.l.b16 %v6793
        %v6826 = vunpack.c.l.b16 %v6794
        %v6827 = vunpack.c.l.b16 %v6795
        %v6828 = vunpack.c.l.b16 %v6796
        %v6829 = vunpack.c.l.b16 %v6797
        %v6830 = vpack.c.b16 %v6815, %v6814
        %v6831 = vpack.c.b16 %v6817, %v6816
        %v6832 = vpack.c.b16 %v6819, %v6818
        %v6833 = vpack.c.b16 %v6821, %v6820
        %v6834 = vpack.c.b16 %v6823, %v6822
        %v6835 = vpack.c.b16 %v6825, %v6824
        %v6836 = vpack.c.b16 %v6827, %v6826
        %v6837 = vpack.c.b16 %v6829, %v6828
        %6846 = vmatprep.subr.bf16.mxu0 0
        %6847 = vmatpush1.bf16.msra.mxu0 %v6830
        %6848 = vmatprep.subr.bf16.mxu0 0
        %6849 = vmatpush1.bf16.msra.mxu0 %v6831
        %6850 = vmatprep.subr.bf16.mxu0 0
        %6851 = vmatpush1.bf16.msra.mxu0 %v6832
        %6852 = vmatprep.subr.bf16.mxu0 0
        %6853 = vmatpush1.bf16.msra.mxu0 %v6833
        %6854 = vmatprep.subr.bf16.mxu0 0
        %6855 = vmatpush1.bf16.msra.mxu0 %v6834
        %6856 = vmatprep.subr.bf16.mxu0 0
        %6857 = vmatpush1.bf16.msra.mxu0 %v6835
        %6858 = vmatprep.subr.bf16.mxu0 0
        %6859 = vmatpush1.bf16.msra.mxu0 %v6836
        %6860 = vmatprep.subr.bf16.mxu0 0
        %6861 = vmatpush1.bf16.msra.mxu0 %v6837
        %6862 = vmatprep.subr.bf16.mxu0 0
        %6863 = vmatpush1.bf16.msra.mxu0 0
        %6864 = vmatprep.subr.bf16.mxu0 0
        %6865 = vmatpush1.bf16.msra.mxu0 0
        %6866 = vmatprep.subr.bf16.mxu0 0
        %6867 = vmatpush1.bf16.msra.mxu0 0
        %6868 = vmatprep.subr.bf16.mxu0 0
        %6869 = vmatpush1.bf16.msra.mxu0 0
        %6870 = vmatprep.subr.bf16.mxu0 0
        %6871 = vmatpush1.bf16.msra.mxu0 0
        %6872 = vmatprep.subr.bf16.mxu0 0
        %6873 = vmatpush1.bf16.msra.mxu0 0
        %6874 = vmatprep.subr.bf16.mxu0 0
        %6875 = vmatpush1.bf16.msra.mxu0 0
        %6876 = vmatprep.subr.bf16.mxu0 0
        %6877 = vmatpush1.bf16.msra.mxu0 0
        %6878 = vmatprep.mubr.bf16.mxu0 0
        %6879 = vmatmul.mubr.bf16.gmra.mrb[0].mxu0 %v6780
        %v6880 = vpop.f32.mrb[0].mxu0
        %v6881 = vadd.f32 0.0, %v6880
        %v6882 = vpop.f32.mrb[0].mxu0
        %v6883 = vpop.f32.mrb[0].mxu0
        %v6884 = vpop.f32.mrb[0].mxu0
        %6885 = vdwg.mxu0
        %v6886 = vadd.f32 %v6766, %v6881
        %v6887 = vld [vmem:[%s2317] sm:$0x3]
        %v6888 = vld [vmem:[%s2317 + $0x18] sm:$0x3]
        %v6891 = vcombine.low %v6887, %v6888
        %v6893 = vunpack.c.l.s4 1983009808
        %v6894 = vunpack.c.0.s8 %v6893
        %v6895 = vlaneseq
        %v6896 = vshrl.u32 %v6895, 7
        %v6897 = vsub.s32 %v6894, %v6896
        %v6898 = vrot.slane %v6891, %v6897
        %v6900 = vpack.c.bf16 %v6898, %v6898
        %s6901 = scalar_lea.vmem [#allocation3], 2112
        %v6902 = vld [vmem:[%s6901] sm:$0xf]
        %v6903 = vld [vmem:[%s6901 + $0x4] sm:$0xf]
        %v6904 = vld [vmem:[%s6901 + $0x8] sm:$0xf]
        %v6905 = vld [vmem:[%s6901 + $0xc] sm:$0xf]
        %v6906 = vld [vmem:[%s6901 + $0x10] sm:$0xf]
        %v6907 = vld [vmem:[%s6901 + $0x14] sm:$0xf]
        %v6908 = vld [vmem:[%s6901 + $0x18] sm:$0xf]
        %v6909 = vld [vmem:[%s6901 + $0x1c] sm:$0xf]
        %v6910 = vld [vmem:[%s6901 + $0x20] sm:$0xf]
        %v6911 = vld [vmem:[%s6901 + $0x24] sm:$0xf]
        %v6912 = vld [vmem:[%s6901 + $0x28] sm:$0xf]
        %v6913 = vld [vmem:[%s6901 + $0x2c] sm:$0xf]
        %v6914 = vld [vmem:[%s6901 + $0x30] sm:$0xf]
        %v6915 = vld [vmem:[%s6901 + $0x34] sm:$0xf]
        %v6916 = vld [vmem:[%s6901 + $0x38] sm:$0xf]
        %v6917 = vld [vmem:[%s6901 + $0x3c] sm:$0xf]
        %v6934 = vunpack.c.l.b16 %v6902
        %v6935 = vunpack.c.l.b16 %v6903
        %v6936 = vunpack.c.l.b16 %v6904
        %v6937 = vunpack.c.l.b16 %v6905
        %v6938 = vunpack.c.l.b16 %v6906
        %v6939 = vunpack.c.l.b16 %v6907
        %v6940 = vunpack.c.l.b16 %v6908
        %v6941 = vunpack.c.l.b16 %v6909
        %v6942 = vunpack.c.l.b16 %v6910
        %v6943 = vunpack.c.l.b16 %v6911
        %v6944 = vunpack.c.l.b16 %v6912
        %v6945 = vunpack.c.l.b16 %v6913
        %v6946 = vunpack.c.l.b16 %v6914
        %v6947 = vunpack.c.l.b16 %v6915
        %v6948 = vunpack.c.l.b16 %v6916
        %v6949 = vunpack.c.l.b16 %v6917
        %v6950 = vpack.c.b16 %v6935, %v6934
        %v6951 = vpack.c.b16 %v6937, %v6936
        %v6952 = vpack.c.b16 %v6939, %v6938
        %v6953 = vpack.c.b16 %v6941, %v6940
        %v6954 = vpack.c.b16 %v6943, %v6942
        %v6955 = vpack.c.b16 %v6945, %v6944
        %v6956 = vpack.c.b16 %v6947, %v6946
        %v6957 = vpack.c.b16 %v6949, %v6948
        %6966 = vmatprep.subr.bf16.mxu0 0
        %6967 = vmatpush1.bf16.msra.mxu0 %v6950
        %6968 = vmatprep.subr.bf16.mxu0 0
        %6969 = vmatpush1.bf16.msra.mxu0 %v6951
        %6970 = vmatprep.subr.bf16.mxu0 0
        %6971 = vmatpush1.bf16.msra.mxu0 %v6952
        %6972 = vmatprep.subr.bf16.mxu0 0
        %6973 = vmatpush1.bf16.msra.mxu0 %v6953
        %6974 = vmatprep.subr.bf16.mxu0 0
        %6975 = vmatpush1.bf16.msra.mxu0 %v6954
        %6976 = vmatprep.subr.bf16.mxu0 0
        %6977 = vmatpush1.bf16.msra.mxu0 %v6955
        %6978 = vmatprep.subr.bf16.mxu0 0
        %6979 = vmatpush1.bf16.msra.mxu0 %v6956
        %6980 = vmatprep.subr.bf16.mxu0 0
        %6981 = vmatpush1.bf16.msra.mxu0 %v6957
        %6982 = vmatprep.subr.bf16.mxu0 0
        %6983 = vmatpush1.bf16.msra.mxu0 0
        %6984 = vmatprep.subr.bf16.mxu0 0
        %6985 = vmatpush1.bf16.msra.mxu0 0
        %6986 = vmatprep.subr.bf16.mxu0 0
        %6987 = vmatpush1.bf16.msra.mxu0 0
        %6988 = vmatprep.subr.bf16.mxu0 0
        %6989 = vmatpush1.bf16.msra.mxu0 0
        %6990 = vmatprep.subr.bf16.mxu0 0
        %6991 = vmatpush1.bf16.msra.mxu0 0
        %6992 = vmatprep.subr.bf16.mxu0 0
        %6993 = vmatpush1.bf16.msra.mxu0 0
        %6994 = vmatprep.subr.bf16.mxu0 0
        %6995 = vmatpush1.bf16.msra.mxu0 0
        %6996 = vmatprep.subr.bf16.mxu0 0
        %6997 = vmatpush1.bf16.msra.mxu0 0
        %6998 = vmatprep.mubr.bf16.mxu0 0
        %6999 = vmatmul.mubr.bf16.gmra.mrb[0].mxu0 %v6900
        %v7000 = vpop.f32.mrb[0].mxu0
        %v7001 = vadd.f32 0.0, %v7000
        %v7002 = vpop.f32.mrb[0].mxu0
        %v7003 = vpop.f32.mrb[0].mxu0
        %v7004 = vpop.f32.mrb[0].mxu0
        %7005 = vdwg.mxu0
        %v7006 = vadd.f32 %v6886, %v7001
        %v7007 = vld [vmem:[%s2317 + $0x1] sm:$0x3]
        %v7008 = vld [vmem:[%s2317 + $0x19] sm:$0x3]
        %v7011 = vcombine.low %v7007, %v7008
        %v7013 = vunpack.c.l.s4 1983009808
        %v7014 = vunpack.c.0.s8 %v7013
        %v7015 = vlaneseq
        %v7016 = vshrl.u32 %v7015, 7
        %v7017 = vsub.s32 %v7014, %v7016
        %v7018 = vrot.slane %v7011, %v7017
        %v7020 = vpack.c.bf16 %v7018, %v7018
        %s7021 = scalar_lea.vmem [#allocation3], 2176
        %v7022 = vld [vmem:[%s7021] sm:$0xf]
        %v7023 = vld [vmem:[%s7021 + $0x4] sm:$0xf]
        %v7024 = vld [vmem:[%s7021 + $0x8] sm:$0xf]
        %v7025 = vld [vmem:[%s7021 + $0xc] sm:$0xf]
        %v7026 = vld [vmem:[%s7021 + $0x10] sm:$0xf]
        %v7027 = vld [vmem:[%s7021 + $0x14] sm:$0xf]
        %v7028 = vld [vmem:[%s7021 + $0x18] sm:$0xf]
        %v7029 = vld [vmem:[%s7021 + $0x1c] sm:$0xf]
        %v7030 = vld [vmem:[%s7021 + $0x20] sm:$0xf]
        %v7031 = vld [vmem:[%s7021 + $0x24] sm:$0xf]
        %v7032 = vld [vmem:[%s7021 + $0x28] sm:$0xf]
        %v7033 = vld [vmem:[%s7021 + $0x2c] sm:$0xf]
        %v7034 = vld [vmem:[%s7021 + $0x30] sm:$0xf]
        %v7035 = vld [vmem:[%s7021 + $0x34] sm:$0xf]
        %v7036 = vld [vmem:[%s7021 + $0x38] sm:$0xf]
        %v7037 = vld [vmem:[%s7021 + $0x3c] sm:$0xf]
        %v7054 = vunpack.c.l.b16 %v7022
        %v7055 = vunpack.c.l.b16 %v7023
        %v7056 = vunpack.c.l.b16 %v7024
        %v7057 = vunpack.c.l.b16 %v7025
        %v7058 = vunpack.c.l.b16 %v7026
        %v7059 = vunpack.c.l.b16 %v7027
        %v7060 = vunpack.c.l.b16 %v7028
        %v7061 = vunpack.c.l.b16 %v7029
        %v7062 = vunpack.c.l.b16 %v7030
        %v7063 = vunpack.c.l.b16 %v7031
        %v7064 = vunpack.c.l.b16 %v7032
        %v7065 = vunpack.c.l.b16 %v7033
        %v7066 = vunpack.c.l.b16 %v7034
        %v7067 = vunpack.c.l.b16 %v7035
        %v7068 = vunpack.c.l.b16 %v7036
        %v7069 = vunpack.c.l.b16 %v7037
        %v7070 = vpack.c.b16 %v7055, %v7054
        %v7071 = vpack.c.b16 %v7057, %v7056
        %v7072 = vpack.c.b16 %v7059, %v7058
        %v7073 = vpack.c.b16 %v7061, %v7060
        %v7074 = vpack.c.b16 %v7063, %v7062
        %v7075 = vpack.c.b16 %v7065, %v7064
        %v7076 = vpack.c.b16 %v7067, %v7066
        %v7077 = vpack.c.b16 %v7069, %v7068
        %7086 = vmatprep.subr.bf16.mxu0 0
        %7087 = vmatpush1.bf16.msra.mxu0 %v7070
        %7088 = vmatprep.subr.bf16.mxu0 0
        %7089 = vmatpush1.bf16.msra.mxu0 %v7071
        %7090 = vmatprep.subr.bf16.mxu0 0
        %7091 = vmatpush1.bf16.msra.mxu0 %v7072
        %7092 = vmatprep.subr.bf16.mxu0 0
        %7093 = vmatpush1.bf16.msra.mxu0 %v7073
        %7094 = vmatprep.subr.bf16.mxu0 0
        %7095 = vmatpush1.bf16.msra.mxu0 %v7074
        %7096 = vmatprep.subr.bf16.mxu0 0
        %7097 = vmatpush1.bf16.msra.mxu0 %v7075
        %7098 = vmatprep.subr.bf16.mxu0 0
        %7099 = vmatpush1.bf16.msra.mxu0 %v7076
        %7100 = vmatprep.subr.bf16.mxu0 0
        %7101 = vmatpush1.bf16.msra.mxu0 %v7077
        %7102 = vmatprep.subr.bf16.mxu0 0
        %7103 = vmatpush1.bf16.msra.mxu0 0
        %7104 = vmatprep.subr.bf16.mxu0 0
        %7105 = vmatpush1.bf16.msra.mxu0 0
        %7106 = vmatprep.subr.bf16.mxu0 0
        %7107 = vmatpush1.bf16.msra.mxu0 0
        %7108 = vmatprep.subr.bf16.mxu0 0
        %7109 = vmatpush1.bf16.msra.mxu0 0
        %7110 = vmatprep.subr.bf16.mxu0 0
        %7111 = vmatpush1.bf16.msra.mxu0 0
        %7112 = vmatprep.subr.bf16.mxu0 0
        %7113 = vmatpush1.bf16.msra.mxu0 0
        %7114 = vmatprep.subr.bf16.mxu0 0
        %7115 = vmatpush1.bf16.msra.mxu0 0
        %7116 = vmatprep.subr.bf16.mxu0 0
        %7117 = vmatpush1.bf16.msra.mxu0 0
        %7118 = vmatprep.mubr.bf16.mxu0 0
        %7119 = vmatmul.mubr.bf16.gmra.mrb[0].mxu0 %v7020
        %v7120 = vpop.f32.mrb[0].mxu0
        %v7121 = vadd.f32 0.0, %v7120
        %v7122 = vpop.f32.mrb[0].mxu0
        %v7123 = vpop.f32.mrb[0].mxu0
        %v7124 = vpop.f32.mrb[0].mxu0
        %7125 = vdwg.mxu0
        %v7126 = vadd.f32 %v7006, %v7121
        %v7127 = vld [vmem:[%s2317 + $0x2] sm:$0x3]
        %v7128 = vld [vmem:[%s2317 + $0x1a] sm:$0x3]
        %v7131 = vcombine.low %v7127, %v7128
        %v7133 = vunpack.c.l.s4 1983009808
        %v7134 = vunpack.c.0.s8 %v7133
        %v7135 = vlaneseq
        %v7136 = vshrl.u32 %v7135, 7
        %v7137 = vsub.s32 %v7134, %v7136
        %v7138 = vrot.slane %v7131, %v7137
        %v7140 = vpack.c.bf16 %v7138, %v7138
        %s7141 = scalar_lea.vmem [#allocation3], 2240
        %v7142 = vld [vmem:[%s7141] sm:$0xf]
        %v7143 = vld [vmem:[%s7141 + $0x4] sm:$0xf]
        %v7144 = vld [vmem:[%s7141 + $0x8] sm:$0xf]
        %v7145 = vld [vmem:[%s7141 + $0xc] sm:$0xf]
        %v7146 = vld [vmem:[%s7141 + $0x10] sm:$0xf]
        %v7147 = vld [vmem:[%s7141 + $0x14] sm:$0xf]
        %v7148 = vld [vmem:[%s7141 + $0x18] sm:$0xf]
        %v7149 = vld [vmem:[%s7141 + $0x1c] sm:$0xf]
        %v7150 = vld [vmem:[%s7141 + $0x20] sm:$0xf]
        %v7151 = vld [vmem:[%s7141 + $0x24] sm:$0xf]
        %v7152 = vld [vmem:[%s7141 + $0x28] sm:$0xf]
        %v7153 = vld [vmem:[%s7141 + $0x2c] sm:$0xf]
        %v7154 = vld [vmem:[%s7141 + $0x30] sm:$0xf]
        %v7155 = vld [vmem:[%s7141 + $0x34] sm:$0xf]
        %v7156 = vld [vmem:[%s7141 + $0x38] sm:$0xf]
        %v7157 = vld [vmem:[%s7141 + $0x3c] sm:$0xf]
        %v7174 = vunpack.c.l.b16 %v7142
        %v7175 = vunpack.c.l.b16 %v7143
        %v7176 = vunpack.c.l.b16 %v7144
        %v7177 = vunpack.c.l.b16 %v7145
        %v7178 = vunpack.c.l.b16 %v7146
        %v7179 = vunpack.c.l.b16 %v7147
        %v7180 = vunpack.c.l.b16 %v7148
        %v7181 = vunpack.c.l.b16 %v7149
        %v7182 = vunpack.c.l.b16 %v7150
        %v7183 = vunpack.c.l.b16 %v7151
        %v7184 = vunpack.c.l.b16 %v7152
        %v7185 = vunpack.c.l.b16 %v7153
        %v7186 = vunpack.c.l.b16 %v7154
        %v7187 = vunpack.c.l.b16 %v7155
        %v7188 = vunpack.c.l.b16 %v7156
        %v7189 = vunpack.c.l.b16 %v7157
        %v7190 = vpack.c.b16 %v7175, %v7174
        %v7191 = vpack.c.b16 %v7177, %v7176
        %v7192 = vpack.c.b16 %v7179, %v7178
        %v7193 = vpack.c.b16 %v7181, %v7180
        %v7194 = vpack.c.b16 %v7183, %v7182
        %v7195 = vpack.c.b16 %v7185, %v7184
        %v7196 = vpack.c.b16 %v7187, %v7186
        %v7197 = vpack.c.b16 %v7189, %v7188
        %7206 = vmatprep.subr.bf16.mxu0 0
        %7207 = vmatpush1.bf16.msra.mxu0 %v7190
        %7208 = vmatprep.subr.bf16.mxu0 0
        %7209 = vmatpush1.bf16.msra.mxu0 %v7191
        %7210 = vmatprep.subr.bf16.mxu0 0
        %7211 = vmatpush1.bf16.msra.mxu0 %v7192
        %7212 = vmatprep.subr.bf16.mxu0 0
        %7213 = vmatpush1.bf16.msra.mxu0 %v7193
        %7214 = vmatprep.subr.bf16.mxu0 0
        %7215 = vmatpush1.bf16.msra.mxu0 %v7194
        %7216 = vmatprep.subr.bf16.mxu0 0
        %7217 = vmatpush1.bf16.msra.mxu0 %v7195
        %7218 = vmatprep.subr.bf16.mxu0 0
        %7219 = vmatpush1.bf16.msra.mxu0 %v7196
        %7220 = vmatprep.subr.bf16.mxu0 0
        %7221 = vmatpush1.bf16.msra.mxu0 %v7197
        %7222 = vmatprep.subr.bf16.mxu0 0
        %7223 = vmatpush1.bf16.msra.mxu0 0
        %7224 = vmatprep.subr.bf16.mxu0 0
        %7225 = vmatpush1.bf16.msra.mxu0 0
        %7226 = vmatprep.subr.bf16.mxu0 0
        %7227 = vmatpush1.bf16.msra.mxu0 0
        %7228 = vmatprep.subr.bf16.mxu0 0
        %7229 = vmatpush1.bf16.msra.mxu0 0
        %7230 = vmatprep.subr.bf16.mxu0 0
        %7231 = vmatpush1.bf16.msra.mxu0 0
        %7232 = vmatprep.subr.bf16.mxu0 0
        %7233 = vmatpush1.bf16.msra.mxu0 0
        %7234 = vmatprep.subr.bf16.mxu0 0
        %7235 = vmatpush1.bf16.msra.mxu0 0
        %7236 = vmatprep.subr.bf16.mxu0 0
        %7237 = vmatpush1.bf16.msra.mxu0 0
        %7238 = vmatprep.mubr.bf16.mxu0 0
        %7239 = vmatmul.mubr.bf16.gmra.mrb[0].mxu0 %v7140
        %v7240 = vpop.f32.mrb[0].mxu0
        %v7241 = vadd.f32 0.0, %v7240
        %v7242 = vpop.f32.mrb[0].mxu0
        %v7243 = vpop.f32.mrb[0].mxu0
        %v7244 = vpop.f32.mrb[0].mxu0
        %7245 = vdwg.mxu0
        %v7246 = vadd.f32 %v7126, %v7241
        %s7247 = scalar_lea.vmem [#allocation6], 3
        %v7248 = vld [vmem:[%s7247] sm:$0x1]
        %v7250 = vlaneseq
        %v7251 = vshrl.u32 %v7250, 7
        %v7252 = vsub.s32 0, %v7251
        %v7253 = vrot.slane %v7248, %v7252
        %v7255 = vadd.f32 %v7246, %v7253
        %v7256 = vmax.f32 %v7255, 0.0
        %v7257 = vpack.c.bf16 %v7256, %v7256
        %v7258 = vld [vmem:[%s3] sm:$0xff]
        %v7259 = vld [vmem:[%s3 + $0x8] sm:$0xff]
        %v7260 = vld [vmem:[%s3 + $0x10] sm:$0xff]
        %v7261 = vld [vmem:[%s3 + $0x18] sm:$0xff]
        %v7262 = vld [vmem:[%s3 + $0x20] sm:$0xff]
        %v7263 = vld [vmem:[%s3 + $0x28] sm:$0xff]
        %v7264 = vld [vmem:[%s3 + $0x30] sm:$0xff]
        %v7265 = vld [vmem:[%s3 + $0x38] sm:$0xff]
        %v7266 = vld [vmem:[%s3 + $0x40] sm:$0xff]
        %v7267 = vld [vmem:[%s3 + $0x48] sm:$0xff]
        %v7268 = vld [vmem:[%s3 + $0x50] sm:$0xff]
        %v7269 = vld [vmem:[%s3 + $0x58] sm:$0xff]
        %v7270 = vld [vmem:[%s3 + $0x60] sm:$0xff]
        %v7271 = vld [vmem:[%s3 + $0x68] sm:$0xff]
        %v7272 = vld [vmem:[%s3 + $0x70] sm:$0xff]
        %v7273 = vld [vmem:[%s3 + $0x78] sm:$0xff]
        %v7274 = vld [vmem:[%s3 + $0x80] sm:$0xff]
        %v7275 = vld [vmem:[%s3 + $0x88] sm:$0xff]
        %v7276 = vld [vmem:[%s3 + $0x90] sm:$0xff]
        %v7277 = vld [vmem:[%s3 + $0x98] sm:$0xff]
        %v7278 = vld [vmem:[%s3 + $0xa0] sm:$0xff]
        %v7279 = vld [vmem:[%s3 + $0xa8] sm:$0xff]
        %v7280 = vld [vmem:[%s3 + $0xb0] sm:$0xff]
        %v7281 = vld [vmem:[%s3 + $0xb8] sm:$0xff]
        %v7282 = vld [vmem:[%s3 + $0xc0] sm:$0xff]
        %v7283 = vld [vmem:[%s3 + $0xc8] sm:$0xff]
        %v7284 = vld [vmem:[%s3 + $0xd0] sm:$0xff]
        %v7285 = vld [vmem:[%s3 + $0xd8] sm:$0xff]
        %v7286 = vld [vmem:[%s3 + $0xe0] sm:$0xff]
        %v7287 = vld [vmem:[%s3 + $0xe8] sm:$0xff]
        %v7288 = vld [vmem:[%s3 + $0xf0] sm:$0xff]
        %v7289 = vld [vmem:[%s3 + $0xf8] sm:$0xff]
        %s7290 = scalar_lea.vmem %s3, 256
        %v7291 = vld [vmem:[%s7290] sm:$0xff]
        %v7292 = vld [vmem:[%s7290 + $0x8] sm:$0xff]
        %v7293 = vld [vmem:[%s7290 + $0x10] sm:$0xff]
        %v7294 = vld [vmem:[%s7290 + $0x18] sm:$0xff]
        %v7295 = vld [vmem:[%s7290 + $0x20] sm:$0xff]
        %v7296 = vld [vmem:[%s7290 + $0x28] sm:$0xff]
        %v7297 = vld [vmem:[%s7290 + $0x30] sm:$0xff]
        %v7298 = vld [vmem:[%s7290 + $0x38] sm:$0xff]
        %v7299 = vld [vmem:[%s7290 + $0x40] sm:$0xff]
        %v7300 = vld [vmem:[%s7290 + $0x48] sm:$0xff]
        %v7301 = vld [vmem:[%s7290 + $0x50] sm:$0xff]
        %v7302 = vld [vmem:[%s7290 + $0x58] sm:$0xff]
        %v7303 = vld [vmem:[%s7290 + $0x60] sm:$0xff]
        %v7304 = vld [vmem:[%s7290 + $0x68] sm:$0xff]
        %v7305 = vld [vmem:[%s7290 + $0x70] sm:$0xff]
        %v7306 = vld [vmem:[%s7290 + $0x78] sm:$0xff]
        %v7307 = vld [vmem:[%s7290 + $0x80] sm:$0xff]
        %v7308 = vld [vmem:[%s7290 + $0x88] sm:$0xff]
        %v7309 = vld [vmem:[%s7290 + $0x90] sm:$0xff]
        %v7310 = vld [vmem:[%s7290 + $0x98] sm:$0xff]
        %v7311 = vld [vmem:[%s7290 + $0xa0] sm:$0xff]
        %v7312 = vld [vmem:[%s7290 + $0xa8] sm:$0xff]
        %v7313 = vld [vmem:[%s7290 + $0xb0] sm:$0xff]
        %v7314 = vld [vmem:[%s7290 + $0xb8] sm:$0xff]
        %v7315 = vld [vmem:[%s7290 + $0xc0] sm:$0xff]
        %v7316 = vld [vmem:[%s7290 + $0xc8] sm:$0xff]
        %v7317 = vld [vmem:[%s7290 + $0xd0] sm:$0xff]
        %v7318 = vld [vmem:[%s7290 + $0xd8] sm:$0xff]
        %v7319 = vld [vmem:[%s7290 + $0xe0] sm:$0xff]
        %v7320 = vld [vmem:[%s7290 + $0xe8] sm:$0xff]
        %v7321 = vld [vmem:[%s7290 + $0xf0] sm:$0xff]
        %v7322 = vld [vmem:[%s7290 + $0xf8] sm:$0xff]
        %v7324 = vshrl.u32 %v7257, 16
        %v7359 = vunpack.c.l.b16 %v7291
        %v7360 = vunpack.c.h.b16 %v7291
        %v7361 = vunpack.c.l.b16 %v7292
        %v7362 = vunpack.c.h.b16 %v7292
        %v7363 = vunpack.c.l.b16 %v7293
        %v7364 = vunpack.c.h.b16 %v7293
        %v7365 = vunpack.c.l.b16 %v7294
        %v7366 = vunpack.c.h.b16 %v7294
        %v7367 = vunpack.c.l.b16 %v7295
        %v7368 = vunpack.c.h.b16 %v7295
        %v7369 = vunpack.c.l.b16 %v7296
        %v7370 = vunpack.c.h.b16 %v7296
        %v7371 = vunpack.c.l.b16 %v7297
        %v7372 = vunpack.c.h.b16 %v7297
        %v7373 = vunpack.c.l.b16 %v7298
        %v7374 = vunpack.c.h.b16 %v7298
        %v7375 = vunpack.c.l.b16 %v7299
        %v7376 = vunpack.c.h.b16 %v7299
        %v7377 = vunpack.c.l.b16 %v7300
        %v7378 = vunpack.c.h.b16 %v7300
        %v7379 = vunpack.c.l.b16 %v7301
        %v7380 = vunpack.c.h.b16 %v7301
        %v7381 = vunpack.c.l.b16 %v7302
        %v7382 = vunpack.c.h.b16 %v7302
        %v7383 = vunpack.c.l.b16 %v7303
        %v7384 = vunpack.c.h.b16 %v7303
        %v7385 = vunpack.c.l.b16 %v7304
        %v7386 = vunpack.c.h.b16 %v7304
        %v7387 = vunpack.c.l.b16 %v7305
        %v7388 = vunpack.c.h.b16 %v7305
        %v7389 = vunpack.c.l.b16 %v7306
        %v7390 = vunpack.c.h.b16 %v7306
        %v7391 = vunpack.c.l.b16 %v7307
        %v7392 = vunpack.c.h.b16 %v7307
        %v7393 = vunpack.c.l.b16 %v7308
        %v7394 = vunpack.c.h.b16 %v7308
        %v7395 = vunpack.c.l.b16 %v7309
        %v7396 = vunpack.c.h.b16 %v7309
        %v7397 = vunpack.c.l.b16 %v7310
        %v7398 = vunpack.c.h.b16 %v7310
        %v7399 = vunpack.c.l.b16 %v7311
        %v7400 = vunpack.c.h.b16 %v7311
        %v7401 = vunpack.c.l.b16 %v7312
        %v7402 = vunpack.c.h.b16 %v7312
        %v7403 = vunpack.c.l.b16 %v7313
        %v7404 = vunpack.c.h.b16 %v7313
        %v7405 = vunpack.c.l.b16 %v7314
        %v7406 = vunpack.c.h.b16 %v7314
        %v7407 = vunpack.c.l.b16 %v7315
        %v7408 = vunpack.c.h.b16 %v7315
        %v7409 = vunpack.c.l.b16 %v7316
        %v7410 = vunpack.c.h.b16 %v7316
        %v7411 = vunpack.c.l.b16 %v7317
        %v7412 = vunpack.c.h.b16 %v7317
        %v7413 = vunpack.c.l.b16 %v7318
        %v7414 = vunpack.c.h.b16 %v7318
        %v7415 = vunpack.c.l.b16 %v7319
        %v7416 = vunpack.c.h.b16 %v7319
        %v7417 = vunpack.c.l.b16 %v7320
        %v7418 = vunpack.c.h.b16 %v7320
        %v7419 = vunpack.c.l.b16 %v7321
        %v7420 = vunpack.c.h.b16 %v7321
        %v7421 = vunpack.c.l.b16 %v7322
        %v7422 = vunpack.c.h.b16 %v7322
        %v7423 = vpack.c.b16 %v7363, %v7359
        %v7424 = vpack.c.b16 %v7364, %v7360
        %v7425 = vpack.c.b16 %v7365, %v7361
        %v7426 = vpack.c.b16 %v7366, %v7362
        %v7427 = vpack.c.b16 %v7371, %v7367
        %v7428 = vpack.c.b16 %v7372, %v7368
        %v7429 = vpack.c.b16 %v7373, %v7369
        %v7430 = vpack.c.b16 %v7374, %v7370
        %v7431 = vpack.c.b16 %v7379, %v7375
        %v7432 = vpack.c.b16 %v7380, %v7376
        %v7433 = vpack.c.b16 %v7381, %v7377
        %v7434 = vpack.c.b16 %v7382, %v7378
        %v7435 = vpack.c.b16 %v7387, %v7383
        %v7436 = vpack.c.b16 %v7388, %v7384
        %v7437 = vpack.c.b16 %v7389, %v7385
        %v7438 = vpack.c.b16 %v7390, %v7386
        %v7439 = vpack.c.b16 %v7395, %v7391
        %v7440 = vpack.c.b16 %v7396, %v7392
        %v7441 = vpack.c.b16 %v7397, %v7393
        %v7442 = vpack.c.b16 %v7398, %v7394
        %v7443 = vpack.c.b16 %v7403, %v7399
        %v7444 = vpack.c.b16 %v7404, %v7400
        %v7445 = vpack.c.b16 %v7405, %v7401
        %v7446 = vpack.c.b16 %v7406, %v7402
        %v7447 = vpack.c.b16 %v7411, %v7407
        %v7448 = vpack.c.b16 %v7412, %v7408
        %v7449 = vpack.c.b16 %v7413, %v7409
        %v7450 = vpack.c.b16 %v7414, %v7410
        %v7451 = vpack.c.b16 %v7419, %v7415
        %v7452 = vpack.c.b16 %v7420, %v7416
        %v7453 = vpack.c.b16 %v7421, %v7417
        %v7454 = vpack.c.b16 %v7422, %v7418
        %7487 = vmatprep.subr.bf16.mxu0 %v7424
        %7488 = vmatpush1.bf16.msra.mxu0 %v7423
        %7489 = vmatprep.subr.bf16.mxu0 %v7428
        %7490 = vmatpush1.bf16.msra.mxu0 %v7427
        %7491 = vmatprep.subr.bf16.mxu0 %v7432
        %7492 = vmatpush1.bf16.msra.mxu0 %v7431
        %7493 = vmatprep.subr.bf16.mxu0 %v7436
        %7494 = vmatpush1.bf16.msra.mxu0 %v7435
        %7495 = vmatprep.subr.bf16.mxu0 %v7440
        %7496 = vmatpush1.bf16.msra.mxu0 %v7439
        %7497 = vmatprep.subr.bf16.mxu0 %v7444
        %7498 = vmatpush1.bf16.msra.mxu0 %v7443
        %7499 = vmatprep.subr.bf16.mxu0 %v7448
        %7500 = vmatpush1.bf16.msra.mxu0 %v7447
        %7501 = vmatprep.subr.bf16.mxu0 %v7452
        %7502 = vmatpush1.bf16.msra.mxu0 %v7451
        %7503 = vmatprep.subr.bf16.mxu0 0
        %7504 = vmatpush1.bf16.msra.mxu0 0
        %7505 = vmatprep.subr.bf16.mxu0 0
        %7506 = vmatpush1.bf16.msra.mxu0 0
        %7507 = vmatprep.subr.bf16.mxu0 0
        %7508 = vmatpush1.bf16.msra.mxu0 0
        %7509 = vmatprep.subr.bf16.mxu0 0
        %7510 = vmatpush1.bf16.msra.mxu0 0
        %7511 = vmatprep.subr.bf16.mxu0 0
        %7512 = vmatpush1.bf16.msra.mxu0 0
        %7513 = vmatprep.subr.bf16.mxu0 0
        %7514 = vmatpush1.bf16.msra.mxu0 0
        %7515 = vmatprep.subr.bf16.mxu0 0
        %7516 = vmatpush1.bf16.msra.mxu0 0
        %7517 = vmatprep.subr.bf16.mxu0 0
        %7518 = vmatpush1.bf16.msra.mxu0 0
        %7519 = vmatprep.mubr.bf16.mxu0 0
        %7520 = vmatmul.mubr.bf16.gmra.mrb[0].mxu0 %v7324
        %v7521 = vpop.f32.mrb[0].mxu0
        %v7522 = vadd.f32 0.0, %v7521
        %v7523 = vpop.f32.mrb[0].mxu0
        %v7524 = vadd.f32 0.0, %v7523
        %v7525 = vpop.f32.mrb[0].mxu0
        %v7526 = vpop.f32.mrb[0].mxu0
        %7527 = vdwg.mxu0
        %7528 = vmatprep.subr.bf16.mxu0 %v7426
        %7529 = vmatpush1.bf16.msra.mxu0 %v7425
        %7530 = vmatprep.subr.bf16.mxu0 %v7430
        %7531 = vmatpush1.bf16.msra.mxu0 %v7429
        %7532 = vmatprep.subr.bf16.mxu0 %v7434
        %7533 = vmatpush1.bf16.msra.mxu0 %v7433
        %7534 = vmatprep.subr.bf16.mxu0 %v7438
        %7535 = vmatpush1.bf16.msra.mxu0 %v7437
        %7536 = vmatprep.subr.bf16.mxu0 %v7442
        %7537 = vmatpush1.bf16.msra.mxu0 %v7441
        %7538 = vmatprep.subr.bf16.mxu0 %v7446
        %7539 = vmatpush1.bf16.msra.mxu0 %v7445
        %7540 = vmatprep.subr.bf16.mxu0 %v7450
        %7541 = vmatpush1.bf16.msra.mxu0 %v7449
        %7542 = vmatprep.subr.bf16.mxu0 %v7454
        %7543 = vmatpush1.bf16.msra.mxu0 %v7453
        %7544 = vmatprep.subr.bf16.mxu0 0
        %7545 = vmatpush1.bf16.msra.mxu0 0
        %7546 = vmatprep.subr.bf16.mxu0 0
        %7547 = vmatpush1.bf16.msra.mxu0 0
        %7548 = vmatprep.subr.bf16.mxu0 0
        %7549 = vmatpush1.bf16.msra.mxu0 0
        %7550 = vmatprep.subr.bf16.mxu0 0
        %7551 = vmatpush1.bf16.msra.mxu0 0
        %7552 = vmatprep.subr.bf16.mxu0 0
        %7553 = vmatpush1.bf16.msra.mxu0 0
        %7554 = vmatprep.subr.bf16.mxu0 0
        %7555 = vmatpush1.bf16.msra.mxu0 0
        %7556 = vmatprep.subr.bf16.mxu0 0
        %7557 = vmatpush1.bf16.msra.mxu0 0
        %7558 = vmatprep.subr.bf16.mxu0 0
        %7559 = vmatpush1.bf16.msra.mxu0 0
        %7560 = vmatprep.mubr.bf16.mxu0 0
        %7561 = vmatmul.mubr.bf16.gmra.mrb[0].mxu0 %v7324
        %v7562 = vpop.f32.mrb[0].mxu0
        %v7563 = vadd.f32 0.0, %v7562
        %v7564 = vpop.f32.mrb[0].mxu0
        %v7565 = vadd.f32 0.0, %v7564
        %v7566 = vpop.f32.mrb[0].mxu0
        %v7567 = vpop.f32.mrb[0].mxu0
        %7568 = vdwg.mxu0
        %v7601 = vunpack.c.l.b16 %v7258
        %v7602 = vunpack.c.h.b16 %v7258
        %v7603 = vunpack.c.l.b16 %v7259
        %v7604 = vunpack.c.h.b16 %v7259
        %v7605 = vunpack.c.l.b16 %v7260
        %v7606 = vunpack.c.h.b16 %v7260
        %v7607 = vunpack.c.l.b16 %v7261
        %v7608 = vunpack.c.h.b16 %v7261
        %v7609 = vunpack.c.l.b16 %v7262
        %v7610 = vunpack.c.h.b16 %v7262
        %v7611 = vunpack.c.l.b16 %v7263
        %v7612 = vunpack.c.h.b16 %v7263
        %v7613 = vunpack.c.l.b16 %v7264
        %v7614 = vunpack.c.h.b16 %v7264
        %v7615 = vunpack.c.l.b16 %v7265
        %v7616 = vunpack.c.h.b16 %v7265
        %v7617 = vunpack.c.l.b16 %v7266
        %v7618 = vunpack.c.h.b16 %v7266
        %v7619 = vunpack.c.l.b16 %v7267
        %v7620 = vunpack.c.h.b16 %v7267
        %v7621 = vunpack.c.l.b16 %v7268
        %v7622 = vunpack.c.h.b16 %v7268
        %v7623 = vunpack.c.l.b16 %v7269
        %v7624 = vunpack.c.h.b16 %v7269
        %v7625 = vunpack.c.l.b16 %v7270
        %v7626 = vunpack.c.h.b16 %v7270
        %v7627 = vunpack.c.l.b16 %v7271
        %v7628 = vunpack.c.h.b16 %v7271
        %v7629 = vunpack.c.l.b16 %v7272
        %v7630 = vunpack.c.h.b16 %v7272
        %v7631 = vunpack.c.l.b16 %v7273
        %v7632 = vunpack.c.h.b16 %v7273
        %v7633 = vunpack.c.l.b16 %v7274
        %v7634 = vunpack.c.h.b16 %v7274
        %v7635 = vunpack.c.l.b16 %v7275
        %v7636 = vunpack.c.h.b16 %v7275
        %v7637 = vunpack.c.l.b16 %v7276
        %v7638 = vunpack.c.h.b16 %v7276
        %v7639 = vunpack.c.l.b16 %v7277
        %v7640 = vunpack.c.h.b16 %v7277
        %v7641 = vunpack.c.l.b16 %v7278
        %v7642 = vunpack.c.h.b16 %v7278
        %v7643 = vunpack.c.l.b16 %v7279
        %v7644 = vunpack.c.h.b16 %v7279
        %v7645 = vunpack.c.l.b16 %v7280
        %v7646 = vunpack.c.h.b16 %v7280
        %v7647 = vunpack.c.l.b16 %v7281
        %v7648 = vunpack.c.h.b16 %v7281
        %v7649 = vunpack.c.l.b16 %v7282
        %v7650 = vunpack.c.h.b16 %v7282
        %v7651 = vunpack.c.l.b16 %v7283
        %v7652 = vunpack.c.h.b16 %v7283
        %v7653 = vunpack.c.l.b16 %v7284
        %v7654 = vunpack.c.h.b16 %v7284
        %v7655 = vunpack.c.l.b16 %v7285
        %v7656 = vunpack.c.h.b16 %v7285
        %v7657 = vunpack.c.l.b16 %v7286
        %v7658 = vunpack.c.h.b16 %v7286
        %v7659 = vunpack.c.l.b16 %v7287
        %v7660 = vunpack.c.h.b16 %v7287
        %v7661 = vunpack.c.l.b16 %v7288
        %v7662 = vunpack.c.h.b16 %v7288
        %v7663 = vunpack.c.l.b16 %v7289
        %v7664 = vunpack.c.h.b16 %v7289
        %v7665 = vpack.c.b16 %v7605, %v7601
        %v7666 = vpack.c.b16 %v7606, %v7602
        %v7667 = vpack.c.b16 %v7607, %v7603
        %v7668 = vpack.c.b16 %v7608, %v7604
        %v7669 = vpack.c.b16 %v7613, %v7609
        %v7670 = vpack.c.b16 %v7614, %v7610
        %v7671 = vpack.c.b16 %v7615, %v7611
        %v7672 = vpack.c.b16 %v7616, %v7612
        %v7673 = vpack.c.b16 %v7621, %v7617
        %v7674 = vpack.c.b16 %v7622, %v7618
        %v7675 = vpack.c.b16 %v7623, %v7619
        %v7676 = vpack.c.b16 %v7624, %v7620
        %v7677 = vpack.c.b16 %v7629, %v7625
        %v7678 = vpack.c.b16 %v7630, %v7626
        %v7679 = vpack.c.b16 %v7631, %v7627
        %v7680 = vpack.c.b16 %v7632, %v7628
        %v7681 = vpack.c.b16 %v7637, %v7633
        %v7682 = vpack.c.b16 %v7638, %v7634
        %v7683 = vpack.c.b16 %v7639, %v7635
        %v7684 = vpack.c.b16 %v7640, %v7636
        %v7685 = vpack.c.b16 %v7645, %v7641
        %v7686 = vpack.c.b16 %v7646, %v7642
        %v7687 = vpack.c.b16 %v7647, %v7643
        %v7688 = vpack.c.b16 %v7648, %v7644
        %v7689 = vpack.c.b16 %v7653, %v7649
        %v7690 = vpack.c.b16 %v7654, %v7650
        %v7691 = vpack.c.b16 %v7655, %v7651
        %v7692 = vpack.c.b16 %v7656, %v7652
        %v7693 = vpack.c.b16 %v7661, %v7657
        %v7694 = vpack.c.b16 %v7662, %v7658
        %v7695 = vpack.c.b16 %v7663, %v7659
        %v7696 = vpack.c.b16 %v7664, %v7660
        %7729 = vmatprep.subr.bf16.mxu0 %v7666
        %7730 = vmatpush1.bf16.msra.mxu0 %v7665
        %7731 = vmatprep.subr.bf16.mxu0 %v7670
        %7732 = vmatpush1.bf16.msra.mxu0 %v7669
        %7733 = vmatprep.subr.bf16.mxu0 %v7674
        %7734 = vmatpush1.bf16.msra.mxu0 %v7673
        %7735 = vmatprep.subr.bf16.mxu0 %v7678
        %7736 = vmatpush1.bf16.msra.mxu0 %v7677
        %7737 = vmatprep.subr.bf16.mxu0 %v7682
        %7738 = vmatpush1.bf16.msra.mxu0 %v7681
        %7739 = vmatprep.subr.bf16.mxu0 %v7686
        %7740 = vmatpush1.bf16.msra.mxu0 %v7685
        %7741 = vmatprep.subr.bf16.mxu0 %v7690
        %7742 = vmatpush1.bf16.msra.mxu0 %v7689
        %7743 = vmatprep.subr.bf16.mxu0 %v7694
        %7744 = vmatpush1.bf16.msra.mxu0 %v7693
        %7745 = vmatprep.subr.bf16.mxu0 0
        %7746 = vmatpush1.bf16.msra.mxu0 0
        %7747 = vmatprep.subr.bf16.mxu0 0
        %7748 = vmatpush1.bf16.msra.mxu0 0
        %7749 = vmatprep.subr.bf16.mxu0 0
        %7750 = vmatpush1.bf16.msra.mxu0 0
        %7751 = vmatprep.subr.bf16.mxu0 0
        %7752 = vmatpush1.bf16.msra.mxu0 0
        %7753 = vmatprep.subr.bf16.mxu0 0
        %7754 = vmatpush1.bf16.msra.mxu0 0
        %7755 = vmatprep.subr.bf16.mxu0 0
        %7756 = vmatpush1.bf16.msra.mxu0 0
        %7757 = vmatprep.subr.bf16.mxu0 0
        %7758 = vmatpush1.bf16.msra.mxu0 0
        %7759 = vmatprep.subr.bf16.mxu0 0
        %7760 = vmatpush1.bf16.msra.mxu0 0
        %7761 = vmatprep.mubr.bf16.mxu0 0
        %7762 = vmatmul.mubr.bf16.gmra.mrb[0].mxu0 %v7257
        %v7763 = vpop.f32.mrb[0].mxu0
        %v7764 = vadd.f32 %v7522, %v7763
        %v7765 = vpop.f32.mrb[0].mxu0
        %v7766 = vadd.f32 %v7524, %v7765
        %v7767 = vpop.f32.mrb[0].mxu0
        %v7768 = vpop.f32.mrb[0].mxu0
        %7769 = vdwg.mxu0
        %7770 = vmatprep.subr.bf16.mxu0 %v7668
        %7771 = vmatpush1.bf16.msra.mxu0 %v7667
        %7772 = vmatprep.subr.bf16.mxu0 %v7672
        %7773 = vmatpush1.bf16.msra.mxu0 %v7671
        %7774 = vmatprep.subr.bf16.mxu0 %v7676
        %7775 = vmatpush1.bf16.msra.mxu0 %v7675
        %7776 = vmatprep.subr.bf16.mxu0 %v7680
        %7777 = vmatpush1.bf16.msra.mxu0 %v7679
        %7778 = vmatprep.subr.bf16.mxu0 %v7684
        %7779 = vmatpush1.bf16.msra.mxu0 %v7683
        %7780 = vmatprep.subr.bf16.mxu0 %v7688
        %7781 = vmatpush1.bf16.msra.mxu0 %v7687
        %7782 = vmatprep.subr.bf16.mxu0 %v7692
        %7783 = vmatpush1.bf16.msra.mxu0 %v7691
        %7784 = vmatprep.subr.bf16.mxu0 %v7696
        %7785 = vmatpush1.bf16.msra.mxu0 %v7695
        %7786 = vmatprep.subr.bf16.mxu0 0
        %7787 = vmatpush1.bf16.msra.mxu0 0
        %7788 = vmatprep.subr.bf16.mxu0 0
        %7789 = vmatpush1.bf16.msra.mxu0 0
        %7790 = vmatprep.subr.bf16.mxu0 0
        %7791 = vmatpush1.bf16.msra.mxu0 0
        %7792 = vmatprep.subr.bf16.mxu0 0
        %7793 = vmatpush1.bf16.msra.mxu0 0
        %7794 = vmatprep.subr.bf16.mxu0 0
        %7795 = vmatpush1.bf16.msra.mxu0 0
        %7796 = vmatprep.subr.bf16.mxu0 0
        %7797 = vmatpush1.bf16.msra.mxu0 0
        %7798 = vmatprep.subr.bf16.mxu0 0
        %7799 = vmatpush1.bf16.msra.mxu0 0
        %7800 = vmatprep.subr.bf16.mxu0 0
        %7801 = vmatpush1.bf16.msra.mxu0 0
        %7802 = vmatprep.mubr.bf16.mxu0 0
        %7803 = vmatmul.mubr.bf16.gmra.mrb[0].mxu0 %v7257
        %v7804 = vpop.f32.mrb[0].mxu0
        %v7805 = vadd.f32 %v7563, %v7804
        %v7806 = vpop.f32.mrb[0].mxu0
        %v7807 = vadd.f32 %v7565, %v7806
        %v7808 = vpop.f32.mrb[0].mxu0
        %v7809 = vpop.f32.mrb[0].mxu0
        %7810 = vdwg.mxu0
        %s7811 = scalar_lea.vmem %s3, 512
        %v7812 = vld [vmem:[%s7811] sm:$0xff]
        %v7813 = vld [vmem:[%s7811 + $0x8] sm:$0xff]
        %v7814 = vld [vmem:[%s7811 + $0x10] sm:$0xff]
        %v7815 = vld [vmem:[%s7811 + $0x18] sm:$0xff]
        %v7816 = vld [vmem:[%s7811 + $0x20] sm:$0xff]
        %v7817 = vld [vmem:[%s7811 + $0x28] sm:$0xff]
        %v7818 = vld [vmem:[%s7811 + $0x30] sm:$0xff]
        %v7819 = vld [vmem:[%s7811 + $0x38] sm:$0xff]
        %v7820 = vld [vmem:[%s7811 + $0x40] sm:$0xff]
        %v7821 = vld [vmem:[%s7811 + $0x48] sm:$0xff]
        %v7822 = vld [vmem:[%s7811 + $0x50] sm:$0xff]
        %v7823 = vld [vmem:[%s7811 + $0x58] sm:$0xff]
        %v7824 = vld [vmem:[%s7811 + $0x60] sm:$0xff]
        %v7825 = vld [vmem:[%s7811 + $0x68] sm:$0xff]
        %v7826 = vld [vmem:[%s7811 + $0x70] sm:$0xff]
        %v7827 = vld [vmem:[%s7811 + $0x78] sm:$0xff]
        %v7828 = vld [vmem:[%s7811 + $0x80] sm:$0xff]
        %v7829 = vld [vmem:[%s7811 + $0x88] sm:$0xff]
        %v7830 = vld [vmem:[%s7811 + $0x90] sm:$0xff]
        %v7831 = vld [vmem:[%s7811 + $0x98] sm:$0xff]
        %v7832 = vld [vmem:[%s7811 + $0xa0] sm:$0xff]
        %v7833 = vld [vmem:[%s7811 + $0xa8] sm:$0xff]
        %v7834 = vld [vmem:[%s7811 + $0xb0] sm:$0xff]
        %v7835 = vld [vmem:[%s7811 + $0xb8] sm:$0xff]
        %v7836 = vld [vmem:[%s7811 + $0xc0] sm:$0xff]
        %v7837 = vld [vmem:[%s7811 + $0xc8] sm:$0xff]
        %v7838 = vld [vmem:[%s7811 + $0xd0] sm:$0xff]
        %v7839 = vld [vmem:[%s7811 + $0xd8] sm:$0xff]
        %v7840 = vld [vmem:[%s7811 + $0xe0] sm:$0xff]
        %v7841 = vld [vmem:[%s7811 + $0xe8] sm:$0xff]
        %v7842 = vld [vmem:[%s7811 + $0xf0] sm:$0xff]
        %v7843 = vld [vmem:[%s7811 + $0xf8] sm:$0xff]
        %v7845 = vrot.slane %v7257, 1
        %v7879 = vunpack.c.l.b16 %v7812
        %v7880 = vunpack.c.h.b16 %v7812
        %v7881 = vunpack.c.l.b16 %v7813
        %v7882 = vunpack.c.h.b16 %v7813
        %v7883 = vunpack.c.l.b16 %v7814
        %v7884 = vunpack.c.h.b16 %v7814
        %v7885 = vunpack.c.l.b16 %v7815
        %v7886 = vunpack.c.h.b16 %v7815
        %v7887 = vunpack.c.l.b16 %v7816
        %v7888 = vunpack.c.h.b16 %v7816
        %v7889 = vunpack.c.l.b16 %v7817
        %v7890 = vunpack.c.h.b16 %v7817
        %v7891 = vunpack.c.l.b16 %v7818
        %v7892 = vunpack.c.h.b16 %v7818
        %v7893 = vunpack.c.l.b16 %v7819
        %v7894 = vunpack.c.h.b16 %v7819
        %v7895 = vunpack.c.l.b16 %v7820
        %v7896 = vunpack.c.h.b16 %v7820
        %v7897 = vunpack.c.l.b16 %v7821
        %v7898 = vunpack.c.h.b16 %v7821
        %v7899 = vunpack.c.l.b16 %v7822
        %v7900 = vunpack.c.h.b16 %v7822
        %v7901 = vunpack.c.l.b16 %v7823
        %v7902 = vunpack.c.h.b16 %v7823
        %v7903 = vunpack.c.l.b16 %v7824
        %v7904 = vunpack.c.h.b16 %v7824
        %v7905 = vunpack.c.l.b16 %v7825
        %v7906 = vunpack.c.h.b16 %v7825
        %v7907 = vunpack.c.l.b16 %v7826
        %v7908 = vunpack.c.h.b16 %v7826
        %v7909 = vunpack.c.l.b16 %v7827
        %v7910 = vunpack.c.h.b16 %v7827
        %v7911 = vunpack.c.l.b16 %v7828
        %v7912 = vunpack.c.h.b16 %v7828
        %v7913 = vunpack.c.l.b16 %v7829
        %v7914 = vunpack.c.h.b16 %v7829
        %v7915 = vunpack.c.l.b16 %v7830
        %v7916 = vunpack.c.h.b16 %v7830
        %v7917 = vunpack.c.l.b16 %v7831
        %v7918 = vunpack.c.h.b16 %v7831
        %v7919 = vunpack.c.l.b16 %v7832
        %v7920 = vunpack.c.h.b16 %v7832
        %v7921 = vunpack.c.l.b16 %v7833
        %v7922 = vunpack.c.h.b16 %v7833
        %v7923 = vunpack.c.l.b16 %v7834
        %v7924 = vunpack.c.h.b16 %v7834
        %v7925 = vunpack.c.l.b16 %v7835
        %v7926 = vunpack.c.h.b16 %v7835
        %v7927 = vunpack.c.l.b16 %v7836
        %v7928 = vunpack.c.h.b16 %v7836
        %v7929 = vunpack.c.l.b16 %v7837
        %v7930 = vunpack.c.h.b16 %v7837
        %v7931 = vunpack.c.l.b16 %v7838
        %v7932 = vunpack.c.h.b16 %v7838
        %v7933 = vunpack.c.l.b16 %v7839
        %v7934 = vunpack.c.h.b16 %v7839
        %v7935 = vunpack.c.l.b16 %v7840
        %v7936 = vunpack.c.h.b16 %v7840
        %v7937 = vunpack.c.l.b16 %v7841
        %v7938 = vunpack.c.h.b16 %v7841
        %v7939 = vunpack.c.l.b16 %v7842
        %v7940 = vunpack.c.h.b16 %v7842
        %v7941 = vunpack.c.l.b16 %v7843
        %v7942 = vunpack.c.h.b16 %v7843
        %v7943 = vpack.c.b16 %v7883, %v7879
        %v7944 = vpack.c.b16 %v7884, %v7880
        %v7945 = vpack.c.b16 %v7885, %v7881
        %v7946 = vpack.c.b16 %v7886, %v7882
        %v7947 = vpack.c.b16 %v7891, %v7887
        %v7948 = vpack.c.b16 %v7892, %v7888
        %v7949 = vpack.c.b16 %v7893, %v7889
        %v7950 = vpack.c.b16 %v7894, %v7890
        %v7951 = vpack.c.b16 %v7899, %v7895
        %v7952 = vpack.c.b16 %v7900, %v7896
        %v7953 = vpack.c.b16 %v7901, %v7897
        %v7954 = vpack.c.b16 %v7902, %v7898
        %v7955 = vpack.c.b16 %v7907, %v7903
        %v7956 = vpack.c.b16 %v7908, %v7904
        %v7957 = vpack.c.b16 %v7909, %v7905
        %v7958 = vpack.c.b16 %v7910, %v7906
        %v7959 = vpack.c.b16 %v7915, %v7911
        %v7960 = vpack.c.b16 %v7916, %v7912
        %v7961 = vpack.c.b16 %v7917, %v7913
        %v7962 = vpack.c.b16 %v7918, %v7914
        %v7963 = vpack.c.b16 %v7923, %v7919
        %v7964 = vpack.c.b16 %v7924, %v7920
        %v7965 = vpack.c.b16 %v7925, %v7921
        %v7966 = vpack.c.b16 %v7926, %v7922
        %v7967 = vpack.c.b16 %v7931, %v7927
        %v7968 = vpack.c.b16 %v7932, %v7928
        %v7969 = vpack.c.b16 %v7933, %v7929
        %v7970 = vpack.c.b16 %v7934, %v7930
        %v7971 = vpack.c.b16 %v7939, %v7935
        %v7972 = vpack.c.b16 %v7940, %v7936
        %v7973 = vpack.c.b16 %v7941, %v7937
        %v7974 = vpack.c.b16 %v7942, %v7938
        %8007 = vmatprep.subr.bf16.mxu0 %v7944
        %8008 = vmatpush1.bf16.msra.mxu0 %v7943
        %8009 = vmatprep.subr.bf16.mxu0 %v7948
        %8010 = vmatpush1.bf16.msra.mxu0 %v7947
        %8011 = vmatprep.subr.bf16.mxu0 %v7952
        %8012 = vmatpush1.bf16.msra.mxu0 %v7951
        %8013 = vmatprep.subr.bf16.mxu0 %v7956
        %8014 = vmatpush1.bf16.msra.mxu0 %v7955
        %8015 = vmatprep.subr.bf16.mxu0 %v7960
        %8016 = vmatpush1.bf16.msra.mxu0 %v7959
        %8017 = vmatprep.subr.bf16.mxu0 %v7964
        %8018 = vmatpush1.bf16.msra.mxu0 %v7963
        %8019 = vmatprep.subr.bf16.mxu0 %v7968
        %8020 = vmatpush1.bf16.msra.mxu0 %v7967
        %8021 = vmatprep.subr.bf16.mxu0 %v7972
        %8022 = vmatpush1.bf16.msra.mxu0 %v7971
        %8023 = vmatprep.subr.bf16.mxu0 0
        %8024 = vmatpush1.bf16.msra.mxu0 0
        %8025 = vmatprep.subr.bf16.mxu0 0
        %8026 = vmatpush1.bf16.msra.mxu0 0
        %8027 = vmatprep.subr.bf16.mxu0 0
        %8028 = vmatpush1.bf16.msra.mxu0 0
        %8029 = vmatprep.subr.bf16.mxu0 0
        %8030 = vmatpush1.bf16.msra.mxu0 0
        %8031 = vmatprep.subr.bf16.mxu0 0
        %8032 = vmatpush1.bf16.msra.mxu0 0
        %8033 = vmatprep.subr.bf16.mxu0 0
        %8034 = vmatpush1.bf16.msra.mxu0 0
        %8035 = vmatprep.subr.bf16.mxu0 0
        %8036 = vmatpush1.bf16.msra.mxu0 0
        %8037 = vmatprep.subr.bf16.mxu0 0
        %8038 = vmatpush1.bf16.msra.mxu0 0
        %8039 = vmatprep.mubr.bf16.mxu0 0
        %8040 = vmatmul.mubr.bf16.gmra.mrb[0].mxu0 %v7845
        %v8041 = vpop.f32.mrb[0].mxu0
        %v8042 = vadd.f32 0.0, %v8041
        %v8043 = vpop.f32.mrb[0].mxu0
        %v8044 = vadd.f32 0.0, %v8043
        %v8045 = vpop.f32.mrb[0].mxu0
        %v8046 = vpop.f32.mrb[0].mxu0
        %8047 = vdwg.mxu0
        %8048 = vmatprep.subr.bf16.mxu0 %v7946
        %8049 = vmatpush1.bf16.msra.mxu0 %v7945
        %8050 = vmatprep.subr.bf16.mxu0 %v7950
        %8051 = vmatpush1.bf16.msra.mxu0 %v7949
        %8052 = vmatprep.subr.bf16.mxu0 %v7954
        %8053 = vmatpush1.bf16.msra.mxu0 %v7953
        %8054 = vmatprep.subr.bf16.mxu0 %v7958
        %8055 = vmatpush1.bf16.msra.mxu0 %v7957
        %8056 = vmatprep.subr.bf16.mxu0 %v7962
        %8057 = vmatpush1.bf16.msra.mxu0 %v7961
        %8058 = vmatprep.subr.bf16.mxu0 %v7966
        %8059 = vmatpush1.bf16.msra.mxu0 %v7965
        %8060 = vmatprep.subr.bf16.mxu0 %v7970
        %8061 = vmatpush1.bf16.msra.mxu0 %v7969
        %8062 = vmatprep.subr.bf16.mxu0 %v7974
        %8063 = vmatpush1.bf16.msra.mxu0 %v7973
        %8064 = vmatprep.subr.bf16.mxu0 0
        %8065 = vmatpush1.bf16.msra.mxu0 0
        %8066 = vmatprep.subr.bf16.mxu0 0
        %8067 = vmatpush1.bf16.msra.mxu0 0
        %8068 = vmatprep.subr.bf16.mxu0 0
        %8069 = vmatpush1.bf16.msra.mxu0 0
        %8070 = vmatprep.subr.bf16.mxu0 0
        %8071 = vmatpush1.bf16.msra.mxu0 0
        %8072 = vmatprep.subr.bf16.mxu0 0
        %8073 = vmatpush1.bf16.msra.mxu0 0
        %8074 = vmatprep.subr.bf16.mxu0 0
        %8075 = vmatpush1.bf16.msra.mxu0 0
        %8076 = vmatprep.subr.bf16.mxu0 0
        %8077 = vmatpush1.bf16.msra.mxu0 0
        %8078 = vmatprep.subr.bf16.mxu0 0
        %8079 = vmatpush1.bf16.msra.mxu0 0
        %8080 = vmatprep.mubr.bf16.mxu0 0
        %8081 = vmatmul.mubr.bf16.gmra.mrb[0].mxu0 %v7845
        %v8082 = vpop.f32.mrb[0].mxu0
        %v8083 = vadd.f32 0.0, %v8082
        %v8084 = vpop.f32.mrb[0].mxu0
        %v8085 = vadd.f32 0.0, %v8084
        %v8086 = vpop.f32.mrb[0].mxu0
        %v8087 = vpop.f32.mrb[0].mxu0
        %8088 = vdwg.mxu0
        %v8089 = vadd.f32 %v7764, %v8042
        %v8090 = vadd.f32 %v7766, %v8044
        %v8091 = vadd.f32 %v7805, %v8083
        %v8092 = vadd.f32 %v7807, %v8085
        %s8093 = scalar_lea.vmem %s3, 768
        %v8094 = vld [vmem:[%s8093] sm:$0xff]
        %v8095 = vld [vmem:[%s8093 + $0x8] sm:$0xff]
        %v8096 = vld [vmem:[%s8093 + $0x10] sm:$0xff]
        %v8097 = vld [vmem:[%s8093 + $0x18] sm:$0xff]
        %v8098 = vld [vmem:[%s8093 + $0x20] sm:$0xff]
        %v8099 = vld [vmem:[%s8093 + $0x28] sm:$0xff]
        %v8100 = vld [vmem:[%s8093 + $0x30] sm:$0xff]
        %v8101 = vld [vmem:[%s8093 + $0x38] sm:$0xff]
        %v8102 = vld [vmem:[%s8093 + $0x40] sm:$0xff]
        %v8103 = vld [vmem:[%s8093 + $0x48] sm:$0xff]
        %v8104 = vld [vmem:[%s8093 + $0x50] sm:$0xff]
        %v8105 = vld [vmem:[%s8093 + $0x58] sm:$0xff]
        %v8106 = vld [vmem:[%s8093 + $0x60] sm:$0xff]
        %v8107 = vld [vmem:[%s8093 + $0x68] sm:$0xff]
        %v8108 = vld [vmem:[%s8093 + $0x70] sm:$0xff]
        %v8109 = vld [vmem:[%s8093 + $0x78] sm:$0xff]
        %v8110 = vld [vmem:[%s8093 + $0x80] sm:$0xff]
        %v8111 = vld [vmem:[%s8093 + $0x88] sm:$0xff]
        %v8112 = vld [vmem:[%s8093 + $0x90] sm:$0xff]
        %v8113 = vld [vmem:[%s8093 + $0x98] sm:$0xff]
        %v8114 = vld [vmem:[%s8093 + $0xa0] sm:$0xff]
        %v8115 = vld [vmem:[%s8093 + $0xa8] sm:$0xff]
        %v8116 = vld [vmem:[%s8093 + $0xb0] sm:$0xff]
        %v8117 = vld [vmem:[%s8093 + $0xb8] sm:$0xff]
        %v8118 = vld [vmem:[%s8093 + $0xc0] sm:$0xff]
        %v8119 = vld [vmem:[%s8093 + $0xc8] sm:$0xff]
        %v8120 = vld [vmem:[%s8093 + $0xd0] sm:$0xff]
        %v8121 = vld [vmem:[%s8093 + $0xd8] sm:$0xff]
        %v8122 = vld [vmem:[%s8093 + $0xe0] sm:$0xff]
        %v8123 = vld [vmem:[%s8093 + $0xe8] sm:$0xff]
        %v8124 = vld [vmem:[%s8093 + $0xf0] sm:$0xff]
        %v8125 = vld [vmem:[%s8093 + $0xf8] sm:$0xff]
        %v8126 = vrot.slane %v7324, 1
        %v8160 = vunpack.c.l.b16 %v8094
        %v8161 = vunpack.c.h.b16 %v8094
        %v8162 = vunpack.c.l.b16 %v8095
        %v8163 = vunpack.c.h.b16 %v8095
        %v8164 = vunpack.c.l.b16 %v8096
        %v8165 = vunpack.c.h.b16 %v8096
        %v8166 = vunpack.c.l.b16 %v8097
        %v8167 = vunpack.c.h.b16 %v8097
        %v8168 = vunpack.c.l.b16 %v8098
        %v8169 = vunpack.c.h.b16 %v8098
        %v8170 = vunpack.c.l.b16 %v8099
        %v8171 = vunpack.c.h.b16 %v8099
        %v8172 = vunpack.c.l.b16 %v8100
        %v8173 = vunpack.c.h.b16 %v8100
        %v8174 = vunpack.c.l.b16 %v8101
        %v8175 = vunpack.c.h.b16 %v8101
        %v8176 = vunpack.c.l.b16 %v8102
        %v8177 = vunpack.c.h.b16 %v8102
        %v8178 = vunpack.c.l.b16 %v8103
        %v8179 = vunpack.c.h.b16 %v8103
        %v8180 = vunpack.c.l.b16 %v8104
        %v8181 = vunpack.c.h.b16 %v8104
        %v8182 = vunpack.c.l.b16 %v8105
        %v8183 = vunpack.c.h.b16 %v8105
        %v8184 = vunpack.c.l.b16 %v8106
        %v8185 = vunpack.c.h.b16 %v8106
        %v8186 = vunpack.c.l.b16 %v8107
        %v8187 = vunpack.c.h.b16 %v8107
        %v8188 = vunpack.c.l.b16 %v8108
        %v8189 = vunpack.c.h.b16 %v8108
        %v8190 = vunpack.c.l.b16 %v8109
        %v8191 = vunpack.c.h.b16 %v8109
        %v8192 = vunpack.c.l.b16 %v8110
        %v8193 = vunpack.c.h.b16 %v8110
        %v8194 = vunpack.c.l.b16 %v8111
        %v8195 = vunpack.c.h.b16 %v8111
        %v8196 = vunpack.c.l.b16 %v8112
        %v8197 = vunpack.c.h.b16 %v8112
        %v8198 = vunpack.c.l.b16 %v8113
        %v8199 = vunpack.c.h.b16 %v8113
        %v8200 = vunpack.c.l.b16 %v8114
        %v8201 = vunpack.c.h.b16 %v8114
        %v8202 = vunpack.c.l.b16 %v8115
        %v8203 = vunpack.c.h.b16 %v8115
        %v8204 = vunpack.c.l.b16 %v8116
        %v8205 = vunpack.c.h.b16 %v8116
        %v8206 = vunpack.c.l.b16 %v8117
        %v8207 = vunpack.c.h.b16 %v8117
        %v8208 = vunpack.c.l.b16 %v8118
        %v8209 = vunpack.c.h.b16 %v8118
        %v8210 = vunpack.c.l.b16 %v8119
        %v8211 = vunpack.c.h.b16 %v8119
        %v8212 = vunpack.c.l.b16 %v8120
        %v8213 = vunpack.c.h.b16 %v8120
        %v8214 = vunpack.c.l.b16 %v8121
        %v8215 = vunpack.c.h.b16 %v8121
        %v8216 = vunpack.c.l.b16 %v8122
        %v8217 = vunpack.c.h.b16 %v8122
        %v8218 = vunpack.c.l.b16 %v8123
        %v8219 = vunpack.c.h.b16 %v8123
        %v8220 = vunpack.c.l.b16 %v8124
        %v8221 = vunpack.c.h.b16 %v8124
        %v8222 = vunpack.c.l.b16 %v8125
        %v8223 = vunpack.c.h.b16 %v8125
        %v8224 = vpack.c.b16 %v8164, %v8160
        %v8225 = vpack.c.b16 %v8165, %v8161
        %v8226 = vpack.c.b16 %v8166, %v8162
        %v8227 = vpack.c.b16 %v8167, %v8163
        %v8228 = vpack.c.b16 %v8172, %v8168
        %v8229 = vpack.c.b16 %v8173, %v8169
        %v8230 = vpack.c.b16 %v8174, %v8170
        %v8231 = vpack.c.b16 %v8175, %v8171
        %v8232 = vpack.c.b16 %v8180, %v8176
        %v8233 = vpack.c.b16 %v8181, %v8177
        %v8234 = vpack.c.b16 %v8182, %v8178
        %v8235 = vpack.c.b16 %v8183, %v8179
        %v8236 = vpack.c.b16 %v8188, %v8184
        %v8237 = vpack.c.b16 %v8189, %v8185
        %v8238 = vpack.c.b16 %v8190, %v8186
        %v8239 = vpack.c.b16 %v8191, %v8187
        %v8240 = vpack.c.b16 %v8196, %v8192
        %v8241 = vpack.c.b16 %v8197, %v8193
        %v8242 = vpack.c.b16 %v8198, %v8194
        %v8243 = vpack.c.b16 %v8199, %v8195
        %v8244 = vpack.c.b16 %v8204, %v8200
        %v8245 = vpack.c.b16 %v8205, %v8201
        %v8246 = vpack.c.b16 %v8206, %v8202
        %v8247 = vpack.c.b16 %v8207, %v8203
        %v8248 = vpack.c.b16 %v8212, %v8208
        %v8249 = vpack.c.b16 %v8213, %v8209
        %v8250 = vpack.c.b16 %v8214, %v8210
        %v8251 = vpack.c.b16 %v8215, %v8211
        %v8252 = vpack.c.b16 %v8220, %v8216
        %v8253 = vpack.c.b16 %v8221, %v8217
        %v8254 = vpack.c.b16 %v8222, %v8218
        %v8255 = vpack.c.b16 %v8223, %v8219
        %8288 = vmatprep.subr.bf16.mxu0 %v8225
        %8289 = vmatpush1.bf16.msra.mxu0 %v8224
        %8290 = vmatprep.subr.bf16.mxu0 %v8229
        %8291 = vmatpush1.bf16.msra.mxu0 %v8228
        %8292 = vmatprep.subr.bf16.mxu0 %v8233
        %8293 = vmatpush1.bf16.msra.mxu0 %v8232
        %8294 = vmatprep.subr.bf16.mxu0 %v8237
        %8295 = vmatpush1.bf16.msra.mxu0 %v8236
        %8296 = vmatprep.subr.bf16.mxu0 %v8241
        %8297 = vmatpush1.bf16.msra.mxu0 %v8240
        %8298 = vmatprep.subr.bf16.mxu0 %v8245
        %8299 = vmatpush1.bf16.msra.mxu0 %v8244
        %8300 = vmatprep.subr.bf16.mxu0 %v8249
        %8301 = vmatpush1.bf16.msra.mxu0 %v8248
        %8302 = vmatprep.subr.bf16.mxu0 %v8253
        %8303 = vmatpush1.bf16.msra.mxu0 %v8252
        %8304 = vmatprep.subr.bf16.mxu0 0
        %8305 = vmatpush1.bf16.msra.mxu0 0
        %8306 = vmatprep.subr.bf16.mxu0 0
        %8307 = vmatpush1.bf16.msra.mxu0 0
        %8308 = vmatprep.subr.bf16.mxu0 0
        %8309 = vmatpush1.bf16.msra.mxu0 0
        %8310 = vmatprep.subr.bf16.mxu0 0
        %8311 = vmatpush1.bf16.msra.mxu0 0
        %8312 = vmatprep.subr.bf16.mxu0 0
        %8313 = vmatpush1.bf16.msra.mxu0 0
        %8314 = vmatprep.subr.bf16.mxu0 0
        %8315 = vmatpush1.bf16.msra.mxu0 0
        %8316 = vmatprep.subr.bf16.mxu0 0
        %8317 = vmatpush1.bf16.msra.mxu0 0
        %8318 = vmatprep.subr.bf16.mxu0 0
        %8319 = vmatpush1.bf16.msra.mxu0 0
        %8320 = vmatprep.mubr.bf16.mxu0 0
        %8321 = vmatmul.mubr.bf16.gmra.mrb[0].mxu0 %v8126
        %v8322 = vpop.f32.mrb[0].mxu0
        %v8323 = vadd.f32 0.0, %v8322
        %v8324 = vpop.f32.mrb[0].mxu0
        %v8325 = vadd.f32 0.0, %v8324
        %v8326 = vpop.f32.mrb[0].mxu0
        %v8327 = vpop.f32.mrb[0].mxu0
        %8328 = vdwg.mxu0
        %8329 = vmatprep.subr.bf16.mxu0 %v8227
        %8330 = vmatpush1.bf16.msra.mxu0 %v8226
        %8331 = vmatprep.subr.bf16.mxu0 %v8231
        %8332 = vmatpush1.bf16.msra.mxu0 %v8230
        %8333 = vmatprep.subr.bf16.mxu0 %v8235
        %8334 = vmatpush1.bf16.msra.mxu0 %v8234
        %8335 = vmatprep.subr.bf16.mxu0 %v8239
        %8336 = vmatpush1.bf16.msra.mxu0 %v8238
        %8337 = vmatprep.subr.bf16.mxu0 %v8243
        %8338 = vmatpush1.bf16.msra.mxu0 %v8242
        %8339 = vmatprep.subr.bf16.mxu0 %v8247
        %8340 = vmatpush1.bf16.msra.mxu0 %v8246
        %8341 = vmatprep.subr.bf16.mxu0 %v8251
        %8342 = vmatpush1.bf16.msra.mxu0 %v8250
        %8343 = vmatprep.subr.bf16.mxu0 %v8255
        %8344 = vmatpush1.bf16.msra.mxu0 %v8254
        %8345 = vmatprep.subr.bf16.mxu0 0
        %8346 = vmatpush1.bf16.msra.mxu0 0
        %8347 = vmatprep.subr.bf16.mxu0 0
        %8348 = vmatpush1.bf16.msra.mxu0 0
        %8349 = vmatprep.subr.bf16.mxu0 0
        %8350 = vmatpush1.bf16.msra.mxu0 0
        %8351 = vmatprep.subr.bf16.mxu0 0
        %8352 = vmatpush1.bf16.msra.mxu0 0
        %8353 = vmatprep.subr.bf16.mxu0 0
        %8354 = vmatpush1.bf16.msra.mxu0 0
        %8355 = vmatprep.subr.bf16.mxu0 0
        %8356 = vmatpush1.bf16.msra.mxu0 0
        %8357 = vmatprep.subr.bf16.mxu0 0
        %8358 = vmatpush1.bf16.msra.mxu0 0
        %8359 = vmatprep.subr.bf16.mxu0 0
        %8360 = vmatpush1.bf16.msra.mxu0 0
        %8361 = vmatprep.mubr.bf16.mxu0 0
        %8362 = vmatmul.mubr.bf16.gmra.mrb[0].mxu0 %v8126
        %v8363 = vpop.f32.mrb[0].mxu0
        %v8364 = vadd.f32 0.0, %v8363
        %v8365 = vpop.f32.mrb[0].mxu0
        %v8366 = vadd.f32 0.0, %v8365
        %v8367 = vpop.f32.mrb[0].mxu0
        %v8368 = vpop.f32.mrb[0].mxu0
        %8369 = vdwg.mxu0
        %v8370 = vadd.f32 %v8089, %v8323
        %v8371 = vadd.f32 %v8090, %v8325
        %v8372 = vadd.f32 %v8091, %v8364
        %v8373 = vadd.f32 %v8092, %v8366
        %v8374 = vld [vmem:[#allocation8] sm:$0xf]
        %v8376 = vlaneseq
        %v8377 = vshrl.u32 %v8376, 7
        %v8378 = vsub.s32 0, %v8377
        %v8379 = vrot.slane %v8374, %v8378
        %v8380 = vlaneseq
        %v8381 = vshrl.u32 %v8380, 7
        %v8382 = vsub.s32 1, %v8381
        %v8383 = vrot.slane %v8374, %v8382
        %v8384 = vlaneseq
        %v8385 = vshrl.u32 %v8384, 7
        %v8386 = vsub.s32 2, %v8385
        %v8387 = vrot.slane %v8374, %v8386
        %v8388 = vlaneseq
        %v8389 = vshrl.u32 %v8388, 7
        %v8390 = vsub.s32 3, %v8389
        %v8391 = vrot.slane %v8374, %v8390
        %v8396 = vadd.f32 %v8370, %v8379
        %v8397 = vadd.f32 %v8371, %v8383
        %v8398 = vadd.f32 %v8372, %v8387
        %v8399 = vadd.f32 %v8373, %v8391
        %v8400 = vmax.f32 %v8396, 0.0
        %v8401 = vmax.f32 %v8397, 0.0
        %v8402 = vmax.f32 %v8398, 0.0
        %v8403 = vmax.f32 %v8399, 0.0
        %v8404 = vpack.c.bf16 %v8400, %v8400
        %v8405 = vpack.c.bf16 %v8401, %v8401
        %v8406 = vpack.c.bf16 %v8402, %v8402
        %v8407 = vpack.c.bf16 %v8403, %v8403
        %v8408 = vld [vmem:[#allocation9] sm:$0xff]
        %v8409 = vld [vmem:[#allocation9 + $0x8] sm:$0xff]
        %v8410 = vld [vmem:[#allocation9 + $0x10] sm:$0xff]
        %v8411 = vld [vmem:[#allocation9 + $0x18] sm:$0xff]
        %v8412 = vld [vmem:[#allocation9 + $0x20] sm:$0xff]
        %v8413 = vld [vmem:[#allocation9 + $0x28] sm:$0xff]
        %v8414 = vld [vmem:[#allocation9 + $0x30] sm:$0xff]
        %v8415 = vld [vmem:[#allocation9 + $0x38] sm:$0xff]
        %v8416 = vld [vmem:[#allocation9 + $0x40] sm:$0xff]
        %v8417 = vld [vmem:[#allocation9 + $0x48] sm:$0xff]
        %v8418 = vld [vmem:[#allocation9 + $0x50] sm:$0xff]
        %v8419 = vld [vmem:[#allocation9 + $0x58] sm:$0xff]
        %v8420 = vld [vmem:[#allocation9 + $0x60] sm:$0xff]
        %v8421 = vld [vmem:[#allocation9 + $0x68] sm:$0xff]
        %v8422 = vld [vmem:[#allocation9 + $0x70] sm:$0xff]
        %v8423 = vld [vmem:[#allocation9 + $0x78] sm:$0xff]
        %v8424 = vld [vmem:[#allocation9 + $0x80] sm:$0xff]
        %v8425 = vld [vmem:[#allocation9 + $0x88] sm:$0xff]
        %v8426 = vld [vmem:[#allocation9 + $0x90] sm:$0xff]
        %v8427 = vld [vmem:[#allocation9 + $0x98] sm:$0xff]
        %v8428 = vld [vmem:[#allocation9 + $0xa0] sm:$0xff]
        %v8429 = vld [vmem:[#allocation9 + $0xa8] sm:$0xff]
        %v8430 = vld [vmem:[#allocation9 + $0xb0] sm:$0xff]
        %v8431 = vld [vmem:[#allocation9 + $0xb8] sm:$0xff]
        %v8432 = vld [vmem:[#allocation9 + $0xc0] sm:$0xff]
        %v8433 = vld [vmem:[#allocation9 + $0xc8] sm:$0xff]
        %v8434 = vld [vmem:[#allocation9 + $0xd0] sm:$0xff]
        %v8435 = vld [vmem:[#allocation9 + $0xd8] sm:$0xff]
        %v8436 = vld [vmem:[#allocation9 + $0xe0] sm:$0xff]
        %v8437 = vld [vmem:[#allocation9 + $0xe8] sm:$0xff]
        %v8438 = vld [vmem:[#allocation9 + $0xf0] sm:$0xff]
        %v8439 = vld [vmem:[#allocation9 + $0xf8] sm:$0xff]
        %v8440 = vld [vmem:[#allocation9 + $0x100] sm:$0xff]
        %v8441 = vld [vmem:[#allocation9 + $0x108] sm:$0xff]
        %v8442 = vld [vmem:[#allocation9 + $0x110] sm:$0xff]
        %v8443 = vld [vmem:[#allocation9 + $0x118] sm:$0xff]
        %v8444 = vld [vmem:[#allocation9 + $0x120] sm:$0xff]
        %v8445 = vld [vmem:[#allocation9 + $0x128] sm:$0xff]
        %v8446 = vld [vmem:[#allocation9 + $0x130] sm:$0xff]
        %v8447 = vld [vmem:[#allocation9 + $0x138] sm:$0xff]
        %v8448 = vld [vmem:[#allocation9 + $0x140] sm:$0xff]
        %v8449 = vld [vmem:[#allocation9 + $0x148] sm:$0xff]
        %v8450 = vld [vmem:[#allocation9 + $0x150] sm:$0xff]
        %v8451 = vld [vmem:[#allocation9 + $0x158] sm:$0xff]
        %v8452 = vld [vmem:[#allocation9 + $0x160] sm:$0xff]
        %v8453 = vld [vmem:[#allocation9 + $0x168] sm:$0xff]
        %v8454 = vld [vmem:[#allocation9 + $0x170] sm:$0xff]
        %v8455 = vld [vmem:[#allocation9 + $0x178] sm:$0xff]
        %v8456 = vld [vmem:[#allocation9 + $0x180] sm:$0xff]
        %v8457 = vld [vmem:[#allocation9 + $0x188] sm:$0xff]
        %v8458 = vld [vmem:[#allocation9 + $0x190] sm:$0xff]
        %v8459 = vld [vmem:[#allocation9 + $0x198] sm:$0xff]
        %v8460 = vld [vmem:[#allocation9 + $0x1a0] sm:$0xff]
        %v8461 = vld [vmem:[#allocation9 + $0x1a8] sm:$0xff]
        %v8462 = vld [vmem:[#allocation9 + $0x1b0] sm:$0xff]
        %v8463 = vld [vmem:[#allocation9 + $0x1b8] sm:$0xff]
        %v8464 = vld [vmem:[#allocation9 + $0x1c0] sm:$0xff]
        %v8465 = vld [vmem:[#allocation9 + $0x1c8] sm:$0xff]
        %v8466 = vld [vmem:[#allocation9 + $0x1d0] sm:$0xff]
        %v8467 = vld [vmem:[#allocation9 + $0x1d8] sm:$0xff]
        %v8468 = vld [vmem:[#allocation9 + $0x1e0] sm:$0xff]
        %v8469 = vld [vmem:[#allocation9 + $0x1e8] sm:$0xff]
        %v8470 = vld [vmem:[#allocation9 + $0x1f0] sm:$0xff]
        %v8471 = vld [vmem:[#allocation9 + $0x1f8] sm:$0xff]
        %v8472 = vld [vmem:[#allocation9 + $0x200] sm:$0xff]
        %v8473 = vld [vmem:[#allocation9 + $0x208] sm:$0xff]
        %v8474 = vld [vmem:[#allocation9 + $0x210] sm:$0xff]
        %v8475 = vld [vmem:[#allocation9 + $0x218] sm:$0xff]
        %v8476 = vld [vmem:[#allocation9 + $0x220] sm:$0xff]
        %v8477 = vld [vmem:[#allocation9 + $0x228] sm:$0xff]
        %v8478 = vld [vmem:[#allocation9 + $0x230] sm:$0xff]
        %v8479 = vld [vmem:[#allocation9 + $0x238] sm:$0xff]
        %v8480 = vld [vmem:[#allocation9 + $0x240] sm:$0xff]
        %v8481 = vld [vmem:[#allocation9 + $0x248] sm:$0xff]
        %v8482 = vld [vmem:[#allocation9 + $0x250] sm:$0xff]
        %v8483 = vld [vmem:[#allocation9 + $0x258] sm:$0xff]
        %v8484 = vld [vmem:[#allocation9 + $0x260] sm:$0xff]
        %v8485 = vld [vmem:[#allocation9 + $0x268] sm:$0xff]
        %v8486 = vld [vmem:[#allocation9 + $0x270] sm:$0xff]
        %v8487 = vld [vmem:[#allocation9 + $0x278] sm:$0xff]
        %v8488 = vld [vmem:[#allocation9 + $0x280] sm:$0xff]
        %v8489 = vld [vmem:[#allocation9 + $0x288] sm:$0xff]
        %v8490 = vld [vmem:[#allocation9 + $0x290] sm:$0xff]
        %v8491 = vld [vmem:[#allocation9 + $0x298] sm:$0xff]
        %v8492 = vld [vmem:[#allocation9 + $0x2a0] sm:$0xff]
        %v8493 = vld [vmem:[#allocation9 + $0x2a8] sm:$0xff]
        %v8494 = vld [vmem:[#allocation9 + $0x2b0] sm:$0xff]
        %v8495 = vld [vmem:[#allocation9 + $0x2b8] sm:$0xff]
        %v8496 = vld [vmem:[#allocation9 + $0x2c0] sm:$0xff]
        %v8497 = vld [vmem:[#allocation9 + $0x2c8] sm:$0xff]
        %v8498 = vld [vmem:[#allocation9 + $0x2d0] sm:$0xff]
        %v8499 = vld [vmem:[#allocation9 + $0x2d8] sm:$0xff]
        %v8500 = vld [vmem:[#allocation9 + $0x2e0] sm:$0xff]
        %v8501 = vld [vmem:[#allocation9 + $0x2e8] sm:$0xff]
        %v8502 = vld [vmem:[#allocation9 + $0x2f0] sm:$0xff]
        %v8503 = vld [vmem:[#allocation9 + $0x2f8] sm:$0xff]
        %v8504 = vld [vmem:[#allocation9 + $0x300] sm:$0xff]
        %v8505 = vld [vmem:[#allocation9 + $0x308] sm:$0xff]
        %v8506 = vld [vmem:[#allocation9 + $0x310] sm:$0xff]
        %v8507 = vld [vmem:[#allocation9 + $0x318] sm:$0xff]
        %v8508 = vld [vmem:[#allocation9 + $0x320] sm:$0xff]
        %v8509 = vld [vmem:[#allocation9 + $0x328] sm:$0xff]
        %v8510 = vld [vmem:[#allocation9 + $0x330] sm:$0xff]
        %v8511 = vld [vmem:[#allocation9 + $0x338] sm:$0xff]
        %v8512 = vld [vmem:[#allocation9 + $0x340] sm:$0xff]
        %v8513 = vld [vmem:[#allocation9 + $0x348] sm:$0xff]
        %v8514 = vld [vmem:[#allocation9 + $0x350] sm:$0xff]
        %v8515 = vld [vmem:[#allocation9 + $0x358] sm:$0xff]
        %v8516 = vld [vmem:[#allocation9 + $0x360] sm:$0xff]
        %v8517 = vld [vmem:[#allocation9 + $0x368] sm:$0xff]
        %v8518 = vld [vmem:[#allocation9 + $0x370] sm:$0xff]
        %v8519 = vld [vmem:[#allocation9 + $0x378] sm:$0xff]
        %v8520 = vld [vmem:[#allocation9 + $0x380] sm:$0xff]
        %v8521 = vld [vmem:[#allocation9 + $0x388] sm:$0xff]
        %v8522 = vld [vmem:[#allocation9 + $0x390] sm:$0xff]
        %v8523 = vld [vmem:[#allocation9 + $0x398] sm:$0xff]
        %v8524 = vld [vmem:[#allocation9 + $0x3a0] sm:$0xff]
        %v8525 = vld [vmem:[#allocation9 + $0x3a8] sm:$0xff]
        %v8526 = vld [vmem:[#allocation9 + $0x3b0] sm:$0xff]
        %v8527 = vld [vmem:[#allocation9 + $0x3b8] sm:$0xff]
        %v8528 = vld [vmem:[#allocation9 + $0x3c0] sm:$0xff]
        %v8529 = vld [vmem:[#allocation9 + $0x3c8] sm:$0xff]
        %v8530 = vld [vmem:[#allocation9 + $0x3d0] sm:$0xff]
        %v8531 = vld [vmem:[#allocation9 + $0x3d8] sm:$0xff]
        %v8532 = vld [vmem:[#allocation9 + $0x3e0] sm:$0xff]
        %v8533 = vld [vmem:[#allocation9 + $0x3e8] sm:$0xff]
        %v8534 = vld [vmem:[#allocation9 + $0x3f0] sm:$0xff]
        %v8535 = vld [vmem:[#allocation9 + $0x3f8] sm:$0xff]
        %v8536 = vld [vmem:[#allocation11] sm:$0xf]
        %v8665 = vunpack.c.l.b16 %v8408
        %v8666 = vunpack.c.h.b16 %v8408
        %v8667 = vunpack.c.l.b16 %v8409
        %v8668 = vunpack.c.h.b16 %v8409
        %v8669 = vunpack.c.l.b16 %v8410
        %v8670 = vunpack.c.h.b16 %v8410
        %v8671 = vunpack.c.l.b16 %v8411
        %v8672 = vunpack.c.h.b16 %v8411
        %v8673 = vunpack.c.l.b16 %v8412
        %v8674 = vunpack.c.h.b16 %v8412
        %v8675 = vunpack.c.l.b16 %v8413
        %v8676 = vunpack.c.h.b16 %v8413
        %v8677 = vunpack.c.l.b16 %v8414
        %v8678 = vunpack.c.h.b16 %v8414
        %v8679 = vunpack.c.l.b16 %v8415
        %v8680 = vunpack.c.h.b16 %v8415
        %v8681 = vunpack.c.l.b16 %v8416
        %v8682 = vunpack.c.h.b16 %v8416
        %v8683 = vunpack.c.l.b16 %v8417
        %v8684 = vunpack.c.h.b16 %v8417
        %v8685 = vunpack.c.l.b16 %v8418
        %v8686 = vunpack.c.h.b16 %v8418
        %v8687 = vunpack.c.l.b16 %v8419
        %v8688 = vunpack.c.h.b16 %v8419
        %v8689 = vunpack.c.l.b16 %v8420
        %v8690 = vunpack.c.h.b16 %v8420
        %v8691 = vunpack.c.l.b16 %v8421
        %v8692 = vunpack.c.h.b16 %v8421
        %v8693 = vunpack.c.l.b16 %v8422
        %v8694 = vunpack.c.h.b16 %v8422
        %v8695 = vunpack.c.l.b16 %v8423
        %v8696 = vunpack.c.h.b16 %v8423
        %v8697 = vunpack.c.l.b16 %v8424
        %v8698 = vunpack.c.h.b16 %v8424
        %v8699 = vunpack.c.l.b16 %v8425
        %v8700 = vunpack.c.h.b16 %v8425
        %v8701 = vunpack.c.l.b16 %v8426
        %v8702 = vunpack.c.h.b16 %v8426
        %v8703 = vunpack.c.l.b16 %v8427
        %v8704 = vunpack.c.h.b16 %v8427
        %v8705 = vunpack.c.l.b16 %v8428
        %v8706 = vunpack.c.h.b16 %v8428
        %v8707 = vunpack.c.l.b16 %v8429
        %v8708 = vunpack.c.h.b16 %v8429
        %v8709 = vunpack.c.l.b16 %v8430
        %v8710 = vunpack.c.h.b16 %v8430
        %v8711 = vunpack.c.l.b16 %v8431
        %v8712 = vunpack.c.h.b16 %v8431
        %v8713 = vunpack.c.l.b16 %v8432
        %v8714 = vunpack.c.h.b16 %v8432
        %v8715 = vunpack.c.l.b16 %v8433
        %v8716 = vunpack.c.h.b16 %v8433
        %v8717 = vunpack.c.l.b16 %v8434
        %v8718 = vunpack.c.h.b16 %v8434
        %v8719 = vunpack.c.l.b16 %v8435
        %v8720 = vunpack.c.h.b16 %v8435
        %v8721 = vunpack.c.l.b16 %v8436
        %v8722 = vunpack.c.h.b16 %v8436
        %v8723 = vunpack.c.l.b16 %v8437
        %v8724 = vunpack.c.h.b16 %v8437
        %v8725 = vunpack.c.l.b16 %v8438
        %v8726 = vunpack.c.h.b16 %v8438
        %v8727 = vunpack.c.l.b16 %v8439
        %v8728 = vunpack.c.h.b16 %v8439
        %v8729 = vunpack.c.l.b16 %v8440
        %v8730 = vunpack.c.h.b16 %v8440
        %v8731 = vunpack.c.l.b16 %v8441
        %v8732 = vunpack.c.h.b16 %v8441
        %v8733 = vunpack.c.l.b16 %v8442
        %v8734 = vunpack.c.h.b16 %v8442
        %v8735 = vunpack.c.l.b16 %v8443
        %v8736 = vunpack.c.h.b16 %v8443
        %v8737 = vunpack.c.l.b16 %v8444
        %v8738 = vunpack.c.h.b16 %v8444
        %v8739 = vunpack.c.l.b16 %v8445
        %v8740 = vunpack.c.h.b16 %v8445
        %v8741 = vunpack.c.l.b16 %v8446
        %v8742 = vunpack.c.h.b16 %v8446
        %v8743 = vunpack.c.l.b16 %v8447
        %v8744 = vunpack.c.h.b16 %v8447
        %v8745 = vunpack.c.l.b16 %v8448
        %v8746 = vunpack.c.h.b16 %v8448
        %v8747 = vunpack.c.l.b16 %v8449
        %v8748 = vunpack.c.h.b16 %v8449
        %v8749 = vunpack.c.l.b16 %v8450
        %v8750 = vunpack.c.h.b16 %v8450
        %v8751 = vunpack.c.l.b16 %v8451
        %v8752 = vunpack.c.h.b16 %v8451
        %v8753 = vunpack.c.l.b16 %v8452
        %v8754 = vunpack.c.h.b16 %v8452
        %v8755 = vunpack.c.l.b16 %v8453
        %v8756 = vunpack.c.h.b16 %v8453
        %v8757 = vunpack.c.l.b16 %v8454
        %v8758 = vunpack.c.h.b16 %v8454
        %v8759 = vunpack.c.l.b16 %v8455
        %v8760 = vunpack.c.h.b16 %v8455
        %v8761 = vunpack.c.l.b16 %v8456
        %v8762 = vunpack.c.h.b16 %v8456
        %v8763 = vunpack.c.l.b16 %v8457
        %v8764 = vunpack.c.h.b16 %v8457
        %v8765 = vunpack.c.l.b16 %v8458
        %v8766 = vunpack.c.h.b16 %v8458
        %v8767 = vunpack.c.l.b16 %v8459
        %v8768 = vunpack.c.h.b16 %v8459
        %v8769 = vunpack.c.l.b16 %v8460
        %v8770 = vunpack.c.h.b16 %v8460
        %v8771 = vunpack.c.l.b16 %v8461
        %v8772 = vunpack.c.h.b16 %v8461
        %v8773 = vunpack.c.l.b16 %v8462
        %v8774 = vunpack.c.h.b16 %v8462
        %v8775 = vunpack.c.l.b16 %v8463
        %v8776 = vunpack.c.h.b16 %v8463
        %v8777 = vunpack.c.l.b16 %v8464
        %v8778 = vunpack.c.h.b16 %v8464
        %v8779 = vunpack.c.l.b16 %v8465
        %v8780 = vunpack.c.h.b16 %v8465
        %v8781 = vunpack.c.l.b16 %v8466
        %v8782 = vunpack.c.h.b16 %v8466
        %v8783 = vunpack.c.l.b16 %v8467
        %v8784 = vunpack.c.h.b16 %v8467
        %v8785 = vunpack.c.l.b16 %v8468
        %v8786 = vunpack.c.h.b16 %v8468
        %v8787 = vunpack.c.l.b16 %v8469
        %v8788 = vunpack.c.h.b16 %v8469
        %v8789 = vunpack.c.l.b16 %v8470
        %v8790 = vunpack.c.h.b16 %v8470
        %v8791 = vunpack.c.l.b16 %v8471
        %v8792 = vunpack.c.h.b16 %v8471
        %v8793 = vunpack.c.l.b16 %v8472
        %v8794 = vunpack.c.h.b16 %v8472
        %v8795 = vunpack.c.l.b16 %v8473
        %v8796 = vunpack.c.h.b16 %v8473
        %v8797 = vunpack.c.l.b16 %v8474
        %v8798 = vunpack.c.h.b16 %v8474
        %v8799 = vunpack.c.l.b16 %v8475
        %v8800 = vunpack.c.h.b16 %v8475
        %v8801 = vunpack.c.l.b16 %v8476
        %v8802 = vunpack.c.h.b16 %v8476
        %v8803 = vunpack.c.l.b16 %v8477
        %v8804 = vunpack.c.h.b16 %v8477
        %v8805 = vunpack.c.l.b16 %v8478
        %v8806 = vunpack.c.h.b16 %v8478
        %v8807 = vunpack.c.l.b16 %v8479
        %v8808 = vunpack.c.h.b16 %v8479
        %v8809 = vunpack.c.l.b16 %v8480
        %v8810 = vunpack.c.h.b16 %v8480
        %v8811 = vunpack.c.l.b16 %v8481
        %v8812 = vunpack.c.h.b16 %v8481
        %v8813 = vunpack.c.l.b16 %v8482
        %v8814 = vunpack.c.h.b16 %v8482
        %v8815 = vunpack.c.l.b16 %v8483
        %v8816 = vunpack.c.h.b16 %v8483
        %v8817 = vunpack.c.l.b16 %v8484
        %v8818 = vunpack.c.h.b16 %v8484
        %v8819 = vunpack.c.l.b16 %v8485
        %v8820 = vunpack.c.h.b16 %v8485
        %v8821 = vunpack.c.l.b16 %v8486
        %v8822 = vunpack.c.h.b16 %v8486
        %v8823 = vunpack.c.l.b16 %v8487
        %v8824 = vunpack.c.h.b16 %v8487
        %v8825 = vunpack.c.l.b16 %v8488
        %v8826 = vunpack.c.h.b16 %v8488
        %v8827 = vunpack.c.l.b16 %v8489
        %v8828 = vunpack.c.h.b16 %v8489
        %v8829 = vunpack.c.l.b16 %v8490
        %v8830 = vunpack.c.h.b16 %v8490
        %v8831 = vunpack.c.l.b16 %v8491
        %v8832 = vunpack.c.h.b16 %v8491
        %v8833 = vunpack.c.l.b16 %v8492
        %v8834 = vunpack.c.h.b16 %v8492
        %v8835 = vunpack.c.l.b16 %v8493
        %v8836 = vunpack.c.h.b16 %v8493
        %v8837 = vunpack.c.l.b16 %v8494
        %v8838 = vunpack.c.h.b16 %v8494
        %v8839 = vunpack.c.l.b16 %v8495
        %v8840 = vunpack.c.h.b16 %v8495
        %v8841 = vunpack.c.l.b16 %v8496
        %v8842 = vunpack.c.h.b16 %v8496
        %v8843 = vunpack.c.l.b16 %v8497
        %v8844 = vunpack.c.h.b16 %v8497
        %v8845 = vunpack.c.l.b16 %v8498
        %v8846 = vunpack.c.h.b16 %v8498
        %v8847 = vunpack.c.l.b16 %v8499
        %v8848 = vunpack.c.h.b16 %v8499
        %v8849 = vunpack.c.l.b16 %v8500
        %v8850 = vunpack.c.h.b16 %v8500
        %v8851 = vunpack.c.l.b16 %v8501
        %v8852 = vunpack.c.h.b16 %v8501
        %v8853 = vunpack.c.l.b16 %v8502
        %v8854 = vunpack.c.h.b16 %v8502
        %v8855 = vunpack.c.l.b16 %v8503
        %v8856 = vunpack.c.h.b16 %v8503
        %v8857 = vunpack.c.l.b16 %v8504
        %v8858 = vunpack.c.h.b16 %v8504
        %v8859 = vunpack.c.l.b16 %v8505
        %v8860 = vunpack.c.h.b16 %v8505
        %v8861 = vunpack.c.l.b16 %v8506
        %v8862 = vunpack.c.h.b16 %v8506
        %v8863 = vunpack.c.l.b16 %v8507
        %v8864 = vunpack.c.h.b16 %v8507
        %v8865 = vunpack.c.l.b16 %v8508
        %v8866 = vunpack.c.h.b16 %v8508
        %v8867 = vunpack.c.l.b16 %v8509
        %v8868 = vunpack.c.h.b16 %v8509
        %v8869 = vunpack.c.l.b16 %v8510
        %v8870 = vunpack.c.h.b16 %v8510
        %v8871 = vunpack.c.l.b16 %v8511
        %v8872 = vunpack.c.h.b16 %v8511
        %v8873 = vunpack.c.l.b16 %v8512
        %v8874 = vunpack.c.h.b16 %v8512
        %v8875 = vunpack.c.l.b16 %v8513
        %v8876 = vunpack.c.h.b16 %v8513
        %v8877 = vunpack.c.l.b16 %v8514
        %v8878 = vunpack.c.h.b16 %v8514
        %v8879 = vunpack.c.l.b16 %v8515
        %v8880 = vunpack.c.h.b16 %v8515
        %v8881 = vunpack.c.l.b16 %v8516
        %v8882 = vunpack.c.h.b16 %v8516
        %v8883 = vunpack.c.l.b16 %v8517
        %v8884 = vunpack.c.h.b16 %v8517
        %v8885 = vunpack.c.l.b16 %v8518
        %v8886 = vunpack.c.h.b16 %v8518
        %v8887 = vunpack.c.l.b16 %v8519
        %v8888 = vunpack.c.h.b16 %v8519
        %v8889 = vunpack.c.l.b16 %v8520
        %v8890 = vunpack.c.h.b16 %v8520
        %v8891 = vunpack.c.l.b16 %v8521
        %v8892 = vunpack.c.h.b16 %v8521
        %v8893 = vunpack.c.l.b16 %v8522
        %v8894 = vunpack.c.h.b16 %v8522
        %v8895 = vunpack.c.l.b16 %v8523
        %v8896 = vunpack.c.h.b16 %v8523
        %v8897 = vunpack.c.l.b16 %v8524
        %v8898 = vunpack.c.h.b16 %v8524
        %v8899 = vunpack.c.l.b16 %v8525
        %v8900 = vunpack.c.h.b16 %v8525
        %v8901 = vunpack.c.l.b16 %v8526
        %v8902 = vunpack.c.h.b16 %v8526
        %v8903 = vunpack.c.l.b16 %v8527
        %v8904 = vunpack.c.h.b16 %v8527
        %v8905 = vunpack.c.l.b16 %v8528
        %v8906 = vunpack.c.h.b16 %v8528
        %v8907 = vunpack.c.l.b16 %v8529
        %v8908 = vunpack.c.h.b16 %v8529
        %v8909 = vunpack.c.l.b16 %v8530
        %v8910 = vunpack.c.h.b16 %v8530
        %v8911 = vunpack.c.l.b16 %v8531
        %v8912 = vunpack.c.h.b16 %v8531
        %v8913 = vunpack.c.l.b16 %v8532
        %v8914 = vunpack.c.h.b16 %v8532
        %v8915 = vunpack.c.l.b16 %v8533
        %v8916 = vunpack.c.h.b16 %v8533
        %v8917 = vunpack.c.l.b16 %v8534
        %v8918 = vunpack.c.h.b16 %v8534
        %v8919 = vunpack.c.l.b16 %v8535
        %v8920 = vunpack.c.h.b16 %v8535
        %v8921 = vpack.c.b16 %v8669, %v8665
        %v8922 = vpack.c.b16 %v8670, %v8666
        %v8923 = vpack.c.b16 %v8671, %v8667
        %v8924 = vpack.c.b16 %v8672, %v8668
        %v8925 = vpack.c.b16 %v8677, %v8673
        %v8926 = vpack.c.b16 %v8678, %v8674
        %v8927 = vpack.c.b16 %v8679, %v8675
        %v8928 = vpack.c.b16 %v8680, %v8676
        %v8929 = vpack.c.b16 %v8685, %v8681
        %v8930 = vpack.c.b16 %v8686, %v8682
        %v8931 = vpack.c.b16 %v8687, %v8683
        %v8932 = vpack.c.b16 %v8688, %v8684
        %v8933 = vpack.c.b16 %v8693, %v8689
        %v8934 = vpack.c.b16 %v8694, %v8690
        %v8935 = vpack.c.b16 %v8695, %v8691
        %v8936 = vpack.c.b16 %v8696, %v8692
        %v8937 = vpack.c.b16 %v8701, %v8697
        %v8938 = vpack.c.b16 %v8702, %v8698
        %v8939 = vpack.c.b16 %v8703, %v8699
        %v8940 = vpack.c.b16 %v8704, %v8700
        %v8941 = vpack.c.b16 %v8709, %v8705
        %v8942 = vpack.c.b16 %v8710, %v8706
        %v8943 = vpack.c.b16 %v8711, %v8707
        %v8944 = vpack.c.b16 %v8712, %v8708
        %v8945 = vpack.c.b16 %v8717, %v8713
        %v8946 = vpack.c.b16 %v8718, %v8714
        %v8947 = vpack.c.b16 %v8719, %v8715
        %v8948 = vpack.c.b16 %v8720, %v8716
        %v8949 = vpack.c.b16 %v8725, %v8721
        %v8950 = vpack.c.b16 %v8726, %v8722
        %v8951 = vpack.c.b16 %v8727, %v8723
        %v8952 = vpack.c.b16 %v8728, %v8724
        %v8953 = vpack.c.b16 %v8733, %v8729
        %v8954 = vpack.c.b16 %v8734, %v8730
        %v8955 = vpack.c.b16 %v8735, %v8731
        %v8956 = vpack.c.b16 %v8736, %v8732
        %v8957 = vpack.c.b16 %v8741, %v8737
        %v8958 = vpack.c.b16 %v8742, %v8738
        %v8959 = vpack.c.b16 %v8743, %v8739
        %v8960 = vpack.c.b16 %v8744, %v8740
        %v8961 = vpack.c.b16 %v8749, %v8745
        %v8962 = vpack.c.b16 %v8750, %v8746
        %v8963 = vpack.c.b16 %v8751, %v8747
        %v8964 = vpack.c.b16 %v8752, %v8748
        %v8965 = vpack.c.b16 %v8757, %v8753
        %v8966 = vpack.c.b16 %v8758, %v8754
        %v8967 = vpack.c.b16 %v8759, %v8755
        %v8968 = vpack.c.b16 %v8760, %v8756
        %v8969 = vpack.c.b16 %v8765, %v8761
        %v8970 = vpack.c.b16 %v8766, %v8762
        %v8971 = vpack.c.b16 %v8767, %v8763
        %v8972 = vpack.c.b16 %v8768, %v8764
        %v8973 = vpack.c.b16 %v8773, %v8769
        %v8974 = vpack.c.b16 %v8774, %v8770
        %v8975 = vpack.c.b16 %v8775, %v8771
        %v8976 = vpack.c.b16 %v8776, %v8772
        %v8977 = vpack.c.b16 %v8781, %v8777
        %v8978 = vpack.c.b16 %v8782, %v8778
        %v8979 = vpack.c.b16 %v8783, %v8779
        %v8980 = vpack.c.b16 %v8784, %v8780
        %v8981 = vpack.c.b16 %v8789, %v8785
        %v8982 = vpack.c.b16 %v8790, %v8786
        %v8983 = vpack.c.b16 %v8791, %v8787
        %v8984 = vpack.c.b16 %v8792, %v8788
        %v8985 = vpack.c.b16 %v8797, %v8793
        %v8986 = vpack.c.b16 %v8798, %v8794
        %v8987 = vpack.c.b16 %v8799, %v8795
        %v8988 = vpack.c.b16 %v8800, %v8796
        %v8989 = vpack.c.b16 %v8805, %v8801
        %v8990 = vpack.c.b16 %v8806, %v8802
        %v8991 = vpack.c.b16 %v8807, %v8803
        %v8992 = vpack.c.b16 %v8808, %v8804
        %v8993 = vpack.c.b16 %v8813, %v8809
        %v8994 = vpack.c.b16 %v8814, %v8810
        %v8995 = vpack.c.b16 %v8815, %v8811
        %v8996 = vpack.c.b16 %v8816, %v8812
        %v8997 = vpack.c.b16 %v8821, %v8817
        %v8998 = vpack.c.b16 %v8822, %v8818
        %v8999 = vpack.c.b16 %v8823, %v8819
        %v9000 = vpack.c.b16 %v8824, %v8820
        %v9001 = vpack.c.b16 %v8829, %v8825
        %v9002 = vpack.c.b16 %v8830, %v8826
        %v9003 = vpack.c.b16 %v8831, %v8827
        %v9004 = vpack.c.b16 %v8832, %v8828
        %v9005 = vpack.c.b16 %v8837, %v8833
        %v9006 = vpack.c.b16 %v8838, %v8834
        %v9007 = vpack.c.b16 %v8839, %v8835
        %v9008 = vpack.c.b16 %v8840, %v8836
        %v9009 = vpack.c.b16 %v8845, %v8841
        %v9010 = vpack.c.b16 %v8846, %v8842
        %v9011 = vpack.c.b16 %v8847, %v8843
        %v9012 = vpack.c.b16 %v8848, %v8844
        %v9013 = vpack.c.b16 %v8853, %v8849
        %v9014 = vpack.c.b16 %v8854, %v8850
        %v9015 = vpack.c.b16 %v8855, %v8851
        %v9016 = vpack.c.b16 %v8856, %v8852
        %v9017 = vpack.c.b16 %v8861, %v8857
        %v9018 = vpack.c.b16 %v8862, %v8858
        %v9019 = vpack.c.b16 %v8863, %v8859
        %v9020 = vpack.c.b16 %v8864, %v8860
        %v9021 = vpack.c.b16 %v8869, %v8865
        %v9022 = vpack.c.b16 %v8870, %v8866
        %v9023 = vpack.c.b16 %v8871, %v8867
        %v9024 = vpack.c.b16 %v8872, %v8868
        %v9025 = vpack.c.b16 %v8877, %v8873
        %v9026 = vpack.c.b16 %v8878, %v8874
        %v9027 = vpack.c.b16 %v8879, %v8875
        %v9028 = vpack.c.b16 %v8880, %v8876
        %v9029 = vpack.c.b16 %v8885, %v8881
        %v9030 = vpack.c.b16 %v8886, %v8882
        %v9031 = vpack.c.b16 %v8887, %v8883
        %v9032 = vpack.c.b16 %v8888, %v8884
        %v9033 = vpack.c.b16 %v8893, %v8889
        %v9034 = vpack.c.b16 %v8894, %v8890
        %v9035 = vpack.c.b16 %v8895, %v8891
        %v9036 = vpack.c.b16 %v8896, %v8892
        %v9037 = vpack.c.b16 %v8901, %v8897
        %v9038 = vpack.c.b16 %v8902, %v8898
        %v9039 = vpack.c.b16 %v8903, %v8899
        %v9040 = vpack.c.b16 %v8904, %v8900
        %v9041 = vpack.c.b16 %v8909, %v8905
        %v9042 = vpack.c.b16 %v8910, %v8906
        %v9043 = vpack.c.b16 %v8911, %v8907
        %v9044 = vpack.c.b16 %v8912, %v8908
        %v9045 = vpack.c.b16 %v8917, %v8913
        %v9046 = vpack.c.b16 %v8918, %v8914
        %v9047 = vpack.c.b16 %v8919, %v8915
        %v9048 = vpack.c.b16 %v8920, %v8916
        %v9178 = vlaneseq
        %v9179 = vshrl.u32 %v9178, 7
        %v9180 = vsub.s32 0, %v9179
        %v9181 = vrot.slane %v8536, %v9180
        %v9182 = vlaneseq
        %v9183 = vshrl.u32 %v9182, 7
        %v9184 = vsub.s32 1, %v9183
        %v9185 = vrot.slane %v8536, %v9184
        %v9186 = vlaneseq
        %v9187 = vshrl.u32 %v9186, 7
        %v9188 = vsub.s32 2, %v9187
        %v9189 = vrot.slane %v8536, %v9188
        %v9190 = vlaneseq
        %v9191 = vshrl.u32 %v9190, 7
        %v9192 = vsub.s32 3, %v9191
        %v9193 = vrot.slane %v8536, %v9192
        %9198 = vmatprep.subr.bf16.mxu0 %v8922
        %9199 = vmatpush1.bf16.msra.mxu0 %v8921
        %9200 = vmatprep.subr.bf16.mxu0 %v8926
        %9201 = vmatpush1.bf16.msra.mxu0 %v8925
        %9202 = vmatprep.subr.bf16.mxu0 %v8930
        %9203 = vmatpush1.bf16.msra.mxu0 %v8929
        %9204 = vmatprep.subr.bf16.mxu0 %v8934
        %9205 = vmatpush1.bf16.msra.mxu0 %v8933
        %9206 = vmatprep.subr.bf16.mxu0 %v8938
        %9207 = vmatpush1.bf16.msra.mxu0 %v8937
        %9208 = vmatprep.subr.bf16.mxu0 %v8942
        %9209 = vmatpush1.bf16.msra.mxu0 %v8941
        %9210 = vmatprep.subr.bf16.mxu0 %v8946
        %9211 = vmatpush1.bf16.msra.mxu0 %v8945
        %9212 = vmatprep.subr.bf16.mxu0 %v8950
        %9213 = vmatpush1.bf16.msra.mxu0 %v8949
        %9214 = vmatprep.subr.bf16.mxu0 %v8954
        %9215 = vmatpush1.bf16.msra.mxu0 %v8953
        %9216 = vmatprep.subr.bf16.mxu0 %v8958
        %9217 = vmatpush1.bf16.msra.mxu0 %v8957
        %9218 = vmatprep.subr.bf16.mxu0 %v8962
        %9219 = vmatpush1.bf16.msra.mxu0 %v8961
        %9220 = vmatprep.subr.bf16.mxu0 %v8966
        %9221 = vmatpush1.bf16.msra.mxu0 %v8965
        %9222 = vmatprep.subr.bf16.mxu0 %v8970
        %9223 = vmatpush1.bf16.msra.mxu0 %v8969
        %9224 = vmatprep.subr.bf16.mxu0 %v8974
        %9225 = vmatpush1.bf16.msra.mxu0 %v8973
        %9226 = vmatprep.subr.bf16.mxu0 %v8978
        %9227 = vmatpush1.bf16.msra.mxu0 %v8977
        %9228 = vmatprep.subr.bf16.mxu0 %v8982
        %9229 = vmatpush1.bf16.msra.mxu0 %v8981
        %9230 = vmatprep.mubr.bf16.mxu0 %v8405
        %9231 = vmatmul.mubr.bf16.gmra.mrb[0].mxu0 %v8404
        %v9232 = vpop.f32.mrb[0].mxu0
        %v9233 = vadd.f32 %v9181, %v9232
        %v9234 = vpop.f32.mrb[0].mxu0
        %v9235 = vadd.f32 %v9185, %v9234
        %v9236 = vpop.f32.mrb[0].mxu0
        %v9237 = vpop.f32.mrb[0].mxu0
        %9238 = vdwg.mxu0
        %9239 = vmatprep.subr.bf16.mxu0 %v8986
        %9240 = vmatpush1.bf16.msra.mxu0 %v8985
        %9241 = vmatprep.subr.bf16.mxu0 %v8990
        %9242 = vmatpush1.bf16.msra.mxu0 %v8989
        %9243 = vmatprep.subr.bf16.mxu0 %v8994
        %9244 = vmatpush1.bf16.msra.mxu0 %v8993
        %9245 = vmatprep.subr.bf16.mxu0 %v8998
        %9246 = vmatpush1.bf16.msra.mxu0 %v8997
        %9247 = vmatprep.subr.bf16.mxu0 %v9002
        %9248 = vmatpush1.bf16.msra.mxu0 %v9001
        %9249 = vmatprep.subr.bf16.mxu0 %v9006
        %9250 = vmatpush1.bf16.msra.mxu0 %v9005
        %9251 = vmatprep.subr.bf16.mxu0 %v9010
        %9252 = vmatpush1.bf16.msra.mxu0 %v9009
        %9253 = vmatprep.subr.bf16.mxu0 %v9014
        %9254 = vmatpush1.bf16.msra.mxu0 %v9013
        %9255 = vmatprep.subr.bf16.mxu0 %v9018
        %9256 = vmatpush1.bf16.msra.mxu0 %v9017
        %9257 = vmatprep.subr.bf16.mxu0 %v9022
        %9258 = vmatpush1.bf16.msra.mxu0 %v9021
        %9259 = vmatprep.subr.bf16.mxu0 %v9026
        %9260 = vmatpush1.bf16.msra.mxu0 %v9025
        %9261 = vmatprep.subr.bf16.mxu0 %v9030
        %9262 = vmatpush1.bf16.msra.mxu0 %v9029
        %9263 = vmatprep.subr.bf16.mxu0 %v9034
        %9264 = vmatpush1.bf16.msra.mxu0 %v9033
        %9265 = vmatprep.subr.bf16.mxu0 %v9038
        %9266 = vmatpush1.bf16.msra.mxu0 %v9037
        %9267 = vmatprep.subr.bf16.mxu0 %v9042
        %9268 = vmatpush1.bf16.msra.mxu0 %v9041
        %9269 = vmatprep.subr.bf16.mxu0 %v9046
        %9270 = vmatpush1.bf16.msra.mxu0 %v9045
        %9271 = vmatprep.mubr.bf16.mxu0 %v8407
        %9272 = vmatmul.mubr.bf16.gmra.mrb[0].mxu0 %v8406
        %v9273 = vpop.f32.mrb[0].mxu0
        %v9274 = vadd.f32 %v9233, %v9273
        %v9275 = vpop.f32.mrb[0].mxu0
        %v9276 = vadd.f32 %v9235, %v9275
        %v9277 = vpop.f32.mrb[0].mxu0
        %v9278 = vpop.f32.mrb[0].mxu0
        %9279 = vdwg.mxu0
        %9280 = vmatprep.subr.bf16.mxu0 %v8924
        %9281 = vmatpush1.bf16.msra.mxu0 %v8923
        %9282 = vmatprep.subr.bf16.mxu0 %v8928
        %9283 = vmatpush1.bf16.msra.mxu0 %v8927
        %9284 = vmatprep.subr.bf16.mxu0 %v8932
        %9285 = vmatpush1.bf16.msra.mxu0 %v8931
        %9286 = vmatprep.subr.bf16.mxu0 %v8936
        %9287 = vmatpush1.bf16.msra.mxu0 %v8935
        %9288 = vmatprep.subr.bf16.mxu0 %v8940
        %9289 = vmatpush1.bf16.msra.mxu0 %v8939
        %9290 = vmatprep.subr.bf16.mxu0 %v8944
        %9291 = vmatpush1.bf16.msra.mxu0 %v8943
        %9292 = vmatprep.subr.bf16.mxu0 %v8948
        %9293 = vmatpush1.bf16.msra.mxu0 %v8947
        %9294 = vmatprep.subr.bf16.mxu0 %v8952
        %9295 = vmatpush1.bf16.msra.mxu0 %v8951
        %9296 = vmatprep.subr.bf16.mxu0 %v8956
        %9297 = vmatpush1.bf16.msra.mxu0 %v8955
        %9298 = vmatprep.subr.bf16.mxu0 %v8960
        %9299 = vmatpush1.bf16.msra.mxu0 %v8959
        %9300 = vmatprep.subr.bf16.mxu0 %v8964
        %9301 = vmatpush1.bf16.msra.mxu0 %v8963
        %9302 = vmatprep.subr.bf16.mxu0 %v8968
        %9303 = vmatpush1.bf16.msra.mxu0 %v8967
        %9304 = vmatprep.subr.bf16.mxu0 %v8972
        %9305 = vmatpush1.bf16.msra.mxu0 %v8971
        %9306 = vmatprep.subr.bf16.mxu0 %v8976
        %9307 = vmatpush1.bf16.msra.mxu0 %v8975
        %9308 = vmatprep.subr.bf16.mxu0 %v8980
        %9309 = vmatpush1.bf16.msra.mxu0 %v8979
        %9310 = vmatprep.subr.bf16.mxu0 %v8984
        %9311 = vmatpush1.bf16.msra.mxu0 %v8983
        %9312 = vmatprep.mubr.bf16.mxu0 %v8405
        %9313 = vmatmul.mubr.bf16.gmra.mrb[0].mxu0 %v8404
        %v9314 = vpop.f32.mrb[0].mxu0
        %v9315 = vadd.f32 %v9189, %v9314
        %v9316 = vpop.f32.mrb[0].mxu0
        %v9317 = vadd.f32 %v9193, %v9316
        %v9318 = vpop.f32.mrb[0].mxu0
        %v9319 = vpop.f32.mrb[0].mxu0
        %9320 = vdwg.mxu0
        %9321 = vmatprep.subr.bf16.mxu0 %v8988
        %9322 = vmatpush1.bf16.msra.mxu0 %v8987
        %9323 = vmatprep.subr.bf16.mxu0 %v8992
        %9324 = vmatpush1.bf16.msra.mxu0 %v8991
        %9325 = vmatprep.subr.bf16.mxu0 %v8996
        %9326 = vmatpush1.bf16.msra.mxu0 %v8995
        %9327 = vmatprep.subr.bf16.mxu0 %v9000
        %9328 = vmatpush1.bf16.msra.mxu0 %v8999
        %9329 = vmatprep.subr.bf16.mxu0 %v9004
        %9330 = vmatpush1.bf16.msra.mxu0 %v9003
        %9331 = vmatprep.subr.bf16.mxu0 %v9008
        %9332 = vmatpush1.bf16.msra.mxu0 %v9007
        %9333 = vmatprep.subr.bf16.mxu0 %v9012
        %9334 = vmatpush1.bf16.msra.mxu0 %v9011
        %9335 = vmatprep.subr.bf16.mxu0 %v9016
        %9336 = vmatpush1.bf16.msra.mxu0 %v9015
        %9337 = vmatprep.subr.bf16.mxu0 %v9020
        %9338 = vmatpush1.bf16.msra.mxu0 %v9019
        %9339 = vmatprep.subr.bf16.mxu0 %v9024
        %9340 = vmatpush1.bf16.msra.mxu0 %v9023
        %9341 = vmatprep.subr.bf16.mxu0 %v9028
        %9342 = vmatpush1.bf16.msra.mxu0 %v9027
        %9343 = vmatprep.subr.bf16.mxu0 %v9032
        %9344 = vmatpush1.bf16.msra.mxu0 %v9031
        %9345 = vmatprep.subr.bf16.mxu0 %v9036
        %9346 = vmatpush1.bf16.msra.mxu0 %v9035
        %9347 = vmatprep.subr.bf16.mxu0 %v9040
        %9348 = vmatpush1.bf16.msra.mxu0 %v9039
        %9349 = vmatprep.subr.bf16.mxu0 %v9044
        %9350 = vmatpush1.bf16.msra.mxu0 %v9043
        %9351 = vmatprep.subr.bf16.mxu0 %v9048
        %9352 = vmatpush1.bf16.msra.mxu0 %v9047
        %9353 = vmatprep.mubr.bf16.mxu0 %v8407
        %9354 = vmatmul.mubr.bf16.gmra.mrb[0].mxu0 %v8406
        %v9355 = vpop.f32.mrb[0].mxu0
        %v9356 = vadd.f32 %v9315, %v9355
        %v9357 = vpop.f32.mrb[0].mxu0
        %v9358 = vadd.f32 %v9317, %v9357
        %v9359 = vpop.f32.mrb[0].mxu0
        %v9360 = vpop.f32.mrb[0].mxu0
        %9361 = vdwg.mxu0
        %v9362 = vmax.f32 %v9274, 0.0
        %v9363 = vmax.f32 %v9276, 0.0
        %v9364 = vmax.f32 %v9356, 0.0
        %v9365 = vmax.f32 %v9358, 0.0
        %v9366 = vpack.c.bf16 %v9362, %v9362
        %v9367 = vpack.c.bf16 %v9363, %v9363
        %v9368 = vpack.c.bf16 %v9364, %v9364
        %v9369 = vpack.c.bf16 %v9365, %v9365
        %v9370 = vld [vmem:[#allocation12] sm:$0xf]
        %v9371 = vld [vmem:[#allocation12 + $0x4] sm:$0xf]
        %v9372 = vld [vmem:[#allocation12 + $0x8] sm:$0xf]
        %v9373 = vld [vmem:[#allocation12 + $0xc] sm:$0xf]
        %v9374 = vld [vmem:[#allocation12 + $0x10] sm:$0xf]
        %v9375 = vld [vmem:[#allocation12 + $0x14] sm:$0xf]
        %v9376 = vld [vmem:[#allocation12 + $0x18] sm:$0xf]
        %v9377 = vld [vmem:[#allocation12 + $0x1c] sm:$0xf]
        %v9378 = vld [vmem:[#allocation12 + $0x20] sm:$0xf]
        %v9379 = vld [vmem:[#allocation12 + $0x24] sm:$0xf]
        %v9380 = vld [vmem:[#allocation12 + $0x28] sm:$0xf]
        %v9381 = vld [vmem:[#allocation12 + $0x2c] sm:$0xf]
        %v9382 = vld [vmem:[#allocation12 + $0x30] sm:$0xf]
        %v9383 = vld [vmem:[#allocation12 + $0x34] sm:$0xf]
        %v9384 = vld [vmem:[#allocation12 + $0x38] sm:$0xf]
        %v9385 = vld [vmem:[#allocation12 + $0x3c] sm:$0xf]
        %v9386 = vld [vmem:[#allocation12 + $0x40] sm:$0xf]
        %v9387 = vld [vmem:[#allocation12 + $0x44] sm:$0xf]
        %v9388 = vld [vmem:[#allocation12 + $0x48] sm:$0xf]
        %v9389 = vld [vmem:[#allocation12 + $0x4c] sm:$0xf]
        %v9390 = vld [vmem:[#allocation12 + $0x50] sm:$0xf]
        %v9391 = vld [vmem:[#allocation12 + $0x54] sm:$0xf]
        %v9392 = vld [vmem:[#allocation12 + $0x58] sm:$0xf]
        %v9393 = vld [vmem:[#allocation12 + $0x5c] sm:$0xf]
        %v9394 = vld [vmem:[#allocation12 + $0x60] sm:$0xf]
        %v9395 = vld [vmem:[#allocation12 + $0x64] sm:$0xf]
        %v9396 = vld [vmem:[#allocation12 + $0x68] sm:$0xf]
        %v9397 = vld [vmem:[#allocation12 + $0x6c] sm:$0xf]
        %v9398 = vld [vmem:[#allocation12 + $0x70] sm:$0xf]
        %v9399 = vld [vmem:[#allocation12 + $0x74] sm:$0xf]
        %v9400 = vld [vmem:[#allocation12 + $0x78] sm:$0xf]
        %v9401 = vld [vmem:[#allocation12 + $0x7c] sm:$0xf]
        %v9402 = vld [vmem:[#allocation12 + $0x80] sm:$0xf]
        %v9403 = vld [vmem:[#allocation12 + $0x84] sm:$0xf]
        %v9404 = vld [vmem:[#allocation12 + $0x88] sm:$0xf]
        %v9405 = vld [vmem:[#allocation12 + $0x8c] sm:$0xf]
        %v9406 = vld [vmem:[#allocation12 + $0x90] sm:$0xf]
        %v9407 = vld [vmem:[#allocation12 + $0x94] sm:$0xf]
        %v9408 = vld [vmem:[#allocation12 + $0x98] sm:$0xf]
        %v9409 = vld [vmem:[#allocation12 + $0x9c] sm:$0xf]
        %v9410 = vld [vmem:[#allocation12 + $0xa0] sm:$0xf]
        %v9411 = vld [vmem:[#allocation12 + $0xa4] sm:$0xf]
        %v9412 = vld [vmem:[#allocation12 + $0xa8] sm:$0xf]
        %v9413 = vld [vmem:[#allocation12 + $0xac] sm:$0xf]
        %v9414 = vld [vmem:[#allocation12 + $0xb0] sm:$0xf]
        %v9415 = vld [vmem:[#allocation12 + $0xb4] sm:$0xf]
        %v9416 = vld [vmem:[#allocation12 + $0xb8] sm:$0xf]
        %v9417 = vld [vmem:[#allocation12 + $0xbc] sm:$0xf]
        %v9418 = vld [vmem:[#allocation12 + $0xc0] sm:$0xf]
        %v9419 = vld [vmem:[#allocation12 + $0xc4] sm:$0xf]
        %v9420 = vld [vmem:[#allocation12 + $0xc8] sm:$0xf]
        %v9421 = vld [vmem:[#allocation12 + $0xcc] sm:$0xf]
        %v9422 = vld [vmem:[#allocation12 + $0xd0] sm:$0xf]
        %v9423 = vld [vmem:[#allocation12 + $0xd4] sm:$0xf]
        %v9424 = vld [vmem:[#allocation12 + $0xd8] sm:$0xf]
        %v9425 = vld [vmem:[#allocation12 + $0xdc] sm:$0xf]
        %v9426 = vld [vmem:[#allocation12 + $0xe0] sm:$0xf]
        %v9427 = vld [vmem:[#allocation12 + $0xe4] sm:$0xf]
        %v9428 = vld [vmem:[#allocation12 + $0xe8] sm:$0xf]
        %v9429 = vld [vmem:[#allocation12 + $0xec] sm:$0xf]
        %v9430 = vld [vmem:[#allocation12 + $0xf0] sm:$0xf]
        %v9431 = vld [vmem:[#allocation12 + $0xf4] sm:$0xf]
        %v9432 = vld [vmem:[#allocation12 + $0xf8] sm:$0xf]
        %v9433 = vld [vmem:[#allocation12 + $0xfc] sm:$0xf]
        %v9434 = vld [vmem:[#allocation14] sm:$0x1]
        %v9499 = vunpack.c.l.b16 %v9370
        %v9500 = vunpack.c.l.b16 %v9371
        %v9501 = vunpack.c.l.b16 %v9372
        %v9502 = vunpack.c.l.b16 %v9373
        %v9503 = vunpack.c.l.b16 %v9374
        %v9504 = vunpack.c.l.b16 %v9375
        %v9505 = vunpack.c.l.b16 %v9376
        %v9506 = vunpack.c.l.b16 %v9377
        %v9507 = vunpack.c.l.b16 %v9378
        %v9508 = vunpack.c.l.b16 %v9379
        %v9509 = vunpack.c.l.b16 %v9380
        %v9510 = vunpack.c.l.b16 %v9381
        %v9511 = vunpack.c.l.b16 %v9382
        %v9512 = vunpack.c.l.b16 %v9383
        %v9513 = vunpack.c.l.b16 %v9384
        %v9514 = vunpack.c.l.b16 %v9385
        %v9515 = vunpack.c.l.b16 %v9386
        %v9516 = vunpack.c.l.b16 %v9387
        %v9517 = vunpack.c.l.b16 %v9388
        %v9518 = vunpack.c.l.b16 %v9389
        %v9519 = vunpack.c.l.b16 %v9390
        %v9520 = vunpack.c.l.b16 %v9391
        %v9521 = vunpack.c.l.b16 %v9392
        %v9522 = vunpack.c.l.b16 %v9393
        %v9523 = vunpack.c.l.b16 %v9394
        %v9524 = vunpack.c.l.b16 %v9395
        %v9525 = vunpack.c.l.b16 %v9396
        %v9526 = vunpack.c.l.b16 %v9397
        %v9527 = vunpack.c.l.b16 %v9398
        %v9528 = vunpack.c.l.b16 %v9399
        %v9529 = vunpack.c.l.b16 %v9400
        %v9530 = vunpack.c.l.b16 %v9401
        %v9531 = vunpack.c.l.b16 %v9402
        %v9532 = vunpack.c.l.b16 %v9403
        %v9533 = vunpack.c.l.b16 %v9404
        %v9534 = vunpack.c.l.b16 %v9405
        %v9535 = vunpack.c.l.b16 %v9406
        %v9536 = vunpack.c.l.b16 %v9407
        %v9537 = vunpack.c.l.b16 %v9408
        %v9538 = vunpack.c.l.b16 %v9409
        %v9539 = vunpack.c.l.b16 %v9410
        %v9540 = vunpack.c.l.b16 %v9411
        %v9541 = vunpack.c.l.b16 %v9412
        %v9542 = vunpack.c.l.b16 %v9413
        %v9543 = vunpack.c.l.b16 %v9414
        %v9544 = vunpack.c.l.b16 %v9415
        %v9545 = vunpack.c.l.b16 %v9416
        %v9546 = vunpack.c.l.b16 %v9417
        %v9547 = vunpack.c.l.b16 %v9418
        %v9548 = vunpack.c.l.b16 %v9419
        %v9549 = vunpack.c.l.b16 %v9420
        %v9550 = vunpack.c.l.b16 %v9421
        %v9551 = vunpack.c.l.b16 %v9422
        %v9552 = vunpack.c.l.b16 %v9423
        %v9553 = vunpack.c.l.b16 %v9424
        %v9554 = vunpack.c.l.b16 %v9425
        %v9555 = vunpack.c.l.b16 %v9426
        %v9556 = vunpack.c.l.b16 %v9427
        %v9557 = vunpack.c.l.b16 %v9428
        %v9558 = vunpack.c.l.b16 %v9429
        %v9559 = vunpack.c.l.b16 %v9430
        %v9560 = vunpack.c.l.b16 %v9431
        %v9561 = vunpack.c.l.b16 %v9432
        %v9562 = vunpack.c.l.b16 %v9433
        %v9563 = vpack.c.b16 %v9500, %v9499
        %v9564 = vpack.c.b16 %v9502, %v9501
        %v9565 = vpack.c.b16 %v9504, %v9503
        %v9566 = vpack.c.b16 %v9506, %v9505
        %v9567 = vpack.c.b16 %v9508, %v9507
        %v9568 = vpack.c.b16 %v9510, %v9509
        %v9569 = vpack.c.b16 %v9512, %v9511
        %v9570 = vpack.c.b16 %v9514, %v9513
        %v9571 = vpack.c.b16 %v9516, %v9515
        %v9572 = vpack.c.b16 %v9518, %v9517
        %v9573 = vpack.c.b16 %v9520, %v9519
        %v9574 = vpack.c.b16 %v9522, %v9521
        %v9575 = vpack.c.b16 %v9524, %v9523
        %v9576 = vpack.c.b16 %v9526, %v9525
        %v9577 = vpack.c.b16 %v9528, %v9527
        %v9578 = vpack.c.b16 %v9530, %v9529
        %v9579 = vpack.c.b16 %v9532, %v9531
        %v9580 = vpack.c.b16 %v9534, %v9533
        %v9581 = vpack.c.b16 %v9536, %v9535
        %v9582 = vpack.c.b16 %v9538, %v9537
        %v9583 = vpack.c.b16 %v9540, %v9539
        %v9584 = vpack.c.b16 %v9542, %v9541
        %v9585 = vpack.c.b16 %v9544, %v9543
        %v9586 = vpack.c.b16 %v9546, %v9545
        %v9587 = vpack.c.b16 %v9548, %v9547
        %v9588 = vpack.c.b16 %v9550, %v9549
        %v9589 = vpack.c.b16 %v9552, %v9551
        %v9590 = vpack.c.b16 %v9554, %v9553
        %v9591 = vpack.c.b16 %v9556, %v9555
        %v9592 = vpack.c.b16 %v9558, %v9557
        %v9593 = vpack.c.b16 %v9560, %v9559
        %v9594 = vpack.c.b16 %v9562, %v9561
        %9627 = vmatprep.subr.bf16.mxu0 0
        %9628 = vmatpush1.bf16.msra.mxu0 %v9563
        %9629 = vmatprep.subr.bf16.mxu0 0
        %9630 = vmatpush1.bf16.msra.mxu0 %v9564
        %9631 = vmatprep.subr.bf16.mxu0 0
        %9632 = vmatpush1.bf16.msra.mxu0 %v9565
        %9633 = vmatprep.subr.bf16.mxu0 0
        %9634 = vmatpush1.bf16.msra.mxu0 %v9566
        %9635 = vmatprep.subr.bf16.mxu0 0
        %9636 = vmatpush1.bf16.msra.mxu0 %v9567
        %9637 = vmatprep.subr.bf16.mxu0 0
        %9638 = vmatpush1.bf16.msra.mxu0 %v9568
        %9639 = vmatprep.subr.bf16.mxu0 0
        %9640 = vmatpush1.bf16.msra.mxu0 %v9569
        %9641 = vmatprep.subr.bf16.mxu0 0
        %9642 = vmatpush1.bf16.msra.mxu0 %v9570
        %9643 = vmatprep.subr.bf16.mxu0 0
        %9644 = vmatpush1.bf16.msra.mxu0 %v9571
        %9645 = vmatprep.subr.bf16.mxu0 0
        %9646 = vmatpush1.bf16.msra.mxu0 %v9572
        %9647 = vmatprep.subr.bf16.mxu0 0
        %9648 = vmatpush1.bf16.msra.mxu0 %v9573
        %9649 = vmatprep.subr.bf16.mxu0 0
        %9650 = vmatpush1.bf16.msra.mxu0 %v9574
        %9651 = vmatprep.subr.bf16.mxu0 0
        %9652 = vmatpush1.bf16.msra.mxu0 %v9575
        %9653 = vmatprep.subr.bf16.mxu0 0
        %9654 = vmatpush1.bf16.msra.mxu0 %v9576
        %9655 = vmatprep.subr.bf16.mxu0 0
        %9656 = vmatpush1.bf16.msra.mxu0 %v9577
        %9657 = vmatprep.subr.bf16.mxu0 0
        %9658 = vmatpush1.bf16.msra.mxu0 %v9578
        %9659 = vmatprep.mubr.bf16.mxu0 %v9367
        %9660 = vmatmul.mubr.bf16.gmra.mrb[0].mxu0 %v9366
        %v9661 = vpop.f32.mrb[0].mxu0
        %v9662 = vadd.f32 %v9434, %v9661
        %v9663 = vpop.f32.mrb[0].mxu0
        %v9664 = vpop.f32.mrb[0].mxu0
        %v9665 = vpop.f32.mrb[0].mxu0
        %9666 = vdwg.mxu0
        %9667 = vmatprep.subr.bf16.mxu0 0
        %9668 = vmatpush1.bf16.msra.mxu0 %v9579
        %9669 = vmatprep.subr.bf16.mxu0 0
        %9670 = vmatpush1.bf16.msra.mxu0 %v9580
        %9671 = vmatprep.subr.bf16.mxu0 0
        %9672 = vmatpush1.bf16.msra.mxu0 %v9581
        %9673 = vmatprep.subr.bf16.mxu0 0
        %9674 = vmatpush1.bf16.msra.mxu0 %v9582
        %9675 = vmatprep.subr.bf16.mxu0 0
        %9676 = vmatpush1.bf16.msra.mxu0 %v9583
        %9677 = vmatprep.subr.bf16.mxu0 0
        %9678 = vmatpush1.bf16.msra.mxu0 %v9584
        %9679 = vmatprep.subr.bf16.mxu0 0
        %9680 = vmatpush1.bf16.msra.mxu0 %v9585
        %9681 = vmatprep.subr.bf16.mxu0 0
        %9682 = vmatpush1.bf16.msra.mxu0 %v9586
        %9683 = vmatprep.subr.bf16.mxu0 0
        %9684 = vmatpush1.bf16.msra.mxu0 %v9587
        %9685 = vmatprep.subr.bf16.mxu0 0
        %9686 = vmatpush1.bf16.msra.mxu0 %v9588
        %9687 = vmatprep.subr.bf16.mxu0 0
        %9688 = vmatpush1.bf16.msra.mxu0 %v9589
        %9689 = vmatprep.subr.bf16.mxu0 0
        %9690 = vmatpush1.bf16.msra.mxu0 %v9590
        %9691 = vmatprep.subr.bf16.mxu0 0
        %9692 = vmatpush1.bf16.msra.mxu0 %v9591
        %9693 = vmatprep.subr.bf16.mxu0 0
        %9694 = vmatpush1.bf16.msra.mxu0 %v9592
        %9695 = vmatprep.subr.bf16.mxu0 0
        %9696 = vmatpush1.bf16.msra.mxu0 %v9593
        %9697 = vmatprep.subr.bf16.mxu0 0
        %9698 = vmatpush1.bf16.msra.mxu0 %v9594
        %9699 = vmatprep.mubr.bf16.mxu0 %v9369
        %9700 = vmatmul.mubr.bf16.gmra.mrb[0].mxu0 %v9368
        %v9701 = vpop.f32.mrb[0].mxu0
        %v9702 = vadd.f32 %v9662, %v9701
        %v9703 = vpop.f32.mrb[0].mxu0
        %v9704 = vpop.f32.mrb[0].mxu0
        %v9705 = vpop.f32.mrb[0].mxu0
        %9706 = vdwg.mxu0
        %9707 = vst [vmem:[%s420] sm:$0x1] %v9702
        %s9708 = sand.u32 %s229, 1
        %s9709 = scalar_lea.sflag [#allocation5], %s9708
        %s9710 = sand.u32 %s229, 1
        %s9711 = scalar_lea.vmem [#allocation15], %s9710
        // Predicated region
        $region85: #{forward.1} parent=55 // pred_check
          %p9712 = pneg %p239
        $region86: #{forward.1} parent=55 // pred_check_branch
          %9714 = sbr.rel (%p9712) target = $region88
        $region87: #{forward.1} parent=55 // pred_region
          %s9716 = ssub.s32 16, 16
          %9717 = vsyncadd %s9709, %s9716
          %s9718 = smul.addr %s27, 16
          %s9719 = scalar_lea.hbm %s9, %s9718
          %s9721 = sshll.u32 %s9711, 4
          %s9722 = int_to_ptr.vmem [resolvable:$true] %s9721
          %9724 = dma.vmem_to_hbm [thread:$0]  %s9722, 16, %s9719, %s9709
        $region88: #{forward.1} parent=55 // pred_fallthru
          _
      $region56: #{forward.1} parent=5 // pred_fallthru
        _
      %p9725 = scmp.le.s32.totalorder 2, %s22
      // Predicated region
      $region89: #{forward.1} parent=5 // pred_check
        %p9726 = pneg %p9725
      $region90: #{forward.1} parent=5 // pred_check_branch
        %9728 = sbr.rel (%p9726) target = $region92
      $region91: #{forward.1} parent=5 // pred_region
        %s9729 = ssub.s32 %s22, 2
        // Predicated region
        $region93: #{forward.1} parent=91 // pred_check
          %p9730 = pneg %p245
        $region94: #{forward.1} parent=91 // pred_check_branch
          %9732 = sbr.rel (%p9730) target = $region96
        $region95: #{forward.1} parent=91 // pred_region
          %s9733 = sand.u32 %s230, 1
          %s9734 = scalar_lea.sflag [#allocation5], %s9733
          %s9735 = sand.u32 %s230, 1
          %s9736 = scalar_lea.vmem [#allocation15], %s9735
          %9737 = dma.done %s9734, 16
        $region96: #{forward.1} parent=91 // pred_fallthru
          _
      $region92: #{forward.1} parent=5 // pred_fallthru
        _
    $region6: #{forward.1} parent=1 // loop_footer
      %s26 = sadd.s32 1, %s22
    $region7: #{forward.1} parent=1 // loop_footer_branch
      %21 = sbr.rel target = $region3
    $region8: #{forward.1} parent=1 // loop_exit
      _
    %9738 = vsyncpa [#allocation4], 1
    %s9739 = scalar_lea.sflag [#allocation4], 1
    %9740 = vsyncpa %s9739, 1
    %9741 = vsyncpa [#allocation7], 1
    %9742 = vsyncpa [#allocation10], 1
    %9743 = vsyncpa [#allocation13], 1
    %9744 = vsyncpa [#allocation5], 1
    %s9745 = scalar_lea.sflag [#allocation5], 1
    %9746 = vsyncpa %s9745, 1

</llo_original>
